<compile_context>
chip_gen: v6e
topology: v6e:2x2x1
jax: 0.10.0
libtpu: 0.0.40
codegen_flags: <defaults>
</compile_context>

<pallas_src>
import functools

import jax
import jax.numpy as jnp
from jax.experimental import pallas as pl
from jax.experimental.pallas import tpu as pltpu


# ----------------------------------------------------------------------------------
# helpers
# ----------------------------------------------------------------------------------
def _round_up(x, m):
    return ((x + m - 1) // m) * m


def _pick_tile(rows, max_tile=1024):
    """Row tile: multiple of 8, capped, and chosen so the grid has >=2 steps when possible
    (keeps both v7x TensorCores busy; on v5e/v6e it just enables DMA/compute overlap)."""
    rows8 = _round_up(rows, 8)
    t = min(max_tile, rows8)
    if t >= rows8 and rows8 > 8:
        t = _round_up((rows8 + 1) // 2, 8)
    return t


def _pack_factor(rows, minor):
    """Tokens packed per 128-lane row (lane-dense layout) when shapes allow."""
    if minor < 128 and 128 % minor == 0 and rows % (128 // minor) == 0:
        return 128 // minor
    return 1


def _compiler_params(n_grid_dims):
    return pltpu.CompilerParams(
        dimension_semantics=("parallel",) * n_grid_dims,
        vmem_limit_bytes=32 * 1024 * 1024,   # safe on v5e/v6e (128 MiB) and v7x (64 MiB)
    )


def _block_diag(w, pack):
    w = w.astype(jnp.float32)
    if pack == 1:
        return w
    return jnp.kron(jnp.eye(pack, dtype=jnp.float32), w)


def _erf(x):
    # Abramowitz & Stegun 7.1.26 (|err| < 1.5e-7): exact-erf GELU semantics built from ops
    # with guaranteed Mosaic lowerings (exp/abs/where), so the gate can be fused in-kernel.
    a1, a2, a3, a4, a5 = 0.254829592, -0.284496736, 1.421413741, -1.453152027, 1.061405429
    p = 0.3275911
    sgn = jnp.where(x >= 0.0, 1.0, -1.0)
    ax = jnp.abs(x)
    t = 1.0 / (1.0 + p * ax)
    poly = ((((a5 * t + a4) * t + a3) * t + a2) * t + a1) * t
    return sgn * (1.0 - poly * jnp.exp(-ax * ax))


def _gelu_exact(x):
    return 0.5 * x * (1.0 + _erf(x * 0.7071067811865476))


# ----------------------------------------------------------------------------------
# 1. WithBias_LayerNorm fused with the following 1x1 conv (lane-packed, block-diagonal)
# ----------------------------------------------------------------------------------
def _ln_matmul_kernel(x_ref, m_ref, w_ref, b_ref, o_ref, *, eps):
    x = x_ref[...].astype(jnp.float32)                        # (tm, cp) lane-dense
    m = m_ref[...]                                            # (cp, cp) block-diag averaging
    mu = jnp.dot(x, m, preferred_element_type=jnp.float32)    # per-token mean, broadcast over lanes
    xc = x - mu
    var = jnp.dot(xc * xc, m, preferred_element_type=jnp.float32)
    xn = xc * jax.lax.rsqrt(var + eps)
    acc = jnp.dot(xn, w_ref[...], preferred_element_type=jnp.float32)
    o_ref[...] = (acc + b_ref[...]).astype(o_ref.dtype)


def ln_matmul(x_tok, ln_w, ln_b, w_mat, conv_b, *, eps=1e-5):
    """LayerNorm over channels (biased var) followed by a 1x1 conv, in one kernel.

    x_tok: (R, C); ln_w/ln_b: (C,); w_mat: (C, Cout); conv_b: (Cout,).  Returns (R, Cout).
    """
    r, c = x_tok.shape
    cout = w_mat.shape[1]
    pack = _pack_factor(r, c)
    rp, cp = r // pack, pack * c
    xp = x_tok.reshape(rp, cp)

    # block-diagonal per-token averaging matrix (one MXU pass per statistic)
    m = _block_diag(jnp.full((c, c), 1.0 / float(c), jnp.float32), pack)
    # fold the LN affine into the conv: (xn*g + b) @ W + cb == xn @ (diag(g) W) + (b @ W + cb)
    w_eff = ln_w.astype(jnp.float32)[:, None] * w_mat.astype(jnp.float32)
    b_eff = ln_b.astype(jnp.float32) @ w_mat.astype(jnp.float32) + conv_b.astype(jnp.float32)
    w_blk = _block_diag(w_eff, pack)                           # (cp, pack*cout)
    b_blk = jnp.tile(b_eff.reshape(1, cout), (1, pack))        # (1, pack*cout)

    tm = _pick_tile(rp)
    rp_pad = _round_up(rp, tm)
    if rp_pad != rp:
        xp = jnp.pad(xp, ((0, rp_pad - rp), (0, 0)))

    nout = pack * cout
    out = pl.pallas_call(
        functools.partial(_ln_matmul_kernel, eps=eps),
        out_shape=jax.ShapeDtypeStruct((rp_pad, nout), x_tok.dtype),
        grid=(rp_pad // tm,),
        in_specs=[
            pl.BlockSpec((tm, cp), lambda i: (i, 0)),
            pl.BlockSpec((cp, cp), lambda i: (0, 0)),
            pl.BlockSpec((cp, nout), lambda i: (0, 0)),
            pl.BlockSpec((1, nout), lambda i: (0, 0)),
        ],
        out_specs=pl.BlockSpec((tm, nout), lambda i: (i, 0)),
        compiler_params=_compiler_params(1),
    )(xp, m, w_blk, b_blk)
    return out[:rp].reshape(r, cout)


# ----------------------------------------------------------------------------------
# 2. 3x3 depthwise conv (padding=1), channels-last, width shifts hoisted
# ----------------------------------------------------------------------------------
def _dwconv3_kernel(x_ref, w_ref, b_ref, o_ref):
    h, w_sz, ch = o_ref.shape
    x = x_ref[...].astype(jnp.float32)                         # (h+2, w+2, ch)
    wgt = w_ref[...].astype(jnp.float32)                       # (3, 3, ch)
    # Hoist the sublane-misaligned width shifts out of the tap loop: 3 shifted copies,
    # then 9 cheap row-offset multiply-accumulates.
    cols = [x[:, kx:kx + w_sz, :] for kx in range(3)]
    acc = cols[0][0:h] * wgt[0:1, 0:1, :]
    for ky in range(3):
        for kx in range(3):
            if ky == 0 and kx == 0:
                continue
            acc = acc + cols[kx][ky:ky + h] * wgt[ky:ky + 1, kx:kx + 1, :]
    o_ref[...] = (acc + b_ref[...].astype(jnp.float32)).astype(o_ref.dtype)


def depthwise_conv3x3(x_img, weight, bias):
    """x_img: (B, H, W, Ch); weight: (3, 3, Ch); bias: (Ch,)."""
    # TODO(synk): for production-sized images, tile over H rows (1-row halo) and 128-channel
    # blocks instead of one whole image per grid step (v7x has only 64 MiB VMEM).
    b, h, w, ch = x_img.shape
    x_pad = jnp.pad(x_img, ((0, 0), (1, 1), (1, 1), (0, 0)))
    return pl.pallas_call(
        _dwconv3_kernel,
        out_shape=jax.ShapeDtypeStruct((b, h, w, ch), x_img.dtype),
        grid=(b,),
        in_specs=[
            pl.BlockSpec((None, h + 2, w + 2, ch), lambda i: (i, 0, 0, 0)),
            pl.BlockSpec((3, 3, ch), lambda i: (0, 0, 0)),
            pl.BlockSpec((1, 1, ch), lambda i: (0, 0, 0)),
        ],
        out_specs=pl.BlockSpec((None, h, w, ch), lambda i: (i, 0, 0, 0)),
        compiler_params=_compiler_params(1),
    )(x_pad, weight, bias.reshape(1, 1, ch))


# ----------------------------------------------------------------------------------
# 3. Channel attention + project_out + residual, token-major, all heads per grid step
# ----------------------------------------------------------------------------------
def _attention_kernel(t_ref, qkv_ref, res_ref, wp_ref, bp_ref, o_ref, *, num_heads, dim):
    ch = dim // num_heads
    wp = wp_ref[...].astype(jnp.float32)                                        # (C, C)
    acc = res_ref[...].astype(jnp.float32) + bp_ref[...].astype(jnp.float32)    # residual + proj bias
    for hh in range(num_heads):
        q = qkv_ref[:, hh * ch:(hh + 1) * ch].astype(jnp.float32)               # (HW, ch)
        k = qkv_ref[:, dim + hh * ch:dim + (hh + 1) * ch].astype(jnp.float32)
        v = qkv_ref[:, 2 * dim + hh * ch:2 * dim + (hh + 1) * ch].astype(jnp.float32)
        # F.normalize(dim=-1): scale each channel by rsqrt of its token-sum of squares
        inv_q = jax.lax.rsqrt(jnp.maximum(jnp.sum(q * q, axis=0, keepdims=True), 1e-24))
        inv_k = jax.lax.rsqrt(jnp.maximum(jnp.sum(k * k, axis=0, keepdims=True), 1e-24))
        qn = q * inv_q
        kn = k * inv_k
        s = jax.lax.dot_general(qn, kn, (((0,), (0,)), ((), ())),
                                preferred_element_type=jnp.float32)              # (ch, ch)
        s = s * t_ref[hh]                                                        # per-head temperature
        mx = jnp.max(s, axis=-1, keepdims=True)
        e = jnp.exp(s - mx)
        p_attn = e * pl.reciprocal(jnp.sum(e, axis=-1, keepdims=True), approx=True)
        # token-major attention output: out[x, c] = sum_d v[x, d] * p_attn[c, d]
        out_h = jax.lax.dot_general(v, p_attn, (((1,), (1,)), ((), ())),
                                    preferred_element_type=jnp.float32)          # (HW, ch)
        # fused project_out contribution of this head
        acc = acc + jnp.dot(out_h, wp[hh * ch:(hh + 1) * ch, :],
                            preferred_element_type=jnp.float32)
    o_ref[...] = acc.astype(o_ref.dtype)


def attention_proj(qkv_tok, res_tok, w_proj, b_proj, temperature, *, num_heads):
    """qkv_tok: (B, HW, 3C) token-major; res_tok: (B, HW, C). Returns res + project_out(attn)."""
    b, hw, _ = qkv_tok.shape
    c = res_tok.shape[-1]
    return pl.pallas_call(
        functools.partial(_attention_kernel, num_heads=num_heads, dim=c),
        out_shape=jax.ShapeDtypeStruct((b, hw, c), res_tok.dtype),
        grid=(b,),
        in_specs=[
            pl.BlockSpec(memory_space=pltpu.MemorySpace.SMEM),          # temperature (NH,)
            pl.BlockSpec((None, hw, 3 * c), lambda i: (i, 0, 0)),
            pl.BlockSpec((None, hw, c), lambda i: (i, 0, 0)),
            pl.BlockSpec((c, c), lambda i: (0, 0)),
            pl.BlockSpec((1, c), lambda i: (0, 0)),
        ],
        out_specs=pl.BlockSpec((None, hw, c), lambda i: (i, 0, 0)),
        compiler_params=_compiler_params(1),
    )(temperature, qkv_tok, res_tok, w_proj, b_proj.reshape(1, c))


# ----------------------------------------------------------------------------------
# 4. GELU gate + project_out + residual (lane-packed, block-diagonal weight)
# ----------------------------------------------------------------------------------
def _ffn_tail_kernel(x_ref, r_ref, w_ref, b_ref, o_ref, *, hidden, pack):
    x = x_ref[...].astype(jnp.float32)                         # (tm, pack*2*hidden)
    parts = []
    for j in range(pack):
        base = j * 2 * hidden
        g1 = x[:, base:base + hidden]
        g2 = x[:, base + hidden:base + 2 * hidden]
        parts.append(_gelu_exact(g1) * g2)
    gated = parts[0] if pack == 1 else jnp.concatenate(parts, axis=1)   # (tm, pack*hidden)
    acc = jnp.dot(gated, w_ref[...], preferred_element_type=jnp.float32)
    o_ref[...] = (acc + b_ref[...] + r_ref[...].astype(jnp.float32)).astype(o_ref.dtype)


def ffn_tail(pin_tok, res_tok, w_pout, b_pout):
    """pin_tok: (R, 2*hidden) dwconv output; res_tok: (R, C). Returns res + pout(gelu(g1)*g2)."""
    r, two_hidden = pin_tok.shape
    hidden = two_hidden // 2
    c = w_pout.shape[1]
    pack = _pack_factor(r, c)
    rp = r // pack
    xin = pin_tok.reshape(rp, pack * two_hidden)
    res = res_tok.reshape(rp, pack * c)
    w_blk = _block_diag(w_pout, pack)                           # (pack*hidden, pack*c)
    b_blk = jnp.tile(b_pout.reshape(1, c).astype(jnp.float32), (1, pack))

    tm = _pick_tile(rp)
    rp_pad = _round_up(rp, tm)
    if rp_pad != rp:
        xin = jnp.pad(xin, ((0, rp_pad - rp), (0, 0)))
        res = jnp.pad(res, ((0, rp_pad - rp), (0, 0)))

    out = pl.pallas_call(
        functools.partial(_ffn_tail_kernel, hidden=hidden, pack=pack),
        out_shape=jax.ShapeDtypeStruct((rp_pad, pack * c), pin_tok.dtype),
        grid=(rp_pad // tm,),
        in_specs=[
            pl.BlockSpec((tm, pack * two_hidden), lambda i: (i, 0)),
            pl.BlockSpec((tm, pack * c), lambda i: (i, 0)),
            pl.BlockSpec((pack * hidden, pack * c), lambda i: (0, 0)),
            pl.BlockSpec((1, pack * c), lambda i: (0, 0)),
        ],
        out_specs=pl.BlockSpec((tm, pack * c), lambda i: (i, 0)),
        compiler_params=_compiler_params(1),
    )(xin, res, w_blk, b_blk)
    return out[:rp].reshape(r, c)


# ----------------------------------------------------------------------------------
# TransformerBlock forward (Pallas kernels + minimal reshape glue)
# ----------------------------------------------------------------------------------
def transformer_block_pallas(x, p, *, num_heads):
    b, c, h, w = x.shape
    hw = h * w
    r = b * hw
    hidden = p["pout_w"].shape[0]

    xt = x.transpose(0, 2, 3, 1).reshape(r, c)                 # NCHW -> token-major (only layout op)

    # --- attention branch: x + project_out(attn(norm1(x))) ---
    qkv_tok = ln_matmul(xt, p["ln1_w"], p["ln1_b"], p["qkv_w"], p["qkv_b"])        # fused LN + 1x1
    qkv_img = depthwise_conv3x3(qkv_tok.reshape(b, h, w, 3 * c), p["qkv_dw_w"], p["qkv_dw_b"])
    x1 = attention_proj(qkv_img.reshape(b, hw, 3 * c), xt.reshape(b, hw, c),
                        p["proj_w"], p["proj_b"], p["temperature"], num_heads=num_heads)
    x1_tok = x1.reshape(r, c)

    # --- FFN branch: x1 + project_out(gelu(g1) * g2) ---
    pin_tok = ln_matmul(x1_tok, p["ln2_w"], p["ln2_b"], p["pin_w"], p["pin_b"])    # fused LN + 1x1
    pin_img = depthwise_conv3x3(pin_tok.reshape(b, h, w, 2 * hidden), p["pin_dw_w"], p["pin_dw_b"])
    x2_tok = ffn_tail(pin_img.reshape(r, 2 * hidden), x1_tok, p["pout_w"], p["pout_b"])

    return x2_tok.reshape(b, h, w, c).transpose(0, 3, 1, 2)    # back to NCHW


# ----------------------------------------------------------------------------------
# Pure-JAX reference (mirrors the PyTorch module math)
# ----------------------------------------------------------------------------------
def transformer_block_ref(x, p, *, num_heads, eps=1e-5):
    hp = jax.lax.Precision.HIGHEST
    b, c, h, w = x.shape
    hw = h * w
    hidden = p["pout_w"].shape[0]

    def ln(t, wt, bs):
        mu = t.mean(-1, keepdims=True)
        var = ((t - mu) ** 2).mean(-1, keepdims=True)          # unbiased=False
        return (t - mu) / jnp.sqrt(var + eps) * wt + bs

    def pw(t, wt, bs):
        return jnp.dot(t, wt, precision=hp) + bs

    def dw(img, wt, bs):
        pad = jnp.pad(img, ((0, 0), (1, 1), (1, 1), (0, 0)))
        acc = jnp.zeros_like(img)
        for ky in range(3):
            for kx in range(3):
                acc = acc + pad[:, ky:ky + h, kx:kx + w, :] * wt[ky, kx]
        return acc + bs

    xt = x.transpose(0, 2, 3, 1).reshape(b * hw, c)

    ln1 = ln(xt, p["ln1_w"], p["ln1_b"])
    qkv = dw(pw(ln1, p["qkv_w"], p["qkv_b"]).reshape(b, h, w, 3 * c),
             p["qkv_dw_w"], p["qkv_dw_b"])
    qkv = qkv.transpose(0, 3, 1, 2).reshape(b, 3 * c, hw)
    q, k, v = jnp.split(qkv, 3, axis=1)
    ch_head = c // num_heads
    q = q.reshape(b, num_heads, ch_head, hw)
    k = k.reshape(b, num_heads, ch_head, hw)
    v = v.reshape(b, num_heads, ch_head, hw)
    qn = q / jnp.maximum(jnp.sqrt(jnp.sum(q * q, -1, keepdims=True)), 1e-12)
    kn = k / jnp.maximum(jnp.sqrt(jnp.sum(k * k, -1, keepdims=True)), 1e-12)
    attn = jnp.einsum("bhcx,bhdx->bhcd", qn, kn, precision=hp)
    attn = attn * p["temperature"][None, :, None, None]
    attn = jax.nn.softmax(attn, axis=-1)
    out = jnp.einsum("bhcd,bhdx->bhcx", attn, v, precision=hp)
    out_t = out.reshape(b, c, hw).transpose(0, 2, 1).reshape(b * hw, c)
    x1 = xt + pw(out_t, p["proj_w"], p["proj_b"])

    ln2 = ln(x1, p["ln2_w"], p["ln2_b"])
    pin = dw(pw(ln2, p["pin_w"], p["pin_b"]).reshape(b, h, w, 2 * hidden),
             p["pin_dw_w"], p["pin_dw_b"])
    g1, g2 = pin[..., :hidden], pin[..., hidden:]
    gated = (jax.nn.gelu(g1, approximate=False) * g2).reshape(b * hw, hidden)
    x2 = x1 + pw(gated, p["pout_w"], p["pout_b"])

    return x2.reshape(b, h, w, c).transpose(0, 3, 1, 2)


if __name__ == "__main__":
    # Shapes consistent with the module: dim=32, num_heads=2, ffn_expansion_factor=2,
    # bias=False, LayerNorm_type='WithBias', input x of shape (2, 32, 16, 16).
    B, C, H, W = 2, 32, 16, 16
    NUM_HEADS = 2
    FFN_FACTOR = 2
    HIDDEN = C * FFN_FACTOR

    key = jax.random.PRNGKey(0)
    ks = jax.random.split(key, 12)

    def nrm(k, shape, scale):
        return scale * jax.random.normal(k, shape, dtype=jnp.float32)

    params = dict(
        ln1_w=1.0 + nrm(ks[0], (C,), 0.05),
        ln1_b=nrm(ks[1], (C,), 0.05),
        qkv_w=nrm(ks[2], (C, 3 * C), 1.0 / (C ** 0.5)),
        qkv_b=jnp.zeros((3 * C,), jnp.float32),             # module built with bias=False
        qkv_dw_w=nrm(ks[3], (3, 3, 3 * C), 0.2),
        qkv_dw_b=jnp.zeros((3 * C,), jnp.float32),
        temperature=1.0 + nrm(ks[4], (NUM_HEADS,), 0.1),
        proj_w=nrm(ks[5], (C, C), 1.0 / (C ** 0.5)),
        proj_b=jnp.zeros((C,), jnp.float32),
        ln2_w=1.0 + nrm(ks[6], (C,), 0.05),
        ln2_b=nrm(ks[7], (C,), 0.05),
        pin_w=nrm(ks[8], (C, 2 * HIDDEN), 1.0 / (C ** 0.5)),
        pin_b=jnp.zeros((2 * HIDDEN,), jnp.float32),
        pin_dw_w=nrm(ks[9], (3, 3, 2 * HIDDEN), 0.2),
        pin_dw_b=jnp.zeros((2 * HIDDEN,), jnp.float32),
        pout_w=nrm(ks[10], (HIDDEN, C), 1.0 / (HIDDEN ** 0.5)),
        pout_b=jnp.zeros((C,), jnp.float32),
    )

    x = jax.random.normal(ks[11], (B, C, H, W), dtype=jnp.float32)

    fwd = jax.jit(functools.partial(transformer_block_pallas, num_heads=NUM_HEADS))
    y = jax.block_until_ready(fwd(x, params))

    y_ref = jax.block_until_ready(transformer_block_ref(x, params, num_heads=NUM_HEADS))

    assert y.shape == x.shape and y.dtype == x.dtype
    # Tolerance covers MXU default-precision passes vs the HIGHEST-precision reference.
    assert jnp.allclose(y, y_ref, atol=2e-2, rtol=2e-2), float(jnp.max(jnp.abs(y - y_ref)))

    print("KERNEL_OK")
</pallas_src>

<mosaic_0001>
module attributes {stable_mosaic.version = 11 : i64} {
  func.func @_ln_matmul_kernel(%arg0: i32, %arg1: memref<64x128xf32, #tpu.memory_space<vmem>>, %arg2: memref<128x128xf32, #tpu.memory_space<vmem>>, %arg3: memref<128x384xf32, #tpu.memory_space<vmem>>, %arg4: memref<1x384xf32, #tpu.memory_space<vmem>>, %arg5: memref<64x384xf32, #tpu.memory_space<vmem>>) attributes {dimension_semantics = [#tpu.dimension_semantics<parallel>], iteration_bounds = array<i64: 2>, scalar_prefetch = 0 : i64, scratch_operands = 0 : i64, tpu.core_type = #tpu.core_type<tc>, window_params = [{transform_indices = @transform_0, window_bounds = array<i64: 64, 128>}, {pipeline_mode = #tpu.pipeline_mode<synchronous>, transform_indices = @transform_1, window_bounds = array<i64: 128, 128>}, {pipeline_mode = #tpu.pipeline_mode<synchronous>, transform_indices = @transform_2, window_bounds = array<i64: 128, 384>}, {pipeline_mode = #tpu.pipeline_mode<synchronous>, transform_indices = @transform_3, window_bounds = array<i64: 1, 384>}, {transform_indices = @transform_4, window_bounds = array<i64: 64, 384>}]} {
    %c0 = arith.constant 0 : index
    %c0_0 = arith.constant 0 : index
    %0 = vector.load %arg1[%c0, %c0_0] : memref<64x128xf32, #tpu.memory_space<vmem>>, vector<64x128xf32>
    %c0_1 = arith.constant 0 : index
    %c0_2 = arith.constant 0 : index
    %1 = vector.load %arg2[%c0_1, %c0_2] : memref<128x128xf32, #tpu.memory_space<vmem>>, vector<128x128xf32>
    %cst = arith.constant dense<0.000000e+00> : vector<64x128xf32>
    %2 = tpu.matmul %0, %1, %cst {dimension_numbers = #tpu.dot_dimension_numbers<[1], [0], [0], [1], [0, 0, 1, 1], [], []>} : vector<64x128xf32>, vector<128x128xf32>, vector<64x128xf32> -> vector<64x128xf32>
    %3 = arith.subf %0, %2 : vector<64x128xf32>
    %4 = arith.mulf %3, %3 : vector<64x128xf32>
    %cst_3 = arith.constant dense<0.000000e+00> : vector<64x128xf32>
    %5 = tpu.matmul %4, %1, %cst_3 {dimension_numbers = #tpu.dot_dimension_numbers<[1], [0], [0], [1], [0, 0, 1, 1], [], []>} : vector<64x128xf32>, vector<128x128xf32>, vector<64x128xf32> -> vector<64x128xf32>
    %cst_4 = arith.constant 9.99999974E-6 : f32
    %6 = vector.broadcast %cst_4 : f32 to vector<64x128xf32>
    %7 = arith.addf %5, %6 : vector<64x128xf32>
    %8 = math.rsqrt %7 : vector<64x128xf32>
    %9 = arith.mulf %3, %8 : vector<64x128xf32>
    %c0_5 = arith.constant 0 : index
    %c0_6 = arith.constant 0 : index
    %10 = vector.load %arg3[%c0_5, %c0_6] : memref<128x384xf32, #tpu.memory_space<vmem>>, vector<128x384xf32>
    %cst_7 = arith.constant dense<0.000000e+00> : vector<64x384xf32>
    %11 = tpu.matmul %9, %10, %cst_7 {dimension_numbers = #tpu.dot_dimension_numbers<[1], [0], [0], [1], [0, 0, 1, 1], [], []>} : vector<64x128xf32>, vector<128x384xf32>, vector<64x384xf32> -> vector<64x384xf32>
    %c0_8 = arith.constant 0 : index
    %c0_9 = arith.constant 0 : index
    %12 = vector.load %arg4[%c0_8, %c0_9] : memref<1x384xf32, #tpu.memory_space<vmem>>, vector<1x384xf32>
    %13 = vector.broadcast %12 : vector<1x384xf32> to vector<64x384xf32>
    %14 = arith.addf %11, %13 : vector<64x384xf32>
    %c0_10 = arith.constant 0 : index
    %c0_11 = arith.constant 0 : index
    %15 = vector.load %arg5[%c0_10, %c0_11] : memref<64x384xf32, #tpu.memory_space<vmem>>, vector<64x384xf32>
    tpu.vector_store %arg5[%c0_10, %c0_11], %14 {strides = array<i32>} : memref<64x384xf32, #tpu.memory_space<vmem>>, vector<64x384xf32>,
    return
  }
  func.func @transform_0(%arg0: i32) -> (i32, i32) {
    %c0_i32 = arith.constant 0 : i32
    %c0_i32_0 = arith.constant 0 : i32
    return %arg0, %c0_i32 : i32, i32
  }
  func.func @transform_1(%arg0: i32) -> (i32, i32) {
    %c0_i32 = arith.constant 0 : i32
    %c0_i32_0 = arith.constant 0 : i32
    %c0_i32_1 = arith.constant 0 : i32
    return %c0_i32, %c0_i32_0 : i32, i32
  }
  func.func @transform_2(%arg0: i32) -> (i32, i32) {
    %c0_i32 = arith.constant 0 : i32
    %c0_i32_0 = arith.constant 0 : i32
    %c0_i32_1 = arith.constant 0 : i32
    return %c0_i32, %c0_i32_0 : i32, i32
  }
  func.func @transform_3(%arg0: i32) -> (i32, i32) {
    %c0_i32 = arith.constant 0 : i32
    %c0_i32_0 = arith.constant 0 : i32
    %c0_i32_1 = arith.constant 0 : i32
    return %c0_i32, %c0_i32_0 : i32, i32
  }
  func.func @transform_4(%arg0: i32) -> (i32, i32) {
    %c0_i32 = arith.constant 0 : i32
    %c0_i32_0 = arith.constant 0 : i32
    return %arg0, %c0_i32 : i32, i32
  }
}

module attributes {stable_mosaic.version = 11 : i64} {
  func.func @_attention_kernel(%arg0: i32, %arg1: memref<2xf32, #tpu.memory_space<smem>>, %arg2: memref<1x256x96xf32, #tpu.memory_space<vmem>>, %arg3: memref<1x256x32xf32, #tpu.memory_space<vmem>>, %arg4: memref<32x32xf32, #tpu.memory_space<vmem>>, %arg5: memref<1x32xf32, #tpu.memory_space<vmem>>, %arg6: memref<1x256x32xf32, #tpu.memory_space<vmem>>) attributes {dimension_semantics = [#tpu.dimension_semantics<parallel>], iteration_bounds = array<i64: 2>, scalar_prefetch = 0 : i64, scratch_operands = 0 : i64, tpu.core_type = #tpu.core_type<tc>, window_params = [{transform_indices = @transform_0, window_bounds = array<i64: 2>}, {transform_indices = @transform_1, window_bounds = array<i64: 1, 256, 96>}, {transform_indices = @transform_2, window_bounds = array<i64: 1, 256, 32>}, {pipeline_mode = #tpu.pipeline_mode<synchronous>, transform_indices = @transform_3, window_bounds = array<i64: 32, 32>}, {pipeline_mode = #tpu.pipeline_mode<synchronous>, transform_indices = @transform_4, window_bounds = array<i64: 1, 32>}, {transform_indices = @transform_5, window_bounds = array<i64: 1, 256, 32>}]} {
    %c0 = arith.constant 0 : index
    %c0_0 = arith.constant 0 : index
    %0 = vector.load %arg4[%c0, %c0_0] : memref<32x32xf32, #tpu.memory_space<vmem>>, vector<32x32xf32>
    %c0_1 = arith.constant 0 : index
    %c0_2 = arith.constant 0 : index
    %c0_3 = arith.constant 0 : index
    %1 = vector.load %arg3[%c0_1, %c0_2, %c0_3] : memref<1x256x32xf32, #tpu.memory_space<vmem>>, vector<1x256x32xf32>
    %2 = vector.shape_cast %1 : vector<1x256x32xf32> to vector<256x32xf32>
    %c0_4 = arith.constant 0 : index
    %c0_5 = arith.constant 0 : index
    %3 = vector.load %arg5[%c0_4, %c0_5] : memref<1x32xf32, #tpu.memory_space<vmem>>, vector<1x32xf32>
    %4 = vector.broadcast %3 : vector<1x32xf32> to vector<256x32xf32>
    %5 = arith.addf %2, %4 : vector<256x32xf32>
    %c0_6 = arith.constant 0 : index
    %c0_7 = arith.constant 0 : index
    %c0_8 = arith.constant 0 : index
    %6 = vector.load %arg2[%c0_6, %c0_7, %c0_8] : memref<1x256x96xf32, #tpu.memory_space<vmem>>, vector<1x256x16xf32>
    %7 = vector.shape_cast %6 : vector<1x256x16xf32> to vector<256x16xf32>
    %c0_9 = arith.constant 0 : index
    %c0_10 = arith.constant 0 : index
    %c32 = arith.constant 32 : index
    %8 = vector.load %arg2[%c0_9, %c0_10, %c32] : memref<1x256x96xf32, #tpu.memory_space<vmem>>, vector<1x256x16xf32>
    %9 = vector.shape_cast %8 : vector<1x256x16xf32> to vector<256x16xf32>
    %c0_11 = arith.constant 0 : index
    %c0_12 = arith.constant 0 : index
    %c64 = arith.constant 64 : index
    %10 = vector.load %arg2[%c0_11, %c0_12, %c64] : memref<1x256x96xf32, #tpu.memory_space<vmem>>, vector<1x256x16xf32>
    %11 = vector.shape_cast %10 : vector<1x256x16xf32> to vector<256x16xf32>
    %12 = arith.mulf %7, %7 : vector<256x16xf32>
    %cst = arith.constant dense<0.000000e+00> : vector<16xf32>
    %13 = vector.multi_reduction <add>, %12, %cst [0] : vector<256x16xf32> to vector<16xf32>
    %14 = vector.shape_cast %13 : vector<16xf32> to vector<1x16xf32>
    %cst_13 = arith.constant 1.000000e-24 : f32
    %15 = vector.broadcast %cst_13 : f32 to vector<1x16xf32>
    %16 = arith.maximumf %14, %15 : vector<1x16xf32>
    %17 = math.rsqrt %16 : vector<1x16xf32>
    %18 = arith.mulf %9, %9 : vector<256x16xf32>
    %cst_14 = arith.constant dense<0.000000e+00> : vector<16xf32>
    %19 = vector.multi_reduction <add>, %18, %cst_14 [0] : vector<256x16xf32> to vector<16xf32>
    %20 = vector.shape_cast %19 : vector<16xf32> to vector<1x16xf32>
    %cst_15 = arith.constant 1.000000e-24 : f32
    %21 = vector.broadcast %cst_15 : f32 to vector<1x16xf32>
    %22 = arith.maximumf %20, %21 : vector<1x16xf32>
    %23 = math.rsqrt %22 : vector<1x16xf32>
    %24 = vector.broadcast %17 : vector<1x16xf32> to vector<256x16xf32>
    %25 = arith.mulf %7, %24 : vector<256x16xf32>
    %26 = vector.broadcast %23 : vector<1x16xf32> to vector<256x16xf32>
    %27 = arith.mulf %9, %26 : vector<256x16xf32>
    %cst_16 = arith.constant dense<0.000000e+00> : vector<16x16xf32>
    %28 = tpu.matmul %25, %27, %cst_16 {dimension_numbers = #tpu.dot_dimension_numbers<[0], [0], [1], [1], [0, 1, 1, 1], [], []>} : vector<256x16xf32>, vector<256x16xf32>, vector<16x16xf32> -> vector<16x16xf32>
    %c0_17 = arith.constant 0 : index
    %29 = memref.load %arg1[%c0_17] : memref<2xf32, #tpu.memory_space<smem>>
    %30 = vector.broadcast %29 : f32 to vector<16x16xf32>
    %31 = arith.mulf %28, %30 : vector<16x16xf32>
    %cst_18 = arith.constant dense<0xFF800000> : vector<16xf32>
    %32 = vector.multi_reduction <maximumf>, %31, %cst_18 [1] : vector<16x16xf32> to vector<16xf32>
    %33 = vector.shape_cast %32 : vector<16xf32> to vector<16x1xf32>
    %34 = vector.broadcast %33 : vector<16x1xf32> to vector<16x16xf32>
    %35 = arith.subf %31, %34 : vector<16x16xf32>
    %36 = math.exp %35 : vector<16x16xf32>
    %cst_19 = arith.constant dense<0.000000e+00> : vector<16xf32>
    %37 = vector.multi_reduction <add>, %36, %cst_19 [1] : vector<16x16xf32> to vector<16xf32>
    %38 = vector.shape_cast %37 : vector<16xf32> to vector<16x1xf32>
    %39 = tpu.reciprocal %38 {approx = true} : vector<16x1xf32> -> vector<16x1xf32>
    %40 = vector.broadcast %39 : vector<16x1xf32> to vector<16x16xf32>
    %41 = arith.mulf %36, %40 : vector<16x16xf32>
    %cst_20 = arith.constant dense<0.000000e+00> : vector<256x16xf32>
    %42 = tpu.matmul %11, %41, %cst_20 {dimension_numbers = #tpu.dot_dimension_numbers<[1], [1], [0], [0], [0, 0, 1, 0], [], []>} : vector<256x16xf32>, vector<16x16xf32>, vector<256x16xf32> -> vector<256x16xf32>
    %43 = vector.extract_strided_slice %0 {offsets = [0, 0], sizes = [16, 32], strides = [1, 1]} : vector<32x32xf32> to vector<16x32xf32>
    %cst_21 = arith.constant dense<0.000000e+00> : vector<256x32xf32>
    %44 = tpu.matmul %42, %43, %cst_21 {dimension_numbers = #tpu.dot_dimension_numbers<[1], [0], [0], [1], [0, 0, 1, 1], [], []>} : vector<256x16xf32>, vector<16x32xf32>, vector<256x32xf32> -> vector<256x32xf32>
    %45 = arith.addf %5, %44 : vector<256x32xf32>
    %c0_22 = arith.constant 0 : index
    %c0_23 = arith.constant 0 : index
    %c16 = arith.constant 16 : index
    %46 = vector.load %arg2[%c0_22, %c0_23, %c16] : memref<1x256x96xf32, #tpu.memory_space<vmem>>, vector<1x256x16xf32>
    %47 = vector.shape_cast %46 : vector<1x256x16xf32> to vector<256x16xf32>
    %c0_24 = arith.constant 0 : index
    %c0_25 = arith.constant 0 : index
    %c48 = arith.constant 48 : index
    %48 = vector.load %arg2[%c0_24, %c0_25, %c48] : memref<1x256x96xf32, #tpu.memory_space<vmem>>, vector<1x256x16xf32>
    %49 = vector.shape_cast %48 : vector<1x256x16xf32> to vector<256x16xf32>
    %c0_26 = arith.constant 0 : index
    %c0_27 = arith.constant 0 : index
    %c80 = arith.constant 80 : index
    %50 = vector.load %arg2[%c0_26, %c0_27, %c80] : memref<1x256x96xf32, #tpu.memory_space<vmem>>, vector<1x256x16xf32>
    %51 = vector.shape_cast %50 : vector<1x256x16xf32> to vector<256x16xf32>
    %52 = arith.mulf %47, %47 : vector<256x16xf32>
    %cst_28 = arith.constant dense<0.000000e+00> : vector<16xf32>
    %53 = vector.multi_reduction <add>, %52, %cst_28 [0] : vector<256x16xf32> to vector<16xf32>
    %54 = vector.shape_cast %53 : vector<16xf32> to vector<1x16xf32>
    %cst_29 = arith.constant 1.000000e-24 : f32
    %55 = vector.broadcast %cst_29 : f32 to vector<1x16xf32>
    %56 = arith.maximumf %54, %55 : vector<1x16xf32>
    %57 = math.rsqrt %56 : vector<1x16xf32>
    %58 = arith.mulf %49, %49 : vector<256x16xf32>
    %cst_30 = arith.constant dense<0.000000e+00> : vector<16xf32>
    %59 = vector.multi_reduction <add>, %58, %cst_30 [0] : vector<256x16xf32> to vector<16xf32>
    %60 = vector.shape_cast %59 : vector<16xf32> to vector<1x16xf32>
    %cst_31 = arith.constant 1.000000e-24 : f32
    %61 = vector.broadcast %cst_31 : f32 to vector<1x16xf32>
    %62 = arith.maximumf %60, %61 : vector<1x16xf32>
    %63 = math.rsqrt %62 : vector<1x16xf32>
    %64 = vector.broadcast %57 : vector<1x16xf32> to vector<256x16xf32>
    %65 = arith.mulf %47, %64 : vector<256x16xf32>
    %66 = vector.broadcast %63 : vector<1x16xf32> to vector<256x16xf32>
    %67 = arith.mulf %49, %66 : vector<256x16xf32>
    %cst_32 = arith.constant dense<0.000000e+00> : vector<16x16xf32>
    %68 = tpu.matmul %65, %67, %cst_32 {dimension_numbers = #tpu.dot_dimension_numbers<[0], [0], [1], [1], [0, 1, 1, 1], [], []>} : vector<256x16xf32>, vector<256x16xf32>, vector<16x16xf32> -> vector<16x16xf32>
    %c1 = arith.constant 1 : index
    %69 = memref.load %arg1[%c1] : memref<2xf32, #tpu.memory_space<smem>>
    %70 = vector.broadcast %69 : f32 to vector<16x16xf32>
    %71 = arith.mulf %68, %70 : vector<16x16xf32>
    %cst_33 = arith.constant dense<0xFF800000> : vector<16xf32>
    %72 = vector.multi_reduction <maximumf>, %71, %cst_33 [1] : vector<16x16xf32> to vector<16xf32>
    %73 = vector.shape_cast %72 : vector<16xf32> to vector<16x1xf32>
    %74 = vector.broadcast %73 : vector<16x1xf32> to vector<16x16xf32>
    %75 = arith.subf %71, %74 : vector<16x16xf32>
    %76 = math.exp %75 : vector<16x16xf32>
    %cst_34 = arith.constant dense<0.000000e+00> : vector<16xf32>
    %77 = vector.multi_reduction <add>, %76, %cst_34 [1] : vector<16x16xf32> to vector<16xf32>
    %78 = vector.shape_cast %77 : vector<16xf32> to vector<16x1xf32>
    %79 = tpu.reciprocal %78 {approx = true} : vector<16x1xf32> -> vector<16x1xf32>
    %80 = vector.broadcast %79 : vector<16x1xf32> to vector<16x16xf32>
    %81 = arith.mulf %76, %80 : vector<16x16xf32>
    %cst_35 = arith.constant dense<0.000000e+00> : vector<256x16xf32>
    %82 = tpu.matmul %51, %81, %cst_35 {dimension_numbers = #tpu.dot_dimension_numbers<[1], [1], [0], [0], [0, 0, 1, 0], [], []>} : vector<256x16xf32>, vector<16x16xf32>, vector<256x16xf32> -> vector<256x16xf32>
    %83 = vector.extract_strided_slice %0 {offsets = [16, 0], sizes = [16, 32], strides = [1, 1]} : vector<32x32xf32> to vector<16x32xf32>
    %cst_36 = arith.constant dense<0.000000e+00> : vector<256x32xf32>
    %84 = tpu.matmul %82, %83, %cst_36 {dimension_numbers = #tpu.dot_dimension_numbers<[1], [0], [0], [1], [0, 0, 1, 1], [], []>} : vector<256x16xf32>, vector<16x32xf32>, vector<256x32xf32> -> vector<256x32xf32>
    %85 = arith.addf %45, %84 : vector<256x32xf32>
    %c0_37 = arith.constant 0 : index
    %c0_38 = arith.constant 0 : index
    %c0_39 = arith.constant 0 : index
    %86 = vector.load %arg6[%c0_37, %c0_38, %c0_39] : memref<1x256x32xf32, #tpu.memory_space<vmem>>, vector<1x256x32xf32>
    %87 = vector.shape_cast %86 : vector<1x256x32xf32> to vector<256x32xf32>
    %88 = vector.shape_cast %85 : vector<256x32xf32> to vector<1x256x32xf32>
    tpu.vector_store %arg6[%c0_37, %c0_38, %c0_39], %88 {strides = array<i32>} : memref<1x256x32xf32, #tpu.memory_space<vmem>>, vector<1x256x32xf32>,
    return
  }
  func.func @transform_0(%arg0: i32) -> i32 {
    %c0_i32 = arith.constant 0 : i32
    %c0_i32_0 = arith.constant 0 : i32
    return %c0_i32 : i32
  }
  func.func @transform_1(%arg0: i32) -> (i32, i32, i32) {
    %c0_i32 = arith.constant 0 : i32
    %c0_i32_0 = arith.constant 0 : i32
    %c0_i32_1 = arith.constant 0 : i32
    return %arg0, %c0_i32, %c0_i32_0 : i32, i32, i32
  }
  func.func @transform_2(%arg0: i32) -> (i32, i32, i32) {
    %c0_i32 = arith.constant 0 : i32
    %c0_i32_0 = arith.constant 0 : i32
    %c0_i32_1 = arith.constant 0 : i32
    return %arg0, %c0_i32, %c0_i32_0 : i32, i32, i32
  }
  func.func @transform_3(%arg0: i32) -> (i32, i32) {
    %c0_i32 = arith.constant 0 : i32
    %c0_i32_0 = arith.constant 0 : i32
    %c0_i32_1 = arith.constant 0 : i32
    return %c0_i32, %c0_i32_0 : i32, i32
  }
  func.func @transform_4(%arg0: i32) -> (i32, i32) {
    %c0_i32 = arith.constant 0 : i32
    %c0_i32_0 = arith.constant 0 : i32
    %c0_i32_1 = arith.constant 0 : i32
    return %c0_i32, %c0_i32_0 : i32, i32
  }
  func.func @transform_5(%arg0: i32) -> (i32, i32, i32) {
    %c0_i32 = arith.constant 0 : i32
    %c0_i32_0 = arith.constant 0 : i32
    %c0_i32_1 = arith.constant 0 : i32
    return %arg0, %c0_i32, %c0_i32_0 : i32, i32, i32
  }
}

module attributes {stable_mosaic.version = 11 : i64} {
  func.func @_dwconv3_kernel(%arg0: i32, %arg1: memref<1x18x18x96xf32, #tpu.memory_space<vmem>>, %arg2: memref<3x3x96xf32, #tpu.memory_space<vmem>>, %arg3: memref<1x1x96xf32, #tpu.memory_space<vmem>>, %arg4: memref<1x16x16x96xf32, #tpu.memory_space<vmem>>) attributes {dimension_semantics = [#tpu.dimension_semantics<parallel>], iteration_bounds = array<i64: 2>, scalar_prefetch = 0 : i64, scratch_operands = 0 : i64, tpu.core_type = #tpu.core_type<tc>, window_params = [{transform_indices = @transform_0, window_bounds = array<i64: 1, 18, 18, 96>}, {pipeline_mode = #tpu.pipeline_mode<synchronous>, transform_indices = @transform_1, window_bounds = array<i64: 3, 3, 96>}, {pipeline_mode = #tpu.pipeline_mode<synchronous>, transform_indices = @transform_2, window_bounds = array<i64: 1, 1, 96>}, {transform_indices = @transform_3, window_bounds = array<i64: 1, 16, 16, 96>}]} {
    %c0 = arith.constant 0 : index
    %c0_0 = arith.constant 0 : index
    %c0_1 = arith.constant 0 : index
    %c0_2 = arith.constant 0 : index
    %0 = vector.load %arg1[%c0, %c0_0, %c0_1, %c0_2] : memref<1x18x18x96xf32, #tpu.memory_space<vmem>>, vector<1x18x18x96xf32>
    %1 = vector.shape_cast %0 : vector<1x18x18x96xf32> to vector<18x18x96xf32>
    %c0_3 = arith.constant 0 : index
    %c0_4 = arith.constant 0 : index
    %c0_5 = arith.constant 0 : index
    %2 = vector.load %arg2[%c0_3, %c0_4, %c0_5] : memref<3x3x96xf32, #tpu.memory_space<vmem>>, vector<3x3x96xf32>
    %3 = vector.extract_strided_slice %1 {offsets = [0, 0, 0], sizes = [18, 16, 96], strides = [1, 1, 1]} : vector<18x18x96xf32> to vector<18x16x96xf32>
    %4 = vector.extract_strided_slice %1 {offsets = [0, 1, 0], sizes = [18, 16, 96], strides = [1, 1, 1]} : vector<18x18x96xf32> to vector<18x16x96xf32>
    %5 = vector.extract_strided_slice %1 {offsets = [0, 2, 0], sizes = [18, 16, 96], strides = [1, 1, 1]} : vector<18x18x96xf32> to vector<18x16x96xf32>
    %6 = vector.extract_strided_slice %3 {offsets = [0, 0, 0], sizes = [16, 16, 96], strides = [1, 1, 1]} : vector<18x16x96xf32> to vector<16x16x96xf32>
    %7 = vector.extract_strided_slice %2 {offsets = [0, 0, 0], sizes = [1, 1, 96], strides = [1, 1, 1]} : vector<3x3x96xf32> to vector<1x1x96xf32>
    %8 = vector.broadcast %7 : vector<1x1x96xf32> to vector<16x16x96xf32>
    %9 = arith.mulf %6, %8 : vector<16x16x96xf32>
    %10 = vector.extract_strided_slice %4 {offsets = [0, 0, 0], sizes = [16, 16, 96], strides = [1, 1, 1]} : vector<18x16x96xf32> to vector<16x16x96xf32>
    %11 = vector.extract_strided_slice %2 {offsets = [0, 1, 0], sizes = [1, 1, 96], strides = [1, 1, 1]} : vector<3x3x96xf32> to vector<1x1x96xf32>
    %12 = vector.broadcast %11 : vector<1x1x96xf32> to vector<16x16x96xf32>
    %13 = arith.mulf %10, %12 : vector<16x16x96xf32>
    %14 = arith.addf %9, %13 : vector<16x16x96xf32>
    %15 = vector.extract_strided_slice %5 {offsets = [0, 0, 0], sizes = [16, 16, 96], strides = [1, 1, 1]} : vector<18x16x96xf32> to vector<16x16x96xf32>
    %16 = vector.extract_strided_slice %2 {offsets = [0, 2, 0], sizes = [1, 1, 96], strides = [1, 1, 1]} : vector<3x3x96xf32> to vector<1x1x96xf32>
    %17 = vector.broadcast %16 : vector<1x1x96xf32> to vector<16x16x96xf32>
    %18 = arith.mulf %15, %17 : vector<16x16x96xf32>
    %19 = arith.addf %14, %18 : vector<16x16x96xf32>
    %20 = vector.extract_strided_slice %3 {offsets = [1, 0, 0], sizes = [16, 16, 96], strides = [1, 1, 1]} : vector<18x16x96xf32> to vector<16x16x96xf32>
    %21 = vector.extract_strided_slice %2 {offsets = [1, 0, 0], sizes = [1, 1, 96], strides = [1, 1, 1]} : vector<3x3x96xf32> to vector<1x1x96xf32>
    %22 = vector.broadcast %21 : vector<1x1x96xf32> to vector<16x16x96xf32>
    %23 = arith.mulf %20, %22 : vector<16x16x96xf32>
    %24 = arith.addf %19, %23 : vector<16x16x96xf32>
    %25 = vector.extract_strided_slice %4 {offsets = [1, 0, 0], sizes = [16, 16, 96], strides = [1, 1, 1]} : vector<18x16x96xf32> to vector<16x16x96xf32>
    %26 = vector.extract_strided_slice %2 {offsets = [1, 1, 0], sizes = [1, 1, 96], strides = [1, 1, 1]} : vector<3x3x96xf32> to vector<1x1x96xf32>
    %27 = vector.broadcast %26 : vector<1x1x96xf32> to vector<16x16x96xf32>
    %28 = arith.mulf %25, %27 : vector<16x16x96xf32>
    %29 = arith.addf %24, %28 : vector<16x16x96xf32>
    %30 = vector.extract_strided_slice %5 {offsets = [1, 0, 0], sizes = [16, 16, 96], strides = [1, 1, 1]} : vector<18x16x96xf32> to vector<16x16x96xf32>
    %31 = vector.extract_strided_slice %2 {offsets = [1, 2, 0], sizes = [1, 1, 96], strides = [1, 1, 1]} : vector<3x3x96xf32> to vector<1x1x96xf32>
    %32 = vector.broadcast %31 : vector<1x1x96xf32> to vector<16x16x96xf32>
    %33 = arith.mulf %30, %32 : vector<16x16x96xf32>
    %34 = arith.addf %29, %33 : vector<16x16x96xf32>
    %35 = vector.extract_strided_slice %3 {offsets = [2, 0, 0], sizes = [16, 16, 96], strides = [1, 1, 1]} : vector<18x16x96xf32> to vector<16x16x96xf32>
    %36 = vector.extract_strided_slice %2 {offsets = [2, 0, 0], sizes = [1, 1, 96], strides = [1, 1, 1]} : vector<3x3x96xf32> to vector<1x1x96xf32>
    %37 = vector.broadcast %36 : vector<1x1x96xf32> to vector<16x16x96xf32>
    %38 = arith.mulf %35, %37 : vector<16x16x96xf32>
    %39 = arith.addf %34, %38 : vector<16x16x96xf32>
    %40 = vector.extract_strided_slice %4 {offsets = [2, 0, 0], sizes = [16, 16, 96], strides = [1, 1, 1]} : vector<18x16x96xf32> to vector<16x16x96xf32>
    %41 = vector.extract_strided_slice %2 {offsets = [2, 1, 0], sizes = [1, 1, 96], strides = [1, 1, 1]} : vector<3x3x96xf32> to vector<1x1x96xf32>
    %42 = vector.broadcast %41 : vector<1x1x96xf32> to vector<16x16x96xf32>
    %43 = arith.mulf %40, %42 : vector<16x16x96xf32>
    %44 = arith.addf %39, %43 : vector<16x16x96xf32>
    %45 = vector.extract_strided_slice %5 {offsets = [2, 0, 0], sizes = [16, 16, 96], strides = [1, 1, 1]} : vector<18x16x96xf32> to vector<16x16x96xf32>
    %46 = vector.extract_strided_slice %2 {offsets = [2, 2, 0], sizes = [1, 1, 96], strides = [1, 1, 1]} : vector<3x3x96xf32> to vector<1x1x96xf32>
    %47 = vector.broadcast %46 : vector<1x1x96xf32> to vector<16x16x96xf32>
    %48 = arith.mulf %45, %47 : vector<16x16x96xf32>
    %49 = arith.addf %44, %48 : vector<16x16x96xf32>
    %c0_6 = arith.constant 0 : index
    %c0_7 = arith.constant 0 : index
    %c0_8 = arith.constant 0 : index
    %50 = vector.load %arg3[%c0_6, %c0_7, %c0_8] : memref<1x1x96xf32, #tpu.memory_space<vmem>>, vector<1x1x96xf32>
    %51 = vector.broadcast %50 : vector<1x1x96xf32> to vector<16x16x96xf32>
    %52 = arith.addf %49, %51 : vector<16x16x96xf32>
    %c0_9 = arith.constant 0 : index
    %c0_10 = arith.constant 0 : index
    %c0_11 = arith.constant 0 : index
    %c0_12 = arith.constant 0 : index
    %53 = vector.load %arg4[%c0_9, %c0_10, %c0_11, %c0_12] : memref<1x16x16x96xf32, #tpu.memory_space<vmem>>, vector<1x16x16x96xf32>
    %54 = vector.shape_cast %53 : vector<1x16x16x96xf32> to vector<16x16x96xf32>
    %55 = vector.shape_cast %52 : vector<16x16x96xf32> to vector<1x16x16x96xf32>
    tpu.vector_store %arg4[%c0_9, %c0_10, %c0_11, %c0_12], %55 {strides = array<i32>} : memref<1x16x16x96xf32, #tpu.memory_space<vmem>>, vector<1x16x16x96xf32>,
    return
  }
  func.func @transform_0(%arg0: i32) -> (i32, i32, i32, i32) {
    %c0_i32 = arith.constant 0 : i32
    %c0_i32_0 = arith.constant 0 : i32
    %c0_i32_1 = arith.constant 0 : i32
    %c0_i32_2 = arith.constant 0 : i32
    return %arg0, %c0_i32, %c0_i32_0, %c0_i32_1 : i32, i32, i32, i32
  }
  func.func @transform_1(%arg0: i32) -> (i32, i32, i32) {
    %c0_i32 = arith.constant 0 : i32
    %c0_i32_0 = arith.constant 0 : i32
    %c0_i32_1 = arith.constant 0 : i32
    %c0_i32_2 = arith.constant 0 : i32
    return %c0_i32, %c0_i32_0, %c0_i32_1 : i32, i32, i32
  }
  func.func @transform_2(%arg0: i32) -> (i32, i32, i32) {
    %c0_i32 = arith.constant 0 : i32
    %c0_i32_0 = arith.constant 0 : i32
    %c0_i32_1 = arith.constant 0 : i32
    %c0_i32_2 = arith.constant 0 : i32
    return %c0_i32, %c0_i32_0, %c0_i32_1 : i32, i32, i32
  }
  func.func @transform_3(%arg0: i32) -> (i32, i32, i32, i32) {
    %c0_i32 = arith.constant 0 : i32
    %c0_i32_0 = arith.constant 0 : i32
    %c0_i32_1 = arith.constant 0 : i32
    %c0_i32_2 = arith.constant 0 : i32
    return %arg0, %c0_i32, %c0_i32_0, %c0_i32_1 : i32, i32, i32, i32
  }
}

module attributes {stable_mosaic.version = 11 : i64} {
  func.func @_ln_matmul_kernel(%arg0: i32, %arg1: memref<64x128xf32, #tpu.memory_space<vmem>>, %arg2: memref<128x128xf32, #tpu.memory_space<vmem>>, %arg3: memref<128x512xf32, #tpu.memory_space<vmem>>, %arg4: memref<1x512xf32, #tpu.memory_space<vmem>>, %arg5: memref<64x512xf32, #tpu.memory_space<vmem>>) attributes {dimension_semantics = [#tpu.dimension_semantics<parallel>], iteration_bounds = array<i64: 2>, scalar_prefetch = 0 : i64, scratch_operands = 0 : i64, tpu.core_type = #tpu.core_type<tc>, window_params = [{transform_indices = @transform_0, window_bounds = array<i64: 64, 128>}, {pipeline_mode = #tpu.pipeline_mode<synchronous>, transform_indices = @transform_1, window_bounds = array<i64: 128, 128>}, {pipeline_mode = #tpu.pipeline_mode<synchronous>, transform_indices = @transform_2, window_bounds = array<i64: 128, 512>}, {pipeline_mode = #tpu.pipeline_mode<synchronous>, transform_indices = @transform_3, window_bounds = array<i64: 1, 512>}, {transform_indices = @transform_4, window_bounds = array<i64: 64, 512>}]} {
    %c0 = arith.constant 0 : index
    %c0_0 = arith.constant 0 : index
    %0 = vector.load %arg1[%c0, %c0_0] : memref<64x128xf32, #tpu.memory_space<vmem>>, vector<64x128xf32>
    %c0_1 = arith.constant 0 : index
    %c0_2 = arith.constant 0 : index
    %1 = vector.load %arg2[%c0_1, %c0_2] : memref<128x128xf32, #tpu.memory_space<vmem>>, vector<128x128xf32>
    %cst = arith.constant dense<0.000000e+00> : vector<64x128xf32>
    %2 = tpu.matmul %0, %1, %cst {dimension_numbers = #tpu.dot_dimension_numbers<[1], [0], [0], [1], [0, 0, 1, 1], [], []>} : vector<64x128xf32>, vector<128x128xf32>, vector<64x128xf32> -> vector<64x128xf32>
    %3 = arith.subf %0, %2 : vector<64x128xf32>
    %4 = arith.mulf %3, %3 : vector<64x128xf32>
    %cst_3 = arith.constant dense<0.000000e+00> : vector<64x128xf32>
    %5 = tpu.matmul %4, %1, %cst_3 {dimension_numbers = #tpu.dot_dimension_numbers<[1], [0], [0], [1], [0, 0, 1, 1], [], []>} : vector<64x128xf32>, vector<128x128xf32>, vector<64x128xf32> -> vector<64x128xf32>
    %cst_4 = arith.constant 9.99999974E-6 : f32
    %6 = vector.broadcast %cst_4 : f32 to vector<64x128xf32>
    %7 = arith.addf %5, %6 : vector<64x128xf32>
    %8 = math.rsqrt %7 : vector<64x128xf32>
    %9 = arith.mulf %3, %8 : vector<64x128xf32>
    %c0_5 = arith.constant 0 : index
    %c0_6 = arith.constant 0 : index
    %10 = vector.load %arg3[%c0_5, %c0_6] : memref<128x512xf32, #tpu.memory_space<vmem>>, vector<128x512xf32>
    %cst_7 = arith.constant dense<0.000000e+00> : vector<64x512xf32>
    %11 = tpu.matmul %9, %10, %cst_7 {dimension_numbers = #tpu.dot_dimension_numbers<[1], [0], [0], [1], [0, 0, 1, 1], [], []>} : vector<64x128xf32>, vector<128x512xf32>, vector<64x512xf32> -> vector<64x512xf32>
    %c0_8 = arith.constant 0 : index
    %c0_9 = arith.constant 0 : index
    %12 = vector.load %arg4[%c0_8, %c0_9] : memref<1x512xf32, #tpu.memory_space<vmem>>, vector<1x512xf32>
    %13 = vector.broadcast %12 : vector<1x512xf32> to vector<64x512xf32>
    %14 = arith.addf %11, %13 : vector<64x512xf32>
    %c0_10 = arith.constant 0 : index
    %c0_11 = arith.constant 0 : index
    %15 = vector.load %arg5[%c0_10, %c0_11] : memref<64x512xf32, #tpu.memory_space<vmem>>, vector<64x512xf32>
    tpu.vector_store %arg5[%c0_10, %c0_11], %14 {strides = array<i32>} : memref<64x512xf32, #tpu.memory_space<vmem>>, vector<64x512xf32>,
    return
  }
  func.func @transform_0(%arg0: i32) -> (i32, i32) {
    %c0_i32 = arith.constant 0 : i32
    %c0_i32_0 = arith.constant 0 : i32
    return %arg0, %c0_i32 : i32, i32
  }
  func.func @transform_1(%arg0: i32) -> (i32, i32) {
    %c0_i32 = arith.constant 0 : i32
    %c0_i32_0 = arith.constant 0 : i32
    %c0_i32_1 = arith.constant 0 : i32
    return %c0_i32, %c0_i32_0 : i32, i32
  }
  func.func @transform_2(%arg0: i32) -> (i32, i32) {
    %c0_i32 = arith.constant 0 : i32
    %c0_i32_0 = arith.constant 0 : i32
    %c0_i32_1 = arith.constant 0 : i32
    return %c0_i32, %c0_i32_0 : i32, i32
  }
  func.func @transform_3(%arg0: i32) -> (i32, i32) {
    %c0_i32 = arith.constant 0 : i32
    %c0_i32_0 = arith.constant 0 : i32
    %c0_i32_1 = arith.constant 0 : i32
    return %c0_i32, %c0_i32_0 : i32, i32
  }
  func.func @transform_4(%arg0: i32) -> (i32, i32) {
    %c0_i32 = arith.constant 0 : i32
    %c0_i32_0 = arith.constant 0 : i32
    return %arg0, %c0_i32 : i32, i32
  }
}

module attributes {stable_mosaic.version = 11 : i64} {
  func.func @_dwconv3_kernel(%arg0: i32, %arg1: memref<1x18x18x128xf32, #tpu.memory_space<vmem>>, %arg2: memref<3x3x128xf32, #tpu.memory_space<vmem>>, %arg3: memref<1x1x128xf32, #tpu.memory_space<vmem>>, %arg4: memref<1x16x16x128xf32, #tpu.memory_space<vmem>>) attributes {dimension_semantics = [#tpu.dimension_semantics<parallel>], iteration_bounds = array<i64: 2>, scalar_prefetch = 0 : i64, scratch_operands = 0 : i64, tpu.core_type = #tpu.core_type<tc>, window_params = [{transform_indices = @transform_0, window_bounds = array<i64: 1, 18, 18, 128>}, {pipeline_mode = #tpu.pipeline_mode<synchronous>, transform_indices = @transform_1, window_bounds = array<i64: 3, 3, 128>}, {pipeline_mode = #tpu.pipeline_mode<synchronous>, transform_indices = @transform_2, window_bounds = array<i64: 1, 1, 128>}, {transform_indices = @transform_3, window_bounds = array<i64: 1, 16, 16, 128>}]} {
    %c0 = arith.constant 0 : index
    %c0_0 = arith.constant 0 : index
    %c0_1 = arith.constant 0 : index
    %c0_2 = arith.constant 0 : index
    %0 = vector.load %arg1[%c0, %c0_0, %c0_1, %c0_2] : memref<1x18x18x128xf32, #tpu.memory_space<vmem>>, vector<1x18x18x128xf32>
    %1 = vector.shape_cast %0 : vector<1x18x18x128xf32> to vector<18x18x128xf32>
    %c0_3 = arith.constant 0 : index
    %c0_4 = arith.constant 0 : index
    %c0_5 = arith.constant 0 : index
    %2 = vector.load %arg2[%c0_3, %c0_4, %c0_5] : memref<3x3x128xf32, #tpu.memory_space<vmem>>, vector<3x3x128xf32>
    %3 = vector.extract_strided_slice %1 {offsets = [0, 0, 0], sizes = [18, 16, 128], strides = [1, 1, 1]} : vector<18x18x128xf32> to vector<18x16x128xf32>
    %4 = vector.extract_strided_slice %1 {offsets = [0, 1, 0], sizes = [18, 16, 128], strides = [1, 1, 1]} : vector<18x18x128xf32> to vector<18x16x128xf32>
    %5 = vector.extract_strided_slice %1 {offsets = [0, 2, 0], sizes = [18, 16, 128], strides = [1, 1, 1]} : vector<18x18x128xf32> to vector<18x16x128xf32>
    %6 = vector.extract_strided_slice %3 {offsets = [0, 0, 0], sizes = [16, 16, 128], strides = [1, 1, 1]} : vector<18x16x128xf32> to vector<16x16x128xf32>
    %7 = vector.extract_strided_slice %2 {offsets = [0, 0, 0], sizes = [1, 1, 128], strides = [1, 1, 1]} : vector<3x3x128xf32> to vector<1x1x128xf32>
    %8 = vector.broadcast %7 : vector<1x1x128xf32> to vector<16x16x128xf32>
    %9 = arith.mulf %6, %8 : vector<16x16x128xf32>
    %10 = vector.extract_strided_slice %4 {offsets = [0, 0, 0], sizes = [16, 16, 128], strides = [1, 1, 1]} : vector<18x16x128xf32> to vector<16x16x128xf32>
    %11 = vector.extract_strided_slice %2 {offsets = [0, 1, 0], sizes = [1, 1, 128], strides = [1, 1, 1]} : vector<3x3x128xf32> to vector<1x1x128xf32>
    %12 = vector.broadcast %11 : vector<1x1x128xf32> to vector<16x16x128xf32>
    %13 = arith.mulf %10, %12 : vector<16x16x128xf32>
    %14 = arith.addf %9, %13 : vector<16x16x128xf32>
    %15 = vector.extract_strided_slice %5 {offsets = [0, 0, 0], sizes = [16, 16, 128], strides = [1, 1, 1]} : vector<18x16x128xf32> to vector<16x16x128xf32>
    %16 = vector.extract_strided_slice %2 {offsets = [0, 2, 0], sizes = [1, 1, 128], strides = [1, 1, 1]} : vector<3x3x128xf32> to vector<1x1x128xf32>
    %17 = vector.broadcast %16 : vector<1x1x128xf32> to vector<16x16x128xf32>
    %18 = arith.mulf %15, %17 : vector<16x16x128xf32>
    %19 = arith.addf %14, %18 : vector<16x16x128xf32>
    %20 = vector.extract_strided_slice %3 {offsets = [1, 0, 0], sizes = [16, 16, 128], strides = [1, 1, 1]} : vector<18x16x128xf32> to vector<16x16x128xf32>
    %21 = vector.extract_strided_slice %2 {offsets = [1, 0, 0], sizes = [1, 1, 128], strides = [1, 1, 1]} : vector<3x3x128xf32> to vector<1x1x128xf32>
    %22 = vector.broadcast %21 : vector<1x1x128xf32> to vector<16x16x128xf32>
    %23 = arith.mulf %20, %22 : vector<16x16x128xf32>
    %24 = arith.addf %19, %23 : vector<16x16x128xf32>
    %25 = vector.extract_strided_slice %4 {offsets = [1, 0, 0], sizes = [16, 16, 128], strides = [1, 1, 1]} : vector<18x16x128xf32> to vector<16x16x128xf32>
    %26 = vector.extract_strided_slice %2 {offsets = [1, 1, 0], sizes = [1, 1, 128], strides = [1, 1, 1]} : vector<3x3x128xf32> to vector<1x1x128xf32>
    %27 = vector.broadcast %26 : vector<1x1x128xf32> to vector<16x16x128xf32>
    %28 = arith.mulf %25, %27 : vector<16x16x128xf32>
    %29 = arith.addf %24, %28 : vector<16x16x128xf32>
    %30 = vector.extract_strided_slice %5 {offsets = [1, 0, 0], sizes = [16, 16, 128], strides = [1, 1, 1]} : vector<18x16x128xf32> to vector<16x16x128xf32>
    %31 = vector.extract_strided_slice %2 {offsets = [1, 2, 0], sizes = [1, 1, 128], strides = [1, 1, 1]} : vector<3x3x128xf32> to vector<1x1x128xf32>
    %32 = vector.broadcast %31 : vector<1x1x128xf32> to vector<16x16x128xf32>
    %33 = arith.mulf %30, %32 : vector<16x16x128xf32>
    %34 = arith.addf %29, %33 : vector<16x16x128xf32>
    %35 = vector.extract_strided_slice %3 {offsets = [2, 0, 0], sizes = [16, 16, 128], strides = [1, 1, 1]} : vector<18x16x128xf32> to vector<16x16x128xf32>
    %36 = vector.extract_strided_slice %2 {offsets = [2, 0, 0], sizes = [1, 1, 128], strides = [1, 1, 1]} : vector<3x3x128xf32> to vector<1x1x128xf32>
    %37 = vector.broadcast %36 : vector<1x1x128xf32> to vector<16x16x128xf32>
    %38 = arith.mulf %35, %37 : vector<16x16x128xf32>
    %39 = arith.addf %34, %38 : vector<16x16x128xf32>
    %40 = vector.extract_strided_slice %4 {offsets = [2, 0, 0], sizes = [16, 16, 128], strides = [1, 1, 1]} : vector<18x16x128xf32> to vector<16x16x128xf32>
    %41 = vector.extract_strided_slice %2 {offsets = [2, 1, 0], sizes = [1, 1, 128], strides = [1, 1, 1]} : vector<3x3x128xf32> to vector<1x1x128xf32>
    %42 = vector.broadcast %41 : vector<1x1x128xf32> to vector<16x16x128xf32>
    %43 = arith.mulf %40, %42 : vector<16x16x128xf32>
    %44 = arith.addf %39, %43 : vector<16x16x128xf32>
    %45 = vector.extract_strided_slice %5 {offsets = [2, 0, 0], sizes = [16, 16, 128], strides = [1, 1, 1]} : vector<18x16x128xf32> to vector<16x16x128xf32>
    %46 = vector.extract_strided_slice %2 {offsets = [2, 2, 0], sizes = [1, 1, 128], strides = [1, 1, 1]} : vector<3x3x128xf32> to vector<1x1x128xf32>
    %47 = vector.broadcast %46 : vector<1x1x128xf32> to vector<16x16x128xf32>
    %48 = arith.mulf %45, %47 : vector<16x16x128xf32>
    %49 = arith.addf %44, %48 : vector<16x16x128xf32>
    %c0_6 = arith.constant 0 : index
    %c0_7 = arith.constant 0 : index
    %c0_8 = arith.constant 0 : index
    %50 = vector.load %arg3[%c0_6, %c0_7, %c0_8] : memref<1x1x128xf32, #tpu.memory_space<vmem>>, vector<1x1x128xf32>
    %51 = vector.broadcast %50 : vector<1x1x128xf32> to vector<16x16x128xf32>
    %52 = arith.addf %49, %51 : vector<16x16x128xf32>
    %c0_9 = arith.constant 0 : index
    %c0_10 = arith.constant 0 : index
    %c0_11 = arith.constant 0 : index
    %c0_12 = arith.constant 0 : index
    %53 = vector.load %arg4[%c0_9, %c0_10, %c0_11, %c0_12] : memref<1x16x16x128xf32, #tpu.memory_space<vmem>>, vector<1x16x16x128xf32>
    %54 = vector.shape_cast %53 : vector<1x16x16x128xf32> to vector<16x16x128xf32>
    %55 = vector.shape_cast %52 : vector<16x16x128xf32> to vector<1x16x16x128xf32>
    tpu.vector_store %arg4[%c0_9, %c0_10, %c0_11, %c0_12], %55 {strides = array<i32>} : memref<1x16x16x128xf32, #tpu.memory_space<vmem>>, vector<1x16x16x128xf32>,
    return
  }
  func.func @transform_0(%arg0: i32) -> (i32, i32, i32, i32) {
    %c0_i32 = arith.constant 0 : i32
    %c0_i32_0 = arith.constant 0 : i32
    %c0_i32_1 = arith.constant 0 : i32
    %c0_i32_2 = arith.constant 0 : i32
    return %arg0, %c0_i32, %c0_i32_0, %c0_i32_1 : i32, i32, i32, i32
  }
  func.func @transform_1(%arg0: i32) -> (i32, i32, i32) {
    %c0_i32 = arith.constant 0 : i32
    %c0_i32_0 = arith.constant 0 : i32
    %c0_i32_1 = arith.constant 0 : i32
    %c0_i32_2 = arith.constant 0 : i32
    return %c0_i32, %c0_i32_0, %c0_i32_1 : i32, i32, i32
  }
  func.func @transform_2(%arg0: i32) -> (i32, i32, i32) {
    %c0_i32 = arith.constant 0 : i32
    %c0_i32_0 = arith.constant 0 : i32
    %c0_i32_1 = arith.constant 0 : i32
    %c0_i32_2 = arith.constant 0 : i32
    return %c0_i32, %c0_i32_0, %c0_i32_1 : i32, i32, i32
  }
  func.func @transform_3(%arg0: i32) -> (i32, i32, i32, i32) {
    %c0_i32 = arith.constant 0 : i32
    %c0_i32_0 = arith.constant 0 : i32
    %c0_i32_1 = arith.constant 0 : i32
    %c0_i32_2 = arith.constant 0 : i32
    return %arg0, %c0_i32, %c0_i32_0, %c0_i32_1 : i32, i32, i32, i32
  }
}

module attributes {stable_mosaic.version = 11 : i64} {
  func.func @_ffn_tail_kernel(%arg0: i32, %arg1: memref<64x512xf32, #tpu.memory_space<vmem>>, %arg2: memref<64x128xf32, #tpu.memory_space<vmem>>, %arg3: memref<256x128xf32, #tpu.memory_space<vmem>>, %arg4: memref<1x128xf32, #tpu.memory_space<vmem>>, %arg5: memref<64x128xf32, #tpu.memory_space<vmem>>) attributes {dimension_semantics = [#tpu.dimension_semantics<parallel>], iteration_bounds = array<i64: 2>, scalar_prefetch = 0 : i64, scratch_operands = 0 : i64, tpu.core_type = #tpu.core_type<tc>, window_params = [{transform_indices = @transform_0, window_bounds = array<i64: 64, 512>}, {transform_indices = @transform_1, window_bounds = array<i64: 64, 128>}, {pipeline_mode = #tpu.pipeline_mode<synchronous>, transform_indices = @transform_2, window_bounds = array<i64: 256, 128>}, {pipeline_mode = #tpu.pipeline_mode<synchronous>, transform_indices = @transform_3, window_bounds = array<i64: 1, 128>}, {transform_indices = @transform_4, window_bounds = array<i64: 64, 128>}]} {
    %c0 = arith.constant 0 : index
    %c0_0 = arith.constant 0 : index
    %0 = vector.load %arg1[%c0, %c0_0] : memref<64x512xf32, #tpu.memory_space<vmem>>, vector<64x512xf32>
    %1 = vector.extract_strided_slice %0 {offsets = [0, 0], sizes = [64, 64], strides = [1, 1]} : vector<64x512xf32> to vector<64x64xf32>
    %2 = vector.extract_strided_slice %0 {offsets = [0, 64], sizes = [64, 64], strides = [1, 1]} : vector<64x512xf32> to vector<64x64xf32>
    %cst = arith.constant 5.000000e-01 : f32
    %3 = vector.broadcast %cst : f32 to vector<64x64xf32>
    %4 = arith.mulf %3, %1 : vector<64x64xf32>
    %cst_1 = arith.constant 0.707106769 : f32
    %5 = vector.broadcast %cst_1 : f32 to vector<64x64xf32>
    %6 = arith.mulf %1, %5 : vector<64x64xf32>
    %cst_2 = arith.constant 0.000000e+00 : f32
    %7 = vector.broadcast %cst_2 : f32 to vector<64x64xf32>
    %8 = arith.cmpf oge, %6, %7 : vector<64x64xf32>
    %cst_3 = arith.constant 1.000000e+00 : f32
    %cst_4 = arith.constant -1.000000e+00 : f32
    %9 = vector.broadcast %cst_3 : f32 to vector<64x64xf32>
    %10 = vector.broadcast %cst_4 : f32 to vector<64x64xf32>
    %11 = arith.select %8, %9, %10 : vector<64x64xi1>, vector<64x64xf32>
    %12 = math.absf %6 : vector<64x64xf32>
    %cst_5 = arith.constant 0.327591091 : f32
    %13 = vector.broadcast %cst_5 : f32 to vector<64x64xf32>
    %14 = arith.mulf %13, %12 : vector<64x64xf32>
    %cst_6 = arith.constant 1.000000e+00 : f32
    %15 = vector.broadcast %cst_6 : f32 to vector<64x64xf32>
    %16 = arith.addf %15, %14 : vector<64x64xf32>
    %cst_7 = arith.constant 1.000000e+00 : f32
    %17 = vector.broadcast %cst_7 : f32 to vector<64x64xf32>
    %18 = arith.divf %17, %16 : vector<64x64xf32>
    %cst_8 = arith.constant 1.06140542 : f32
    %19 = vector.broadcast %cst_8 : f32 to vector<64x64xf32>
    %20 = arith.mulf %19, %18 : vector<64x64xf32>
    %cst_9 = arith.constant -1.45315206 : f32
    %21 = vector.broadcast %cst_9 : f32 to vector<64x64xf32>
    %22 = arith.addf %20, %21 : vector<64x64xf32>
    %23 = arith.mulf %22, %18 : vector<64x64xf32>
    %cst_10 = arith.constant 1.42141378 : f32
    %24 = vector.broadcast %cst_10 : f32 to vector<64x64xf32>
    %25 = arith.addf %23, %24 : vector<64x64xf32>
    %26 = arith.mulf %25, %18 : vector<64x64xf32>
    %cst_11 = arith.constant -0.284496725 : f32
    %27 = vector.broadcast %cst_11 : f32 to vector<64x64xf32>
    %28 = arith.addf %26, %27 : vector<64x64xf32>
    %29 = arith.mulf %28, %18 : vector<64x64xf32>
    %cst_12 = arith.constant 0.254829586 : f32
    %30 = vector.broadcast %cst_12 : f32 to vector<64x64xf32>
    %31 = arith.addf %29, %30 : vector<64x64xf32>
    %32 = arith.mulf %31, %18 : vector<64x64xf32>
    %cst_13 = arith.constant 0.000000e+00 : f32
    %33 = vector.broadcast %cst_13 : f32 to vector<64x64xf32>
    %34 = arith.subf %33, %12 : vector<64x64xf32>
    %35 = arith.mulf %34, %12 : vector<64x64xf32>
    %36 = math.exp %35 : vector<64x64xf32>
    %37 = arith.mulf %32, %36 : vector<64x64xf32>
    %cst_14 = arith.constant 1.000000e+00 : f32
    %38 = vector.broadcast %cst_14 : f32 to vector<64x64xf32>
    %39 = arith.subf %38, %37 : vector<64x64xf32>
    %40 = arith.mulf %11, %39 : vector<64x64xf32>
    %cst_15 = arith.constant 1.000000e+00 : f32
    %41 = vector.broadcast %cst_15 : f32 to vector<64x64xf32>
    %42 = arith.addf %41, %40 : vector<64x64xf32>
    %43 = arith.mulf %4, %42 : vector<64x64xf32>
    %44 = arith.mulf %43, %2 : vector<64x64xf32>
    %45 = vector.extract_strided_slice %0 {offsets = [0, 128], sizes = [64, 64], strides = [1, 1]} : vector<64x512xf32> to vector<64x64xf32>
    %46 = vector.extract_strided_slice %0 {offsets = [0, 192], sizes = [64, 64], strides = [1, 1]} : vector<64x512xf32> to vector<64x64xf32>
    %cst_16 = arith.constant 5.000000e-01 : f32
    %47 = vector.broadcast %cst_16 : f32 to vector<64x64xf32>
    %48 = arith.mulf %47, %45 : vector<64x64xf32>
    %cst_17 = arith.constant 0.707106769 : f32
    %49 = vector.broadcast %cst_17 : f32 to vector<64x64xf32>
    %50 = arith.mulf %45, %49 : vector<64x64xf32>
    %cst_18 = arith.constant 0.000000e+00 : f32
    %51 = vector.broadcast %cst_18 : f32 to vector<64x64xf32>
    %52 = arith.cmpf oge, %50, %51 : vector<64x64xf32>
    %cst_19 = arith.constant 1.000000e+00 : f32
    %cst_20 = arith.constant -1.000000e+00 : f32
    %53 = vector.broadcast %cst_19 : f32 to vector<64x64xf32>
    %54 = vector.broadcast %cst_20 : f32 to vector<64x64xf32>
    %55 = arith.select %52, %53, %54 : vector<64x64xi1>, vector<64x64xf32>
    %56 = math.absf %50 : vector<64x64xf32>
    %cst_21 = arith.constant 0.327591091 : f32
    %57 = vector.broadcast %cst_21 : f32 to vector<64x64xf32>
    %58 = arith.mulf %57, %56 : vector<64x64xf32>
    %cst_22 = arith.constant 1.000000e+00 : f32
    %59 = vector.broadcast %cst_22 : f32 to vector<64x64xf32>
    %60 = arith.addf %59, %58 : vector<64x64xf32>
    %cst_23 = arith.constant 1.000000e+00 : f32
    %61 = vector.broadcast %cst_23 : f32 to vector<64x64xf32>
    %62 = arith.divf %61, %60 : vector<64x64xf32>
    %cst_24 = arith.constant 1.06140542 : f32
    %63 = vector.broadcast %cst_24 : f32 to vector<64x64xf32>
    %64 = arith.mulf %63, %62 : vector<64x64xf32>
    %cst_25 = arith.constant -1.45315206 : f32
    %65 = vector.broadcast %cst_25 : f32 to vector<64x64xf32>
    %66 = arith.addf %64, %65 : vector<64x64xf32>
    %67 = arith.mulf %66, %62 : vector<64x64xf32>
    %cst_26 = arith.constant 1.42141378 : f32
    %68 = vector.broadcast %cst_26 : f32 to vector<64x64xf32>
    %69 = arith.addf %67, %68 : vector<64x64xf32>
    %70 = arith.mulf %69, %62 : vector<64x64xf32>
    %cst_27 = arith.constant -0.284496725 : f32
    %71 = vector.broadcast %cst_27 : f32 to vector<64x64xf32>
    %72 = arith.addf %70, %71 : vector<64x64xf32>
    %73 = arith.mulf %72, %62 : vector<64x64xf32>
    %cst_28 = arith.constant 0.254829586 : f32
    %74 = vector.broadcast %cst_28 : f32 to vector<64x64xf32>
    %75 = arith.addf %73, %74 : vector<64x64xf32>
    %76 = arith.mulf %75, %62 : vector<64x64xf32>
    %cst_29 = arith.constant 0.000000e+00 : f32
    %77 = vector.broadcast %cst_29 : f32 to vector<64x64xf32>
    %78 = arith.subf %77, %56 : vector<64x64xf32>
    %79 = arith.mulf %78, %56 : vector<64x64xf32>
    %80 = math.exp %79 : vector<64x64xf32>
    %81 = arith.mulf %76, %80 : vector<64x64xf32>
    %cst_30 = arith.constant 1.000000e+00 : f32
    %82 = vector.broadcast %cst_30 : f32 to vector<64x64xf32>
    %83 = arith.subf %82, %81 : vector<64x64xf32>
    %84 = arith.mulf %55, %83 : vector<64x64xf32>
    %cst_31 = arith.constant 1.000000e+00 : f32
    %85 = vector.broadcast %cst_31 : f32 to vector<64x64xf32>
    %86 = arith.addf %85, %84 : vector<64x64xf32>
    %87 = arith.mulf %48, %86 : vector<64x64xf32>
    %88 = arith.mulf %87, %46 : vector<64x64xf32>
    %89 = vector.extract_strided_slice %0 {offsets = [0, 256], sizes = [64, 64], strides = [1, 1]} : vector<64x512xf32> to vector<64x64xf32>
    %90 = vector.extract_strided_slice %0 {offsets = [0, 320], sizes = [64, 64], strides = [1, 1]} : vector<64x512xf32> to vector<64x64xf32>
    %cst_32 = arith.constant 5.000000e-01 : f32
    %91 = vector.broadcast %cst_32 : f32 to vector<64x64xf32>
    %92 = arith.mulf %91, %89 : vector<64x64xf32>
    %cst_33 = arith.constant 0.707106769 : f32
    %93 = vector.broadcast %cst_33 : f32 to vector<64x64xf32>
    %94 = arith.mulf %89, %93 : vector<64x64xf32>
    %cst_34 = arith.constant 0.000000e+00 : f32
    %95 = vector.broadcast %cst_34 : f32 to vector<64x64xf32>
    %96 = arith.cmpf oge, %94, %95 : vector<64x64xf32>
    %cst_35 = arith.constant 1.000000e+00 : f32
    %cst_36 = arith.constant -1.000000e+00 : f32
    %97 = vector.broadcast %cst_35 : f32 to vector<64x64xf32>
    %98 = vector.broadcast %cst_36 : f32 to vector<64x64xf32>
    %99 = arith.select %96, %97, %98 : vector<64x64xi1>, vector<64x64xf32>
    %100 = math.absf %94 : vector<64x64xf32>
    %cst_37 = arith.constant 0.327591091 : f32
    %101 = vector.broadcast %cst_37 : f32 to vector<64x64xf32>
    %102 = arith.mulf %101, %100 : vector<64x64xf32>
    %cst_38 = arith.constant 1.000000e+00 : f32
    %103 = vector.broadcast %cst_38 : f32 to vector<64x64xf32>
    %104 = arith.addf %103, %102 : vector<64x64xf32>
    %cst_39 = arith.constant 1.000000e+00 : f32
    %105 = vector.broadcast %cst_39 : f32 to vector<64x64xf32>
    %106 = arith.divf %105, %104 : vector<64x64xf32>
    %cst_40 = arith.constant 1.06140542 : f32
    %107 = vector.broadcast %cst_40 : f32 to vector<64x64xf32>
    %108 = arith.mulf %107, %106 : vector<64x64xf32>
    %cst_41 = arith.constant -1.45315206 : f32
    %109 = vector.broadcast %cst_41 : f32 to vector<64x64xf32>
    %110 = arith.addf %108, %109 : vector<64x64xf32>
    %111 = arith.mulf %110, %106 : vector<64x64xf32>
    %cst_42 = arith.constant 1.42141378 : f32
    %112 = vector.broadcast %cst_42 : f32 to vector<64x64xf32>
    %113 = arith.addf %111, %112 : vector<64x64xf32>
    %114 = arith.mulf %113, %106 : vector<64x64xf32>
    %cst_43 = arith.constant -0.284496725 : f32
    %115 = vector.broadcast %cst_43 : f32 to vector<64x64xf32>
    %116 = arith.addf %114, %115 : vector<64x64xf32>
    %117 = arith.mulf %116, %106 : vector<64x64xf32>
    %cst_44 = arith.constant 0.254829586 : f32
    %118 = vector.broadcast %cst_44 : f32 to vector<64x64xf32>
    %119 = arith.addf %117, %118 : vector<64x64xf32>
    %120 = arith.mulf %119, %106 : vector<64x64xf32>
    %cst_45 = arith.constant 0.000000e+00 : f32
    %121 = vector.broadcast %cst_45 : f32 to vector<64x64xf32>
    %122 = arith.subf %121, %100 : vector<64x64xf32>
    %123 = arith.mulf %122, %100 : vector<64x64xf32>
    %124 = math.exp %123 : vector<64x64xf32>
    %125 = arith.mulf %120, %124 : vector<64x64xf32>
    %cst_46 = arith.constant 1.000000e+00 : f32
    %126 = vector.broadcast %cst_46 : f32 to vector<64x64xf32>
    %127 = arith.subf %126, %125 : vector<64x64xf32>
    %128 = arith.mulf %99, %127 : vector<64x64xf32>
    %cst_47 = arith.constant 1.000000e+00 : f32
    %129 = vector.broadcast %cst_47 : f32 to vector<64x64xf32>
    %130 = arith.addf %129, %128 : vector<64x64xf32>
    %131 = arith.mulf %92, %130 : vector<64x64xf32>
    %132 = arith.mulf %131, %90 : vector<64x64xf32>
    %133 = vector.extract_strided_slice %0 {offsets = [0, 384], sizes = [64, 64], strides = [1, 1]} : vector<64x512xf32> to vector<64x64xf32>
    %134 = vector.extract_strided_slice %0 {offsets = [0, 448], sizes = [64, 64], strides = [1, 1]} : vector<64x512xf32> to vector<64x64xf32>
    %cst_48 = arith.constant 5.000000e-01 : f32
    %135 = vector.broadcast %cst_48 : f32 to vector<64x64xf32>
    %136 = arith.mulf %135, %133 : vector<64x64xf32>
    %cst_49 = arith.constant 0.707106769 : f32
    %137 = vector.broadcast %cst_49 : f32 to vector<64x64xf32>
    %138 = arith.mulf %133, %137 : vector<64x64xf32>
    %cst_50 = arith.constant 0.000000e+00 : f32
    %139 = vector.broadcast %cst_50 : f32 to vector<64x64xf32>
    %140 = arith.cmpf oge, %138, %139 : vector<64x64xf32>
    %cst_51 = arith.constant 1.000000e+00 : f32
    %cst_52 = arith.constant -1.000000e+00 : f32
    %141 = vector.broadcast %cst_51 : f32 to vector<64x64xf32>
    %142 = vector.broadcast %cst_52 : f32 to vector<64x64xf32>
    %143 = arith.select %140, %141, %142 : vector<64x64xi1>, vector<64x64xf32>
    %144 = math.absf %138 : vector<64x64xf32>
    %cst_53 = arith.constant 0.327591091 : f32
    %145 = vector.broadcast %cst_53 : f32 to vector<64x64xf32>
    %146 = arith.mulf %145, %144 : vector<64x64xf32>
    %cst_54 = arith.constant 1.000000e+00 : f32
    %147 = vector.broadcast %cst_54 : f32 to vector<64x64xf32>
    %148 = arith.addf %147, %146 : vector<64x64xf32>
    %cst_55 = arith.constant 1.000000e+00 : f32
    %149 = vector.broadcast %cst_55 : f32 to vector<64x64xf32>
    %150 = arith.divf %149, %148 : vector<64x64xf32>
    %cst_56 = arith.constant 1.06140542 : f32
    %151 = vector.broadcast %cst_56 : f32 to vector<64x64xf32>
    %152 = arith.mulf %151, %150 : vector<64x64xf32>
    %cst_57 = arith.constant -1.45315206 : f32
    %153 = vector.broadcast %cst_57 : f32 to vector<64x64xf32>
    %154 = arith.addf %152, %153 : vector<64x64xf32>
    %155 = arith.mulf %154, %150 : vector<64x64xf32>
    %cst_58 = arith.constant 1.42141378 : f32
    %156 = vector.broadcast %cst_58 : f32 to vector<64x64xf32>
    %157 = arith.addf %155, %156 : vector<64x64xf32>
    %158 = arith.mulf %157, %150 : vector<64x64xf32>
    %cst_59 = arith.constant -0.284496725 : f32
    %159 = vector.broadcast %cst_59 : f32 to vector<64x64xf32>
    %160 = arith.addf %158, %159 : vector<64x64xf32>
    %161 = arith.mulf %160, %150 : vector<64x64xf32>
    %cst_60 = arith.constant 0.254829586 : f32
    %162 = vector.broadcast %cst_60 : f32 to vector<64x64xf32>
    %163 = arith.addf %161, %162 : vector<64x64xf32>
    %164 = arith.mulf %163, %150 : vector<64x64xf32>
    %cst_61 = arith.constant 0.000000e+00 : f32
    %165 = vector.broadcast %cst_61 : f32 to vector<64x64xf32>
    %166 = arith.subf %165, %144 : vector<64x64xf32>
    %167 = arith.mulf %166, %144 : vector<64x64xf32>
    %168 = math.exp %167 : vector<64x64xf32>
    %169 = arith.mulf %164, %168 : vector<64x64xf32>
    %cst_62 = arith.constant 1.000000e+00 : f32
    %170 = vector.broadcast %cst_62 : f32 to vector<64x64xf32>
    %171 = arith.subf %170, %169 : vector<64x64xf32>
    %172 = arith.mulf %143, %171 : vector<64x64xf32>
    %cst_63 = arith.constant 1.000000e+00 : f32
    %173 = vector.broadcast %cst_63 : f32 to vector<64x64xf32>
    %174 = arith.addf %173, %172 : vector<64x64xf32>
    %175 = arith.mulf %136, %174 : vector<64x64xf32>
    %176 = arith.mulf %175, %134 : vector<64x64xf32>
    %177 = tpu.concatenate %44, %88, %132, %176 in 1 : vector<64x64xf32>, vector<64x64xf32>, vector<64x64xf32>, vector<64x64xf32> -> vector<64x256xf32>
    %c0_64 = arith.constant 0 : index
    %c0_65 = arith.constant 0 : index
    %178 = vector.load %arg3[%c0_64, %c0_65] : memref<256x128xf32, #tpu.memory_space<vmem>>, vector<256x128xf32>
    %cst_66 = arith.constant dense<0.000000e+00> : vector<64x128xf32>
    %179 = tpu.matmul %177, %178, %cst_66 {dimension_numbers = #tpu.dot_dimension_numbers<[1], [0], [0], [1], [0, 0, 1, 1], [], []>} : vector<64x256xf32>, vector<256x128xf32>, vector<64x128xf32> -> vector<64x128xf32>
    %c0_67 = arith.constant 0 : index
    %c0_68 = arith.constant 0 : index
    %180 = vector.load %arg4[%c0_67, %c0_68] : memref<1x128xf32, #tpu.memory_space<vmem>>, vector<1x128xf32>
    %181 = vector.broadcast %180 : vector<1x128xf32> to vector<64x128xf32>
    %182 = arith.addf %179, %181 : vector<64x128xf32>
    %c0_69 = arith.constant 0 : index
    %c0_70 = arith.constant 0 : index
    %183 = vector.load %arg2[%c0_69, %c0_70] : memref<64x128xf32, #tpu.memory_space<vmem>>, vector<64x128xf32>
    %184 = arith.addf %182, %183 : vector<64x128xf32>
    %c0_71 = arith.constant 0 : index
    %c0_72 = arith.constant 0 : index
    %185 = vector.load %arg5[%c0_71, %c0_72] : memref<64x128xf32, #tpu.memory_space<vmem>>, vector<64x128xf32>
    tpu.vector_store %arg5[%c0_71, %c0_72], %184 {strides = array<i32>} : memref<64x128xf32, #tpu.memory_space<vmem>>, vector<64x128xf32>,
    return
  }
  func.func @transform_0(%arg0: i32) -> (i32, i32) {
    %c0_i32 = arith.constant 0 : i32
    %c0_i32_0 = arith.constant 0 : i32
    return %arg0, %c0_i32 : i32, i32
  }
  func.func @transform_1(%arg0: i32) -> (i32, i32) {
    %c0_i32 = arith.constant 0 : i32
    %c0_i32_0 = arith.constant 0 : i32
    return %arg0, %c0_i32 : i32, i32
  }
  func.func @transform_2(%arg0: i32) -> (i32, i32) {
    %c0_i32 = arith.constant 0 : i32
    %c0_i32_0 = arith.constant 0 : i32
    %c0_i32_1 = arith.constant 0 : i32
    return %c0_i32, %c0_i32_0 : i32, i32
  }
  func.func @transform_3(%arg0: i32) -> (i32, i32) {
    %c0_i32 = arith.constant 0 : i32
    %c0_i32_0 = arith.constant 0 : i32
    %c0_i32_1 = arith.constant 0 : i32
    return %c0_i32, %c0_i32_0 : i32, i32
  }
  func.func @transform_4(%arg0: i32) -> (i32, i32) {
    %c0_i32 = arith.constant 0 : i32
    %c0_i32_0 = arith.constant 0 : i32
    return %arg0, %c0_i32 : i32, i32
  }
}

</mosaic_0001>

<llo_original>
// kernel: transformer_block_pallas.6
$region0: #{transformer_block_pallas.6}
  #allocation0 [shape = 'u32[]', space=smem, size = 0x4, offset = 0x4, fixed_abs, tag = 'smem constant byte address 0x4 - core index']
  #allocation1 [shape = 'u32[144,128]{1,0:T(1,128)}', space=vmem, size = 0x12000, scoped, tag = 'internal scratch']
  %s0 = inlined_call_operand.vmem [shape: f32[128,128], index: 0, kind: input, shape index: {}]
  %s1 = inlined_call_operand.vmem [shape: f32[128,128], index: 1, kind: input, shape index: {}]
  %s2 = inlined_call_operand.vmem [shape: f32[128,384], index: 2, kind: input, shape index: {}]
  %s3 = inlined_call_operand.vmem [shape: f32[1,384], index: 3, kind: input, shape index: {}]
  %s4 = inlined_call_operand.vmem [shape: f32[128,384], index: 4, kind: output, shape index: {}]
  %s5 = sld [smem:[#allocation0]]
  $region49: #{transformer_block_pallas.6} parent=0
    _
  %s7 = ssub.s32 1, %s5
  %s8 = scalar_select 0, %s7, %s5
  loop: start=0, step=1, limit=4
  $region2: #{transformer_block_pallas.6} parent=0 // loop_pre_header
    _
  $region3: #{transformer_block_pallas.6} parent=0 // loop_header
    %s10 = sphi 0, %s14
    %p11 = scmp.ge.s32.totalorder %s10, 4
    %s20 = sphi 0, %s22
    %s23 = sphi 0, %s20
    %s24 = sphi 0, %s23
    %s40 = sphi 0, %s24
    %s44 = sphi 0, %s44
    %s46 = sphi 0, %s44
    %s47 = sphi 0, %s46
    %s61 = sphi 0, %s47
    %s65 = sphi 0, %s65
    %s67 = sphi 0, %s65
    %s68 = sphi 0, %s67
    %s82 = sphi 0, %s68
    %s86 = sphi 0, %s86
    %s88 = sphi 0, %s86
    %s89 = sphi 0, %s88
    %s103 = sphi 0, %s89
    %s109 = sphi 0, %s111
    %s112 = sphi 0, %s109
    %s113 = sphi 0, %s112
    %s129 = sphi 0, %s113
  $region4: #{transformer_block_pallas.6} parent=0 // loop_header_branch
    %13 = sbr.rel (%p11) target = $region8
  $region5: #{transformer_block_pallas.6} parent=0 // loop_body
    %s15 = ssub.s32 %s10, 1
    %s16 = ssub.s32 %s10, 2
    %s17 = sadd.s32 %s10, 1
    %s18 = ssub.s32 %s10, %s17
    %p19 = scmp.eq.s32.totalorder %s18, 0
    %s21 = sadd.s32 %s20, 1
    %s22 = scalar_select %p19, %s20, %s21
    %p25 = pneg %p19
    %p26 = scmp.eq.s32.totalorder %s10, 1
    %p27 = por %p25, %p26
    %p28 = scmp.ne.s32.totalorder %s20, %s23
    %p29 = scmp.eq.s32.totalorder %s10, 0
    %p30 = por %p28, %p29
    %p31 = scmp.ne.s32.totalorder %s20, %s23
    %p32 = scmp.eq.s32.totalorder %s15, 1
    %p33 = por %p31, %p32
    %p34 = scmp.ne.s32.totalorder %s23, %s24
    %p35 = scmp.eq.s32.totalorder %s15, 0
    %p36 = por %p34, %p35
    %p37 = scmp.ne.s32.totalorder %s23, %s24
    %p38 = scmp.eq.s32.totalorder %s16, 1
    %p39 = por %p37, %p38
    %p41 = scmp.ne.s32.totalorder %s24, %s40
    %p42 = scmp.eq.s32.totalorder %s16, 0
    %p43 = por %p41, %p42
    %s45 = sadd.s32 %s44, 1
    %p48 = scmp.eq.s32.totalorder %s10, 1
    %p49 = scmp.ne.s32.totalorder %s44, %s46
    %p50 = scmp.eq.s32.totalorder %s10, 0
    %p51 = por %p49, %p50
    %p52 = scmp.ne.s32.totalorder %s44, %s46
    %p53 = scmp.eq.s32.totalorder %s15, 1
    %p54 = por %p52, %p53
    %p55 = scmp.ne.s32.totalorder %s46, %s47
    %p56 = scmp.eq.s32.totalorder %s15, 0
    %p57 = por %p55, %p56
    %p58 = scmp.ne.s32.totalorder %s46, %s47
    %p59 = scmp.eq.s32.totalorder %s16, 1
    %p60 = por %p58, %p59
    %p62 = scmp.ne.s32.totalorder %s47, %s61
    %p63 = scmp.eq.s32.totalorder %s16, 0
    %p64 = por %p62, %p63
    %s66 = sadd.s32 %s65, 1
    %p69 = scmp.eq.s32.totalorder %s10, 1
    %p70 = scmp.ne.s32.totalorder %s65, %s67
    %p71 = scmp.eq.s32.totalorder %s10, 0
    %p72 = por %p70, %p71
    %p73 = scmp.ne.s32.totalorder %s65, %s67
    %p74 = scmp.eq.s32.totalorder %s15, 1
    %p75 = por %p73, %p74
    %p76 = scmp.ne.s32.totalorder %s67, %s68
    %p77 = scmp.eq.s32.totalorder %s15, 0
    %p78 = por %p76, %p77
    %p79 = scmp.ne.s32.totalorder %s67, %s68
    %p80 = scmp.eq.s32.totalorder %s16, 1
    %p81 = por %p79, %p80
    %p83 = scmp.ne.s32.totalorder %s68, %s82
    %p84 = scmp.eq.s32.totalorder %s16, 0
    %p85 = por %p83, %p84
    %s87 = sadd.s32 %s86, 1
    %p90 = scmp.eq.s32.totalorder %s10, 1
    %p91 = scmp.ne.s32.totalorder %s86, %s88
    %p92 = scmp.eq.s32.totalorder %s10, 0
    %p93 = por %p91, %p92
    %p94 = scmp.ne.s32.totalorder %s86, %s88
    %p95 = scmp.eq.s32.totalorder %s15, 1
    %p96 = por %p94, %p95
    %p97 = scmp.ne.s32.totalorder %s88, %s89
    %p98 = scmp.eq.s32.totalorder %s15, 0
    %p99 = por %p97, %p98
    %p100 = scmp.ne.s32.totalorder %s88, %s89
    %p101 = scmp.eq.s32.totalorder %s16, 1
    %p102 = por %p100, %p101
    %p104 = scmp.ne.s32.totalorder %s89, %s103
    %p105 = scmp.eq.s32.totalorder %s16, 0
    %p106 = por %p104, %p105
    %s107 = ssub.s32 %s10, %s17
    %p108 = scmp.eq.s32.totalorder %s107, 0
    %s110 = sadd.s32 %s109, 1
    %s111 = scalar_select %p108, %s109, %s110
    %p114 = pneg %p108
    %p115 = scmp.eq.s32.totalorder %s10, 1
    %p116 = por %p114, %p115
    %p117 = scmp.ne.s32.totalorder %s109, %s112
    %p118 = scmp.eq.s32.totalorder %s10, 0
    %p119 = por %p117, %p118
    %p120 = scmp.ne.s32.totalorder %s109, %s112
    %p121 = scmp.eq.s32.totalorder %s15, 1
    %p122 = por %p120, %p121
    %p123 = scmp.ne.s32.totalorder %s112, %s113
    %p124 = scmp.eq.s32.totalorder %s15, 0
    %p125 = por %p123, %p124
    %p126 = scmp.ne.s32.totalorder %s112, %s113
    %p127 = scmp.eq.s32.totalorder %s16, 1
    %p128 = por %p126, %p127
    %p130 = scmp.ne.s32.totalorder %s113, %s129
    %p131 = scmp.eq.s32.totalorder %s16, 0
    %p132 = por %p130, %p131
    %p133 = scmp.le.s32.totalorder 1, %s10
    %p134 = scmp.lt.s32.totalorder %s10, 3
    %p135 = pnand %p133, %p134
    %p136 = pneg %p135
    // Predicated region
    $region9: #{transformer_block_pallas.6} parent=5 // pred_check
      _
    $region10: #{transformer_block_pallas.6} parent=5 // pred_check_branch
      %138 = sbr.rel (%p135) target = $region12
    $region11: #{transformer_block_pallas.6} parent=5 // pred_region
      %s139 = ssub.s32 %s10, 1
      // Predicated region
      $region13: #{transformer_block_pallas.6} parent=11 // pred_check
        %p140 = pneg %p57
      $region14: #{transformer_block_pallas.6} parent=11 // pred_check_branch
        %142 = sbr.rel (%p140) target = $region16
      $region15: #{transformer_block_pallas.6} parent=11 // pred_region
        _
      $region16: #{transformer_block_pallas.6} parent=11 // pred_fallthru
        _
      // Predicated region
      $region17: #{transformer_block_pallas.6} parent=11 // pred_check
        %p143 = pneg %p78
      $region18: #{transformer_block_pallas.6} parent=11 // pred_check_branch
        %145 = sbr.rel (%p143) target = $region20
      $region19: #{transformer_block_pallas.6} parent=11 // pred_region
        _
      $region20: #{transformer_block_pallas.6} parent=11 // pred_fallthru
        _
      // Predicated region
      $region21: #{transformer_block_pallas.6} parent=11 // pred_check
        %p146 = pneg %p99
      $region22: #{transformer_block_pallas.6} parent=11 // pred_check_branch
        %148 = sbr.rel (%p146) target = $region24
      $region23: #{transformer_block_pallas.6} parent=11 // pred_region
        _
      $region24: #{transformer_block_pallas.6} parent=11 // pred_fallthru
        _
    $region12: #{transformer_block_pallas.6} parent=5 // pred_fallthru
      _
    %p149 = scmp.lt.s32.totalorder %s10, 2
    // Predicated region
    $region25: #{transformer_block_pallas.6} parent=5 // pred_check
      %p150 = pneg %p149
    $region26: #{transformer_block_pallas.6} parent=5 // pred_check_branch
      %152 = sbr.rel (%p150) target = $region28
    $region27: #{transformer_block_pallas.6} parent=5 // pred_region
      // Predicated region
      $region29: #{transformer_block_pallas.6} parent=27 // pred_check
        %p153 = pneg %p30
      $region30: #{transformer_block_pallas.6} parent=27 // pred_check_branch
        %155 = sbr.rel (%p153) target = $region32
      $region31: #{transformer_block_pallas.6} parent=27 // pred_region
        %s156 = smul.u32 8, %s10
        %p157 = scmp.lt.s32.totalorder %s156, 15
        %s158 = scalar_select %p157, %s156, 15
        %s159 = smul.addr %s158, 8
        %s160 = scalar_lea.vmem %s0, %s159
        %s161 = smul.u32 8, %s10
      $region32: #{transformer_block_pallas.6} parent=27 // pred_fallthru
        _
    $region28: #{transformer_block_pallas.6} parent=5 // pred_fallthru
      _
    %p162 = scmp.le.s32.totalorder 1, %s10
    %p163 = scmp.lt.s32.totalorder %s10, 3
    %p164 = pnand %p162, %p163
    %p165 = pneg %p164
    // Predicated region
    $region33: #{transformer_block_pallas.6} parent=5 // pred_check
      _
    $region34: #{transformer_block_pallas.6} parent=5 // pred_check_branch
      %167 = sbr.rel (%p164) target = $region36
    $region35: #{transformer_block_pallas.6} parent=5 // pred_region
      %s168 = ssub.s32 %s10, 1
      %s169 = smul.u32 8, %s15
      %p170 = scmp.lt.s32.totalorder %s169, 15
      %s171 = scalar_select %p170, %s169, 15
      %s172 = smul.addr %s171, 8
      %s173 = scalar_lea.vmem %s0, %s172
      %p174 = pneg %p36
      %p175 = pneg %p33
      %p176 = pneg %p57
      %p177 = pneg %p54
      %p178 = pneg %p78
      %p179 = pneg %p75
      %p180 = pneg %p99
      %p181 = pneg %p96
      %p182 = pneg %p125
      %p183 = pneg %p122
      %s184 = smul.u32 8, %s15
      %p185 = scmp.lt.s32.totalorder %s184, 15
      %s186 = scalar_select %p185, %s184, 15
      %s187 = smul.addr %s186, 3
      %s188 = smul.addr %s187, 8
      %s189 = scalar_lea.vmem %s4, %s188
      %s190 = smul.u32 8, %s15
      %p191 = scmp.lt.s32.totalorder %s190, 15
      %s192 = scalar_select %p191, %s190, 15
      %s193 = smul.addr %s192, 8
      %s194 = scalar_lea.vmem %s0, %s193
      %s195 = smul.u32 8, %s15
      %s196 = smul.u32 8, %s15
      %p197 = scmp.lt.s32.totalorder %s196, 15
      %s198 = scalar_select %p197, %s196, 15
      %s199 = smul.addr %s198, 3
      %s200 = smul.addr %s199, 8
      %s201 = scalar_lea.vmem %s4, %s200
      %s202 = smul.u32 8, %s15
      %v203 = vld [vmem:[%s194] sm:$0xff]
      %v204 = vld [vmem:[%s194 + $0x8] sm:$0xff]
      %v205 = vld [vmem:[%s194 + $0x10] sm:$0xff]
      %v206 = vld [vmem:[%s194 + $0x18] sm:$0xff]
      %v207 = vld [vmem:[%s194 + $0x20] sm:$0xff]
      %v208 = vld [vmem:[%s194 + $0x28] sm:$0xff]
      %v209 = vld [vmem:[%s194 + $0x30] sm:$0xff]
      %v210 = vld [vmem:[%s194 + $0x38] sm:$0xff]
      %v211 = vld [vmem:[%s1] sm:$0xff]
      %v212 = vld [vmem:[%s1 + $0x8] sm:$0xff]
      %v213 = vld [vmem:[%s1 + $0x10] sm:$0xff]
      %v214 = vld [vmem:[%s1 + $0x18] sm:$0xff]
      %v215 = vld [vmem:[%s1 + $0x20] sm:$0xff]
      %v216 = vld [vmem:[%s1 + $0x28] sm:$0xff]
      %v217 = vld [vmem:[%s1 + $0x30] sm:$0xff]
      %v218 = vld [vmem:[%s1 + $0x38] sm:$0xff]
      %v219 = vld [vmem:[%s1 + $0x40] sm:$0xff]
      %v220 = vld [vmem:[%s1 + $0x48] sm:$0xff]
      %v221 = vld [vmem:[%s1 + $0x50] sm:$0xff]
      %v222 = vld [vmem:[%s1 + $0x58] sm:$0xff]
      %v223 = vld [vmem:[%s1 + $0x60] sm:$0xff]
      %v224 = vld [vmem:[%s1 + $0x68] sm:$0xff]
      %v225 = vld [vmem:[%s1 + $0x70] sm:$0xff]
      %v226 = vld [vmem:[%s1 + $0x78] sm:$0xff]
      %227 = vmatprep.subr.mxu0 0.0
      %228 = vmatpush1.msra.mxu0 %v226
      %229 = vmatprep.subr.mxu0 0.0
      %230 = vmatpush1.msra.mxu0 %v225
      %231 = vmatprep.subr.mxu0 0.0
      %232 = vmatpush1.msra.mxu0 %v224
      %233 = vmatprep.subr.mxu0 0.0
      %234 = vmatpush1.msra.mxu0 %v223
      %235 = vmatprep.subr.mxu0 0.0
      %236 = vmatpush1.msra.mxu0 %v222
      %237 = vmatprep.subr.mxu0 0.0
      %238 = vmatpush1.msra.mxu0 %v221
      %239 = vmatprep.subr.mxu0 0.0
      %240 = vmatpush1.msra.mxu0 %v220
      %241 = vmatprep.subr.mxu0 0.0
      %242 = vmatpush1.msra.mxu0 %v219
      %243 = vmatprep.subr.mxu0 0.0
      %244 = vmatpush1.msra.mxu0 %v218
      %245 = vmatprep.subr.mxu0 0.0
      %246 = vmatpush1.msra.mxu0 %v217
      %247 = vmatprep.subr.mxu0 0.0
      %248 = vmatpush1.msra.mxu0 %v216
      %249 = vmatprep.subr.mxu0 0.0
      %250 = vmatpush1.msra.mxu0 %v215
      %251 = vmatprep.subr.mxu0 0.0
      %252 = vmatpush1.msra.mxu0 %v214
      %253 = vmatprep.subr.mxu0 0.0
      %254 = vmatpush1.msra.mxu0 %v213
      %255 = vmatprep.subr.mxu0 0.0
      %256 = vmatpush1.msra.mxu0 %v212
      %257 = vmatprep.subr.mxu0 0.0
      %258 = vmatpush1.msra.mxu0 %v211
      %259 = vmatprep.subr.mxu0 0.0
      %260 = vmatpush2.msra.mxu0 0.0
      %261 = vmatprep.subr.mxu0 0.0
      %262 = vmatpush2.msra.mxu0 0.0
      %263 = vmatprep.subr.mxu0 0.0
      %264 = vmatpush2.msra.mxu0 0.0
      %265 = vmatprep.subr.mxu0 0.0
      %266 = vmatpush2.msra.mxu0 0.0
      %267 = vmatprep.subr.mxu0 0.0
      %268 = vmatpush2.msra.mxu0 0.0
      %269 = vmatprep.subr.mxu0 0.0
      %270 = vmatpush2.msra.mxu0 0.0
      %271 = vmatprep.subr.mxu0 0.0
      %272 = vmatpush2.msra.mxu0 0.0
      %273 = vmatprep.subr.mxu0 0.0
      %274 = vmatpush2.msra.mxu0 0.0
      %275 = vmatprep.subr.mxu0 0.0
      %276 = vmatpush2.msra.mxu0 0.0
      %277 = vmatprep.subr.mxu0 0.0
      %278 = vmatpush2.msra.mxu0 0.0
      %279 = vmatprep.subr.mxu0 0.0
      %280 = vmatpush2.msra.mxu0 0.0
      %281 = vmatprep.subr.mxu0 0.0
      %282 = vmatpush2.msra.mxu0 0.0
      %283 = vmatprep.subr.mxu0 0.0
      %284 = vmatpush2.msra.mxu0 0.0
      %285 = vmatprep.subr.mxu0 0.0
      %286 = vmatpush2.msra.mxu0 0.0
      %287 = vmatprep.subr.mxu0 0.0
      %288 = vmatpush2.msra.mxu0 0.0
      %289 = vmatprep.subr.mxu0 0.0
      %290 = vmatpush2.msra.mxu0 0.0
      %291 = vmatprep.mubr.f32.mxu0 0.0
      %292 = vmatmul.mubr.f32.gmra.mxu0 %v203
      %v293 = vpop.f32.mrf.mxu0
      %v294 = vadd.f32 0.0, %v293
      %v295 = vpop.f32.mrf.mxu0
      %296 = vmatprep.mubr.f32.mxu0 0.0
      %297 = vmatmul.mubr.f32.gmra.mxu0 %v204
      %v298 = vpop.f32.mrf.mxu0
      %v299 = vadd.f32 0.0, %v298
      %v300 = vpop.f32.mrf.mxu0
      %301 = vmatprep.mubr.f32.mxu0 0.0
      %302 = vmatmul.mubr.f32.gmra.mxu0 %v205
      %v303 = vpop.f32.mrf.mxu0
      %v304 = vadd.f32 0.0, %v303
      %v305 = vpop.f32.mrf.mxu0
      %306 = vmatprep.mubr.f32.mxu0 0.0
      %307 = vmatmul.mubr.f32.gmra.mxu0 %v206
      %v308 = vpop.f32.mrf.mxu0
      %v309 = vadd.f32 0.0, %v308
      %v310 = vpop.f32.mrf.mxu0
      %311 = vmatprep.mubr.f32.mxu0 0.0
      %312 = vmatmul.mubr.f32.gmra.mxu0 %v207
      %v313 = vpop.f32.mrf.mxu0
      %v314 = vadd.f32 0.0, %v313
      %v315 = vpop.f32.mrf.mxu0
      %316 = vmatprep.mubr.f32.mxu0 0.0
      %317 = vmatmul.mubr.f32.gmra.mxu0 %v208
      %v318 = vpop.f32.mrf.mxu0
      %v319 = vadd.f32 0.0, %v318
      %v320 = vpop.f32.mrf.mxu0
      %321 = vmatprep.mubr.f32.mxu0 0.0
      %322 = vmatmul.mubr.f32.gmra.mxu0 %v209
      %v323 = vpop.f32.mrf.mxu0
      %v324 = vadd.f32 0.0, %v323
      %v325 = vpop.f32.mrf.mxu0
      %326 = vmatprep.mubr.f32.mxu0 0.0
      %327 = vmatmul.mubr.f32.gmra.mxu0 %v210
      %v328 = vpop.f32.mrf.mxu0
      %v329 = vadd.f32 0.0, %v328
      %v330 = vpop.f32.mrf.mxu0
      %331 = vdwg.mxu0
      %v332 = vsub.f32 %v203, %v294
      %v333 = vsub.f32 %v204, %v299
      %v334 = vsub.f32 %v205, %v304
      %v335 = vsub.f32 %v206, %v309
      %v336 = vsub.f32 %v207, %v314
      %v337 = vsub.f32 %v208, %v319
      %v338 = vsub.f32 %v209, %v324
      %v339 = vsub.f32 %v210, %v329
      %v340 = vmul.f32 %v332, %v332
      %v341 = vmul.f32 %v333, %v333
      %v342 = vmul.f32 %v334, %v334
      %v343 = vmul.f32 %v335, %v335
      %v344 = vmul.f32 %v336, %v336
      %v345 = vmul.f32 %v337, %v337
      %v346 = vmul.f32 %v338, %v338
      %v347 = vmul.f32 %v339, %v339
      %348 = vmatprep.subr.mxu0 0.0
      %349 = vmatpush1.msra.mxu0 %v226
      %350 = vmatprep.subr.mxu0 0.0
      %351 = vmatpush1.msra.mxu0 %v225
      %352 = vmatprep.subr.mxu0 0.0
      %353 = vmatpush1.msra.mxu0 %v224
      %354 = vmatprep.subr.mxu0 0.0
      %355 = vmatpush1.msra.mxu0 %v223
      %356 = vmatprep.subr.mxu0 0.0
      %357 = vmatpush1.msra.mxu0 %v222
      %358 = vmatprep.subr.mxu0 0.0
      %359 = vmatpush1.msra.mxu0 %v221
      %360 = vmatprep.subr.mxu0 0.0
      %361 = vmatpush1.msra.mxu0 %v220
      %362 = vmatprep.subr.mxu0 0.0
      %363 = vmatpush1.msra.mxu0 %v219
      %364 = vmatprep.subr.mxu0 0.0
      %365 = vmatpush1.msra.mxu0 %v218
      %366 = vmatprep.subr.mxu0 0.0
      %367 = vmatpush1.msra.mxu0 %v217
      %368 = vmatprep.subr.mxu0 0.0
      %369 = vmatpush1.msra.mxu0 %v216
      %370 = vmatprep.subr.mxu0 0.0
      %371 = vmatpush1.msra.mxu0 %v215
      %372 = vmatprep.subr.mxu0 0.0
      %373 = vmatpush1.msra.mxu0 %v214
      %374 = vmatprep.subr.mxu0 0.0
      %375 = vmatpush1.msra.mxu0 %v213
      %376 = vmatprep.subr.mxu0 0.0
      %377 = vmatpush1.msra.mxu0 %v212
      %378 = vmatprep.subr.mxu0 0.0
      %379 = vmatpush1.msra.mxu0 %v211
      %380 = vmatprep.subr.mxu0 0.0
      %381 = vmatpush2.msra.mxu0 0.0
      %382 = vmatprep.subr.mxu0 0.0
      %383 = vmatpush2.msra.mxu0 0.0
      %384 = vmatprep.subr.mxu0 0.0
      %385 = vmatpush2.msra.mxu0 0.0
      %386 = vmatprep.subr.mxu0 0.0
      %387 = vmatpush2.msra.mxu0 0.0
      %388 = vmatprep.subr.mxu0 0.0
      %389 = vmatpush2.msra.mxu0 0.0
      %390 = vmatprep.subr.mxu0 0.0
      %391 = vmatpush2.msra.mxu0 0.0
      %392 = vmatprep.subr.mxu0 0.0
      %393 = vmatpush2.msra.mxu0 0.0
      %394 = vmatprep.subr.mxu0 0.0
      %395 = vmatpush2.msra.mxu0 0.0
      %396 = vmatprep.subr.mxu0 0.0
      %397 = vmatpush2.msra.mxu0 0.0
      %398 = vmatprep.subr.mxu0 0.0
      %399 = vmatpush2.msra.mxu0 0.0
      %400 = vmatprep.subr.mxu0 0.0
      %401 = vmatpush2.msra.mxu0 0.0
      %402 = vmatprep.subr.mxu0 0.0
      %403 = vmatpush2.msra.mxu0 0.0
      %404 = vmatprep.subr.mxu0 0.0
      %405 = vmatpush2.msra.mxu0 0.0
      %406 = vmatprep.subr.mxu0 0.0
      %407 = vmatpush2.msra.mxu0 0.0
      %408 = vmatprep.subr.mxu0 0.0
      %409 = vmatpush2.msra.mxu0 0.0
      %410 = vmatprep.subr.mxu0 0.0
      %411 = vmatpush2.msra.mxu0 0.0
      %412 = vmatprep.mubr.f32.mxu0 0.0
      %413 = vmatmul.mubr.f32.gmra.mxu0 %v340
      %v414 = vpop.f32.mrf.mxu0
      %v415 = vadd.f32 1e-05, %v414
      %v416 = vpop.f32.mrf.mxu0
      %417 = vmatprep.mubr.f32.mxu0 0.0
      %418 = vmatmul.mubr.f32.gmra.mxu0 %v341
      %v419 = vpop.f32.mrf.mxu0
      %v420 = vadd.f32 1e-05, %v419
      %v421 = vpop.f32.mrf.mxu0
      %422 = vmatprep.mubr.f32.mxu0 0.0
      %423 = vmatmul.mubr.f32.gmra.mxu0 %v342
      %v424 = vpop.f32.mrf.mxu0
      %v425 = vadd.f32 1e-05, %v424
      %v426 = vpop.f32.mrf.mxu0
      %427 = vmatprep.mubr.f32.mxu0 0.0
      %428 = vmatmul.mubr.f32.gmra.mxu0 %v343
      %v429 = vpop.f32.mrf.mxu0
      %v430 = vadd.f32 1e-05, %v429
      %v431 = vpop.f32.mrf.mxu0
      %432 = vmatprep.mubr.f32.mxu0 0.0
      %433 = vmatmul.mubr.f32.gmra.mxu0 %v344
      %v434 = vpop.f32.mrf.mxu0
      %v435 = vadd.f32 1e-05, %v434
      %v436 = vpop.f32.mrf.mxu0
      %437 = vmatprep.mubr.f32.mxu0 0.0
      %438 = vmatmul.mubr.f32.gmra.mxu0 %v345
      %v439 = vpop.f32.mrf.mxu0
      %v440 = vadd.f32 1e-05, %v439
      %v441 = vpop.f32.mrf.mxu0
      %442 = vmatprep.mubr.f32.mxu0 0.0
      %443 = vmatmul.mubr.f32.gmra.mxu0 %v346
      %v444 = vpop.f32.mrf.mxu0
      %v445 = vadd.f32 1e-05, %v444
      %v446 = vpop.f32.mrf.mxu0
      %447 = vmatprep.mubr.f32.mxu0 0.0
      %448 = vmatmul.mubr.f32.gmra.mxu0 %v347
      %v449 = vpop.f32.mrf.mxu0
      %v450 = vadd.f32 1e-05, %v449
      %v451 = vpop.f32.mrf.mxu0
      %452 = vdwg.mxu0
      %v453 = vrsqrt.pop %v415
      %v454 = vrsqrt.pop %v420
      %v455 = vrsqrt.pop %v425
      %v456 = vrsqrt.pop %v430
      %v457 = vrsqrt.pop %v435
      %v458 = vrsqrt.pop %v440
      %v459 = vrsqrt.pop %v445
      %v460 = vrsqrt.pop %v450
      %v461 = vmul.f32 %v332, %v453
      %v462 = vmul.f32 %v333, %v454
      %v463 = vmul.f32 %v334, %v455
      %v464 = vmul.f32 %v335, %v456
      %v465 = vmul.f32 %v336, %v457
      %v466 = vmul.f32 %v337, %v458
      %v467 = vmul.f32 %v338, %v459
      %v468 = vmul.f32 %v339, %v460
      %v469 = vld [vmem:[%s2] sm:$0xff]
      %v470 = vld [vmem:[%s2 + $0x8] sm:$0xff]
      %v471 = vld [vmem:[%s2 + $0x10] sm:$0xff]
      %v472 = vld [vmem:[%s2 + $0x18] sm:$0xff]
      %v473 = vld [vmem:[%s2 + $0x20] sm:$0xff]
      %v474 = vld [vmem:[%s2 + $0x28] sm:$0xff]
      %v475 = vld [vmem:[%s2 + $0x30] sm:$0xff]
      %v476 = vld [vmem:[%s2 + $0x38] sm:$0xff]
      %v477 = vld [vmem:[%s2 + $0x40] sm:$0xff]
      %v478 = vld [vmem:[%s2 + $0x48] sm:$0xff]
      %v479 = vld [vmem:[%s2 + $0x50] sm:$0xff]
      %v480 = vld [vmem:[%s2 + $0x58] sm:$0xff]
      %v481 = vld [vmem:[%s2 + $0x60] sm:$0xff]
      %v482 = vld [vmem:[%s2 + $0x68] sm:$0xff]
      %v483 = vld [vmem:[%s2 + $0x70] sm:$0xff]
      %v484 = vld [vmem:[%s2 + $0x78] sm:$0xff]
      %v485 = vld [vmem:[%s2 + $0x80] sm:$0xff]
      %v486 = vld [vmem:[%s2 + $0x88] sm:$0xff]
      %v487 = vld [vmem:[%s2 + $0x90] sm:$0xff]
      %v488 = vld [vmem:[%s2 + $0x98] sm:$0xff]
      %v489 = vld [vmem:[%s2 + $0xa0] sm:$0xff]
      %v490 = vld [vmem:[%s2 + $0xa8] sm:$0xff]
      %v491 = vld [vmem:[%s2 + $0xb0] sm:$0xff]
      %v492 = vld [vmem:[%s2 + $0xb8] sm:$0xff]
      %v493 = vld [vmem:[%s2 + $0xc0] sm:$0xff]
      %v494 = vld [vmem:[%s2 + $0xc8] sm:$0xff]
      %v495 = vld [vmem:[%s2 + $0xd0] sm:$0xff]
      %v496 = vld [vmem:[%s2 + $0xd8] sm:$0xff]
      %v497 = vld [vmem:[%s2 + $0xe0] sm:$0xff]
      %v498 = vld [vmem:[%s2 + $0xe8] sm:$0xff]
      %v499 = vld [vmem:[%s2 + $0xf0] sm:$0xff]
      %v500 = vld [vmem:[%s2 + $0xf8] sm:$0xff]
      %v501 = vld [vmem:[%s2 + $0x100] sm:$0xff]
      %v502 = vld [vmem:[%s2 + $0x108] sm:$0xff]
      %v503 = vld [vmem:[%s2 + $0x110] sm:$0xff]
      %v504 = vld [vmem:[%s2 + $0x118] sm:$0xff]
      %v505 = vld [vmem:[%s2 + $0x120] sm:$0xff]
      %v506 = vld [vmem:[%s2 + $0x128] sm:$0xff]
      %v507 = vld [vmem:[%s2 + $0x130] sm:$0xff]
      %v508 = vld [vmem:[%s2 + $0x138] sm:$0xff]
      %v509 = vld [vmem:[%s2 + $0x140] sm:$0xff]
      %v510 = vld [vmem:[%s2 + $0x148] sm:$0xff]
      %v511 = vld [vmem:[%s2 + $0x150] sm:$0xff]
      %v512 = vld [vmem:[%s2 + $0x158] sm:$0xff]
      %v513 = vld [vmem:[%s2 + $0x160] sm:$0xff]
      %v514 = vld [vmem:[%s2 + $0x168] sm:$0xff]
      %v515 = vld [vmem:[%s2 + $0x170] sm:$0xff]
      %v516 = vld [vmem:[%s2 + $0x178] sm:$0xff]
      %v517 = vld [vmem:[%s3] sm:$0x7]
      %v519 = vlaneseq
      %v520 = vshrl.u32 %v519, 7
      %v521 = vsub.s32 0, %v520
      %v522 = vrot.slane %v517, %v521
      %v523 = vlaneseq
      %v524 = vshrl.u32 %v523, 7
      %v525 = vsub.s32 1, %v524
      %v526 = vrot.slane %v517, %v525
      %v527 = vlaneseq
      %v528 = vshrl.u32 %v527, 7
      %v529 = vsub.s32 2, %v528
      %v530 = vrot.slane %v517, %v529
      %534 = vmatprep.subr.mxu0 %v515
      %535 = vmatpush1.msra.mxu0 %v514
      %536 = vmatprep.subr.mxu0 %v512
      %537 = vmatpush1.msra.mxu0 %v511
      %538 = vmatprep.subr.mxu0 %v509
      %539 = vmatpush1.msra.mxu0 %v508
      %540 = vmatprep.subr.mxu0 %v506
      %541 = vmatpush1.msra.mxu0 %v505
      %542 = vmatprep.subr.mxu0 %v503
      %543 = vmatpush1.msra.mxu0 %v502
      %544 = vmatprep.subr.mxu0 %v500
      %545 = vmatpush1.msra.mxu0 %v499
      %546 = vmatprep.subr.mxu0 %v497
      %547 = vmatpush1.msra.mxu0 %v496
      %548 = vmatprep.subr.mxu0 %v494
      %549 = vmatpush1.msra.mxu0 %v493
      %550 = vmatprep.subr.mxu0 %v491
      %551 = vmatpush1.msra.mxu0 %v490
      %552 = vmatprep.subr.mxu0 %v488
      %553 = vmatpush1.msra.mxu0 %v487
      %554 = vmatprep.subr.mxu0 %v485
      %555 = vmatpush1.msra.mxu0 %v484
      %556 = vmatprep.subr.mxu0 %v482
      %557 = vmatpush1.msra.mxu0 %v481
      %558 = vmatprep.subr.mxu0 %v479
      %559 = vmatpush1.msra.mxu0 %v478
      %560 = vmatprep.subr.mxu0 %v476
      %561 = vmatpush1.msra.mxu0 %v475
      %562 = vmatprep.subr.mxu0 %v473
      %563 = vmatpush1.msra.mxu0 %v472
      %564 = vmatprep.subr.mxu0 %v470
      %565 = vmatpush1.msra.mxu0 %v469
      %566 = vmatprep.subr.mxu0 0.0
      %567 = vmatpush2.msra.mxu0 0.0
      %568 = vmatprep.subr.mxu0 0.0
      %569 = vmatpush2.msra.mxu0 0.0
      %570 = vmatprep.subr.mxu0 0.0
      %571 = vmatpush2.msra.mxu0 0.0
      %572 = vmatprep.subr.mxu0 0.0
      %573 = vmatpush2.msra.mxu0 0.0
      %574 = vmatprep.subr.mxu0 0.0
      %575 = vmatpush2.msra.mxu0 0.0
      %576 = vmatprep.subr.mxu0 0.0
      %577 = vmatpush2.msra.mxu0 0.0
      %578 = vmatprep.subr.mxu0 0.0
      %579 = vmatpush2.msra.mxu0 0.0
      %580 = vmatprep.subr.mxu0 0.0
      %581 = vmatpush2.msra.mxu0 0.0
      %582 = vmatprep.subr.mxu0 0.0
      %583 = vmatpush2.msra.mxu0 0.0
      %584 = vmatprep.subr.mxu0 0.0
      %585 = vmatpush2.msra.mxu0 0.0
      %586 = vmatprep.subr.mxu0 0.0
      %587 = vmatpush2.msra.mxu0 0.0
      %588 = vmatprep.subr.mxu0 0.0
      %589 = vmatpush2.msra.mxu0 0.0
      %590 = vmatprep.subr.mxu0 0.0
      %591 = vmatpush2.msra.mxu0 0.0
      %592 = vmatprep.subr.mxu0 0.0
      %593 = vmatpush2.msra.mxu0 0.0
      %594 = vmatprep.subr.mxu0 0.0
      %595 = vmatpush2.msra.mxu0 0.0
      %596 = vmatprep.subr.mxu0 0.0
      %597 = vmatpush2.msra.mxu0 0.0
      %598 = vmatprep.mubr.f32.mxu0 0.0
      %599 = vmatmul.mubr.f32.gmra.mxu0 %v461
      %v600 = vpop.f32.mrf.mxu0
      %v601 = vadd.f32 %v522, %v600
      %v602 = vpop.f32.mrf.mxu0
      %v603 = vadd.f32 %v526, %v602
      %604 = vmatprep.mubr.f32.mxu0 0.0
      %605 = vmatmul.mubr.f32.gmra.mxu0 %v462
      %v606 = vpop.f32.mrf.mxu0
      %v607 = vadd.f32 %v522, %v606
      %v608 = vpop.f32.mrf.mxu0
      %v609 = vadd.f32 %v526, %v608
      %610 = vmatprep.mubr.f32.mxu0 0.0
      %611 = vmatmul.mubr.f32.gmra.mxu0 %v463
      %v612 = vpop.f32.mrf.mxu0
      %v613 = vadd.f32 %v522, %v612
      %v614 = vpop.f32.mrf.mxu0
      %v615 = vadd.f32 %v526, %v614
      %616 = vmatprep.mubr.f32.mxu0 0.0
      %617 = vmatmul.mubr.f32.gmra.mxu0 %v464
      %v618 = vpop.f32.mrf.mxu0
      %v619 = vadd.f32 %v522, %v618
      %v620 = vpop.f32.mrf.mxu0
      %v621 = vadd.f32 %v526, %v620
      %622 = vmatprep.mubr.f32.mxu0 0.0
      %623 = vmatmul.mubr.f32.gmra.mxu0 %v465
      %v624 = vpop.f32.mrf.mxu0
      %v625 = vadd.f32 %v522, %v624
      %v626 = vpop.f32.mrf.mxu0
      %v627 = vadd.f32 %v526, %v626
      %628 = vmatprep.mubr.f32.mxu0 0.0
      %629 = vmatmul.mubr.f32.gmra.mxu0 %v466
      %v630 = vpop.f32.mrf.mxu0
      %v631 = vadd.f32 %v522, %v630
      %v632 = vpop.f32.mrf.mxu0
      %v633 = vadd.f32 %v526, %v632
      %634 = vmatprep.mubr.f32.mxu0 0.0
      %635 = vmatmul.mubr.f32.gmra.mxu0 %v467
      %v636 = vpop.f32.mrf.mxu0
      %v637 = vadd.f32 %v522, %v636
      %v638 = vpop.f32.mrf.mxu0
      %v639 = vadd.f32 %v526, %v638
      %640 = vmatprep.mubr.f32.mxu0 0.0
      %641 = vmatmul.mubr.f32.gmra.mxu0 %v468
      %v642 = vpop.f32.mrf.mxu0
      %v643 = vadd.f32 %v522, %v642
      %v644 = vpop.f32.mrf.mxu0
      %v645 = vadd.f32 %v526, %v644
      %646 = vdwg.mxu0
      %647 = vmatprep.subr.mxu0 0.0
      %648 = vmatpush1.msra.mxu0 %v516
      %649 = vmatprep.subr.mxu0 0.0
      %650 = vmatpush1.msra.mxu0 %v513
      %651 = vmatprep.subr.mxu0 0.0
      %652 = vmatpush1.msra.mxu0 %v510
      %653 = vmatprep.subr.mxu0 0.0
      %654 = vmatpush1.msra.mxu0 %v507
      %655 = vmatprep.subr.mxu0 0.0
      %656 = vmatpush1.msra.mxu0 %v504
      %657 = vmatprep.subr.mxu0 0.0
      %658 = vmatpush1.msra.mxu0 %v501
      %659 = vmatprep.subr.mxu0 0.0
      %660 = vmatpush1.msra.mxu0 %v498
      %661 = vmatprep.subr.mxu0 0.0
      %662 = vmatpush1.msra.mxu0 %v495
      %663 = vmatprep.subr.mxu0 0.0
      %664 = vmatpush1.msra.mxu0 %v492
      %665 = vmatprep.subr.mxu0 0.0
      %666 = vmatpush1.msra.mxu0 %v489
      %667 = vmatprep.subr.mxu0 0.0
      %668 = vmatpush1.msra.mxu0 %v486
      %669 = vmatprep.subr.mxu0 0.0
      %670 = vmatpush1.msra.mxu0 %v483
      %671 = vmatprep.subr.mxu0 0.0
      %672 = vmatpush1.msra.mxu0 %v480
      %673 = vmatprep.subr.mxu0 0.0
      %674 = vmatpush1.msra.mxu0 %v477
      %675 = vmatprep.subr.mxu0 0.0
      %676 = vmatpush1.msra.mxu0 %v474
      %677 = vmatprep.subr.mxu0 0.0
      %678 = vmatpush1.msra.mxu0 %v471
      %679 = vmatprep.subr.mxu0 0.0
      %680 = vmatpush2.msra.mxu0 0.0
      %681 = vmatprep.subr.mxu0 0.0
      %682 = vmatpush2.msra.mxu0 0.0
      %683 = vmatprep.subr.mxu0 0.0
      %684 = vmatpush2.msra.mxu0 0.0
      %685 = vmatprep.subr.mxu0 0.0
      %686 = vmatpush2.msra.mxu0 0.0
      %687 = vmatprep.subr.mxu0 0.0
      %688 = vmatpush2.msra.mxu0 0.0
      %689 = vmatprep.subr.mxu0 0.0
      %690 = vmatpush2.msra.mxu0 0.0
      %691 = vmatprep.subr.mxu0 0.0
      %692 = vmatpush2.msra.mxu0 0.0
      %693 = vmatprep.subr.mxu0 0.0
      %694 = vmatpush2.msra.mxu0 0.0
      %695 = vmatprep.subr.mxu0 0.0
      %696 = vmatpush2.msra.mxu0 0.0
      %697 = vmatprep.subr.mxu0 0.0
      %698 = vmatpush2.msra.mxu0 0.0
      %699 = vmatprep.subr.mxu0 0.0
      %700 = vmatpush2.msra.mxu0 0.0
      %701 = vmatprep.subr.mxu0 0.0
      %702 = vmatpush2.msra.mxu0 0.0
      %703 = vmatprep.subr.mxu0 0.0
      %704 = vmatpush2.msra.mxu0 0.0
      %705 = vmatprep.subr.mxu0 0.0
      %706 = vmatpush2.msra.mxu0 0.0
      %707 = vmatprep.subr.mxu0 0.0
      %708 = vmatpush2.msra.mxu0 0.0
      %709 = vmatprep.subr.mxu0 0.0
      %710 = vmatpush2.msra.mxu0 0.0
      %711 = vmatprep.mubr.f32.mxu0 0.0
      %712 = vmatmul.mubr.f32.gmra.mxu0 %v461
      %v713 = vpop.f32.mrf.mxu0
      %v714 = vadd.f32 %v530, %v713
      %v715 = vpop.f32.mrf.mxu0
      %716 = vmatprep.mubr.f32.mxu0 0.0
      %717 = vmatmul.mubr.f32.gmra.mxu0 %v462
      %v718 = vpop.f32.mrf.mxu0
      %v719 = vadd.f32 %v530, %v718
      %v720 = vpop.f32.mrf.mxu0
      %721 = vmatprep.mubr.f32.mxu0 0.0
      %722 = vmatmul.mubr.f32.gmra.mxu0 %v463
      %v723 = vpop.f32.mrf.mxu0
      %v724 = vadd.f32 %v530, %v723
      %v725 = vpop.f32.mrf.mxu0
      %726 = vmatprep.mubr.f32.mxu0 0.0
      %727 = vmatmul.mubr.f32.gmra.mxu0 %v464
      %v728 = vpop.f32.mrf.mxu0
      %v729 = vadd.f32 %v530, %v728
      %v730 = vpop.f32.mrf.mxu0
      %731 = vmatprep.mubr.f32.mxu0 0.0
      %732 = vmatmul.mubr.f32.gmra.mxu0 %v465
      %v733 = vpop.f32.mrf.mxu0
      %v734 = vadd.f32 %v530, %v733
      %v735 = vpop.f32.mrf.mxu0
      %736 = vmatprep.mubr.f32.mxu0 0.0
      %737 = vmatmul.mubr.f32.gmra.mxu0 %v466
      %v738 = vpop.f32.mrf.mxu0
      %v739 = vadd.f32 %v530, %v738
      %v740 = vpop.f32.mrf.mxu0
      %741 = vmatprep.mubr.f32.mxu0 0.0
      %742 = vmatmul.mubr.f32.gmra.mxu0 %v467
      %v743 = vpop.f32.mrf.mxu0
      %v744 = vadd.f32 %v530, %v743
      %v745 = vpop.f32.mrf.mxu0
      %746 = vmatprep.mubr.f32.mxu0 0.0
      %747 = vmatmul.mubr.f32.gmra.mxu0 %v468
      %v748 = vpop.f32.mrf.mxu0
      %v749 = vadd.f32 %v530, %v748
      %v750 = vpop.f32.mrf.mxu0
      %751 = vdwg.mxu0
      %752 = vst [vmem:[%s201] sm:$0xff] %v601
      %753 = vst [vmem:[%s201 + $0x8] sm:$0xff] %v603
      %754 = vst [vmem:[%s201 + $0x10] sm:$0xff] %v714
      %755 = vst [vmem:[%s201 + $0x18] sm:$0xff] %v607
      %756 = vst [vmem:[%s201 + $0x20] sm:$0xff] %v609
      %757 = vst [vmem:[%s201 + $0x28] sm:$0xff] %v719
      %758 = vst [vmem:[%s201 + $0x30] sm:$0xff] %v613
      %759 = vst [vmem:[%s201 + $0x38] sm:$0xff] %v615
      %760 = vst [vmem:[%s201 + $0x40] sm:$0xff] %v724
      %761 = vst [vmem:[%s201 + $0x48] sm:$0xff] %v619
      %762 = vst [vmem:[%s201 + $0x50] sm:$0xff] %v621
      %763 = vst [vmem:[%s201 + $0x58] sm:$0xff] %v729
      %764 = vst [vmem:[%s201 + $0x60] sm:$0xff] %v625
      %765 = vst [vmem:[%s201 + $0x68] sm:$0xff] %v627
      %766 = vst [vmem:[%s201 + $0x70] sm:$0xff] %v734
      %767 = vst [vmem:[%s201 + $0x78] sm:$0xff] %v631
      %768 = vst [vmem:[%s201 + $0x80] sm:$0xff] %v633
      %769 = vst [vmem:[%s201 + $0x88] sm:$0xff] %v739
      %770 = vst [vmem:[%s201 + $0x90] sm:$0xff] %v637
      %771 = vst [vmem:[%s201 + $0x98] sm:$0xff] %v639
      %772 = vst [vmem:[%s201 + $0xa0] sm:$0xff] %v744
      %773 = vst [vmem:[%s201 + $0xa8] sm:$0xff] %v643
      %774 = vst [vmem:[%s201 + $0xb0] sm:$0xff] %v645
      %775 = vst [vmem:[%s201 + $0xb8] sm:$0xff] %v749
      %s776 = smul.u32 8, %s15
      %p777 = scmp.lt.s32.totalorder %s776, 15
      %s778 = scalar_select %p777, %s776, 15
      %s779 = smul.addr %s778, 3
      %s780 = smul.addr %s779, 8
      %s781 = scalar_lea.vmem %s4, %s780
      // Predicated region
      $region37: #{transformer_block_pallas.6} parent=35 // pred_check
        %p782 = pneg %p122
      $region38: #{transformer_block_pallas.6} parent=35 // pred_check_branch
        %784 = sbr.rel (%p782) target = $region40
      $region39: #{transformer_block_pallas.6} parent=35 // pred_region
        %s785 = smul.u32 8, %s15
      $region40: #{transformer_block_pallas.6} parent=35 // pred_fallthru
        _
    $region36: #{transformer_block_pallas.6} parent=5 // pred_fallthru
      _
    %p786 = scmp.le.s32.totalorder 2, %s10
    // Predicated region
    $region41: #{transformer_block_pallas.6} parent=5 // pred_check
      %p787 = pneg %p786
    $region42: #{transformer_block_pallas.6} parent=5 // pred_check_branch
      %789 = sbr.rel (%p787) target = $region44
    $region43: #{transformer_block_pallas.6} parent=5 // pred_region
      %s790 = ssub.s32 %s10, 2
      // Predicated region
      $region45: #{transformer_block_pallas.6} parent=43 // pred_check
        %p791 = pneg %p128
      $region46: #{transformer_block_pallas.6} parent=43 // pred_check_branch
        %793 = sbr.rel (%p791) target = $region48
      $region47: #{transformer_block_pallas.6} parent=43 // pred_region
        %s794 = smul.u32 8, %s16
        %p795 = scmp.lt.s32.totalorder %s794, 15
        %s796 = scalar_select %p795, %s794, 15
        %s797 = smul.addr %s796, 3
        %s798 = smul.addr %s797, 8
        %s799 = scalar_lea.vmem %s4, %s798
      $region48: #{transformer_block_pallas.6} parent=43 // pred_fallthru
        _
    $region44: #{transformer_block_pallas.6} parent=5 // pred_fallthru
      _
  $region6: #{transformer_block_pallas.6} parent=0 // loop_footer
    %s14 = sadd.s32 1, %s10
  $region7: #{transformer_block_pallas.6} parent=0 // loop_footer_branch
    %9 = sbr.rel target = $region3
  $region8: #{transformer_block_pallas.6} parent=0 // loop_exit
    _

// kernel: transformer_block_pallas.7
$region0: #{transformer_block_pallas.7}
  #allocation0 [shape = 'u32[]', space=smem, size = 0x4, offset = 0x4, fixed_abs, tag = 'smem constant byte address 0x4 - core index']
  #allocation1 [shape = 'u32[144,128]{1,0:T(1,128)}', space=vmem, size = 0x12000, scoped, tag = 'internal scratch']
  %s0 = inlined_call_operand.vmem [shape: f32[2,18,18,96], index: 0, kind: input, shape index: {}]
  %s1 = inlined_call_operand.vmem [shape: f32[3,3,96], index: 1, kind: input, shape index: {}]
  %s2 = inlined_call_operand.vmem [shape: f32[1,1,96], index: 2, kind: input, shape index: {}]
  %s3 = inlined_call_operand.vmem [shape: f32[2,16,16,96], index: 3, kind: output, shape index: {}]
  %s4 = sld [smem:[#allocation0]]
  $region45: #{transformer_block_pallas.7} parent=0
    _
  %s6 = ssub.s32 1, %s4
  %s7 = scalar_select 0, %s6, %s4
  loop: start=0, step=1, limit=4
  $region2: #{transformer_block_pallas.7} parent=0 // loop_pre_header
    _
  $region3: #{transformer_block_pallas.7} parent=0 // loop_header
    %s9 = sphi 0, %s13
    %p10 = scmp.ge.s32.totalorder %s9, 4
    %s19 = sphi 0, %s21
    %s22 = sphi 0, %s19
    %s23 = sphi 0, %s22
    %s39 = sphi 0, %s23
    %s43 = sphi 0, %s43
    %s45 = sphi 0, %s43
    %s46 = sphi 0, %s45
    %s60 = sphi 0, %s46
    %s64 = sphi 0, %s64
    %s66 = sphi 0, %s64
    %s67 = sphi 0, %s66
    %s81 = sphi 0, %s67
    %s87 = sphi 0, %s89
    %s90 = sphi 0, %s87
    %s91 = sphi 0, %s90
    %s107 = sphi 0, %s91
  $region4: #{transformer_block_pallas.7} parent=0 // loop_header_branch
    %12 = sbr.rel (%p10) target = $region8
  $region5: #{transformer_block_pallas.7} parent=0 // loop_body
    %s14 = ssub.s32 %s9, 1
    %s15 = ssub.s32 %s9, 2
    %s16 = sadd.s32 %s9, 1
    %s17 = ssub.s32 %s9, %s16
    %p18 = scmp.eq.s32.totalorder %s17, 0
    %s20 = sadd.s32 %s19, 1
    %s21 = scalar_select %p18, %s19, %s20
    %p24 = pneg %p18
    %p25 = scmp.eq.s32.totalorder %s9, 1
    %p26 = por %p24, %p25
    %p27 = scmp.ne.s32.totalorder %s19, %s22
    %p28 = scmp.eq.s32.totalorder %s9, 0
    %p29 = por %p27, %p28
    %p30 = scmp.ne.s32.totalorder %s19, %s22
    %p31 = scmp.eq.s32.totalorder %s14, 1
    %p32 = por %p30, %p31
    %p33 = scmp.ne.s32.totalorder %s22, %s23
    %p34 = scmp.eq.s32.totalorder %s14, 0
    %p35 = por %p33, %p34
    %p36 = scmp.ne.s32.totalorder %s22, %s23
    %p37 = scmp.eq.s32.totalorder %s15, 1
    %p38 = por %p36, %p37
    %p40 = scmp.ne.s32.totalorder %s23, %s39
    %p41 = scmp.eq.s32.totalorder %s15, 0
    %p42 = por %p40, %p41
    %s44 = sadd.s32 %s43, 1
    %p47 = scmp.eq.s32.totalorder %s9, 1
    %p48 = scmp.ne.s32.totalorder %s43, %s45
    %p49 = scmp.eq.s32.totalorder %s9, 0
    %p50 = por %p48, %p49
    %p51 = scmp.ne.s32.totalorder %s43, %s45
    %p52 = scmp.eq.s32.totalorder %s14, 1
    %p53 = por %p51, %p52
    %p54 = scmp.ne.s32.totalorder %s45, %s46
    %p55 = scmp.eq.s32.totalorder %s14, 0
    %p56 = por %p54, %p55
    %p57 = scmp.ne.s32.totalorder %s45, %s46
    %p58 = scmp.eq.s32.totalorder %s15, 1
    %p59 = por %p57, %p58
    %p61 = scmp.ne.s32.totalorder %s46, %s60
    %p62 = scmp.eq.s32.totalorder %s15, 0
    %p63 = por %p61, %p62
    %s65 = sadd.s32 %s64, 1
    %p68 = scmp.eq.s32.totalorder %s9, 1
    %p69 = scmp.ne.s32.totalorder %s64, %s66
    %p70 = scmp.eq.s32.totalorder %s9, 0
    %p71 = por %p69, %p70
    %p72 = scmp.ne.s32.totalorder %s64, %s66
    %p73 = scmp.eq.s32.totalorder %s14, 1
    %p74 = por %p72, %p73
    %p75 = scmp.ne.s32.totalorder %s66, %s67
    %p76 = scmp.eq.s32.totalorder %s14, 0
    %p77 = por %p75, %p76
    %p78 = scmp.ne.s32.totalorder %s66, %s67
    %p79 = scmp.eq.s32.totalorder %s15, 1
    %p80 = por %p78, %p79
    %p82 = scmp.ne.s32.totalorder %s67, %s81
    %p83 = scmp.eq.s32.totalorder %s15, 0
    %p84 = por %p82, %p83
    %s85 = ssub.s32 %s9, %s16
    %p86 = scmp.eq.s32.totalorder %s85, 0
    %s88 = sadd.s32 %s87, 1
    %s89 = scalar_select %p86, %s87, %s88
    %p92 = pneg %p86
    %p93 = scmp.eq.s32.totalorder %s9, 1
    %p94 = por %p92, %p93
    %p95 = scmp.ne.s32.totalorder %s87, %s90
    %p96 = scmp.eq.s32.totalorder %s9, 0
    %p97 = por %p95, %p96
    %p98 = scmp.ne.s32.totalorder %s87, %s90
    %p99 = scmp.eq.s32.totalorder %s14, 1
    %p100 = por %p98, %p99
    %p101 = scmp.ne.s32.totalorder %s90, %s91
    %p102 = scmp.eq.s32.totalorder %s14, 0
    %p103 = por %p101, %p102
    %p104 = scmp.ne.s32.totalorder %s90, %s91
    %p105 = scmp.eq.s32.totalorder %s15, 1
    %p106 = por %p104, %p105
    %p108 = scmp.ne.s32.totalorder %s91, %s107
    %p109 = scmp.eq.s32.totalorder %s15, 0
    %p110 = por %p108, %p109
    %p111 = scmp.le.s32.totalorder 1, %s9
    %p112 = scmp.lt.s32.totalorder %s9, 3
    %p113 = pnand %p111, %p112
    %p114 = pneg %p113
    // Predicated region
    $region9: #{transformer_block_pallas.7} parent=5 // pred_check
      _
    $region10: #{transformer_block_pallas.7} parent=5 // pred_check_branch
      %116 = sbr.rel (%p113) target = $region12
    $region11: #{transformer_block_pallas.7} parent=5 // pred_region
      %s117 = ssub.s32 %s9, 1
      // Predicated region
      $region13: #{transformer_block_pallas.7} parent=11 // pred_check
        %p118 = pneg %p56
      $region14: #{transformer_block_pallas.7} parent=11 // pred_check_branch
        %120 = sbr.rel (%p118) target = $region16
      $region15: #{transformer_block_pallas.7} parent=11 // pred_region
        _
      $region16: #{transformer_block_pallas.7} parent=11 // pred_fallthru
        _
      // Predicated region
      $region17: #{transformer_block_pallas.7} parent=11 // pred_check
        %p121 = pneg %p77
      $region18: #{transformer_block_pallas.7} parent=11 // pred_check_branch
        %123 = sbr.rel (%p121) target = $region20
      $region19: #{transformer_block_pallas.7} parent=11 // pred_region
        _
      $region20: #{transformer_block_pallas.7} parent=11 // pred_fallthru
        _
    $region12: #{transformer_block_pallas.7} parent=5 // pred_fallthru
      _
    %p124 = scmp.lt.s32.totalorder %s9, 2
    // Predicated region
    $region21: #{transformer_block_pallas.7} parent=5 // pred_check
      %p125 = pneg %p124
    $region22: #{transformer_block_pallas.7} parent=5 // pred_check_branch
      %127 = sbr.rel (%p125) target = $region24
    $region23: #{transformer_block_pallas.7} parent=5 // pred_region
      // Predicated region
      $region25: #{transformer_block_pallas.7} parent=23 // pred_check
        %p128 = pneg %p29
      $region26: #{transformer_block_pallas.7} parent=23 // pred_check_branch
        %130 = sbr.rel (%p128) target = $region28
      $region27: #{transformer_block_pallas.7} parent=23 // pred_region
        %p131 = scmp.lt.s32.totalorder %s9, 1
        %s132 = scalar_select %p131, %s9, 1
        %s133 = smul.addr %s132, 54
        %s134 = smul.addr %s133, 8
        %s135 = scalar_lea.vmem %s0, %s134
      $region28: #{transformer_block_pallas.7} parent=23 // pred_fallthru
        _
    $region24: #{transformer_block_pallas.7} parent=5 // pred_fallthru
      _
    %p136 = scmp.le.s32.totalorder 1, %s9
    %p137 = scmp.lt.s32.totalorder %s9, 3
    %p138 = pnand %p136, %p137
    %p139 = pneg %p138
    // Predicated region
    $region29: #{transformer_block_pallas.7} parent=5 // pred_check
      _
    $region30: #{transformer_block_pallas.7} parent=5 // pred_check_branch
      %141 = sbr.rel (%p138) target = $region32
    $region31: #{transformer_block_pallas.7} parent=5 // pred_region
      %s142 = ssub.s32 %s9, 1
      %p143 = scmp.lt.s32.totalorder %s14, 1
      %s144 = scalar_select %p143, %s14, 1
      %s145 = smul.addr %s144, 54
      %s146 = smul.addr %s145, 8
      %s147 = scalar_lea.vmem %s0, %s146
      %p148 = pneg %p35
      %p149 = pneg %p32
      %p150 = pneg %p56
      %p151 = pneg %p53
      %p152 = pneg %p77
      %p153 = pneg %p74
      %p154 = pneg %p103
      %p155 = pneg %p100
      %p156 = scmp.lt.s32.totalorder %s14, 1
      %s157 = scalar_select %p156, %s14, 1
      %s158 = smul.addr %s157, 32
      %s159 = smul.addr %s158, 8
      %s160 = scalar_lea.vmem %s3, %s159
      %p161 = scmp.lt.s32.totalorder %s14, 1
      %s162 = scalar_select %p161, %s14, 1
      %s163 = smul.addr %s162, 54
      %s164 = smul.addr %s163, 8
      %s165 = scalar_lea.vmem %s0, %s164
      %p166 = scmp.lt.s32.totalorder %s14, 1
      %s167 = scalar_select %p166, %s14, 1
      %s168 = smul.addr %s167, 32
      %s169 = smul.addr %s168, 8
      %s170 = scalar_lea.vmem %s3, %s169
      %v171 = vld [vmem:[%s165] sm:$0xff]
      %v172 = vld [vmem:[%s165 + $0x8] sm:$0xff]
      %v173 = vld [vmem:[%s165 + $0x10] sm:$0x3]
      %v174 = vld [vmem:[%s165 + $0x18] sm:$0xff]
      %v175 = vld [vmem:[%s165 + $0x20] sm:$0xff]
      %v176 = vld [vmem:[%s165 + $0x28] sm:$0x3]
      %v177 = vld [vmem:[%s165 + $0x30] sm:$0xff]
      %v178 = vld [vmem:[%s165 + $0x38] sm:$0xff]
      %v179 = vld [vmem:[%s165 + $0x40] sm:$0x3]
      %v180 = vld [vmem:[%s165 + $0x48] sm:$0xff]
      %v181 = vld [vmem:[%s165 + $0x50] sm:$0xff]
      %v182 = vld [vmem:[%s165 + $0x58] sm:$0x3]
      %v183 = vld [vmem:[%s165 + $0x60] sm:$0xff]
      %v184 = vld [vmem:[%s165 + $0x68] sm:$0xff]
      %v185 = vld [vmem:[%s165 + $0x70] sm:$0x3]
      %v186 = vld [vmem:[%s165 + $0x78] sm:$0xff]
      %v187 = vld [vmem:[%s165 + $0x80] sm:$0xff]
      %v188 = vld [vmem:[%s165 + $0x88] sm:$0x3]
      %v189 = vld [vmem:[%s165 + $0x90] sm:$0xff]
      %v190 = vld [vmem:[%s165 + $0x98] sm:$0xff]
      %v191 = vld [vmem:[%s165 + $0xa0] sm:$0x3]
      %v192 = vld [vmem:[%s165 + $0xa8] sm:$0xff]
      %v193 = vld [vmem:[%s165 + $0xb0] sm:$0xff]
      %v194 = vld [vmem:[%s165 + $0xb8] sm:$0x3]
      %v195 = vld [vmem:[%s165 + $0xc0] sm:$0xff]
      %v196 = vld [vmem:[%s165 + $0xc8] sm:$0xff]
      %v197 = vld [vmem:[%s165 + $0xd0] sm:$0x3]
      %v198 = vld [vmem:[%s165 + $0xd8] sm:$0xff]
      %v199 = vld [vmem:[%s165 + $0xe0] sm:$0xff]
      %v200 = vld [vmem:[%s165 + $0xe8] sm:$0x3]
      %v201 = vld [vmem:[%s165 + $0xf0] sm:$0xff]
      %v202 = vld [vmem:[%s165 + $0xf8] sm:$0xff]
      %v203 = vld [vmem:[%s165 + $0x100] sm:$0x3]
      %v204 = vld [vmem:[%s165 + $0x108] sm:$0xff]
      %v205 = vld [vmem:[%s165 + $0x110] sm:$0xff]
      %v206 = vld [vmem:[%s165 + $0x118] sm:$0x3]
      %v207 = vld [vmem:[%s165 + $0x120] sm:$0xff]
      %v208 = vld [vmem:[%s165 + $0x128] sm:$0xff]
      %v209 = vld [vmem:[%s165 + $0x130] sm:$0x3]
      %v210 = vld [vmem:[%s165 + $0x138] sm:$0xff]
      %v211 = vld [vmem:[%s165 + $0x140] sm:$0xff]
      %v212 = vld [vmem:[%s165 + $0x148] sm:$0x3]
      %v213 = vld [vmem:[%s165 + $0x150] sm:$0xff]
      %v214 = vld [vmem:[%s165 + $0x158] sm:$0xff]
      %v215 = vld [vmem:[%s165 + $0x160] sm:$0x3]
      %v216 = vld [vmem:[%s165 + $0x168] sm:$0xff]
      %v217 = vld [vmem:[%s165 + $0x170] sm:$0xff]
      %v218 = vld [vmem:[%s165 + $0x178] sm:$0x3]
      %v219 = vld [vmem:[%s165 + $0x180] sm:$0xff]
      %v220 = vld [vmem:[%s165 + $0x188] sm:$0xff]
      %v221 = vld [vmem:[%s165 + $0x190] sm:$0x3]
      %v222 = vld [vmem:[%s165 + $0x198] sm:$0xff]
      %v223 = vld [vmem:[%s165 + $0x1a0] sm:$0xff]
      %v224 = vld [vmem:[%s165 + $0x1a8] sm:$0x3]
      %v225 = vld [vmem:[%s1] sm:$0x7]
      %v226 = vld [vmem:[%s1 + $0x4] sm:$0x7]
      %v227 = vld [vmem:[%s1 + $0x8] sm:$0x7]
      %v228 = vlaneseq
      %v229 = vshrl.u32 %v228, 7
      %v230 = vsub.s32 0, %v229
      %v231 = vrot.slane %v225, %v230
      %v232 = vmul.f32 %v171, %v231
      %v233 = vmul.f32 %v172, %v231
      %v234 = vmul.f32 %v174, %v231
      %v235 = vmul.f32 %v175, %v231
      %v236 = vmul.f32 %v177, %v231
      %v237 = vmul.f32 %v178, %v231
      %v238 = vmul.f32 %v180, %v231
      %v239 = vmul.f32 %v181, %v231
      %v240 = vmul.f32 %v183, %v231
      %v241 = vmul.f32 %v184, %v231
      %v242 = vmul.f32 %v186, %v231
      %v243 = vmul.f32 %v187, %v231
      %v244 = vmul.f32 %v189, %v231
      %v245 = vmul.f32 %v190, %v231
      %v246 = vmul.f32 %v192, %v231
      %v247 = vmul.f32 %v193, %v231
      %v248 = vmul.f32 %v195, %v231
      %v249 = vmul.f32 %v196, %v231
      %v250 = vmul.f32 %v198, %v231
      %v251 = vmul.f32 %v199, %v231
      %v252 = vmul.f32 %v201, %v231
      %v253 = vmul.f32 %v202, %v231
      %v254 = vmul.f32 %v204, %v231
      %v255 = vmul.f32 %v205, %v231
      %v256 = vmul.f32 %v207, %v231
      %v257 = vmul.f32 %v208, %v231
      %v258 = vmul.f32 %v210, %v231
      %v259 = vmul.f32 %v211, %v231
      %v260 = vmul.f32 %v213, %v231
      %v261 = vmul.f32 %v214, %v231
      %v262 = vmul.f32 %v216, %v231
      %v263 = vmul.f32 %v217, %v231
      %v264 = vlaneseq
      %v265 = vshrl.u32 %v264, 7
      %v266 = vsub.s32 1, %v265
      %v267 = vrot.slane %v225, %v266
      %v268 = vmul.f32 %v171, %v267
      %v269 = vmul.f32 %v172, %v267
      %v270 = vmul.f32 %v173, %v267
      %v271 = vmul.f32 %v174, %v267
      %v272 = vmul.f32 %v175, %v267
      %v273 = vmul.f32 %v176, %v267
      %v274 = vmul.f32 %v177, %v267
      %v275 = vmul.f32 %v178, %v267
      %v276 = vmul.f32 %v179, %v267
      %v277 = vmul.f32 %v180, %v267
      %v278 = vmul.f32 %v181, %v267
      %v279 = vmul.f32 %v182, %v267
      %v280 = vmul.f32 %v183, %v267
      %v281 = vmul.f32 %v184, %v267
      %v282 = vmul.f32 %v185, %v267
      %v283 = vmul.f32 %v186, %v267
      %v284 = vmul.f32 %v187, %v267
      %v285 = vmul.f32 %v188, %v267
      %v286 = vmul.f32 %v189, %v267
      %v287 = vmul.f32 %v190, %v267
      %v288 = vmul.f32 %v191, %v267
      %v289 = vmul.f32 %v192, %v267
      %v290 = vmul.f32 %v193, %v267
      %v291 = vmul.f32 %v194, %v267
      %v292 = vmul.f32 %v195, %v267
      %v293 = vmul.f32 %v196, %v267
      %v294 = vmul.f32 %v197, %v267
      %v295 = vmul.f32 %v198, %v267
      %v296 = vmul.f32 %v199, %v267
      %v297 = vmul.f32 %v200, %v267
      %v298 = vmul.f32 %v201, %v267
      %v299 = vmul.f32 %v202, %v267
      %v300 = vmul.f32 %v203, %v267
      %v301 = vmul.f32 %v204, %v267
      %v302 = vmul.f32 %v205, %v267
      %v303 = vmul.f32 %v206, %v267
      %v304 = vmul.f32 %v207, %v267
      %v305 = vmul.f32 %v208, %v267
      %v306 = vmul.f32 %v209, %v267
      %v307 = vmul.f32 %v210, %v267
      %v308 = vmul.f32 %v211, %v267
      %v309 = vmul.f32 %v212, %v267
      %v310 = vmul.f32 %v213, %v267
      %v311 = vmul.f32 %v214, %v267
      %v312 = vmul.f32 %v215, %v267
      %v313 = vmul.f32 %v216, %v267
      %v314 = vmul.f32 %v217, %v267
      %v315 = vmul.f32 %v218, %v267
      %vm364 = vcmask 1046528
      %v365 = vrot.slane %v268, 1
      %v366 = vrot.slane %v269, 1
      %v367 = vsel %vm364, %v365, %v366
      %v368 = vrot.slane %v270, 1
      %v369 = vsel %vm364, %v366, %v368
      %v370 = vrot.slane %v271, 1
      %v371 = vrot.slane %v272, 1
      %v372 = vsel %vm364, %v370, %v371
      %v373 = vrot.slane %v273, 1
      %v374 = vsel %vm364, %v371, %v373
      %v375 = vrot.slane %v274, 1
      %v376 = vrot.slane %v275, 1
      %v377 = vsel %vm364, %v375, %v376
      %v378 = vrot.slane %v276, 1
      %v379 = vsel %vm364, %v376, %v378
      %v380 = vrot.slane %v277, 1
      %v381 = vrot.slane %v278, 1
      %v382 = vsel %vm364, %v380, %v381
      %v383 = vrot.slane %v279, 1
      %v384 = vsel %vm364, %v381, %v383
      %v385 = vrot.slane %v280, 1
      %v386 = vrot.slane %v281, 1
      %v387 = vsel %vm364, %v385, %v386
      %v388 = vrot.slane %v282, 1
      %v389 = vsel %vm364, %v386, %v388
      %v390 = vrot.slane %v283, 1
      %v391 = vrot.slane %v284, 1
      %v392 = vsel %vm364, %v390, %v391
      %v393 = vrot.slane %v285, 1
      %v394 = vsel %vm364, %v391, %v393
      %v395 = vrot.slane %v286, 1
      %v396 = vrot.slane %v287, 1
      %v397 = vsel %vm364, %v395, %v396
      %v398 = vrot.slane %v288, 1
      %v399 = vsel %vm364, %v396, %v398
      %v400 = vrot.slane %v289, 1
      %v401 = vrot.slane %v290, 1
      %v402 = vsel %vm364, %v400, %v401
      %v403 = vrot.slane %v291, 1
      %v404 = vsel %vm364, %v401, %v403
      %v405 = vrot.slane %v292, 1
      %v406 = vrot.slane %v293, 1
      %v407 = vsel %vm364, %v405, %v406
      %v408 = vrot.slane %v294, 1
      %v409 = vsel %vm364, %v406, %v408
      %v410 = vrot.slane %v295, 1
      %v411 = vrot.slane %v296, 1
      %v412 = vsel %vm364, %v410, %v411
      %v413 = vrot.slane %v297, 1
      %v414 = vsel %vm364, %v411, %v413
      %v415 = vrot.slane %v298, 1
      %v416 = vrot.slane %v299, 1
      %v417 = vsel %vm364, %v415, %v416
      %v418 = vrot.slane %v300, 1
      %v419 = vsel %vm364, %v416, %v418
      %v420 = vrot.slane %v301, 1
      %v421 = vrot.slane %v302, 1
      %v422 = vsel %vm364, %v420, %v421
      %v423 = vrot.slane %v303, 1
      %v424 = vsel %vm364, %v421, %v423
      %v425 = vrot.slane %v304, 1
      %v426 = vrot.slane %v305, 1
      %v427 = vsel %vm364, %v425, %v426
      %v428 = vrot.slane %v306, 1
      %v429 = vsel %vm364, %v426, %v428
      %v430 = vrot.slane %v307, 1
      %v431 = vrot.slane %v308, 1
      %v432 = vsel %vm364, %v430, %v431
      %v433 = vrot.slane %v309, 1
      %v434 = vsel %vm364, %v431, %v433
      %v435 = vrot.slane %v310, 1
      %v436 = vrot.slane %v311, 1
      %v437 = vsel %vm364, %v435, %v436
      %v438 = vrot.slane %v312, 1
      %v439 = vsel %vm364, %v436, %v438
      %v440 = vrot.slane %v313, 1
      %v441 = vrot.slane %v314, 1
      %v442 = vsel %vm364, %v440, %v441
      %v443 = vrot.slane %v315, 1
      %v444 = vsel %vm364, %v441, %v443
      %v477 = vadd.f32 %v232, %v367
      %v478 = vadd.f32 %v233, %v369
      %v479 = vadd.f32 %v234, %v372
      %v480 = vadd.f32 %v235, %v374
      %v481 = vadd.f32 %v236, %v377
      %v482 = vadd.f32 %v237, %v379
      %v483 = vadd.f32 %v238, %v382
      %v484 = vadd.f32 %v239, %v384
      %v485 = vadd.f32 %v240, %v387
      %v486 = vadd.f32 %v241, %v389
      %v487 = vadd.f32 %v242, %v392
      %v488 = vadd.f32 %v243, %v394
      %v489 = vadd.f32 %v244, %v397
      %v490 = vadd.f32 %v245, %v399
      %v491 = vadd.f32 %v246, %v402
      %v492 = vadd.f32 %v247, %v404
      %v493 = vadd.f32 %v248, %v407
      %v494 = vadd.f32 %v249, %v409
      %v495 = vadd.f32 %v250, %v412
      %v496 = vadd.f32 %v251, %v414
      %v497 = vadd.f32 %v252, %v417
      %v498 = vadd.f32 %v253, %v419
      %v499 = vadd.f32 %v254, %v422
      %v500 = vadd.f32 %v255, %v424
      %v501 = vadd.f32 %v256, %v427
      %v502 = vadd.f32 %v257, %v429
      %v503 = vadd.f32 %v258, %v432
      %v504 = vadd.f32 %v259, %v434
      %v505 = vadd.f32 %v260, %v437
      %v506 = vadd.f32 %v261, %v439
      %v507 = vadd.f32 %v262, %v442
      %v508 = vadd.f32 %v263, %v444
      %v509 = vlaneseq
      %v510 = vshrl.u32 %v509, 7
      %v511 = vsub.s32 2, %v510
      %v512 = vrot.slane %v225, %v511
      %v513 = vmul.f32 %v171, %v512
      %v514 = vmul.f32 %v172, %v512
      %v515 = vmul.f32 %v173, %v512
      %v516 = vmul.f32 %v174, %v512
      %v517 = vmul.f32 %v175, %v512
      %v518 = vmul.f32 %v176, %v512
      %v519 = vmul.f32 %v177, %v512
      %v520 = vmul.f32 %v178, %v512
      %v521 = vmul.f32 %v179, %v512
      %v522 = vmul.f32 %v180, %v512
      %v523 = vmul.f32 %v181, %v512
      %v524 = vmul.f32 %v182, %v512
      %v525 = vmul.f32 %v183, %v512
      %v526 = vmul.f32 %v184, %v512
      %v527 = vmul.f32 %v185, %v512
      %v528 = vmul.f32 %v186, %v512
      %v529 = vmul.f32 %v187, %v512
      %v530 = vmul.f32 %v188, %v512
      %v531 = vmul.f32 %v189, %v512
      %v532 = vmul.f32 %v190, %v512
      %v533 = vmul.f32 %v191, %v512
      %v534 = vmul.f32 %v192, %v512
      %v535 = vmul.f32 %v193, %v512
      %v536 = vmul.f32 %v194, %v512
      %v537 = vmul.f32 %v195, %v512
      %v538 = vmul.f32 %v196, %v512
      %v539 = vmul.f32 %v197, %v512
      %v540 = vmul.f32 %v198, %v512
      %v541 = vmul.f32 %v199, %v512
      %v542 = vmul.f32 %v200, %v512
      %v543 = vmul.f32 %v201, %v512
      %v544 = vmul.f32 %v202, %v512
      %v545 = vmul.f32 %v203, %v512
      %v546 = vmul.f32 %v204, %v512
      %v547 = vmul.f32 %v205, %v512
      %v548 = vmul.f32 %v206, %v512
      %v549 = vmul.f32 %v207, %v512
      %v550 = vmul.f32 %v208, %v512
      %v551 = vmul.f32 %v209, %v512
      %v552 = vmul.f32 %v210, %v512
      %v553 = vmul.f32 %v211, %v512
      %v554 = vmul.f32 %v212, %v512
      %v555 = vmul.f32 %v213, %v512
      %v556 = vmul.f32 %v214, %v512
      %v557 = vmul.f32 %v215, %v512
      %v558 = vmul.f32 %v216, %v512
      %v559 = vmul.f32 %v217, %v512
      %v560 = vmul.f32 %v218, %v512
      %vm609 = vcmask 1045504
      %v610 = vrot.slane %v513, 2
      %v611 = vrot.slane %v514, 2
      %v612 = vsel %vm609, %v610, %v611
      %v613 = vrot.slane %v515, 2
      %v614 = vsel %vm609, %v611, %v613
      %v615 = vrot.slane %v516, 2
      %v616 = vrot.slane %v517, 2
      %v617 = vsel %vm609, %v615, %v616
      %v618 = vrot.slane %v518, 2
      %v619 = vsel %vm609, %v616, %v618
      %v620 = vrot.slane %v519, 2
      %v621 = vrot.slane %v520, 2
      %v622 = vsel %vm609, %v620, %v621
      %v623 = vrot.slane %v521, 2
      %v624 = vsel %vm609, %v621, %v623
      %v625 = vrot.slane %v522, 2
      %v626 = vrot.slane %v523, 2
      %v627 = vsel %vm609, %v625, %v626
      %v628 = vrot.slane %v524, 2
      %v629 = vsel %vm609, %v626, %v628
      %v630 = vrot.slane %v525, 2
      %v631 = vrot.slane %v526, 2
      %v632 = vsel %vm609, %v630, %v631
      %v633 = vrot.slane %v527, 2
      %v634 = vsel %vm609, %v631, %v633
      %v635 = vrot.slane %v528, 2
      %v636 = vrot.slane %v529, 2
      %v637 = vsel %vm609, %v635, %v636
      %v638 = vrot.slane %v530, 2
      %v639 = vsel %vm609, %v636, %v638
      %v640 = vrot.slane %v531, 2
      %v641 = vrot.slane %v532, 2
      %v642 = vsel %vm609, %v640, %v641
      %v643 = vrot.slane %v533, 2
      %v644 = vsel %vm609, %v641, %v643
      %v645 = vrot.slane %v534, 2
      %v646 = vrot.slane %v535, 2
      %v647 = vsel %vm609, %v645, %v646
      %v648 = vrot.slane %v536, 2
      %v649 = vsel %vm609, %v646, %v648
      %v650 = vrot.slane %v537, 2
      %v651 = vrot.slane %v538, 2
      %v652 = vsel %vm609, %v650, %v651
      %v653 = vrot.slane %v539, 2
      %v654 = vsel %vm609, %v651, %v653
      %v655 = vrot.slane %v540, 2
      %v656 = vrot.slane %v541, 2
      %v657 = vsel %vm609, %v655, %v656
      %v658 = vrot.slane %v542, 2
      %v659 = vsel %vm609, %v656, %v658
      %v660 = vrot.slane %v543, 2
      %v661 = vrot.slane %v544, 2
      %v662 = vsel %vm609, %v660, %v661
      %v663 = vrot.slane %v545, 2
      %v664 = vsel %vm609, %v661, %v663
      %v665 = vrot.slane %v546, 2
      %v666 = vrot.slane %v547, 2
      %v667 = vsel %vm609, %v665, %v666
      %v668 = vrot.slane %v548, 2
      %v669 = vsel %vm609, %v666, %v668
      %v670 = vrot.slane %v549, 2
      %v671 = vrot.slane %v550, 2
      %v672 = vsel %vm609, %v670, %v671
      %v673 = vrot.slane %v551, 2
      %v674 = vsel %vm609, %v671, %v673
      %v675 = vrot.slane %v552, 2
      %v676 = vrot.slane %v553, 2
      %v677 = vsel %vm609, %v675, %v676
      %v678 = vrot.slane %v554, 2
      %v679 = vsel %vm609, %v676, %v678
      %v680 = vrot.slane %v555, 2
      %v681 = vrot.slane %v556, 2
      %v682 = vsel %vm609, %v680, %v681
      %v683 = vrot.slane %v557, 2
      %v684 = vsel %vm609, %v681, %v683
      %v685 = vrot.slane %v558, 2
      %v686 = vrot.slane %v559, 2
      %v687 = vsel %vm609, %v685, %v686
      %v688 = vrot.slane %v560, 2
      %v689 = vsel %vm609, %v686, %v688
      %v722 = vadd.f32 %v477, %v612
      %v723 = vadd.f32 %v478, %v614
      %v724 = vadd.f32 %v479, %v617
      %v725 = vadd.f32 %v480, %v619
      %v726 = vadd.f32 %v481, %v622
      %v727 = vadd.f32 %v482, %v624
      %v728 = vadd.f32 %v483, %v627
      %v729 = vadd.f32 %v484, %v629
      %v730 = vadd.f32 %v485, %v632
      %v731 = vadd.f32 %v486, %v634
      %v732 = vadd.f32 %v487, %v637
      %v733 = vadd.f32 %v488, %v639
      %v734 = vadd.f32 %v489, %v642
      %v735 = vadd.f32 %v490, %v644
      %v736 = vadd.f32 %v491, %v647
      %v737 = vadd.f32 %v492, %v649
      %v738 = vadd.f32 %v493, %v652
      %v739 = vadd.f32 %v494, %v654
      %v740 = vadd.f32 %v495, %v657
      %v741 = vadd.f32 %v496, %v659
      %v742 = vadd.f32 %v497, %v662
      %v743 = vadd.f32 %v498, %v664
      %v744 = vadd.f32 %v499, %v667
      %v745 = vadd.f32 %v500, %v669
      %v746 = vadd.f32 %v501, %v672
      %v747 = vadd.f32 %v502, %v674
      %v748 = vadd.f32 %v503, %v677
      %v749 = vadd.f32 %v504, %v679
      %v750 = vadd.f32 %v505, %v682
      %v751 = vadd.f32 %v506, %v684
      %v752 = vadd.f32 %v507, %v687
      %v753 = vadd.f32 %v508, %v689
      %v754 = vlaneseq
      %v755 = vshrl.u32 %v754, 7
      %v756 = vsub.s32 0, %v755
      %v757 = vrot.slane %v226, %v756
      %v758 = vmul.f32 %v174, %v757
      %v759 = vmul.f32 %v175, %v757
      %v760 = vmul.f32 %v177, %v757
      %v761 = vmul.f32 %v178, %v757
      %v762 = vmul.f32 %v180, %v757
      %v763 = vmul.f32 %v181, %v757
      %v764 = vmul.f32 %v183, %v757
      %v765 = vmul.f32 %v184, %v757
      %v766 = vmul.f32 %v186, %v757
      %v767 = vmul.f32 %v187, %v757
      %v768 = vmul.f32 %v189, %v757
      %v769 = vmul.f32 %v190, %v757
      %v770 = vmul.f32 %v192, %v757
      %v771 = vmul.f32 %v193, %v757
      %v772 = vmul.f32 %v195, %v757
      %v773 = vmul.f32 %v196, %v757
      %v774 = vmul.f32 %v198, %v757
      %v775 = vmul.f32 %v199, %v757
      %v776 = vmul.f32 %v201, %v757
      %v777 = vmul.f32 %v202, %v757
      %v778 = vmul.f32 %v204, %v757
      %v779 = vmul.f32 %v205, %v757
      %v780 = vmul.f32 %v207, %v757
      %v781 = vmul.f32 %v208, %v757
      %v782 = vmul.f32 %v210, %v757
      %v783 = vmul.f32 %v211, %v757
      %v784 = vmul.f32 %v213, %v757
      %v785 = vmul.f32 %v214, %v757
      %v786 = vmul.f32 %v216, %v757
      %v787 = vmul.f32 %v217, %v757
      %v788 = vmul.f32 %v219, %v757
      %v789 = vmul.f32 %v220, %v757
      %v790 = vadd.f32 %v722, %v758
      %v791 = vadd.f32 %v723, %v759
      %v792 = vadd.f32 %v724, %v760
      %v793 = vadd.f32 %v725, %v761
      %v794 = vadd.f32 %v726, %v762
      %v795 = vadd.f32 %v727, %v763
      %v796 = vadd.f32 %v728, %v764
      %v797 = vadd.f32 %v729, %v765
      %v798 = vadd.f32 %v730, %v766
      %v799 = vadd.f32 %v731, %v767
      %v800 = vadd.f32 %v732, %v768
      %v801 = vadd.f32 %v733, %v769
      %v802 = vadd.f32 %v734, %v770
      %v803 = vadd.f32 %v735, %v771
      %v804 = vadd.f32 %v736, %v772
      %v805 = vadd.f32 %v737, %v773
      %v806 = vadd.f32 %v738, %v774
      %v807 = vadd.f32 %v739, %v775
      %v808 = vadd.f32 %v740, %v776
      %v809 = vadd.f32 %v741, %v777
      %v810 = vadd.f32 %v742, %v778
      %v811 = vadd.f32 %v743, %v779
      %v812 = vadd.f32 %v744, %v780
      %v813 = vadd.f32 %v745, %v781
      %v814 = vadd.f32 %v746, %v782
      %v815 = vadd.f32 %v747, %v783
      %v816 = vadd.f32 %v748, %v784
      %v817 = vadd.f32 %v749, %v785
      %v818 = vadd.f32 %v750, %v786
      %v819 = vadd.f32 %v751, %v787
      %v820 = vadd.f32 %v752, %v788
      %v821 = vadd.f32 %v753, %v789
      %v822 = vlaneseq
      %v823 = vshrl.u32 %v822, 7
      %v824 = vsub.s32 1, %v823
      %v825 = vrot.slane %v226, %v824
      %v826 = vmul.f32 %v174, %v825
      %v827 = vmul.f32 %v175, %v825
      %v828 = vmul.f32 %v176, %v825
      %v829 = vmul.f32 %v177, %v825
      %v830 = vmul.f32 %v178, %v825
      %v831 = vmul.f32 %v179, %v825
      %v832 = vmul.f32 %v180, %v825
      %v833 = vmul.f32 %v181, %v825
      %v834 = vmul.f32 %v182, %v825
      %v835 = vmul.f32 %v183, %v825
      %v836 = vmul.f32 %v184, %v825
      %v837 = vmul.f32 %v185, %v825
      %v838 = vmul.f32 %v186, %v825
      %v839 = vmul.f32 %v187, %v825
      %v840 = vmul.f32 %v188, %v825
      %v841 = vmul.f32 %v189, %v825
      %v842 = vmul.f32 %v190, %v825
      %v843 = vmul.f32 %v191, %v825
      %v844 = vmul.f32 %v192, %v825
      %v845 = vmul.f32 %v193, %v825
      %v846 = vmul.f32 %v194, %v825
      %v847 = vmul.f32 %v195, %v825
      %v848 = vmul.f32 %v196, %v825
      %v849 = vmul.f32 %v197, %v825
      %v850 = vmul.f32 %v198, %v825
      %v851 = vmul.f32 %v199, %v825
      %v852 = vmul.f32 %v200, %v825
      %v853 = vmul.f32 %v201, %v825
      %v854 = vmul.f32 %v202, %v825
      %v855 = vmul.f32 %v203, %v825
      %v856 = vmul.f32 %v204, %v825
      %v857 = vmul.f32 %v205, %v825
      %v858 = vmul.f32 %v206, %v825
      %v859 = vmul.f32 %v207, %v825
      %v860 = vmul.f32 %v208, %v825
      %v861 = vmul.f32 %v209, %v825
      %v862 = vmul.f32 %v210, %v825
      %v863 = vmul.f32 %v211, %v825
      %v864 = vmul.f32 %v212, %v825
      %v865 = vmul.f32 %v213, %v825
      %v866 = vmul.f32 %v214, %v825
      %v867 = vmul.f32 %v215, %v825
      %v868 = vmul.f32 %v216, %v825
      %v869 = vmul.f32 %v217, %v825
      %v870 = vmul.f32 %v218, %v825
      %v871 = vmul.f32 %v219, %v825
      %v872 = vmul.f32 %v220, %v825
      %v873 = vmul.f32 %v221, %v825
      %v922 = vrot.slane %v826, 1
      %v923 = vrot.slane %v827, 1
      %v924 = vsel %vm364, %v922, %v923
      %v925 = vrot.slane %v828, 1
      %v926 = vsel %vm364, %v923, %v925
      %v927 = vrot.slane %v829, 1
      %v928 = vrot.slane %v830, 1
      %v929 = vsel %vm364, %v927, %v928
      %v930 = vrot.slane %v831, 1
      %v931 = vsel %vm364, %v928, %v930
      %v932 = vrot.slane %v832, 1
      %v933 = vrot.slane %v833, 1
      %v934 = vsel %vm364, %v932, %v933
      %v935 = vrot.slane %v834, 1
      %v936 = vsel %vm364, %v933, %v935
      %v937 = vrot.slane %v835, 1
      %v938 = vrot.slane %v836, 1
      %v939 = vsel %vm364, %v937, %v938
      %v940 = vrot.slane %v837, 1
      %v941 = vsel %vm364, %v938, %v940
      %v942 = vrot.slane %v838, 1
      %v943 = vrot.slane %v839, 1
      %v944 = vsel %vm364, %v942, %v943
      %v945 = vrot.slane %v840, 1
      %v946 = vsel %vm364, %v943, %v945
      %v947 = vrot.slane %v841, 1
      %v948 = vrot.slane %v842, 1
      %v949 = vsel %vm364, %v947, %v948
      %v950 = vrot.slane %v843, 1
      %v951 = vsel %vm364, %v948, %v950
      %v952 = vrot.slane %v844, 1
      %v953 = vrot.slane %v845, 1
      %v954 = vsel %vm364, %v952, %v953
      %v955 = vrot.slane %v846, 1
      %v956 = vsel %vm364, %v953, %v955
      %v957 = vrot.slane %v847, 1
      %v958 = vrot.slane %v848, 1
      %v959 = vsel %vm364, %v957, %v958
      %v960 = vrot.slane %v849, 1
      %v961 = vsel %vm364, %v958, %v960
      %v962 = vrot.slane %v850, 1
      %v963 = vrot.slane %v851, 1
      %v964 = vsel %vm364, %v962, %v963
      %v965 = vrot.slane %v852, 1
      %v966 = vsel %vm364, %v963, %v965
      %v967 = vrot.slane %v853, 1
      %v968 = vrot.slane %v854, 1
      %v969 = vsel %vm364, %v967, %v968
      %v970 = vrot.slane %v855, 1
      %v971 = vsel %vm364, %v968, %v970
      %v972 = vrot.slane %v856, 1
      %v973 = vrot.slane %v857, 1
      %v974 = vsel %vm364, %v972, %v973
      %v975 = vrot.slane %v858, 1
      %v976 = vsel %vm364, %v973, %v975
      %v977 = vrot.slane %v859, 1
      %v978 = vrot.slane %v860, 1
      %v979 = vsel %vm364, %v977, %v978
      %v980 = vrot.slane %v861, 1
      %v981 = vsel %vm364, %v978, %v980
      %v982 = vrot.slane %v862, 1
      %v983 = vrot.slane %v863, 1
      %v984 = vsel %vm364, %v982, %v983
      %v985 = vrot.slane %v864, 1
      %v986 = vsel %vm364, %v983, %v985
      %v987 = vrot.slane %v865, 1
      %v988 = vrot.slane %v866, 1
      %v989 = vsel %vm364, %v987, %v988
      %v990 = vrot.slane %v867, 1
      %v991 = vsel %vm364, %v988, %v990
      %v992 = vrot.slane %v868, 1
      %v993 = vrot.slane %v869, 1
      %v994 = vsel %vm364, %v992, %v993
      %v995 = vrot.slane %v870, 1
      %v996 = vsel %vm364, %v993, %v995
      %v997 = vrot.slane %v871, 1
      %v998 = vrot.slane %v872, 1
      %v999 = vsel %vm364, %v997, %v998
      %v1000 = vrot.slane %v873, 1
      %v1001 = vsel %vm364, %v998, %v1000
      %v1034 = vadd.f32 %v790, %v924
      %v1035 = vadd.f32 %v791, %v926
      %v1036 = vadd.f32 %v792, %v929
      %v1037 = vadd.f32 %v793, %v931
      %v1038 = vadd.f32 %v794, %v934
      %v1039 = vadd.f32 %v795, %v936
      %v1040 = vadd.f32 %v796, %v939
      %v1041 = vadd.f32 %v797, %v941
      %v1042 = vadd.f32 %v798, %v944
      %v1043 = vadd.f32 %v799, %v946
      %v1044 = vadd.f32 %v800, %v949
      %v1045 = vadd.f32 %v801, %v951
      %v1046 = vadd.f32 %v802, %v954
      %v1047 = vadd.f32 %v803, %v956
      %v1048 = vadd.f32 %v804, %v959
      %v1049 = vadd.f32 %v805, %v961
      %v1050 = vadd.f32 %v806, %v964
      %v1051 = vadd.f32 %v807, %v966
      %v1052 = vadd.f32 %v808, %v969
      %v1053 = vadd.f32 %v809, %v971
      %v1054 = vadd.f32 %v810, %v974
      %v1055 = vadd.f32 %v811, %v976
      %v1056 = vadd.f32 %v812, %v979
      %v1057 = vadd.f32 %v813, %v981
      %v1058 = vadd.f32 %v814, %v984
      %v1059 = vadd.f32 %v815, %v986
      %v1060 = vadd.f32 %v816, %v989
      %v1061 = vadd.f32 %v817, %v991
      %v1062 = vadd.f32 %v818, %v994
      %v1063 = vadd.f32 %v819, %v996
      %v1064 = vadd.f32 %v820, %v999
      %v1065 = vadd.f32 %v821, %v1001
      %v1066 = vlaneseq
      %v1067 = vshrl.u32 %v1066, 7
      %v1068 = vsub.s32 2, %v1067
      %v1069 = vrot.slane %v226, %v1068
      %v1070 = vmul.f32 %v174, %v1069
      %v1071 = vmul.f32 %v175, %v1069
      %v1072 = vmul.f32 %v176, %v1069
      %v1073 = vmul.f32 %v177, %v1069
      %v1074 = vmul.f32 %v178, %v1069
      %v1075 = vmul.f32 %v179, %v1069
      %v1076 = vmul.f32 %v180, %v1069
      %v1077 = vmul.f32 %v181, %v1069
      %v1078 = vmul.f32 %v182, %v1069
      %v1079 = vmul.f32 %v183, %v1069
      %v1080 = vmul.f32 %v184, %v1069
      %v1081 = vmul.f32 %v185, %v1069
      %v1082 = vmul.f32 %v186, %v1069
      %v1083 = vmul.f32 %v187, %v1069
      %v1084 = vmul.f32 %v188, %v1069
      %v1085 = vmul.f32 %v189, %v1069
      %v1086 = vmul.f32 %v190, %v1069
      %v1087 = vmul.f32 %v191, %v1069
      %v1088 = vmul.f32 %v192, %v1069
      %v1089 = vmul.f32 %v193, %v1069
      %v1090 = vmul.f32 %v194, %v1069
      %v1091 = vmul.f32 %v195, %v1069
      %v1092 = vmul.f32 %v196, %v1069
      %v1093 = vmul.f32 %v197, %v1069
      %v1094 = vmul.f32 %v198, %v1069
      %v1095 = vmul.f32 %v199, %v1069
      %v1096 = vmul.f32 %v200, %v1069
      %v1097 = vmul.f32 %v201, %v1069
      %v1098 = vmul.f32 %v202, %v1069
      %v1099 = vmul.f32 %v203, %v1069
      %v1100 = vmul.f32 %v204, %v1069
      %v1101 = vmul.f32 %v205, %v1069
      %v1102 = vmul.f32 %v206, %v1069
      %v1103 = vmul.f32 %v207, %v1069
      %v1104 = vmul.f32 %v208, %v1069
      %v1105 = vmul.f32 %v209, %v1069
      %v1106 = vmul.f32 %v210, %v1069
      %v1107 = vmul.f32 %v211, %v1069
      %v1108 = vmul.f32 %v212, %v1069
      %v1109 = vmul.f32 %v213, %v1069
      %v1110 = vmul.f32 %v214, %v1069
      %v1111 = vmul.f32 %v215, %v1069
      %v1112 = vmul.f32 %v216, %v1069
      %v1113 = vmul.f32 %v217, %v1069
      %v1114 = vmul.f32 %v218, %v1069
      %v1115 = vmul.f32 %v219, %v1069
      %v1116 = vmul.f32 %v220, %v1069
      %v1117 = vmul.f32 %v221, %v1069
      %v1166 = vrot.slane %v1070, 2
      %v1167 = vrot.slane %v1071, 2
      %v1168 = vsel %vm609, %v1166, %v1167
      %v1169 = vrot.slane %v1072, 2
      %v1170 = vsel %vm609, %v1167, %v1169
      %v1171 = vrot.slane %v1073, 2
      %v1172 = vrot.slane %v1074, 2
      %v1173 = vsel %vm609, %v1171, %v1172
      %v1174 = vrot.slane %v1075, 2
      %v1175 = vsel %vm609, %v1172, %v1174
      %v1176 = vrot.slane %v1076, 2
      %v1177 = vrot.slane %v1077, 2
      %v1178 = vsel %vm609, %v1176, %v1177
      %v1179 = vrot.slane %v1078, 2
      %v1180 = vsel %vm609, %v1177, %v1179
      %v1181 = vrot.slane %v1079, 2
      %v1182 = vrot.slane %v1080, 2
      %v1183 = vsel %vm609, %v1181, %v1182
      %v1184 = vrot.slane %v1081, 2
      %v1185 = vsel %vm609, %v1182, %v1184
      %v1186 = vrot.slane %v1082, 2
      %v1187 = vrot.slane %v1083, 2
      %v1188 = vsel %vm609, %v1186, %v1187
      %v1189 = vrot.slane %v1084, 2
      %v1190 = vsel %vm609, %v1187, %v1189
      %v1191 = vrot.slane %v1085, 2
      %v1192 = vrot.slane %v1086, 2
      %v1193 = vsel %vm609, %v1191, %v1192
      %v1194 = vrot.slane %v1087, 2
      %v1195 = vsel %vm609, %v1192, %v1194
      %v1196 = vrot.slane %v1088, 2
      %v1197 = vrot.slane %v1089, 2
      %v1198 = vsel %vm609, %v1196, %v1197
      %v1199 = vrot.slane %v1090, 2
      %v1200 = vsel %vm609, %v1197, %v1199
      %v1201 = vrot.slane %v1091, 2
      %v1202 = vrot.slane %v1092, 2
      %v1203 = vsel %vm609, %v1201, %v1202
      %v1204 = vrot.slane %v1093, 2
      %v1205 = vsel %vm609, %v1202, %v1204
      %v1206 = vrot.slane %v1094, 2
      %v1207 = vrot.slane %v1095, 2
      %v1208 = vsel %vm609, %v1206, %v1207
      %v1209 = vrot.slane %v1096, 2
      %v1210 = vsel %vm609, %v1207, %v1209
      %v1211 = vrot.slane %v1097, 2
      %v1212 = vrot.slane %v1098, 2
      %v1213 = vsel %vm609, %v1211, %v1212
      %v1214 = vrot.slane %v1099, 2
      %v1215 = vsel %vm609, %v1212, %v1214
      %v1216 = vrot.slane %v1100, 2
      %v1217 = vrot.slane %v1101, 2
      %v1218 = vsel %vm609, %v1216, %v1217
      %v1219 = vrot.slane %v1102, 2
      %v1220 = vsel %vm609, %v1217, %v1219
      %v1221 = vrot.slane %v1103, 2
      %v1222 = vrot.slane %v1104, 2
      %v1223 = vsel %vm609, %v1221, %v1222
      %v1224 = vrot.slane %v1105, 2
      %v1225 = vsel %vm609, %v1222, %v1224
      %v1226 = vrot.slane %v1106, 2
      %v1227 = vrot.slane %v1107, 2
      %v1228 = vsel %vm609, %v1226, %v1227
      %v1229 = vrot.slane %v1108, 2
      %v1230 = vsel %vm609, %v1227, %v1229
      %v1231 = vrot.slane %v1109, 2
      %v1232 = vrot.slane %v1110, 2
      %v1233 = vsel %vm609, %v1231, %v1232
      %v1234 = vrot.slane %v1111, 2
      %v1235 = vsel %vm609, %v1232, %v1234
      %v1236 = vrot.slane %v1112, 2
      %v1237 = vrot.slane %v1113, 2
      %v1238 = vsel %vm609, %v1236, %v1237
      %v1239 = vrot.slane %v1114, 2
      %v1240 = vsel %vm609, %v1237, %v1239
      %v1241 = vrot.slane %v1115, 2
      %v1242 = vrot.slane %v1116, 2
      %v1243 = vsel %vm609, %v1241, %v1242
      %v1244 = vrot.slane %v1117, 2
      %v1245 = vsel %vm609, %v1242, %v1244
      %v1278 = vadd.f32 %v1034, %v1168
      %v1279 = vadd.f32 %v1035, %v1170
      %v1280 = vadd.f32 %v1036, %v1173
      %v1281 = vadd.f32 %v1037, %v1175
      %v1282 = vadd.f32 %v1038, %v1178
      %v1283 = vadd.f32 %v1039, %v1180
      %v1284 = vadd.f32 %v1040, %v1183
      %v1285 = vadd.f32 %v1041, %v1185
      %v1286 = vadd.f32 %v1042, %v1188
      %v1287 = vadd.f32 %v1043, %v1190
      %v1288 = vadd.f32 %v1044, %v1193
      %v1289 = vadd.f32 %v1045, %v1195
      %v1290 = vadd.f32 %v1046, %v1198
      %v1291 = vadd.f32 %v1047, %v1200
      %v1292 = vadd.f32 %v1048, %v1203
      %v1293 = vadd.f32 %v1049, %v1205
      %v1294 = vadd.f32 %v1050, %v1208
      %v1295 = vadd.f32 %v1051, %v1210
      %v1296 = vadd.f32 %v1052, %v1213
      %v1297 = vadd.f32 %v1053, %v1215
      %v1298 = vadd.f32 %v1054, %v1218
      %v1299 = vadd.f32 %v1055, %v1220
      %v1300 = vadd.f32 %v1056, %v1223
      %v1301 = vadd.f32 %v1057, %v1225
      %v1302 = vadd.f32 %v1058, %v1228
      %v1303 = vadd.f32 %v1059, %v1230
      %v1304 = vadd.f32 %v1060, %v1233
      %v1305 = vadd.f32 %v1061, %v1235
      %v1306 = vadd.f32 %v1062, %v1238
      %v1307 = vadd.f32 %v1063, %v1240
      %v1308 = vadd.f32 %v1064, %v1243
      %v1309 = vadd.f32 %v1065, %v1245
      %v1310 = vlaneseq
      %v1311 = vshrl.u32 %v1310, 7
      %v1312 = vsub.s32 0, %v1311
      %v1313 = vrot.slane %v227, %v1312
      %v1314 = vmul.f32 %v177, %v1313
      %v1315 = vmul.f32 %v178, %v1313
      %v1316 = vmul.f32 %v180, %v1313
      %v1317 = vmul.f32 %v181, %v1313
      %v1318 = vmul.f32 %v183, %v1313
      %v1319 = vmul.f32 %v184, %v1313
      %v1320 = vmul.f32 %v186, %v1313
      %v1321 = vmul.f32 %v187, %v1313
      %v1322 = vmul.f32 %v189, %v1313
      %v1323 = vmul.f32 %v190, %v1313
      %v1324 = vmul.f32 %v192, %v1313
      %v1325 = vmul.f32 %v193, %v1313
      %v1326 = vmul.f32 %v195, %v1313
      %v1327 = vmul.f32 %v196, %v1313
      %v1328 = vmul.f32 %v198, %v1313
      %v1329 = vmul.f32 %v199, %v1313
      %v1330 = vmul.f32 %v201, %v1313
      %v1331 = vmul.f32 %v202, %v1313
      %v1332 = vmul.f32 %v204, %v1313
      %v1333 = vmul.f32 %v205, %v1313
      %v1334 = vmul.f32 %v207, %v1313
      %v1335 = vmul.f32 %v208, %v1313
      %v1336 = vmul.f32 %v210, %v1313
      %v1337 = vmul.f32 %v211, %v1313
      %v1338 = vmul.f32 %v213, %v1313
      %v1339 = vmul.f32 %v214, %v1313
      %v1340 = vmul.f32 %v216, %v1313
      %v1341 = vmul.f32 %v217, %v1313
      %v1342 = vmul.f32 %v219, %v1313
      %v1343 = vmul.f32 %v220, %v1313
      %v1344 = vmul.f32 %v222, %v1313
      %v1345 = vmul.f32 %v223, %v1313
      %v1346 = vadd.f32 %v1278, %v1314
      %v1347 = vadd.f32 %v1279, %v1315
      %v1348 = vadd.f32 %v1280, %v1316
      %v1349 = vadd.f32 %v1281, %v1317
      %v1350 = vadd.f32 %v1282, %v1318
      %v1351 = vadd.f32 %v1283, %v1319
      %v1352 = vadd.f32 %v1284, %v1320
      %v1353 = vadd.f32 %v1285, %v1321
      %v1354 = vadd.f32 %v1286, %v1322
      %v1355 = vadd.f32 %v1287, %v1323
      %v1356 = vadd.f32 %v1288, %v1324
      %v1357 = vadd.f32 %v1289, %v1325
      %v1358 = vadd.f32 %v1290, %v1326
      %v1359 = vadd.f32 %v1291, %v1327
      %v1360 = vadd.f32 %v1292, %v1328
      %v1361 = vadd.f32 %v1293, %v1329
      %v1362 = vadd.f32 %v1294, %v1330
      %v1363 = vadd.f32 %v1295, %v1331
      %v1364 = vadd.f32 %v1296, %v1332
      %v1365 = vadd.f32 %v1297, %v1333
      %v1366 = vadd.f32 %v1298, %v1334
      %v1367 = vadd.f32 %v1299, %v1335
      %v1368 = vadd.f32 %v1300, %v1336
      %v1369 = vadd.f32 %v1301, %v1337
      %v1370 = vadd.f32 %v1302, %v1338
      %v1371 = vadd.f32 %v1303, %v1339
      %v1372 = vadd.f32 %v1304, %v1340
      %v1373 = vadd.f32 %v1305, %v1341
      %v1374 = vadd.f32 %v1306, %v1342
      %v1375 = vadd.f32 %v1307, %v1343
      %v1376 = vadd.f32 %v1308, %v1344
      %v1377 = vadd.f32 %v1309, %v1345
      %v1378 = vlaneseq
      %v1379 = vshrl.u32 %v1378, 7
      %v1380 = vsub.s32 1, %v1379
      %v1381 = vrot.slane %v227, %v1380
      %v1382 = vmul.f32 %v177, %v1381
      %v1383 = vmul.f32 %v178, %v1381
      %v1384 = vmul.f32 %v179, %v1381
      %v1385 = vmul.f32 %v180, %v1381
      %v1386 = vmul.f32 %v181, %v1381
      %v1387 = vmul.f32 %v182, %v1381
      %v1388 = vmul.f32 %v183, %v1381
      %v1389 = vmul.f32 %v184, %v1381
      %v1390 = vmul.f32 %v185, %v1381
      %v1391 = vmul.f32 %v186, %v1381
      %v1392 = vmul.f32 %v187, %v1381
      %v1393 = vmul.f32 %v188, %v1381
      %v1394 = vmul.f32 %v189, %v1381
      %v1395 = vmul.f32 %v190, %v1381
      %v1396 = vmul.f32 %v191, %v1381
      %v1397 = vmul.f32 %v192, %v1381
      %v1398 = vmul.f32 %v193, %v1381
      %v1399 = vmul.f32 %v194, %v1381
      %v1400 = vmul.f32 %v195, %v1381
      %v1401 = vmul.f32 %v196, %v1381
      %v1402 = vmul.f32 %v197, %v1381
      %v1403 = vmul.f32 %v198, %v1381
      %v1404 = vmul.f32 %v199, %v1381
      %v1405 = vmul.f32 %v200, %v1381
      %v1406 = vmul.f32 %v201, %v1381
      %v1407 = vmul.f32 %v202, %v1381
      %v1408 = vmul.f32 %v203, %v1381
      %v1409 = vmul.f32 %v204, %v1381
      %v1410 = vmul.f32 %v205, %v1381
      %v1411 = vmul.f32 %v206, %v1381
      %v1412 = vmul.f32 %v207, %v1381
      %v1413 = vmul.f32 %v208, %v1381
      %v1414 = vmul.f32 %v209, %v1381
      %v1415 = vmul.f32 %v210, %v1381
      %v1416 = vmul.f32 %v211, %v1381
      %v1417 = vmul.f32 %v212, %v1381
      %v1418 = vmul.f32 %v213, %v1381
      %v1419 = vmul.f32 %v214, %v1381
      %v1420 = vmul.f32 %v215, %v1381
      %v1421 = vmul.f32 %v216, %v1381
      %v1422 = vmul.f32 %v217, %v1381
      %v1423 = vmul.f32 %v218, %v1381
      %v1424 = vmul.f32 %v219, %v1381
      %v1425 = vmul.f32 %v220, %v1381
      %v1426 = vmul.f32 %v221, %v1381
      %v1427 = vmul.f32 %v222, %v1381
      %v1428 = vmul.f32 %v223, %v1381
      %v1429 = vmul.f32 %v224, %v1381
      %v1478 = vrot.slane %v1382, 1
      %v1479 = vrot.slane %v1383, 1
      %v1480 = vsel %vm364, %v1478, %v1479
      %v1481 = vrot.slane %v1384, 1
      %v1482 = vsel %vm364, %v1479, %v1481
      %v1483 = vrot.slane %v1385, 1
      %v1484 = vrot.slane %v1386, 1
      %v1485 = vsel %vm364, %v1483, %v1484
      %v1486 = vrot.slane %v1387, 1
      %v1487 = vsel %vm364, %v1484, %v1486
      %v1488 = vrot.slane %v1388, 1
      %v1489 = vrot.slane %v1389, 1
      %v1490 = vsel %vm364, %v1488, %v1489
      %v1491 = vrot.slane %v1390, 1
      %v1492 = vsel %vm364, %v1489, %v1491
      %v1493 = vrot.slane %v1391, 1
      %v1494 = vrot.slane %v1392, 1
      %v1495 = vsel %vm364, %v1493, %v1494
      %v1496 = vrot.slane %v1393, 1
      %v1497 = vsel %vm364, %v1494, %v1496
      %v1498 = vrot.slane %v1394, 1
      %v1499 = vrot.slane %v1395, 1
      %v1500 = vsel %vm364, %v1498, %v1499
      %v1501 = vrot.slane %v1396, 1
      %v1502 = vsel %vm364, %v1499, %v1501
      %v1503 = vrot.slane %v1397, 1
      %v1504 = vrot.slane %v1398, 1
      %v1505 = vsel %vm364, %v1503, %v1504
      %v1506 = vrot.slane %v1399, 1
      %v1507 = vsel %vm364, %v1504, %v1506
      %v1508 = vrot.slane %v1400, 1
      %v1509 = vrot.slane %v1401, 1
      %v1510 = vsel %vm364, %v1508, %v1509
      %v1511 = vrot.slane %v1402, 1
      %v1512 = vsel %vm364, %v1509, %v1511
      %v1513 = vrot.slane %v1403, 1
      %v1514 = vrot.slane %v1404, 1
      %v1515 = vsel %vm364, %v1513, %v1514
      %v1516 = vrot.slane %v1405, 1
      %v1517 = vsel %vm364, %v1514, %v1516
      %v1518 = vrot.slane %v1406, 1
      %v1519 = vrot.slane %v1407, 1
      %v1520 = vsel %vm364, %v1518, %v1519
      %v1521 = vrot.slane %v1408, 1
      %v1522 = vsel %vm364, %v1519, %v1521
      %v1523 = vrot.slane %v1409, 1
      %v1524 = vrot.slane %v1410, 1
      %v1525 = vsel %vm364, %v1523, %v1524
      %v1526 = vrot.slane %v1411, 1
      %v1527 = vsel %vm364, %v1524, %v1526
      %v1528 = vrot.slane %v1412, 1
      %v1529 = vrot.slane %v1413, 1
      %v1530 = vsel %vm364, %v1528, %v1529
      %v1531 = vrot.slane %v1414, 1
      %v1532 = vsel %vm364, %v1529, %v1531
      %v1533 = vrot.slane %v1415, 1
      %v1534 = vrot.slane %v1416, 1
      %v1535 = vsel %vm364, %v1533, %v1534
      %v1536 = vrot.slane %v1417, 1
      %v1537 = vsel %vm364, %v1534, %v1536
      %v1538 = vrot.slane %v1418, 1
      %v1539 = vrot.slane %v1419, 1
      %v1540 = vsel %vm364, %v1538, %v1539
      %v1541 = vrot.slane %v1420, 1
      %v1542 = vsel %vm364, %v1539, %v1541
      %v1543 = vrot.slane %v1421, 1
      %v1544 = vrot.slane %v1422, 1
      %v1545 = vsel %vm364, %v1543, %v1544
      %v1546 = vrot.slane %v1423, 1
      %v1547 = vsel %vm364, %v1544, %v1546
      %v1548 = vrot.slane %v1424, 1
      %v1549 = vrot.slane %v1425, 1
      %v1550 = vsel %vm364, %v1548, %v1549
      %v1551 = vrot.slane %v1426, 1
      %v1552 = vsel %vm364, %v1549, %v1551
      %v1553 = vrot.slane %v1427, 1
      %v1554 = vrot.slane %v1428, 1
      %v1555 = vsel %vm364, %v1553, %v1554
      %v1556 = vrot.slane %v1429, 1
      %v1557 = vsel %vm364, %v1554, %v1556
      %v1590 = vadd.f32 %v1346, %v1480
      %v1591 = vadd.f32 %v1347, %v1482
      %v1592 = vadd.f32 %v1348, %v1485
      %v1593 = vadd.f32 %v1349, %v1487
      %v1594 = vadd.f32 %v1350, %v1490
      %v1595 = vadd.f32 %v1351, %v1492
      %v1596 = vadd.f32 %v1352, %v1495
      %v1597 = vadd.f32 %v1353, %v1497
      %v1598 = vadd.f32 %v1354, %v1500
      %v1599 = vadd.f32 %v1355, %v1502
      %v1600 = vadd.f32 %v1356, %v1505
      %v1601 = vadd.f32 %v1357, %v1507
      %v1602 = vadd.f32 %v1358, %v1510
      %v1603 = vadd.f32 %v1359, %v1512
      %v1604 = vadd.f32 %v1360, %v1515
      %v1605 = vadd.f32 %v1361, %v1517
      %v1606 = vadd.f32 %v1362, %v1520
      %v1607 = vadd.f32 %v1363, %v1522
      %v1608 = vadd.f32 %v1364, %v1525
      %v1609 = vadd.f32 %v1365, %v1527
      %v1610 = vadd.f32 %v1366, %v1530
      %v1611 = vadd.f32 %v1367, %v1532
      %v1612 = vadd.f32 %v1368, %v1535
      %v1613 = vadd.f32 %v1369, %v1537
      %v1614 = vadd.f32 %v1370, %v1540
      %v1615 = vadd.f32 %v1371, %v1542
      %v1616 = vadd.f32 %v1372, %v1545
      %v1617 = vadd.f32 %v1373, %v1547
      %v1618 = vadd.f32 %v1374, %v1550
      %v1619 = vadd.f32 %v1375, %v1552
      %v1620 = vadd.f32 %v1376, %v1555
      %v1621 = vadd.f32 %v1377, %v1557
      %v1622 = vlaneseq
      %v1623 = vshrl.u32 %v1622, 7
      %v1624 = vsub.s32 2, %v1623
      %v1625 = vrot.slane %v227, %v1624
      %v1626 = vmul.f32 %v177, %v1625
      %v1627 = vmul.f32 %v178, %v1625
      %v1628 = vmul.f32 %v179, %v1625
      %v1629 = vmul.f32 %v180, %v1625
      %v1630 = vmul.f32 %v181, %v1625
      %v1631 = vmul.f32 %v182, %v1625
      %v1632 = vmul.f32 %v183, %v1625
      %v1633 = vmul.f32 %v184, %v1625
      %v1634 = vmul.f32 %v185, %v1625
      %v1635 = vmul.f32 %v186, %v1625
      %v1636 = vmul.f32 %v187, %v1625
      %v1637 = vmul.f32 %v188, %v1625
      %v1638 = vmul.f32 %v189, %v1625
      %v1639 = vmul.f32 %v190, %v1625
      %v1640 = vmul.f32 %v191, %v1625
      %v1641 = vmul.f32 %v192, %v1625
      %v1642 = vmul.f32 %v193, %v1625
      %v1643 = vmul.f32 %v194, %v1625
      %v1644 = vmul.f32 %v195, %v1625
      %v1645 = vmul.f32 %v196, %v1625
      %v1646 = vmul.f32 %v197, %v1625
      %v1647 = vmul.f32 %v198, %v1625
      %v1648 = vmul.f32 %v199, %v1625
      %v1649 = vmul.f32 %v200, %v1625
      %v1650 = vmul.f32 %v201, %v1625
      %v1651 = vmul.f32 %v202, %v1625
      %v1652 = vmul.f32 %v203, %v1625
      %v1653 = vmul.f32 %v204, %v1625
      %v1654 = vmul.f32 %v205, %v1625
      %v1655 = vmul.f32 %v206, %v1625
      %v1656 = vmul.f32 %v207, %v1625
      %v1657 = vmul.f32 %v208, %v1625
      %v1658 = vmul.f32 %v209, %v1625
      %v1659 = vmul.f32 %v210, %v1625
      %v1660 = vmul.f32 %v211, %v1625
      %v1661 = vmul.f32 %v212, %v1625
      %v1662 = vmul.f32 %v213, %v1625
      %v1663 = vmul.f32 %v214, %v1625
      %v1664 = vmul.f32 %v215, %v1625
      %v1665 = vmul.f32 %v216, %v1625
      %v1666 = vmul.f32 %v217, %v1625
      %v1667 = vmul.f32 %v218, %v1625
      %v1668 = vmul.f32 %v219, %v1625
      %v1669 = vmul.f32 %v220, %v1625
      %v1670 = vmul.f32 %v221, %v1625
      %v1671 = vmul.f32 %v222, %v1625
      %v1672 = vmul.f32 %v223, %v1625
      %v1673 = vmul.f32 %v224, %v1625
      %v1722 = vrot.slane %v1626, 2
      %v1723 = vrot.slane %v1627, 2
      %v1724 = vsel %vm609, %v1722, %v1723
      %v1725 = vrot.slane %v1628, 2
      %v1726 = vsel %vm609, %v1723, %v1725
      %v1727 = vrot.slane %v1629, 2
      %v1728 = vrot.slane %v1630, 2
      %v1729 = vsel %vm609, %v1727, %v1728
      %v1730 = vrot.slane %v1631, 2
      %v1731 = vsel %vm609, %v1728, %v1730
      %v1732 = vrot.slane %v1632, 2
      %v1733 = vrot.slane %v1633, 2
      %v1734 = vsel %vm609, %v1732, %v1733
      %v1735 = vrot.slane %v1634, 2
      %v1736 = vsel %vm609, %v1733, %v1735
      %v1737 = vrot.slane %v1635, 2
      %v1738 = vrot.slane %v1636, 2
      %v1739 = vsel %vm609, %v1737, %v1738
      %v1740 = vrot.slane %v1637, 2
      %v1741 = vsel %vm609, %v1738, %v1740
      %v1742 = vrot.slane %v1638, 2
      %v1743 = vrot.slane %v1639, 2
      %v1744 = vsel %vm609, %v1742, %v1743
      %v1745 = vrot.slane %v1640, 2
      %v1746 = vsel %vm609, %v1743, %v1745
      %v1747 = vrot.slane %v1641, 2
      %v1748 = vrot.slane %v1642, 2
      %v1749 = vsel %vm609, %v1747, %v1748
      %v1750 = vrot.slane %v1643, 2
      %v1751 = vsel %vm609, %v1748, %v1750
      %v1752 = vrot.slane %v1644, 2
      %v1753 = vrot.slane %v1645, 2
      %v1754 = vsel %vm609, %v1752, %v1753
      %v1755 = vrot.slane %v1646, 2
      %v1756 = vsel %vm609, %v1753, %v1755
      %v1757 = vrot.slane %v1647, 2
      %v1758 = vrot.slane %v1648, 2
      %v1759 = vsel %vm609, %v1757, %v1758
      %v1760 = vrot.slane %v1649, 2
      %v1761 = vsel %vm609, %v1758, %v1760
      %v1762 = vrot.slane %v1650, 2
      %v1763 = vrot.slane %v1651, 2
      %v1764 = vsel %vm609, %v1762, %v1763
      %v1765 = vrot.slane %v1652, 2
      %v1766 = vsel %vm609, %v1763, %v1765
      %v1767 = vrot.slane %v1653, 2
      %v1768 = vrot.slane %v1654, 2
      %v1769 = vsel %vm609, %v1767, %v1768
      %v1770 = vrot.slane %v1655, 2
      %v1771 = vsel %vm609, %v1768, %v1770
      %v1772 = vrot.slane %v1656, 2
      %v1773 = vrot.slane %v1657, 2
      %v1774 = vsel %vm609, %v1772, %v1773
      %v1775 = vrot.slane %v1658, 2
      %v1776 = vsel %vm609, %v1773, %v1775
      %v1777 = vrot.slane %v1659, 2
      %v1778 = vrot.slane %v1660, 2
      %v1779 = vsel %vm609, %v1777, %v1778
      %v1780 = vrot.slane %v1661, 2
      %v1781 = vsel %vm609, %v1778, %v1780
      %v1782 = vrot.slane %v1662, 2
      %v1783 = vrot.slane %v1663, 2
      %v1784 = vsel %vm609, %v1782, %v1783
      %v1785 = vrot.slane %v1664, 2
      %v1786 = vsel %vm609, %v1783, %v1785
      %v1787 = vrot.slane %v1665, 2
      %v1788 = vrot.slane %v1666, 2
      %v1789 = vsel %vm609, %v1787, %v1788
      %v1790 = vrot.slane %v1667, 2
      %v1791 = vsel %vm609, %v1788, %v1790
      %v1792 = vrot.slane %v1668, 2
      %v1793 = vrot.slane %v1669, 2
      %v1794 = vsel %vm609, %v1792, %v1793
      %v1795 = vrot.slane %v1670, 2
      %v1796 = vsel %vm609, %v1793, %v1795
      %v1797 = vrot.slane %v1671, 2
      %v1798 = vrot.slane %v1672, 2
      %v1799 = vsel %vm609, %v1797, %v1798
      %v1800 = vrot.slane %v1673, 2
      %v1801 = vsel %vm609, %v1798, %v1800
      %v1834 = vadd.f32 %v1590, %v1724
      %v1835 = vadd.f32 %v1591, %v1726
      %v1836 = vadd.f32 %v1592, %v1729
      %v1837 = vadd.f32 %v1593, %v1731
      %v1838 = vadd.f32 %v1594, %v1734
      %v1839 = vadd.f32 %v1595, %v1736
      %v1840 = vadd.f32 %v1596, %v1739
      %v1841 = vadd.f32 %v1597, %v1741
      %v1842 = vadd.f32 %v1598, %v1744
      %v1843 = vadd.f32 %v1599, %v1746
      %v1844 = vadd.f32 %v1600, %v1749
      %v1845 = vadd.f32 %v1601, %v1751
      %v1846 = vadd.f32 %v1602, %v1754
      %v1847 = vadd.f32 %v1603, %v1756
      %v1848 = vadd.f32 %v1604, %v1759
      %v1849 = vadd.f32 %v1605, %v1761
      %v1850 = vadd.f32 %v1606, %v1764
      %v1851 = vadd.f32 %v1607, %v1766
      %v1852 = vadd.f32 %v1608, %v1769
      %v1853 = vadd.f32 %v1609, %v1771
      %v1854 = vadd.f32 %v1610, %v1774
      %v1855 = vadd.f32 %v1611, %v1776
      %v1856 = vadd.f32 %v1612, %v1779
      %v1857 = vadd.f32 %v1613, %v1781
      %v1858 = vadd.f32 %v1614, %v1784
      %v1859 = vadd.f32 %v1615, %v1786
      %v1860 = vadd.f32 %v1616, %v1789
      %v1861 = vadd.f32 %v1617, %v1791
      %v1862 = vadd.f32 %v1618, %v1794
      %v1863 = vadd.f32 %v1619, %v1796
      %v1864 = vadd.f32 %v1620, %v1799
      %v1865 = vadd.f32 %v1621, %v1801
      %v1866 = vld [vmem:[%s2] sm:$0x1]
      %v1868 = vlaneseq
      %v1869 = vshrl.u32 %v1868, 7
      %v1870 = vsub.s32 0, %v1869
      %v1871 = vrot.slane %v1866, %v1870
      %v1873 = vadd.f32 %v1834, %v1871
      %v1874 = vadd.f32 %v1835, %v1871
      %v1875 = vadd.f32 %v1836, %v1871
      %v1876 = vadd.f32 %v1837, %v1871
      %v1877 = vadd.f32 %v1838, %v1871
      %v1878 = vadd.f32 %v1839, %v1871
      %v1879 = vadd.f32 %v1840, %v1871
      %v1880 = vadd.f32 %v1841, %v1871
      %v1881 = vadd.f32 %v1842, %v1871
      %v1882 = vadd.f32 %v1843, %v1871
      %v1883 = vadd.f32 %v1844, %v1871
      %v1884 = vadd.f32 %v1845, %v1871
      %v1885 = vadd.f32 %v1846, %v1871
      %v1886 = vadd.f32 %v1847, %v1871
      %v1887 = vadd.f32 %v1848, %v1871
      %v1888 = vadd.f32 %v1849, %v1871
      %v1889 = vadd.f32 %v1850, %v1871
      %v1890 = vadd.f32 %v1851, %v1871
      %v1891 = vadd.f32 %v1852, %v1871
      %v1892 = vadd.f32 %v1853, %v1871
      %v1893 = vadd.f32 %v1854, %v1871
      %v1894 = vadd.f32 %v1855, %v1871
      %v1895 = vadd.f32 %v1856, %v1871
      %v1896 = vadd.f32 %v1857, %v1871
      %v1897 = vadd.f32 %v1858, %v1871
      %v1898 = vadd.f32 %v1859, %v1871
      %v1899 = vadd.f32 %v1860, %v1871
      %v1900 = vadd.f32 %v1861, %v1871
      %v1901 = vadd.f32 %v1862, %v1871
      %v1902 = vadd.f32 %v1863, %v1871
      %v1903 = vadd.f32 %v1864, %v1871
      %v1904 = vadd.f32 %v1865, %v1871
      %vm1905 = vcmask 785408
      %1906 = vst.msk [vmem:[%s170] sm:$0xff] %vm1905, %v1873
      %1907 = vst.msk [vmem:[%s170 + $0x8] sm:$0xff] %vm1905, %v1874
      %1908 = vst.msk [vmem:[%s170 + $0x10] sm:$0xff] %vm1905, %v1875
      %1909 = vst.msk [vmem:[%s170 + $0x18] sm:$0xff] %vm1905, %v1876
      %1910 = vst.msk [vmem:[%s170 + $0x20] sm:$0xff] %vm1905, %v1877
      %1911 = vst.msk [vmem:[%s170 + $0x28] sm:$0xff] %vm1905, %v1878
      %1912 = vst.msk [vmem:[%s170 + $0x30] sm:$0xff] %vm1905, %v1879
      %1913 = vst.msk [vmem:[%s170 + $0x38] sm:$0xff] %vm1905, %v1880
      %1914 = vst.msk [vmem:[%s170 + $0x40] sm:$0xff] %vm1905, %v1881
      %1915 = vst.msk [vmem:[%s170 + $0x48] sm:$0xff] %vm1905, %v1882
      %1916 = vst.msk [vmem:[%s170 + $0x50] sm:$0xff] %vm1905, %v1883
      %1917 = vst.msk [vmem:[%s170 + $0x58] sm:$0xff] %vm1905, %v1884
      %1918 = vst.msk [vmem:[%s170 + $0x60] sm:$0xff] %vm1905, %v1885
      %1919 = vst.msk [vmem:[%s170 + $0x68] sm:$0xff] %vm1905, %v1886
      %1920 = vst.msk [vmem:[%s170 + $0x70] sm:$0xff] %vm1905, %v1887
      %1921 = vst.msk [vmem:[%s170 + $0x78] sm:$0xff] %vm1905, %v1888
      %1922 = vst.msk [vmem:[%s170 + $0x80] sm:$0xff] %vm1905, %v1889
      %1923 = vst.msk [vmem:[%s170 + $0x88] sm:$0xff] %vm1905, %v1890
      %1924 = vst.msk [vmem:[%s170 + $0x90] sm:$0xff] %vm1905, %v1891
      %1925 = vst.msk [vmem:[%s170 + $0x98] sm:$0xff] %vm1905, %v1892
      %1926 = vst.msk [vmem:[%s170 + $0xa0] sm:$0xff] %vm1905, %v1893
      %1927 = vst.msk [vmem:[%s170 + $0xa8] sm:$0xff] %vm1905, %v1894
      %1928 = vst.msk [vmem:[%s170 + $0xb0] sm:$0xff] %vm1905, %v1895
      %1929 = vst.msk [vmem:[%s170 + $0xb8] sm:$0xff] %vm1905, %v1896
      %1930 = vst.msk [vmem:[%s170 + $0xc0] sm:$0xff] %vm1905, %v1897
      %1931 = vst.msk [vmem:[%s170 + $0xc8] sm:$0xff] %vm1905, %v1898
      %1932 = vst.msk [vmem:[%s170 + $0xd0] sm:$0xff] %vm1905, %v1899
      %1933 = vst.msk [vmem:[%s170 + $0xd8] sm:$0xff] %vm1905, %v1900
      %1934 = vst.msk [vmem:[%s170 + $0xe0] sm:$0xff] %vm1905, %v1901
      %1935 = vst.msk [vmem:[%s170 + $0xe8] sm:$0xff] %vm1905, %v1902
      %1936 = vst.msk [vmem:[%s170 + $0xf0] sm:$0xff] %vm1905, %v1903
      %1937 = vst.msk [vmem:[%s170 + $0xf8] sm:$0xff] %vm1905, %v1904
      %p1938 = scmp.lt.s32.totalorder %s14, 1
      %s1939 = scalar_select %p1938, %s14, 1
      %s1940 = smul.addr %s1939, 32
      %s1941 = smul.addr %s1940, 8
      %s1942 = scalar_lea.vmem %s3, %s1941
      // Predicated region
      $region33: #{transformer_block_pallas.7} parent=31 // pred_check
        %p1943 = pneg %p100
      $region34: #{transformer_block_pallas.7} parent=31 // pred_check_branch
        %1945 = sbr.rel (%p1943) target = $region36
      $region35: #{transformer_block_pallas.7} parent=31 // pred_region
        _
      $region36: #{transformer_block_pallas.7} parent=31 // pred_fallthru
        _
    $region32: #{transformer_block_pallas.7} parent=5 // pred_fallthru
      _
    %p1946 = scmp.le.s32.totalorder 2, %s9
    // Predicated region
    $region37: #{transformer_block_pallas.7} parent=5 // pred_check
      %p1947 = pneg %p1946
    $region38: #{transformer_block_pallas.7} parent=5 // pred_check_branch
      %1949 = sbr.rel (%p1947) target = $region40
    $region39: #{transformer_block_pallas.7} parent=5 // pred_region
      %s1950 = ssub.s32 %s9, 2
      // Predicated region
      $region41: #{transformer_block_pallas.7} parent=39 // pred_check
        %p1951 = pneg %p106
      $region42: #{transformer_block_pallas.7} parent=39 // pred_check_branch
        %1953 = sbr.rel (%p1951) target = $region44
      $region43: #{transformer_block_pallas.7} parent=39 // pred_region
        %p1954 = scmp.lt.s32.totalorder %s15, 1
        %s1955 = scalar_select %p1954, %s15, 1
        %s1956 = smul.addr %s1955, 32
        %s1957 = smul.addr %s1956, 8
        %s1958 = scalar_lea.vmem %s3, %s1957
      $region44: #{transformer_block_pallas.7} parent=39 // pred_fallthru
        _
    $region40: #{transformer_block_pallas.7} parent=5 // pred_fallthru
      _
  $region6: #{transformer_block_pallas.7} parent=0 // loop_footer
    %s13 = sadd.s32 1, %s9
  $region7: #{transformer_block_pallas.7} parent=0 // loop_footer_branch
    %8 = sbr.rel target = $region3
  $region8: #{transformer_block_pallas.7} parent=0 // loop_exit
    _

// kernel: transformer_block_pallas.8
$region0: #{transformer_block_pallas.8}
  #allocation0 [shape = 'u32[]', space=smem, size = 0x4, offset = 0x4, fixed_abs, tag = 'smem constant byte address 0x4 - core index']
  #allocation1 [shape = 'u32[144,128]{1,0:T(1,128)}', space=vmem, size = 0x12000, scoped, tag = 'internal scratch']
  %s0 = inlined_call_operand.vmem [shape: f32[2], index: 0, kind: input, shape index: {}]
  %s1 = inlined_call_operand.vmem [shape: f32[2,256,96], index: 1, kind: input, shape index: {}]
  %s2 = inlined_call_operand.vmem [shape: f32[2,256,32], index: 2, kind: input, shape index: {}]
  %s3 = inlined_call_operand.vmem [shape: f32[32,32], index: 3, kind: input, shape index: {}]
  %s4 = inlined_call_operand.vmem [shape: f32[1,32], index: 4, kind: input, shape index: {}]
  %s5 = inlined_call_operand.vmem [shape: f32[2,256,32], index: 5, kind: output, shape index: {}]
  %s6 = sld [smem:[#allocation0]]
  $region57: #{transformer_block_pallas.8} parent=0
    _
  %s8 = ssub.s32 1, %s6
  %s9 = scalar_select 0, %s8, %s6
  $region1: #{transformer_block_pallas.8} parent=0
    #allocation2 [shape = 'u8[512]{0}', space=smem, size = 0x200, scoped, tag = 'input window, operand 0, single buffered']
    #allocation3 [shape = 's32[2]{0}', space=sflag, size = 0x8, scoped, tag = 'scoped memory for transformer_block_pallas.8']
    %10 = vsyncpa [#allocation3], 0
    loop: start=0, step=1, limit=4
    $region2: #{transformer_block_pallas.8} parent=1 // loop_pre_header
      _
    $region3: #{transformer_block_pallas.8} parent=1 // loop_header
      %s12 = sphi 0, %s16
      %p13 = scmp.ge.s32.totalorder %s12, 4
      %s20 = sphi 0, %s20
      %s22 = sphi 0, %s20
      %s23 = sphi 0, %s22
      %s37 = sphi 0, %s23
      %s43 = sphi 0, %s45
      %s46 = sphi 0, %s43
      %s47 = sphi 0, %s46
      %s63 = sphi 0, %s47
      %s69 = sphi 0, %s71
      %s72 = sphi 0, %s69
      %s73 = sphi 0, %s72
      %s89 = sphi 0, %s73
      %s93 = sphi 0, %s93
      %s95 = sphi 0, %s93
      %s96 = sphi 0, %s95
      %s110 = sphi 0, %s96
      %s114 = sphi 0, %s114
      %s116 = sphi 0, %s114
      %s117 = sphi 0, %s116
      %s131 = sphi 0, %s117
      %s137 = sphi 0, %s139
      %s140 = sphi 0, %s137
      %s141 = sphi 0, %s140
      %s157 = sphi 0, %s141
    $region4: #{transformer_block_pallas.8} parent=1 // loop_header_branch
      %15 = sbr.rel (%p13) target = $region8
    $region5: #{transformer_block_pallas.8} parent=1 // loop_body
      %s17 = ssub.s32 %s12, 1
      %s18 = ssub.s32 %s12, 2
      %s19 = sadd.s32 %s12, 1
      %s21 = sadd.s32 %s20, 1
      %p24 = scmp.eq.s32.totalorder %s12, 1
      %p25 = scmp.ne.s32.totalorder %s20, %s22
      %p26 = scmp.eq.s32.totalorder %s12, 0
      %p27 = por %p25, %p26
      %p28 = scmp.ne.s32.totalorder %s20, %s22
      %p29 = scmp.eq.s32.totalorder %s17, 1
      %p30 = por %p28, %p29
      %p31 = scmp.ne.s32.totalorder %s22, %s23
      %p32 = scmp.eq.s32.totalorder %s17, 0
      %p33 = por %p31, %p32
      %p34 = scmp.ne.s32.totalorder %s22, %s23
      %p35 = scmp.eq.s32.totalorder %s18, 1
      %p36 = por %p34, %p35
      %p38 = scmp.ne.s32.totalorder %s23, %s37
      %p39 = scmp.eq.s32.totalorder %s18, 0
      %p40 = por %p38, %p39
      %s41 = ssub.s32 %s12, %s19
      %p42 = scmp.eq.s32.totalorder %s41, 0
      %s44 = sadd.s32 %s43, 1
      %s45 = scalar_select %p42, %s43, %s44
      %p48 = pneg %p42
      %p49 = scmp.eq.s32.totalorder %s12, 1
      %p50 = por %p48, %p49
      %p51 = scmp.ne.s32.totalorder %s43, %s46
      %p52 = scmp.eq.s32.totalorder %s12, 0
      %p53 = por %p51, %p52
      %p54 = scmp.ne.s32.totalorder %s43, %s46
      %p55 = scmp.eq.s32.totalorder %s17, 1
      %p56 = por %p54, %p55
      %p57 = scmp.ne.s32.totalorder %s46, %s47
      %p58 = scmp.eq.s32.totalorder %s17, 0
      %p59 = por %p57, %p58
      %p60 = scmp.ne.s32.totalorder %s46, %s47
      %p61 = scmp.eq.s32.totalorder %s18, 1
      %p62 = por %p60, %p61
      %p64 = scmp.ne.s32.totalorder %s47, %s63
      %p65 = scmp.eq.s32.totalorder %s18, 0
      %p66 = por %p64, %p65
      %s67 = ssub.s32 %s12, %s19
      %p68 = scmp.eq.s32.totalorder %s67, 0
      %s70 = sadd.s32 %s69, 1
      %s71 = scalar_select %p68, %s69, %s70
      %p74 = pneg %p68
      %p75 = scmp.eq.s32.totalorder %s12, 1
      %p76 = por %p74, %p75
      %p77 = scmp.ne.s32.totalorder %s69, %s72
      %p78 = scmp.eq.s32.totalorder %s12, 0
      %p79 = por %p77, %p78
      %p80 = scmp.ne.s32.totalorder %s69, %s72
      %p81 = scmp.eq.s32.totalorder %s17, 1
      %p82 = por %p80, %p81
      %p83 = scmp.ne.s32.totalorder %s72, %s73
      %p84 = scmp.eq.s32.totalorder %s17, 0
      %p85 = por %p83, %p84
      %p86 = scmp.ne.s32.totalorder %s72, %s73
      %p87 = scmp.eq.s32.totalorder %s18, 1
      %p88 = por %p86, %p87
      %p90 = scmp.ne.s32.totalorder %s73, %s89
      %p91 = scmp.eq.s32.totalorder %s18, 0
      %p92 = por %p90, %p91
      %s94 = sadd.s32 %s93, 1
      %p97 = scmp.eq.s32.totalorder %s12, 1
      %p98 = scmp.ne.s32.totalorder %s93, %s95
      %p99 = scmp.eq.s32.totalorder %s12, 0
      %p100 = por %p98, %p99
      %p101 = scmp.ne.s32.totalorder %s93, %s95
      %p102 = scmp.eq.s32.totalorder %s17, 1
      %p103 = por %p101, %p102
      %p104 = scmp.ne.s32.totalorder %s95, %s96
      %p105 = scmp.eq.s32.totalorder %s17, 0
      %p106 = por %p104, %p105
      %p107 = scmp.ne.s32.totalorder %s95, %s96
      %p108 = scmp.eq.s32.totalorder %s18, 1
      %p109 = por %p107, %p108
      %p111 = scmp.ne.s32.totalorder %s96, %s110
      %p112 = scmp.eq.s32.totalorder %s18, 0
      %p113 = por %p111, %p112
      %s115 = sadd.s32 %s114, 1
      %p118 = scmp.eq.s32.totalorder %s12, 1
      %p119 = scmp.ne.s32.totalorder %s114, %s116
      %p120 = scmp.eq.s32.totalorder %s12, 0
      %p121 = por %p119, %p120
      %p122 = scmp.ne.s32.totalorder %s114, %s116
      %p123 = scmp.eq.s32.totalorder %s17, 1
      %p124 = por %p122, %p123
      %p125 = scmp.ne.s32.totalorder %s116, %s117
      %p126 = scmp.eq.s32.totalorder %s17, 0
      %p127 = por %p125, %p126
      %p128 = scmp.ne.s32.totalorder %s116, %s117
      %p129 = scmp.eq.s32.totalorder %s18, 1
      %p130 = por %p128, %p129
      %p132 = scmp.ne.s32.totalorder %s117, %s131
      %p133 = scmp.eq.s32.totalorder %s18, 0
      %p134 = por %p132, %p133
      %s135 = ssub.s32 %s12, %s19
      %p136 = scmp.eq.s32.totalorder %s135, 0
      %s138 = sadd.s32 %s137, 1
      %s139 = scalar_select %p136, %s137, %s138
      %p142 = pneg %p136
      %p143 = scmp.eq.s32.totalorder %s12, 1
      %p144 = por %p142, %p143
      %p145 = scmp.ne.s32.totalorder %s137, %s140
      %p146 = scmp.eq.s32.totalorder %s12, 0
      %p147 = por %p145, %p146
      %p148 = scmp.ne.s32.totalorder %s137, %s140
      %p149 = scmp.eq.s32.totalorder %s17, 1
      %p150 = por %p148, %p149
      %p151 = scmp.ne.s32.totalorder %s140, %s141
      %p152 = scmp.eq.s32.totalorder %s17, 0
      %p153 = por %p151, %p152
      %p154 = scmp.ne.s32.totalorder %s140, %s141
      %p155 = scmp.eq.s32.totalorder %s18, 1
      %p156 = por %p154, %p155
      %p158 = scmp.ne.s32.totalorder %s141, %s157
      %p159 = scmp.eq.s32.totalorder %s18, 0
      %p160 = por %p158, %p159
      %p161 = scmp.le.s32.totalorder 1, %s12
      %p162 = scmp.lt.s32.totalorder %s12, 3
      %p163 = pnand %p161, %p162
      %p164 = pneg %p163
      // Predicated region
      $region9: #{transformer_block_pallas.8} parent=5 // pred_check
        _
      $region10: #{transformer_block_pallas.8} parent=5 // pred_check_branch
        %166 = sbr.rel (%p163) target = $region12
      $region11: #{transformer_block_pallas.8} parent=5 // pred_region
        %s167 = ssub.s32 %s12, 1
        // Predicated region
        $region13: #{transformer_block_pallas.8} parent=11 // pred_check
          %p168 = pneg %p33
        $region14: #{transformer_block_pallas.8} parent=11 // pred_check_branch
          %170 = sbr.rel (%p168) target = $region16
        $region15: #{transformer_block_pallas.8} parent=11 // pred_region
          %s172 = ssub.s32 16, 16
          %173 = vsyncadd [#allocation3], %s172
          %s175 = sshll.u32 %s0, 4
          %s176 = int_to_ptr.vmem [resolvable:$true] %s175
          %178 = dma.vmem_to_smem %s176, 16, [#allocation2], [#allocation3]
        $region16: #{transformer_block_pallas.8} parent=11 // pred_fallthru
          _
        // Predicated region
        $region17: #{transformer_block_pallas.8} parent=11 // pred_check
          %p179 = pneg %p106
        $region18: #{transformer_block_pallas.8} parent=11 // pred_check_branch
          %181 = sbr.rel (%p179) target = $region20
        $region19: #{transformer_block_pallas.8} parent=11 // pred_region
          _
        $region20: #{transformer_block_pallas.8} parent=11 // pred_fallthru
          _
        // Predicated region
        $region21: #{transformer_block_pallas.8} parent=11 // pred_check
          %p182 = pneg %p127
        $region22: #{transformer_block_pallas.8} parent=11 // pred_check_branch
          %184 = sbr.rel (%p182) target = $region24
        $region23: #{transformer_block_pallas.8} parent=11 // pred_region
          _
        $region24: #{transformer_block_pallas.8} parent=11 // pred_fallthru
          _
      $region12: #{transformer_block_pallas.8} parent=5 // pred_fallthru
        _
      %p185 = scmp.lt.s32.totalorder %s12, 2
      // Predicated region
      $region25: #{transformer_block_pallas.8} parent=5 // pred_check
        %p186 = pneg %p185
      $region26: #{transformer_block_pallas.8} parent=5 // pred_check_branch
        %188 = sbr.rel (%p186) target = $region28
      $region27: #{transformer_block_pallas.8} parent=5 // pred_region
        // Predicated region
        $region29: #{transformer_block_pallas.8} parent=27 // pred_check
          %p189 = pneg %p53
        $region30: #{transformer_block_pallas.8} parent=27 // pred_check_branch
          %191 = sbr.rel (%p189) target = $region32
        $region31: #{transformer_block_pallas.8} parent=27 // pred_region
          %p192 = scmp.lt.s32.totalorder %s12, 1
          %s193 = scalar_select %p192, %s12, 1
          %s194 = smul.addr %s193, 32
          %s195 = smul.addr %s194, 8
          %s196 = scalar_lea.vmem %s1, %s195
        $region32: #{transformer_block_pallas.8} parent=27 // pred_fallthru
          _
        // Predicated region
        $region33: #{transformer_block_pallas.8} parent=27 // pred_check
          %p197 = pneg %p79
        $region34: #{transformer_block_pallas.8} parent=27 // pred_check_branch
          %199 = sbr.rel (%p197) target = $region36
        $region35: #{transformer_block_pallas.8} parent=27 // pred_region
          %p200 = scmp.lt.s32.totalorder %s12, 1
          %s201 = scalar_select %p200, %s12, 1
          %s202 = smul.addr %s201, 32
          %s203 = smul.addr %s202, 8
          %s204 = scalar_lea.vmem %s2, %s203
        $region36: #{transformer_block_pallas.8} parent=27 // pred_fallthru
          _
      $region28: #{transformer_block_pallas.8} parent=5 // pred_fallthru
        _
      %p205 = scmp.le.s32.totalorder 1, %s12
      %p206 = scmp.lt.s32.totalorder %s12, 3
      %p207 = pnand %p205, %p206
      %p208 = pneg %p207
      // Predicated region
      $region37: #{transformer_block_pallas.8} parent=5 // pred_check
        _
      $region38: #{transformer_block_pallas.8} parent=5 // pred_check_branch
        %210 = sbr.rel (%p207) target = $region40
      $region39: #{transformer_block_pallas.8} parent=5 // pred_region
        %s211 = ssub.s32 %s12, 1
        // Predicated region
        $region41: #{transformer_block_pallas.8} parent=39 // pred_check
          %p212 = pneg %p33
        $region42: #{transformer_block_pallas.8} parent=39 // pred_check_branch
          %214 = sbr.rel (%p212) target = $region44
        $region43: #{transformer_block_pallas.8} parent=39 // pred_region
          %215 = dma.done [#allocation3], 16
        $region44: #{transformer_block_pallas.8} parent=39 // pred_fallthru
          _
        %216 = sfence
        %p217 = pneg %p33
        %p218 = pneg %p30
        %p219 = scmp.lt.s32.totalorder %s17, 1
        %s220 = scalar_select %p219, %s17, 1
        %s221 = smul.addr %s220, 32
        %s222 = smul.addr %s221, 8
        %s223 = scalar_lea.vmem %s1, %s222
        %p224 = pneg %p59
        %p225 = pneg %p56
        %p226 = scmp.lt.s32.totalorder %s17, 1
        %s227 = scalar_select %p226, %s17, 1
        %s228 = smul.addr %s227, 32
        %s229 = smul.addr %s228, 8
        %s230 = scalar_lea.vmem %s2, %s229
        %p231 = pneg %p85
        %p232 = pneg %p82
        %p233 = pneg %p106
        %p234 = pneg %p103
        %p235 = pneg %p127
        %p236 = pneg %p124
        %p237 = pneg %p153
        %p238 = pneg %p150
        %p239 = scmp.lt.s32.totalorder %s17, 1
        %s240 = scalar_select %p239, %s17, 1
        %s241 = smul.addr %s240, 32
        %s242 = smul.addr %s241, 8
        %s243 = scalar_lea.vmem %s5, %s242
        %p244 = scmp.lt.s32.totalorder %s17, 1
        %s245 = scalar_select %p244, %s17, 1
        %s246 = smul.addr %s245, 32
        %s247 = smul.addr %s246, 8
        %s248 = scalar_lea.vmem %s1, %s247
        %p249 = scmp.lt.s32.totalorder %s17, 1
        %s250 = scalar_select %p249, %s17, 1
        %s251 = smul.addr %s250, 32
        %s252 = smul.addr %s251, 8
        %s253 = scalar_lea.vmem %s2, %s252
        %p254 = scmp.lt.s32.totalorder %s17, 1
        %s255 = scalar_select %p254, %s17, 1
        %s256 = smul.addr %s255, 32
        %s257 = smul.addr %s256, 8
        %s258 = scalar_lea.vmem %s5, %s257
        %v259 = vld [vmem:[%s3] sm:$0xff]
        %v260 = vld [vmem:[%s3 + $0x8] sm:$0xff]
        %v261 = vld [vmem:[%s3 + $0x10] sm:$0xff]
        %v262 = vld [vmem:[%s3 + $0x18] sm:$0xff]
        %v263 = vld [vmem:[%s253] sm:$0xff]
        %v264 = vld [vmem:[%s253 + $0x8] sm:$0xff]
        %v265 = vld [vmem:[%s253 + $0x10] sm:$0xff]
        %v266 = vld [vmem:[%s253 + $0x18] sm:$0xff]
        %v267 = vld [vmem:[%s253 + $0x20] sm:$0xff]
        %v268 = vld [vmem:[%s253 + $0x28] sm:$0xff]
        %v269 = vld [vmem:[%s253 + $0x30] sm:$0xff]
        %v270 = vld [vmem:[%s253 + $0x38] sm:$0xff]
        %v271 = vld [vmem:[%s253 + $0x40] sm:$0xff]
        %v272 = vld [vmem:[%s253 + $0x48] sm:$0xff]
        %v273 = vld [vmem:[%s253 + $0x50] sm:$0xff]
        %v274 = vld [vmem:[%s253 + $0x58] sm:$0xff]
        %v275 = vld [vmem:[%s253 + $0x60] sm:$0xff]
        %v276 = vld [vmem:[%s253 + $0x68] sm:$0xff]
        %v277 = vld [vmem:[%s253 + $0x70] sm:$0xff]
        %v278 = vld [vmem:[%s253 + $0x78] sm:$0xff]
        %v279 = vld [vmem:[%s253 + $0x80] sm:$0xff]
        %v280 = vld [vmem:[%s253 + $0x88] sm:$0xff]
        %v281 = vld [vmem:[%s253 + $0x90] sm:$0xff]
        %v282 = vld [vmem:[%s253 + $0x98] sm:$0xff]
        %v283 = vld [vmem:[%s253 + $0xa0] sm:$0xff]
        %v284 = vld [vmem:[%s253 + $0xa8] sm:$0xff]
        %v285 = vld [vmem:[%s253 + $0xb0] sm:$0xff]
        %v286 = vld [vmem:[%s253 + $0xb8] sm:$0xff]
        %v287 = vld [vmem:[%s253 + $0xc0] sm:$0xff]
        %v288 = vld [vmem:[%s253 + $0xc8] sm:$0xff]
        %v289 = vld [vmem:[%s253 + $0xd0] sm:$0xff]
        %v290 = vld [vmem:[%s253 + $0xd8] sm:$0xff]
        %v291 = vld [vmem:[%s253 + $0xe0] sm:$0xff]
        %v292 = vld [vmem:[%s253 + $0xe8] sm:$0xff]
        %v293 = vld [vmem:[%s253 + $0xf0] sm:$0xff]
        %v294 = vld [vmem:[%s253 + $0xf8] sm:$0xff]
        %v295 = vld [vmem:[%s4] sm:$0x1]
        %v297 = vlaneseq
        %v298 = vshrl.u32 %v297, 7
        %v299 = vsub.s32 0, %v298
        %v300 = vrot.slane %v295, %v299
        %v302 = vadd.f32 %v263, %v300
        %v303 = vadd.f32 %v264, %v300
        %v304 = vadd.f32 %v265, %v300
        %v305 = vadd.f32 %v266, %v300
        %v306 = vadd.f32 %v267, %v300
        %v307 = vadd.f32 %v268, %v300
        %v308 = vadd.f32 %v269, %v300
        %v309 = vadd.f32 %v270, %v300
        %v310 = vadd.f32 %v271, %v300
        %v311 = vadd.f32 %v272, %v300
        %v312 = vadd.f32 %v273, %v300
        %v313 = vadd.f32 %v274, %v300
        %v314 = vadd.f32 %v275, %v300
        %v315 = vadd.f32 %v276, %v300
        %v316 = vadd.f32 %v277, %v300
        %v317 = vadd.f32 %v278, %v300
        %v318 = vadd.f32 %v279, %v300
        %v319 = vadd.f32 %v280, %v300
        %v320 = vadd.f32 %v281, %v300
        %v321 = vadd.f32 %v282, %v300
        %v322 = vadd.f32 %v283, %v300
        %v323 = vadd.f32 %v284, %v300
        %v324 = vadd.f32 %v285, %v300
        %v325 = vadd.f32 %v286, %v300
        %v326 = vadd.f32 %v287, %v300
        %v327 = vadd.f32 %v288, %v300
        %v328 = vadd.f32 %v289, %v300
        %v329 = vadd.f32 %v290, %v300
        %v330 = vadd.f32 %v291, %v300
        %v331 = vadd.f32 %v292, %v300
        %v332 = vadd.f32 %v293, %v300
        %v333 = vadd.f32 %v294, %v300
        %v334 = vld [vmem:[%s248] sm:$0xff]
        %v335 = vld [vmem:[%s248 + $0x8] sm:$0xff]
        %v336 = vld [vmem:[%s248 + $0x10] sm:$0xff]
        %v337 = vld [vmem:[%s248 + $0x18] sm:$0xff]
        %v338 = vld [vmem:[%s248 + $0x20] sm:$0xff]
        %v339 = vld [vmem:[%s248 + $0x28] sm:$0xff]
        %v340 = vld [vmem:[%s248 + $0x30] sm:$0xff]
        %v341 = vld [vmem:[%s248 + $0x38] sm:$0xff]
        %v342 = vld [vmem:[%s248 + $0x40] sm:$0xff]
        %v343 = vld [vmem:[%s248 + $0x48] sm:$0xff]
        %v344 = vld [vmem:[%s248 + $0x50] sm:$0xff]
        %v345 = vld [vmem:[%s248 + $0x58] sm:$0xff]
        %v346 = vld [vmem:[%s248 + $0x60] sm:$0xff]
        %v347 = vld [vmem:[%s248 + $0x68] sm:$0xff]
        %v348 = vld [vmem:[%s248 + $0x70] sm:$0xff]
        %v349 = vld [vmem:[%s248 + $0x78] sm:$0xff]
        %v350 = vld [vmem:[%s248 + $0x80] sm:$0xff]
        %v351 = vld [vmem:[%s248 + $0x88] sm:$0xff]
        %v352 = vld [vmem:[%s248 + $0x90] sm:$0xff]
        %v353 = vld [vmem:[%s248 + $0x98] sm:$0xff]
        %v354 = vld [vmem:[%s248 + $0xa0] sm:$0xff]
        %v355 = vld [vmem:[%s248 + $0xa8] sm:$0xff]
        %v356 = vld [vmem:[%s248 + $0xb0] sm:$0xff]
        %v357 = vld [vmem:[%s248 + $0xb8] sm:$0xff]
        %v358 = vld [vmem:[%s248 + $0xc0] sm:$0xff]
        %v359 = vld [vmem:[%s248 + $0xc8] sm:$0xff]
        %v360 = vld [vmem:[%s248 + $0xd0] sm:$0xff]
        %v361 = vld [vmem:[%s248 + $0xd8] sm:$0xff]
        %v362 = vld [vmem:[%s248 + $0xe0] sm:$0xff]
        %v363 = vld [vmem:[%s248 + $0xe8] sm:$0xff]
        %v364 = vld [vmem:[%s248 + $0xf0] sm:$0xff]
        %v365 = vld [vmem:[%s248 + $0xf8] sm:$0xff]
        %v366 = vmul.f32 %v334, %v334
        %v367 = vmul.f32 %v335, %v335
        %v368 = vmul.f32 %v336, %v336
        %v369 = vmul.f32 %v337, %v337
        %v370 = vmul.f32 %v338, %v338
        %v371 = vmul.f32 %v339, %v339
        %v372 = vmul.f32 %v340, %v340
        %v373 = vmul.f32 %v341, %v341
        %v374 = vmul.f32 %v342, %v342
        %v375 = vmul.f32 %v343, %v343
        %v376 = vmul.f32 %v344, %v344
        %v377 = vmul.f32 %v345, %v345
        %v378 = vmul.f32 %v346, %v346
        %v379 = vmul.f32 %v347, %v347
        %v380 = vmul.f32 %v348, %v348
        %v381 = vmul.f32 %v349, %v349
        %v382 = vmul.f32 %v350, %v350
        %v383 = vmul.f32 %v351, %v351
        %v384 = vmul.f32 %v352, %v352
        %v385 = vmul.f32 %v353, %v353
        %v386 = vmul.f32 %v354, %v354
        %v387 = vmul.f32 %v355, %v355
        %v388 = vmul.f32 %v356, %v356
        %v389 = vmul.f32 %v357, %v357
        %v390 = vmul.f32 %v358, %v358
        %v391 = vmul.f32 %v359, %v359
        %v392 = vmul.f32 %v360, %v360
        %v393 = vmul.f32 %v361, %v361
        %v394 = vmul.f32 %v362, %v362
        %v395 = vmul.f32 %v363, %v363
        %v396 = vmul.f32 %v364, %v364
        %v397 = vmul.f32 %v365, %v365
        %vm398 = vcmask 130048
        %v399 = vsel %vm398, %v366, 0.0
        %v400 = vsel %vm398, %v367, 0.0
        %v401 = vadd.f32 %v399, %v400
        %v402 = vsel %vm398, %v368, 0.0
        %v403 = vadd.f32 %v401, %v402
        %v404 = vsel %vm398, %v369, 0.0
        %v405 = vadd.f32 %v403, %v404
        %v406 = vsel %vm398, %v370, 0.0
        %v407 = vadd.f32 %v405, %v406
        %v408 = vsel %vm398, %v371, 0.0
        %v409 = vadd.f32 %v407, %v408
        %v410 = vsel %vm398, %v372, 0.0
        %v411 = vadd.f32 %v409, %v410
        %v412 = vsel %vm398, %v373, 0.0
        %v413 = vadd.f32 %v411, %v412
        %v414 = vsel %vm398, %v374, 0.0
        %v415 = vadd.f32 %v413, %v414
        %v416 = vsel %vm398, %v375, 0.0
        %v417 = vadd.f32 %v415, %v416
        %v418 = vsel %vm398, %v376, 0.0
        %v419 = vadd.f32 %v417, %v418
        %v420 = vsel %vm398, %v377, 0.0
        %v421 = vadd.f32 %v419, %v420
        %v422 = vsel %vm398, %v378, 0.0
        %v423 = vadd.f32 %v421, %v422
        %v424 = vsel %vm398, %v379, 0.0
        %v425 = vadd.f32 %v423, %v424
        %v426 = vsel %vm398, %v380, 0.0
        %v427 = vadd.f32 %v425, %v426
        %v428 = vsel %vm398, %v381, 0.0
        %v429 = vadd.f32 %v427, %v428
        %v430 = vsel %vm398, %v382, 0.0
        %v431 = vadd.f32 %v429, %v430
        %v432 = vsel %vm398, %v383, 0.0
        %v433 = vadd.f32 %v431, %v432
        %v434 = vsel %vm398, %v384, 0.0
        %v435 = vadd.f32 %v433, %v434
        %v436 = vsel %vm398, %v385, 0.0
        %v437 = vadd.f32 %v435, %v436
        %v438 = vsel %vm398, %v386, 0.0
        %v439 = vadd.f32 %v437, %v438
        %v440 = vsel %vm398, %v387, 0.0
        %v441 = vadd.f32 %v439, %v440
        %v442 = vsel %vm398, %v388, 0.0
        %v443 = vadd.f32 %v441, %v442
        %v444 = vsel %vm398, %v389, 0.0
        %v445 = vadd.f32 %v443, %v444
        %v446 = vsel %vm398, %v390, 0.0
        %v447 = vadd.f32 %v445, %v446
        %v448 = vsel %vm398, %v391, 0.0
        %v449 = vadd.f32 %v447, %v448
        %v450 = vsel %vm398, %v392, 0.0
        %v451 = vadd.f32 %v449, %v450
        %v452 = vsel %vm398, %v393, 0.0
        %v453 = vadd.f32 %v451, %v452
        %v454 = vsel %vm398, %v394, 0.0
        %v455 = vadd.f32 %v453, %v454
        %v456 = vsel %vm398, %v395, 0.0
        %v457 = vadd.f32 %v455, %v456
        %v458 = vsel %vm398, %v396, 0.0
        %v459 = vadd.f32 %v457, %v458
        %v460 = vsel %vm398, %v397, 0.0
        %v461 = vadd.f32 %v459, %v460
        %v462 = vrot.slane %v461, 4
        %v463 = vadd.f32 %v461, %v462
        %v464 = vrot.slane %v463, 2
        %v465 = vadd.f32 %v463, %v464
        %v466 = vrot.slane %v465, 1
        %v467 = vadd.f32 %v465, %v466
        %v468 = vmax.f32 %v467, 1e-24
        %v469 = vrsqrt.pop %v468
        %vm470 = vcmask 392448
        %v471 = vsel %vm470, %v366, 0.0
        %v472 = vsel %vm470, %v367, 0.0
        %v473 = vadd.f32 %v471, %v472
        %v474 = vsel %vm470, %v368, 0.0
        %v475 = vadd.f32 %v473, %v474
        %v476 = vsel %vm470, %v369, 0.0
        %v477 = vadd.f32 %v475, %v476
        %v478 = vsel %vm470, %v370, 0.0
        %v479 = vadd.f32 %v477, %v478
        %v480 = vsel %vm470, %v371, 0.0
        %v481 = vadd.f32 %v479, %v480
        %v482 = vsel %vm470, %v372, 0.0
        %v483 = vadd.f32 %v481, %v482
        %v484 = vsel %vm470, %v373, 0.0
        %v485 = vadd.f32 %v483, %v484
        %v486 = vsel %vm470, %v374, 0.0
        %v487 = vadd.f32 %v485, %v486
        %v488 = vsel %vm470, %v375, 0.0
        %v489 = vadd.f32 %v487, %v488
        %v490 = vsel %vm470, %v376, 0.0
        %v491 = vadd.f32 %v489, %v490
        %v492 = vsel %vm470, %v377, 0.0
        %v493 = vadd.f32 %v491, %v492
        %v494 = vsel %vm470, %v378, 0.0
        %v495 = vadd.f32 %v493, %v494
        %v496 = vsel %vm470, %v379, 0.0
        %v497 = vadd.f32 %v495, %v496
        %v498 = vsel %vm470, %v380, 0.0
        %v499 = vadd.f32 %v497, %v498
        %v500 = vsel %vm470, %v381, 0.0
        %v501 = vadd.f32 %v499, %v500
        %v502 = vsel %vm470, %v382, 0.0
        %v503 = vadd.f32 %v501, %v502
        %v504 = vsel %vm470, %v383, 0.0
        %v505 = vadd.f32 %v503, %v504
        %v506 = vsel %vm470, %v384, 0.0
        %v507 = vadd.f32 %v505, %v506
        %v508 = vsel %vm470, %v385, 0.0
        %v509 = vadd.f32 %v507, %v508
        %v510 = vsel %vm470, %v386, 0.0
        %v511 = vadd.f32 %v509, %v510
        %v512 = vsel %vm470, %v387, 0.0
        %v513 = vadd.f32 %v511, %v512
        %v514 = vsel %vm470, %v388, 0.0
        %v515 = vadd.f32 %v513, %v514
        %v516 = vsel %vm470, %v389, 0.0
        %v517 = vadd.f32 %v515, %v516
        %v518 = vsel %vm470, %v390, 0.0
        %v519 = vadd.f32 %v517, %v518
        %v520 = vsel %vm470, %v391, 0.0
        %v521 = vadd.f32 %v519, %v520
        %v522 = vsel %vm470, %v392, 0.0
        %v523 = vadd.f32 %v521, %v522
        %v524 = vsel %vm470, %v393, 0.0
        %v525 = vadd.f32 %v523, %v524
        %v526 = vsel %vm470, %v394, 0.0
        %v527 = vadd.f32 %v525, %v526
        %v528 = vsel %vm470, %v395, 0.0
        %v529 = vadd.f32 %v527, %v528
        %v530 = vsel %vm470, %v396, 0.0
        %v531 = vadd.f32 %v529, %v530
        %v532 = vsel %vm470, %v397, 0.0
        %v533 = vadd.f32 %v531, %v532
        %v534 = vrot.slane %v533, 4
        %v535 = vadd.f32 %v533, %v534
        %v536 = vrot.slane %v535, 2
        %v537 = vadd.f32 %v535, %v536
        %v538 = vrot.slane %v537, 1
        %v539 = vadd.f32 %v537, %v538
        %v540 = vmax.f32 %v539, 1e-24
        %v541 = vrsqrt.pop %v540
        %v542 = vmul.f32 %v334, %v469
        %v543 = vmul.f32 %v335, %v469
        %v544 = vmul.f32 %v336, %v469
        %v545 = vmul.f32 %v337, %v469
        %v546 = vmul.f32 %v338, %v469
        %v547 = vmul.f32 %v339, %v469
        %v548 = vmul.f32 %v340, %v469
        %v549 = vmul.f32 %v341, %v469
        %v550 = vmul.f32 %v342, %v469
        %v551 = vmul.f32 %v343, %v469
        %v552 = vmul.f32 %v344, %v469
        %v553 = vmul.f32 %v345, %v469
        %v554 = vmul.f32 %v346, %v469
        %v555 = vmul.f32 %v347, %v469
        %v556 = vmul.f32 %v348, %v469
        %v557 = vmul.f32 %v349, %v469
        %v558 = vmul.f32 %v350, %v469
        %v559 = vmul.f32 %v351, %v469
        %v560 = vmul.f32 %v352, %v469
        %v561 = vmul.f32 %v353, %v469
        %v562 = vmul.f32 %v354, %v469
        %v563 = vmul.f32 %v355, %v469
        %v564 = vmul.f32 %v356, %v469
        %v565 = vmul.f32 %v357, %v469
        %v566 = vmul.f32 %v358, %v469
        %v567 = vmul.f32 %v359, %v469
        %v568 = vmul.f32 %v360, %v469
        %v569 = vmul.f32 %v361, %v469
        %v570 = vmul.f32 %v362, %v469
        %v571 = vmul.f32 %v363, %v469
        %v572 = vmul.f32 %v364, %v469
        %v573 = vmul.f32 %v365, %v469
        %v574 = vmul.f32 %v334, %v541
        %v575 = vmul.f32 %v335, %v541
        %v576 = vmul.f32 %v336, %v541
        %v577 = vmul.f32 %v337, %v541
        %v578 = vmul.f32 %v338, %v541
        %v579 = vmul.f32 %v339, %v541
        %v580 = vmul.f32 %v340, %v541
        %v581 = vmul.f32 %v341, %v541
        %v582 = vmul.f32 %v342, %v541
        %v583 = vmul.f32 %v343, %v541
        %v584 = vmul.f32 %v344, %v541
        %v585 = vmul.f32 %v345, %v541
        %v586 = vmul.f32 %v346, %v541
        %v587 = vmul.f32 %v347, %v541
        %v588 = vmul.f32 %v348, %v541
        %v589 = vmul.f32 %v349, %v541
        %v590 = vmul.f32 %v350, %v541
        %v591 = vmul.f32 %v351, %v541
        %v592 = vmul.f32 %v352, %v541
        %v593 = vmul.f32 %v353, %v541
        %v594 = vmul.f32 %v354, %v541
        %v595 = vmul.f32 %v355, %v541
        %v596 = vmul.f32 %v356, %v541
        %v597 = vmul.f32 %v357, %v541
        %v598 = vmul.f32 %v358, %v541
        %v599 = vmul.f32 %v359, %v541
        %v600 = vmul.f32 %v360, %v541
        %v601 = vmul.f32 %v361, %v541
        %v602 = vmul.f32 %v362, %v541
        %v603 = vmul.f32 %v363, %v541
        %v604 = vmul.f32 %v364, %v541
        %v605 = vmul.f32 %v365, %v541
        %606 = vxpose.xlu0.b32.start [1/16] %v542, 128
        %607 = vxpose.xlu0.b32.cont [2/16] %v543, 128
        %608 = vxpose.xlu0.b32.cont [3/16] %v544, 128
        %609 = vxpose.xlu0.b32.cont [4/16] %v545, 128
        %610 = vxpose.xlu0.b32.cont [5/16] %v546, 128
        %611 = vxpose.xlu0.b32.cont [6/16] %v547, 128
        %612 = vxpose.xlu0.b32.cont [7/16] %v548, 128
        %613 = vxpose.xlu0.b32.cont [8/16] %v549, 128
        %614 = vxpose.xlu0.b32.cont [9/16] %v550, 128
        %615 = vxpose.xlu0.b32.cont [10/16] %v551, 128
        %616 = vxpose.xlu0.b32.cont [11/16] %v552, 128
        %617 = vxpose.xlu0.b32.cont [12/16] %v553, 128
        %618 = vxpose.xlu0.b32.cont [13/16] %v554, 128
        %619 = vxpose.xlu0.b32.cont [14/16] %v555, 128
        %620 = vxpose.xlu0.b32.cont [15/16] %v556, 128
        %621 = vxpose.xlu0.b32.end [16/16] %v557, 128
        %v622 = vpop.trf.xlu0
        %v623 = vpop.trf.xlu0
        %v624 = vpop.trf.xlu0
        %v625 = vpop.trf.xlu0
        %v626 = vpop.trf.xlu0
        %v627 = vpop.trf.xlu0
        %v628 = vpop.trf.xlu0
        %v629 = vpop.trf.xlu0
        %v630 = vpop.trf.xlu0
        %v631 = vpop.trf.xlu0
        %v632 = vpop.trf.xlu0
        %v633 = vpop.trf.xlu0
        %v634 = vpop.trf.xlu0
        %v635 = vpop.trf.xlu0
        %v636 = vpop.trf.xlu0
        %v637 = vpop.trf.xlu0
        %638 = vxpose.xlu0.b32.start [1/16] %v558, 128
        %639 = vxpose.xlu0.b32.cont [2/16] %v559, 128
        %640 = vxpose.xlu0.b32.cont [3/16] %v560, 128
        %641 = vxpose.xlu0.b32.cont [4/16] %v561, 128
        %642 = vxpose.xlu0.b32.cont [5/16] %v562, 128
        %643 = vxpose.xlu0.b32.cont [6/16] %v563, 128
        %644 = vxpose.xlu0.b32.cont [7/16] %v564, 128
        %645 = vxpose.xlu0.b32.cont [8/16] %v565, 128
        %646 = vxpose.xlu0.b32.cont [9/16] %v566, 128
        %647 = vxpose.xlu0.b32.cont [10/16] %v567, 128
        %648 = vxpose.xlu0.b32.cont [11/16] %v568, 128
        %649 = vxpose.xlu0.b32.cont [12/16] %v569, 128
        %650 = vxpose.xlu0.b32.cont [13/16] %v570, 128
        %651 = vxpose.xlu0.b32.cont [14/16] %v571, 128
        %652 = vxpose.xlu0.b32.cont [15/16] %v572, 128
        %653 = vxpose.xlu0.b32.end [16/16] %v573, 128
        %v654 = vpop.trf.xlu0
        %v655 = vpop.trf.xlu0
        %v656 = vpop.trf.xlu0
        %v657 = vpop.trf.xlu0
        %v658 = vpop.trf.xlu0
        %v659 = vpop.trf.xlu0
        %v660 = vpop.trf.xlu0
        %v661 = vpop.trf.xlu0
        %v662 = vpop.trf.xlu0
        %v663 = vpop.trf.xlu0
        %v664 = vpop.trf.xlu0
        %v665 = vpop.trf.xlu0
        %v666 = vpop.trf.xlu0
        %v667 = vpop.trf.xlu0
        %v668 = vpop.trf.xlu0
        %v669 = vpop.trf.xlu0
        %702 = vrot.lane.b32.xlu0 %v574, 96
        %v703 = vpop.permute.xlu0 %702
        %704 = vrot.lane.b32.xlu0 %v575, 96
        %v705 = vpop.permute.xlu0 %704
        %706 = vrot.lane.b32.xlu0 %v576, 96
        %v707 = vpop.permute.xlu0 %706
        %708 = vrot.lane.b32.xlu0 %v577, 96
        %v709 = vpop.permute.xlu0 %708
        %710 = vrot.lane.b32.xlu0 %v578, 96
        %v711 = vpop.permute.xlu0 %710
        %712 = vrot.lane.b32.xlu0 %v579, 96
        %v713 = vpop.permute.xlu0 %712
        %714 = vrot.lane.b32.xlu0 %v580, 96
        %v715 = vpop.permute.xlu0 %714
        %716 = vrot.lane.b32.xlu0 %v581, 96
        %v717 = vpop.permute.xlu0 %716
        %718 = vrot.lane.b32.xlu0 %v582, 96
        %v719 = vpop.permute.xlu0 %718
        %720 = vrot.lane.b32.xlu0 %v583, 96
        %v721 = vpop.permute.xlu0 %720
        %722 = vrot.lane.b32.xlu0 %v584, 96
        %v723 = vpop.permute.xlu0 %722
        %724 = vrot.lane.b32.xlu0 %v585, 96
        %v725 = vpop.permute.xlu0 %724
        %726 = vrot.lane.b32.xlu0 %v586, 96
        %v727 = vpop.permute.xlu0 %726
        %728 = vrot.lane.b32.xlu0 %v587, 96
        %v729 = vpop.permute.xlu0 %728
        %730 = vrot.lane.b32.xlu0 %v588, 96
        %v731 = vpop.permute.xlu0 %730
        %732 = vrot.lane.b32.xlu0 %v589, 96
        %v733 = vpop.permute.xlu0 %732
        %734 = vrot.lane.b32.xlu0 %v590, 96
        %v735 = vpop.permute.xlu0 %734
        %736 = vrot.lane.b32.xlu0 %v591, 96
        %v737 = vpop.permute.xlu0 %736
        %738 = vrot.lane.b32.xlu0 %v592, 96
        %v739 = vpop.permute.xlu0 %738
        %740 = vrot.lane.b32.xlu0 %v593, 96
        %v741 = vpop.permute.xlu0 %740
        %742 = vrot.lane.b32.xlu0 %v594, 96
        %v743 = vpop.permute.xlu0 %742
        %744 = vrot.lane.b32.xlu0 %v595, 96
        %v745 = vpop.permute.xlu0 %744
        %746 = vrot.lane.b32.xlu0 %v596, 96
        %v747 = vpop.permute.xlu0 %746
        %748 = vrot.lane.b32.xlu0 %v597, 96
        %v749 = vpop.permute.xlu0 %748
        %750 = vrot.lane.b32.xlu0 %v598, 96
        %v751 = vpop.permute.xlu0 %750
        %752 = vrot.lane.b32.xlu0 %v599, 96
        %v753 = vpop.permute.xlu0 %752
        %754 = vrot.lane.b32.xlu0 %v600, 96
        %v755 = vpop.permute.xlu0 %754
        %756 = vrot.lane.b32.xlu0 %v601, 96
        %v757 = vpop.permute.xlu0 %756
        %758 = vrot.lane.b32.xlu0 %v602, 96
        %v759 = vpop.permute.xlu0 %758
        %760 = vrot.lane.b32.xlu0 %v603, 96
        %v761 = vpop.permute.xlu0 %760
        %762 = vrot.lane.b32.xlu0 %v604, 96
        %v763 = vpop.permute.xlu0 %762
        %764 = vrot.lane.b32.xlu0 %v605, 96
        %v765 = vpop.permute.xlu0 %764
        %798 = vmatprep.subr.mxu0 0.0
        %799 = vmatpush1.msra.mxu0 %v733
        %800 = vmatprep.subr.mxu0 0.0
        %801 = vmatpush1.msra.mxu0 %v731
        %802 = vmatprep.subr.mxu0 0.0
        %803 = vmatpush1.msra.mxu0 %v729
        %804 = vmatprep.subr.mxu0 0.0
        %805 = vmatpush1.msra.mxu0 %v727
        %806 = vmatprep.subr.mxu0 0.0
        %807 = vmatpush1.msra.mxu0 %v725
        %808 = vmatprep.subr.mxu0 0.0
        %809 = vmatpush1.msra.mxu0 %v723
        %810 = vmatprep.subr.mxu0 0.0
        %811 = vmatpush1.msra.mxu0 %v721
        %812 = vmatprep.subr.mxu0 0.0
        %813 = vmatpush1.msra.mxu0 %v719
        %814 = vmatprep.subr.mxu0 0.0
        %815 = vmatpush1.msra.mxu0 %v717
        %816 = vmatprep.subr.mxu0 0.0
        %817 = vmatpush1.msra.mxu0 %v715
        %818 = vmatprep.subr.mxu0 0.0
        %819 = vmatpush1.msra.mxu0 %v713
        %820 = vmatprep.subr.mxu0 0.0
        %821 = vmatpush1.msra.mxu0 %v711
        %822 = vmatprep.subr.mxu0 0.0
        %823 = vmatpush1.msra.mxu0 %v709
        %824 = vmatprep.subr.mxu0 0.0
        %825 = vmatpush1.msra.mxu0 %v707
        %826 = vmatprep.subr.mxu0 0.0
        %827 = vmatpush1.msra.mxu0 %v705
        %828 = vmatprep.subr.mxu0 0.0
        %829 = vmatpush1.msra.mxu0 %v703
        %830 = vmatprep.subr.mxu0 0.0
        %831 = vmatpush2.msra.mxu0 %v765
        %832 = vmatprep.subr.mxu0 0.0
        %833 = vmatpush2.msra.mxu0 %v763
        %834 = vmatprep.subr.mxu0 0.0
        %835 = vmatpush2.msra.mxu0 %v761
        %836 = vmatprep.subr.mxu0 0.0
        %837 = vmatpush2.msra.mxu0 %v759
        %838 = vmatprep.subr.mxu0 0.0
        %839 = vmatpush2.msra.mxu0 %v757
        %840 = vmatprep.subr.mxu0 0.0
        %841 = vmatpush2.msra.mxu0 %v755
        %842 = vmatprep.subr.mxu0 0.0
        %843 = vmatpush2.msra.mxu0 %v753
        %844 = vmatprep.subr.mxu0 0.0
        %845 = vmatpush2.msra.mxu0 %v751
        %846 = vmatprep.subr.mxu0 0.0
        %847 = vmatpush2.msra.mxu0 %v749
        %848 = vmatprep.subr.mxu0 0.0
        %849 = vmatpush2.msra.mxu0 %v747
        %850 = vmatprep.subr.mxu0 0.0
        %851 = vmatpush2.msra.mxu0 %v745
        %852 = vmatprep.subr.mxu0 0.0
        %853 = vmatpush2.msra.mxu0 %v743
        %854 = vmatprep.subr.mxu0 0.0
        %855 = vmatpush2.msra.mxu0 %v741
        %856 = vmatprep.subr.mxu0 0.0
        %857 = vmatpush2.msra.mxu0 %v739
        %858 = vmatprep.subr.mxu0 0.0
        %859 = vmatpush2.msra.mxu0 %v737
        %860 = vmatprep.subr.mxu0 0.0
        %861 = vmatpush2.msra.mxu0 %v735
        %862 = vmatprep.mubr.f32.mxu0 %v654
        %863 = vmatmul.mubr.f32.gmra.mxu0 %v622
        %v864 = vpop.f32.mrf.mxu0
        %v865 = vadd.f32 0.0, %v864
        %v866 = vpop.f32.mrf.mxu0
        %867 = vmatprep.mubr.f32.mxu0 %v655
        %868 = vmatmul.mubr.f32.gmra.mxu0 %v623
        %v869 = vpop.f32.mrf.mxu0
        %v870 = vadd.f32 0.0, %v869
        %v871 = vpop.f32.mrf.mxu0
        %872 = vdwg.mxu0
        %s873 = sld [smem:[#allocation2]]
        %v874 = vstv %s873
        %v875 = vmul.f32 %v865, %v874
        %v876 = vmul.f32 %v870, %v874
        %v877 = vsel %vm398, %v875, -inf
        %878 = vmax.xlane.f32.xlu0 %v877
        %v879 = vpop.xlane.xlu0 %878
        %v880 = vsel %vm398, %v876, -inf
        %881 = vmax.xlane.f32.xlu0 %v880
        %v882 = vpop.xlane.xlu0 %881
        %v883 = vsub.f32 %v875, %v879
        %v884 = vsub.f32 %v876, %v882
        %v885 = vmul.f32 %v883, 1.442695
        %v886 = vpow.pop %v885
        %v887 = vmul.f32 %v884, 1.442695
        %v888 = vpow.pop %v887
        %v889 = vsel %vm398, %v886, 0.0
        %890 = vadd.xlane.f32.xlu0 %v889
        %v891 = vpop.xlane.xlu0 %890
        %v892 = vsel %vm398, %v888, 0.0
        %893 = vadd.xlane.f32.xlu0 %v892
        %v894 = vpop.xlane.xlu0 %893
        %v895 = vrcp.pop %v891
        %v896 = vrcp.pop %v894
        %v897 = vmul.f32 %v886, %v895
        %v898 = vmul.f32 %v888, %v896
        %931 = vrot.lane.b32.xlu0 %v334, 64
        %v932 = vpop.permute.xlu0 %931
        %933 = vrot.lane.b32.xlu0 %v335, 64
        %v934 = vpop.permute.xlu0 %933
        %935 = vrot.lane.b32.xlu0 %v336, 64
        %v936 = vpop.permute.xlu0 %935
        %937 = vrot.lane.b32.xlu0 %v337, 64
        %v938 = vpop.permute.xlu0 %937
        %939 = vrot.lane.b32.xlu0 %v338, 64
        %v940 = vpop.permute.xlu0 %939
        %941 = vrot.lane.b32.xlu0 %v339, 64
        %v942 = vpop.permute.xlu0 %941
        %943 = vrot.lane.b32.xlu0 %v340, 64
        %v944 = vpop.permute.xlu0 %943
        %945 = vrot.lane.b32.xlu0 %v341, 64
        %v946 = vpop.permute.xlu0 %945
        %947 = vrot.lane.b32.xlu0 %v342, 64
        %v948 = vpop.permute.xlu0 %947
        %949 = vrot.lane.b32.xlu0 %v343, 64
        %v950 = vpop.permute.xlu0 %949
        %951 = vrot.lane.b32.xlu0 %v344, 64
        %v952 = vpop.permute.xlu0 %951
        %953 = vrot.lane.b32.xlu0 %v345, 64
        %v954 = vpop.permute.xlu0 %953
        %955 = vrot.lane.b32.xlu0 %v346, 64
        %v956 = vpop.permute.xlu0 %955
        %957 = vrot.lane.b32.xlu0 %v347, 64
        %v958 = vpop.permute.xlu0 %957
        %959 = vrot.lane.b32.xlu0 %v348, 64
        %v960 = vpop.permute.xlu0 %959
        %961 = vrot.lane.b32.xlu0 %v349, 64
        %v962 = vpop.permute.xlu0 %961
        %963 = vrot.lane.b32.xlu0 %v350, 64
        %v964 = vpop.permute.xlu0 %963
        %965 = vrot.lane.b32.xlu0 %v351, 64
        %v966 = vpop.permute.xlu0 %965
        %967 = vrot.lane.b32.xlu0 %v352, 64
        %v968 = vpop.permute.xlu0 %967
        %969 = vrot.lane.b32.xlu0 %v353, 64
        %v970 = vpop.permute.xlu0 %969
        %971 = vrot.lane.b32.xlu0 %v354, 64
        %v972 = vpop.permute.xlu0 %971
        %973 = vrot.lane.b32.xlu0 %v355, 64
        %v974 = vpop.permute.xlu0 %973
        %975 = vrot.lane.b32.xlu0 %v356, 64
        %v976 = vpop.permute.xlu0 %975
        %977 = vrot.lane.b32.xlu0 %v357, 64
        %v978 = vpop.permute.xlu0 %977
        %979 = vrot.lane.b32.xlu0 %v358, 64
        %v980 = vpop.permute.xlu0 %979
        %981 = vrot.lane.b32.xlu0 %v359, 64
        %v982 = vpop.permute.xlu0 %981
        %983 = vrot.lane.b32.xlu0 %v360, 64
        %v984 = vpop.permute.xlu0 %983
        %985 = vrot.lane.b32.xlu0 %v361, 64
        %v986 = vpop.permute.xlu0 %985
        %987 = vrot.lane.b32.xlu0 %v362, 64
        %v988 = vpop.permute.xlu0 %987
        %989 = vrot.lane.b32.xlu0 %v363, 64
        %v990 = vpop.permute.xlu0 %989
        %991 = vrot.lane.b32.xlu0 %v364, 64
        %v992 = vpop.permute.xlu0 %991
        %993 = vrot.lane.b32.xlu0 %v365, 64
        %v994 = vpop.permute.xlu0 %993
        %v995 = vsel %vm398, %v932, 0
        %v997 = vsel %vm398, %v934, 0
        %v999 = vsel %vm398, %v936, 0
        %v1001 = vsel %vm398, %v938, 0
        %v1003 = vsel %vm398, %v940, 0
        %v1005 = vsel %vm398, %v942, 0
        %v1007 = vsel %vm398, %v944, 0
        %v1009 = vsel %vm398, %v946, 0
        %v1011 = vsel %vm398, %v948, 0
        %v1013 = vsel %vm398, %v950, 0
        %v1015 = vsel %vm398, %v952, 0
        %v1017 = vsel %vm398, %v954, 0
        %v1019 = vsel %vm398, %v956, 0
        %v1021 = vsel %vm398, %v958, 0
        %v1023 = vsel %vm398, %v960, 0
        %v1025 = vsel %vm398, %v962, 0
        %v1027 = vsel %vm398, %v964, 0
        %v1029 = vsel %vm398, %v966, 0
        %v1031 = vsel %vm398, %v968, 0
        %v1033 = vsel %vm398, %v970, 0
        %v1035 = vsel %vm398, %v972, 0
        %v1037 = vsel %vm398, %v974, 0
        %v1039 = vsel %vm398, %v976, 0
        %v1041 = vsel %vm398, %v978, 0
        %v1043 = vsel %vm398, %v980, 0
        %v1045 = vsel %vm398, %v982, 0
        %v1047 = vsel %vm398, %v984, 0
        %v1049 = vsel %vm398, %v986, 0
        %v1051 = vsel %vm398, %v988, 0
        %v1053 = vsel %vm398, %v990, 0
        %v1055 = vsel %vm398, %v992, 0
        %v1057 = vsel %vm398, %v994, 0
        %v1060 = vsel %vm398, %v897, 0
        %v1063 = vsel %vm398, %v898, 0
        %1065 = vmatprep.subr.mxu0 0.0
        %1066 = vmatpush1.xpose.msra.mxu0 0.0
        %1067 = vmatprep.subr.mxu0 0.0
        %1068 = vmatpush1.xpose.msra.mxu0 0.0
        %1069 = vmatprep.subr.mxu0 0.0
        %1070 = vmatpush1.xpose.msra.mxu0 0.0
        %1071 = vmatprep.subr.mxu0 0.0
        %1072 = vmatpush1.xpose.msra.mxu0 0.0
        %1073 = vmatprep.subr.mxu0 0.0
        %1074 = vmatpush1.xpose.msra.mxu0 0.0
        %1075 = vmatprep.subr.mxu0 0.0
        %1076 = vmatpush1.xpose.msra.mxu0 0.0
        %1077 = vmatprep.subr.mxu0 0.0
        %1078 = vmatpush1.xpose.msra.mxu0 0.0
        %1079 = vmatprep.subr.mxu0 0.0
        %1080 = vmatpush1.xpose.msra.mxu0 0.0
        %1081 = vmatprep.subr.mxu0 0.0
        %1082 = vmatpush1.xpose.msra.mxu0 0.0
        %1083 = vmatprep.subr.mxu0 0.0
        %1084 = vmatpush1.xpose.msra.mxu0 0.0
        %1085 = vmatprep.subr.mxu0 0.0
        %1086 = vmatpush1.xpose.msra.mxu0 0.0
        %1087 = vmatprep.subr.mxu0 0.0
        %1088 = vmatpush1.xpose.msra.mxu0 0.0
        %1089 = vmatprep.subr.mxu0 0.0
        %1090 = vmatpush1.xpose.msra.mxu0 0.0
        %1091 = vmatprep.subr.mxu0 0.0
        %1092 = vmatpush1.xpose.msra.mxu0 0.0
        %1093 = vmatprep.subr.mxu0 0.0
        %1094 = vmatpush1.xpose.msra.mxu0 %v1063
        %1095 = vmatprep.subr.mxu0 0.0
        %1096 = vmatpush1.xpose.msra.mxu0 %v1060
        %1097 = vmatprep.subr.mxu0 0.0
        %1098 = vmatpush2.xpose.msra.mxu0 0.0
        %1099 = vmatprep.subr.mxu0 0.0
        %1100 = vmatpush2.xpose.msra.mxu0 0.0
        %1101 = vmatprep.subr.mxu0 0.0
        %1102 = vmatpush2.xpose.msra.mxu0 0.0
        %1103 = vmatprep.subr.mxu0 0.0
        %1104 = vmatpush2.xpose.msra.mxu0 0.0
        %1105 = vmatprep.subr.mxu0 0.0
        %1106 = vmatpush2.xpose.msra.mxu0 0.0
        %1107 = vmatprep.subr.mxu0 0.0
        %1108 = vmatpush2.xpose.msra.mxu0 0.0
        %1109 = vmatprep.subr.mxu0 0.0
        %1110 = vmatpush2.xpose.msra.mxu0 0.0
        %1111 = vmatprep.subr.mxu0 0.0
        %1112 = vmatpush2.xpose.msra.mxu0 0.0
        %1113 = vmatprep.subr.mxu0 0.0
        %1114 = vmatpush2.xpose.msra.mxu0 0.0
        %1115 = vmatprep.subr.mxu0 0.0
        %1116 = vmatpush2.xpose.msra.mxu0 0.0
        %1117 = vmatprep.subr.mxu0 0.0
        %1118 = vmatpush2.xpose.msra.mxu0 0.0
        %1119 = vmatprep.subr.mxu0 0.0
        %1120 = vmatpush2.xpose.msra.mxu0 0.0
        %1121 = vmatprep.subr.mxu0 0.0
        %1122 = vmatpush2.xpose.msra.mxu0 0.0
        %1123 = vmatprep.subr.mxu0 0.0
        %1124 = vmatpush2.xpose.msra.mxu0 0.0
        %1125 = vmatprep.subr.mxu0 0.0
        %1126 = vmatpush2.xpose.msra.mxu0 0.0
        %1127 = vmatprep.subr.mxu0 0.0
        %1128 = vmatpush2.xpose.msra.mxu0 0.0
        %1129 = vmatprep.mubr.f32.mxu0 0.0
        %1130 = vmatmul.mubr.f32.gmra.mxu0 %v995
        %v1131 = vpop.f32.mrf.mxu0
        %v1132 = vadd.f32 0.0, %v1131
        %v1133 = vpop.f32.mrf.mxu0
        %1134 = vmatprep.mubr.f32.mxu0 0.0
        %1135 = vmatmul.mubr.f32.gmra.mxu0 %v997
        %v1136 = vpop.f32.mrf.mxu0
        %v1137 = vadd.f32 0.0, %v1136
        %v1138 = vpop.f32.mrf.mxu0
        %1139 = vmatprep.mubr.f32.mxu0 0.0
        %1140 = vmatmul.mubr.f32.gmra.mxu0 %v999
        %v1141 = vpop.f32.mrf.mxu0
        %v1142 = vadd.f32 0.0, %v1141
        %v1143 = vpop.f32.mrf.mxu0
        %1144 = vmatprep.mubr.f32.mxu0 0.0
        %1145 = vmatmul.mubr.f32.gmra.mxu0 %v1001
        %v1146 = vpop.f32.mrf.mxu0
        %v1147 = vadd.f32 0.0, %v1146
        %v1148 = vpop.f32.mrf.mxu0
        %1149 = vmatprep.mubr.f32.mxu0 0.0
        %1150 = vmatmul.mubr.f32.gmra.mxu0 %v1003
        %v1151 = vpop.f32.mrf.mxu0
        %v1152 = vadd.f32 0.0, %v1151
        %v1153 = vpop.f32.mrf.mxu0
        %1154 = vmatprep.mubr.f32.mxu0 0.0
        %1155 = vmatmul.mubr.f32.gmra.mxu0 %v1005
        %v1156 = vpop.f32.mrf.mxu0
        %v1157 = vadd.f32 0.0, %v1156
        %v1158 = vpop.f32.mrf.mxu0
        %1159 = vmatprep.mubr.f32.mxu0 0.0
        %1160 = vmatmul.mubr.f32.gmra.mxu0 %v1007
        %v1161 = vpop.f32.mrf.mxu0
        %v1162 = vadd.f32 0.0, %v1161
        %v1163 = vpop.f32.mrf.mxu0
        %1164 = vmatprep.mubr.f32.mxu0 0.0
        %1165 = vmatmul.mubr.f32.gmra.mxu0 %v1009
        %v1166 = vpop.f32.mrf.mxu0
        %v1167 = vadd.f32 0.0, %v1166
        %v1168 = vpop.f32.mrf.mxu0
        %1169 = vmatprep.mubr.f32.mxu0 0.0
        %1170 = vmatmul.mubr.f32.gmra.mxu0 %v1011
        %v1171 = vpop.f32.mrf.mxu0
        %v1172 = vadd.f32 0.0, %v1171
        %v1173 = vpop.f32.mrf.mxu0
        %1174 = vmatprep.mubr.f32.mxu0 0.0
        %1175 = vmatmul.mubr.f32.gmra.mxu0 %v1013
        %v1176 = vpop.f32.mrf.mxu0
        %v1177 = vadd.f32 0.0, %v1176
        %v1178 = vpop.f32.mrf.mxu0
        %1179 = vmatprep.mubr.f32.mxu0 0.0
        %1180 = vmatmul.mubr.f32.gmra.mxu0 %v1015
        %v1181 = vpop.f32.mrf.mxu0
        %v1182 = vadd.f32 0.0, %v1181
        %v1183 = vpop.f32.mrf.mxu0
        %1184 = vmatprep.mubr.f32.mxu0 0.0
        %1185 = vmatmul.mubr.f32.gmra.mxu0 %v1017
        %v1186 = vpop.f32.mrf.mxu0
        %v1187 = vadd.f32 0.0, %v1186
        %v1188 = vpop.f32.mrf.mxu0
        %1189 = vmatprep.mubr.f32.mxu0 0.0
        %1190 = vmatmul.mubr.f32.gmra.mxu0 %v1019
        %v1191 = vpop.f32.mrf.mxu0
        %v1192 = vadd.f32 0.0, %v1191
        %v1193 = vpop.f32.mrf.mxu0
        %1194 = vmatprep.mubr.f32.mxu0 0.0
        %1195 = vmatmul.mubr.f32.gmra.mxu0 %v1021
        %v1196 = vpop.f32.mrf.mxu0
        %v1197 = vadd.f32 0.0, %v1196
        %v1198 = vpop.f32.mrf.mxu0
        %1199 = vmatprep.mubr.f32.mxu0 0.0
        %1200 = vmatmul.mubr.f32.gmra.mxu0 %v1023
        %v1201 = vpop.f32.mrf.mxu0
        %v1202 = vadd.f32 0.0, %v1201
        %v1203 = vpop.f32.mrf.mxu0
        %1204 = vmatprep.mubr.f32.mxu0 0.0
        %1205 = vmatmul.mubr.f32.gmra.mxu0 %v1025
        %v1206 = vpop.f32.mrf.mxu0
        %v1207 = vadd.f32 0.0, %v1206
        %v1208 = vpop.f32.mrf.mxu0
        %1209 = vmatprep.mubr.f32.mxu0 0.0
        %1210 = vmatmul.mubr.f32.gmra.mxu0 %v1027
        %v1211 = vpop.f32.mrf.mxu0
        %v1212 = vadd.f32 0.0, %v1211
        %v1213 = vpop.f32.mrf.mxu0
        %1214 = vmatprep.mubr.f32.mxu0 0.0
        %1215 = vmatmul.mubr.f32.gmra.mxu0 %v1029
        %v1216 = vpop.f32.mrf.mxu0
        %v1217 = vadd.f32 0.0, %v1216
        %v1218 = vpop.f32.mrf.mxu0
        %1219 = vmatprep.mubr.f32.mxu0 0.0
        %1220 = vmatmul.mubr.f32.gmra.mxu0 %v1031
        %v1221 = vpop.f32.mrf.mxu0
        %v1222 = vadd.f32 0.0, %v1221
        %v1223 = vpop.f32.mrf.mxu0
        %1224 = vmatprep.mubr.f32.mxu0 0.0
        %1225 = vmatmul.mubr.f32.gmra.mxu0 %v1033
        %v1226 = vpop.f32.mrf.mxu0
        %v1227 = vadd.f32 0.0, %v1226
        %v1228 = vpop.f32.mrf.mxu0
        %1229 = vmatprep.mubr.f32.mxu0 0.0
        %1230 = vmatmul.mubr.f32.gmra.mxu0 %v1035
        %v1231 = vpop.f32.mrf.mxu0
        %v1232 = vadd.f32 0.0, %v1231
        %v1233 = vpop.f32.mrf.mxu0
        %1234 = vmatprep.mubr.f32.mxu0 0.0
        %1235 = vmatmul.mubr.f32.gmra.mxu0 %v1037
        %v1236 = vpop.f32.mrf.mxu0
        %v1237 = vadd.f32 0.0, %v1236
        %v1238 = vpop.f32.mrf.mxu0
        %1239 = vmatprep.mubr.f32.mxu0 0.0
        %1240 = vmatmul.mubr.f32.gmra.mxu0 %v1039
        %v1241 = vpop.f32.mrf.mxu0
        %v1242 = vadd.f32 0.0, %v1241
        %v1243 = vpop.f32.mrf.mxu0
        %1244 = vmatprep.mubr.f32.mxu0 0.0
        %1245 = vmatmul.mubr.f32.gmra.mxu0 %v1041
        %v1246 = vpop.f32.mrf.mxu0
        %v1247 = vadd.f32 0.0, %v1246
        %v1248 = vpop.f32.mrf.mxu0
        %1249 = vmatprep.mubr.f32.mxu0 0.0
        %1250 = vmatmul.mubr.f32.gmra.mxu0 %v1043
        %v1251 = vpop.f32.mrf.mxu0
        %v1252 = vadd.f32 0.0, %v1251
        %v1253 = vpop.f32.mrf.mxu0
        %1254 = vmatprep.mubr.f32.mxu0 0.0
        %1255 = vmatmul.mubr.f32.gmra.mxu0 %v1045
        %v1256 = vpop.f32.mrf.mxu0
        %v1257 = vadd.f32 0.0, %v1256
        %v1258 = vpop.f32.mrf.mxu0
        %1259 = vmatprep.mubr.f32.mxu0 0.0
        %1260 = vmatmul.mubr.f32.gmra.mxu0 %v1047
        %v1261 = vpop.f32.mrf.mxu0
        %v1262 = vadd.f32 0.0, %v1261
        %v1263 = vpop.f32.mrf.mxu0
        %1264 = vmatprep.mubr.f32.mxu0 0.0
        %1265 = vmatmul.mubr.f32.gmra.mxu0 %v1049
        %v1266 = vpop.f32.mrf.mxu0
        %v1267 = vadd.f32 0.0, %v1266
        %v1268 = vpop.f32.mrf.mxu0
        %1269 = vmatprep.mubr.f32.mxu0 0.0
        %1270 = vmatmul.mubr.f32.gmra.mxu0 %v1051
        %v1271 = vpop.f32.mrf.mxu0
        %v1272 = vadd.f32 0.0, %v1271
        %v1273 = vpop.f32.mrf.mxu0
        %1274 = vmatprep.mubr.f32.mxu0 0.0
        %1275 = vmatmul.mubr.f32.gmra.mxu0 %v1053
        %v1276 = vpop.f32.mrf.mxu0
        %v1277 = vadd.f32 0.0, %v1276
        %v1278 = vpop.f32.mrf.mxu0
        %1279 = vmatprep.mubr.f32.mxu0 0.0
        %1280 = vmatmul.mubr.f32.gmra.mxu0 %v1055
        %v1281 = vpop.f32.mrf.mxu0
        %v1282 = vadd.f32 0.0, %v1281
        %v1283 = vpop.f32.mrf.mxu0
        %1284 = vmatprep.mubr.f32.mxu0 0.0
        %1285 = vmatmul.mubr.f32.gmra.mxu0 %v1057
        %v1286 = vpop.f32.mrf.mxu0
        %v1287 = vadd.f32 0.0, %v1286
        %v1288 = vpop.f32.mrf.mxu0
        %1289 = vdwg.mxu0
        %v1291 = vsel %vm398, %v1132, 0
        %v1294 = vsel %vm398, %v1137, 0
        %v1297 = vsel %vm398, %v1142, 0
        %v1300 = vsel %vm398, %v1147, 0
        %v1303 = vsel %vm398, %v1152, 0
        %v1306 = vsel %vm398, %v1157, 0
        %v1309 = vsel %vm398, %v1162, 0
        %v1312 = vsel %vm398, %v1167, 0
        %v1315 = vsel %vm398, %v1172, 0
        %v1318 = vsel %vm398, %v1177, 0
        %v1321 = vsel %vm398, %v1182, 0
        %v1324 = vsel %vm398, %v1187, 0
        %v1327 = vsel %vm398, %v1192, 0
        %v1330 = vsel %vm398, %v1197, 0
        %v1333 = vsel %vm398, %v1202, 0
        %v1336 = vsel %vm398, %v1207, 0
        %v1339 = vsel %vm398, %v1212, 0
        %v1342 = vsel %vm398, %v1217, 0
        %v1345 = vsel %vm398, %v1222, 0
        %v1348 = vsel %vm398, %v1227, 0
        %v1351 = vsel %vm398, %v1232, 0
        %v1354 = vsel %vm398, %v1237, 0
        %v1357 = vsel %vm398, %v1242, 0
        %v1360 = vsel %vm398, %v1247, 0
        %v1363 = vsel %vm398, %v1252, 0
        %v1366 = vsel %vm398, %v1257, 0
        %v1369 = vsel %vm398, %v1262, 0
        %v1372 = vsel %vm398, %v1267, 0
        %v1375 = vsel %vm398, %v1272, 0
        %v1378 = vsel %vm398, %v1277, 0
        %v1381 = vsel %vm398, %v1282, 0
        %v1384 = vsel %vm398, %v1287, 0
        %1386 = vmatprep.subr.mxu0 0.0
        %1387 = vmatpush1.msra.mxu0 0.0
        %1388 = vmatprep.subr.mxu0 0.0
        %1389 = vmatpush1.msra.mxu0 0.0
        %1390 = vmatprep.subr.mxu0 0.0
        %1391 = vmatpush1.msra.mxu0 0.0
        %1392 = vmatprep.subr.mxu0 0.0
        %1393 = vmatpush1.msra.mxu0 0.0
        %1394 = vmatprep.subr.mxu0 0.0
        %1395 = vmatpush1.msra.mxu0 0.0
        %1396 = vmatprep.subr.mxu0 0.0
        %1397 = vmatpush1.msra.mxu0 0.0
        %1398 = vmatprep.subr.mxu0 0.0
        %1399 = vmatpush1.msra.mxu0 0.0
        %1400 = vmatprep.subr.mxu0 0.0
        %1401 = vmatpush1.msra.mxu0 0.0
        %1402 = vmatprep.subr.mxu0 0.0
        %1403 = vmatpush1.msra.mxu0 0.0
        %1404 = vmatprep.subr.mxu0 0.0
        %1405 = vmatpush1.msra.mxu0 0.0
        %1406 = vmatprep.subr.mxu0 0.0
        %1407 = vmatpush1.msra.mxu0 0.0
        %1408 = vmatprep.subr.mxu0 0.0
        %1409 = vmatpush1.msra.mxu0 0.0
        %1410 = vmatprep.subr.mxu0 0.0
        %1411 = vmatpush1.msra.mxu0 0.0
        %1412 = vmatprep.subr.mxu0 0.0
        %1413 = vmatpush1.msra.mxu0 0.0
        %1414 = vmatprep.subr.mxu0 0.0
        %1415 = vmatpush1.msra.mxu0 %v260
        %1416 = vmatprep.subr.mxu0 0.0
        %1417 = vmatpush1.msra.mxu0 %v259
        %1418 = vmatprep.subr.mxu0 0.0
        %1419 = vmatpush2.msra.mxu0 0.0
        %1420 = vmatprep.subr.mxu0 0.0
        %1421 = vmatpush2.msra.mxu0 0.0
        %1422 = vmatprep.subr.mxu0 0.0
        %1423 = vmatpush2.msra.mxu0 0.0
        %1424 = vmatprep.subr.mxu0 0.0
        %1425 = vmatpush2.msra.mxu0 0.0
        %1426 = vmatprep.subr.mxu0 0.0
        %1427 = vmatpush2.msra.mxu0 0.0
        %1428 = vmatprep.subr.mxu0 0.0
        %1429 = vmatpush2.msra.mxu0 0.0
        %1430 = vmatprep.subr.mxu0 0.0
        %1431 = vmatpush2.msra.mxu0 0.0
        %1432 = vmatprep.subr.mxu0 0.0
        %1433 = vmatpush2.msra.mxu0 0.0
        %1434 = vmatprep.subr.mxu0 0.0
        %1435 = vmatpush2.msra.mxu0 0.0
        %1436 = vmatprep.subr.mxu0 0.0
        %1437 = vmatpush2.msra.mxu0 0.0
        %1438 = vmatprep.subr.mxu0 0.0
        %1439 = vmatpush2.msra.mxu0 0.0
        %1440 = vmatprep.subr.mxu0 0.0
        %1441 = vmatpush2.msra.mxu0 0.0
        %1442 = vmatprep.subr.mxu0 0.0
        %1443 = vmatpush2.msra.mxu0 0.0
        %1444 = vmatprep.subr.mxu0 0.0
        %1445 = vmatpush2.msra.mxu0 0.0
        %1446 = vmatprep.subr.mxu0 0.0
        %1447 = vmatpush2.msra.mxu0 0.0
        %1448 = vmatprep.subr.mxu0 0.0
        %1449 = vmatpush2.msra.mxu0 0.0
        %1450 = vmatprep.mubr.f32.mxu0 0.0
        %1451 = vmatmul.mubr.f32.gmra.mxu0 %v1291
        %v1452 = vpop.f32.mrf.mxu0
        %v1453 = vadd.f32 0.0, %v1452
        %v1454 = vpop.f32.mrf.mxu0
        %1455 = vmatprep.mubr.f32.mxu0 0.0
        %1456 = vmatmul.mubr.f32.gmra.mxu0 %v1294
        %v1457 = vpop.f32.mrf.mxu0
        %v1458 = vadd.f32 0.0, %v1457
        %v1459 = vpop.f32.mrf.mxu0
        %1460 = vmatprep.mubr.f32.mxu0 0.0
        %1461 = vmatmul.mubr.f32.gmra.mxu0 %v1297
        %v1462 = vpop.f32.mrf.mxu0
        %v1463 = vadd.f32 0.0, %v1462
        %v1464 = vpop.f32.mrf.mxu0
        %1465 = vmatprep.mubr.f32.mxu0 0.0
        %1466 = vmatmul.mubr.f32.gmra.mxu0 %v1300
        %v1467 = vpop.f32.mrf.mxu0
        %v1468 = vadd.f32 0.0, %v1467
        %v1469 = vpop.f32.mrf.mxu0
        %1470 = vmatprep.mubr.f32.mxu0 0.0
        %1471 = vmatmul.mubr.f32.gmra.mxu0 %v1303
        %v1472 = vpop.f32.mrf.mxu0
        %v1473 = vadd.f32 0.0, %v1472
        %v1474 = vpop.f32.mrf.mxu0
        %1475 = vmatprep.mubr.f32.mxu0 0.0
        %1476 = vmatmul.mubr.f32.gmra.mxu0 %v1306
        %v1477 = vpop.f32.mrf.mxu0
        %v1478 = vadd.f32 0.0, %v1477
        %v1479 = vpop.f32.mrf.mxu0
        %1480 = vmatprep.mubr.f32.mxu0 0.0
        %1481 = vmatmul.mubr.f32.gmra.mxu0 %v1309
        %v1482 = vpop.f32.mrf.mxu0
        %v1483 = vadd.f32 0.0, %v1482
        %v1484 = vpop.f32.mrf.mxu0
        %1485 = vmatprep.mubr.f32.mxu0 0.0
        %1486 = vmatmul.mubr.f32.gmra.mxu0 %v1312
        %v1487 = vpop.f32.mrf.mxu0
        %v1488 = vadd.f32 0.0, %v1487
        %v1489 = vpop.f32.mrf.mxu0
        %1490 = vmatprep.mubr.f32.mxu0 0.0
        %1491 = vmatmul.mubr.f32.gmra.mxu0 %v1315
        %v1492 = vpop.f32.mrf.mxu0
        %v1493 = vadd.f32 0.0, %v1492
        %v1494 = vpop.f32.mrf.mxu0
        %1495 = vmatprep.mubr.f32.mxu0 0.0
        %1496 = vmatmul.mubr.f32.gmra.mxu0 %v1318
        %v1497 = vpop.f32.mrf.mxu0
        %v1498 = vadd.f32 0.0, %v1497
        %v1499 = vpop.f32.mrf.mxu0
        %1500 = vmatprep.mubr.f32.mxu0 0.0
        %1501 = vmatmul.mubr.f32.gmra.mxu0 %v1321
        %v1502 = vpop.f32.mrf.mxu0
        %v1503 = vadd.f32 0.0, %v1502
        %v1504 = vpop.f32.mrf.mxu0
        %1505 = vmatprep.mubr.f32.mxu0 0.0
        %1506 = vmatmul.mubr.f32.gmra.mxu0 %v1324
        %v1507 = vpop.f32.mrf.mxu0
        %v1508 = vadd.f32 0.0, %v1507
        %v1509 = vpop.f32.mrf.mxu0
        %1510 = vmatprep.mubr.f32.mxu0 0.0
        %1511 = vmatmul.mubr.f32.gmra.mxu0 %v1327
        %v1512 = vpop.f32.mrf.mxu0
        %v1513 = vadd.f32 0.0, %v1512
        %v1514 = vpop.f32.mrf.mxu0
        %1515 = vmatprep.mubr.f32.mxu0 0.0
        %1516 = vmatmul.mubr.f32.gmra.mxu0 %v1330
        %v1517 = vpop.f32.mrf.mxu0
        %v1518 = vadd.f32 0.0, %v1517
        %v1519 = vpop.f32.mrf.mxu0
        %1520 = vmatprep.mubr.f32.mxu0 0.0
        %1521 = vmatmul.mubr.f32.gmra.mxu0 %v1333
        %v1522 = vpop.f32.mrf.mxu0
        %v1523 = vadd.f32 0.0, %v1522
        %v1524 = vpop.f32.mrf.mxu0
        %1525 = vmatprep.mubr.f32.mxu0 0.0
        %1526 = vmatmul.mubr.f32.gmra.mxu0 %v1336
        %v1527 = vpop.f32.mrf.mxu0
        %v1528 = vadd.f32 0.0, %v1527
        %v1529 = vpop.f32.mrf.mxu0
        %1530 = vmatprep.mubr.f32.mxu0 0.0
        %1531 = vmatmul.mubr.f32.gmra.mxu0 %v1339
        %v1532 = vpop.f32.mrf.mxu0
        %v1533 = vadd.f32 0.0, %v1532
        %v1534 = vpop.f32.mrf.mxu0
        %1535 = vmatprep.mubr.f32.mxu0 0.0
        %1536 = vmatmul.mubr.f32.gmra.mxu0 %v1342
        %v1537 = vpop.f32.mrf.mxu0
        %v1538 = vadd.f32 0.0, %v1537
        %v1539 = vpop.f32.mrf.mxu0
        %1540 = vmatprep.mubr.f32.mxu0 0.0
        %1541 = vmatmul.mubr.f32.gmra.mxu0 %v1345
        %v1542 = vpop.f32.mrf.mxu0
        %v1543 = vadd.f32 0.0, %v1542
        %v1544 = vpop.f32.mrf.mxu0
        %1545 = vmatprep.mubr.f32.mxu0 0.0
        %1546 = vmatmul.mubr.f32.gmra.mxu0 %v1348
        %v1547 = vpop.f32.mrf.mxu0
        %v1548 = vadd.f32 0.0, %v1547
        %v1549 = vpop.f32.mrf.mxu0
        %1550 = vmatprep.mubr.f32.mxu0 0.0
        %1551 = vmatmul.mubr.f32.gmra.mxu0 %v1351
        %v1552 = vpop.f32.mrf.mxu0
        %v1553 = vadd.f32 0.0, %v1552
        %v1554 = vpop.f32.mrf.mxu0
        %1555 = vmatprep.mubr.f32.mxu0 0.0
        %1556 = vmatmul.mubr.f32.gmra.mxu0 %v1354
        %v1557 = vpop.f32.mrf.mxu0
        %v1558 = vadd.f32 0.0, %v1557
        %v1559 = vpop.f32.mrf.mxu0
        %1560 = vmatprep.mubr.f32.mxu0 0.0
        %1561 = vmatmul.mubr.f32.gmra.mxu0 %v1357
        %v1562 = vpop.f32.mrf.mxu0
        %v1563 = vadd.f32 0.0, %v1562
        %v1564 = vpop.f32.mrf.mxu0
        %1565 = vmatprep.mubr.f32.mxu0 0.0
        %1566 = vmatmul.mubr.f32.gmra.mxu0 %v1360
        %v1567 = vpop.f32.mrf.mxu0
        %v1568 = vadd.f32 0.0, %v1567
        %v1569 = vpop.f32.mrf.mxu0
        %1570 = vmatprep.mubr.f32.mxu0 0.0
        %1571 = vmatmul.mubr.f32.gmra.mxu0 %v1363
        %v1572 = vpop.f32.mrf.mxu0
        %v1573 = vadd.f32 0.0, %v1572
        %v1574 = vpop.f32.mrf.mxu0
        %1575 = vmatprep.mubr.f32.mxu0 0.0
        %1576 = vmatmul.mubr.f32.gmra.mxu0 %v1366
        %v1577 = vpop.f32.mrf.mxu0
        %v1578 = vadd.f32 0.0, %v1577
        %v1579 = vpop.f32.mrf.mxu0
        %1580 = vmatprep.mubr.f32.mxu0 0.0
        %1581 = vmatmul.mubr.f32.gmra.mxu0 %v1369
        %v1582 = vpop.f32.mrf.mxu0
        %v1583 = vadd.f32 0.0, %v1582
        %v1584 = vpop.f32.mrf.mxu0
        %1585 = vmatprep.mubr.f32.mxu0 0.0
        %1586 = vmatmul.mubr.f32.gmra.mxu0 %v1372
        %v1587 = vpop.f32.mrf.mxu0
        %v1588 = vadd.f32 0.0, %v1587
        %v1589 = vpop.f32.mrf.mxu0
        %1590 = vmatprep.mubr.f32.mxu0 0.0
        %1591 = vmatmul.mubr.f32.gmra.mxu0 %v1375
        %v1592 = vpop.f32.mrf.mxu0
        %v1593 = vadd.f32 0.0, %v1592
        %v1594 = vpop.f32.mrf.mxu0
        %1595 = vmatprep.mubr.f32.mxu0 0.0
        %1596 = vmatmul.mubr.f32.gmra.mxu0 %v1378
        %v1597 = vpop.f32.mrf.mxu0
        %v1598 = vadd.f32 0.0, %v1597
        %v1599 = vpop.f32.mrf.mxu0
        %1600 = vmatprep.mubr.f32.mxu0 0.0
        %1601 = vmatmul.mubr.f32.gmra.mxu0 %v1381
        %v1602 = vpop.f32.mrf.mxu0
        %v1603 = vadd.f32 0.0, %v1602
        %v1604 = vpop.f32.mrf.mxu0
        %1605 = vmatprep.mubr.f32.mxu0 0.0
        %1606 = vmatmul.mubr.f32.gmra.mxu0 %v1384
        %v1607 = vpop.f32.mrf.mxu0
        %v1608 = vadd.f32 0.0, %v1607
        %v1609 = vpop.f32.mrf.mxu0
        %1610 = vdwg.mxu0
        %v1611 = vadd.f32 %v302, %v1453
        %v1612 = vadd.f32 %v303, %v1458
        %v1613 = vadd.f32 %v304, %v1463
        %v1614 = vadd.f32 %v305, %v1468
        %v1615 = vadd.f32 %v306, %v1473
        %v1616 = vadd.f32 %v307, %v1478
        %v1617 = vadd.f32 %v308, %v1483
        %v1618 = vadd.f32 %v309, %v1488
        %v1619 = vadd.f32 %v310, %v1493
        %v1620 = vadd.f32 %v311, %v1498
        %v1621 = vadd.f32 %v312, %v1503
        %v1622 = vadd.f32 %v313, %v1508
        %v1623 = vadd.f32 %v314, %v1513
        %v1624 = vadd.f32 %v315, %v1518
        %v1625 = vadd.f32 %v316, %v1523
        %v1626 = vadd.f32 %v317, %v1528
        %v1627 = vadd.f32 %v318, %v1533
        %v1628 = vadd.f32 %v319, %v1538
        %v1629 = vadd.f32 %v320, %v1543
        %v1630 = vadd.f32 %v321, %v1548
        %v1631 = vadd.f32 %v322, %v1553
        %v1632 = vadd.f32 %v323, %v1558
        %v1633 = vadd.f32 %v324, %v1563
        %v1634 = vadd.f32 %v325, %v1568
        %v1635 = vadd.f32 %v326, %v1573
        %v1636 = vadd.f32 %v327, %v1578
        %v1637 = vadd.f32 %v328, %v1583
        %v1638 = vadd.f32 %v329, %v1588
        %v1639 = vadd.f32 %v330, %v1593
        %v1640 = vadd.f32 %v331, %v1598
        %v1641 = vadd.f32 %v332, %v1603
        %v1642 = vadd.f32 %v333, %v1608
        %vm1643 = vcmask 261248
        %v1644 = vsel %vm1643, %v366, 0.0
        %v1645 = vsel %vm1643, %v367, 0.0
        %v1646 = vadd.f32 %v1644, %v1645
        %v1647 = vsel %vm1643, %v368, 0.0
        %v1648 = vadd.f32 %v1646, %v1647
        %v1649 = vsel %vm1643, %v369, 0.0
        %v1650 = vadd.f32 %v1648, %v1649
        %v1651 = vsel %vm1643, %v370, 0.0
        %v1652 = vadd.f32 %v1650, %v1651
        %v1653 = vsel %vm1643, %v371, 0.0
        %v1654 = vadd.f32 %v1652, %v1653
        %v1655 = vsel %vm1643, %v372, 0.0
        %v1656 = vadd.f32 %v1654, %v1655
        %v1657 = vsel %vm1643, %v373, 0.0
        %v1658 = vadd.f32 %v1656, %v1657
        %v1659 = vsel %vm1643, %v374, 0.0
        %v1660 = vadd.f32 %v1658, %v1659
        %v1661 = vsel %vm1643, %v375, 0.0
        %v1662 = vadd.f32 %v1660, %v1661
        %v1663 = vsel %vm1643, %v376, 0.0
        %v1664 = vadd.f32 %v1662, %v1663
        %v1665 = vsel %vm1643, %v377, 0.0
        %v1666 = vadd.f32 %v1664, %v1665
        %v1667 = vsel %vm1643, %v378, 0.0
        %v1668 = vadd.f32 %v1666, %v1667
        %v1669 = vsel %vm1643, %v379, 0.0
        %v1670 = vadd.f32 %v1668, %v1669
        %v1671 = vsel %vm1643, %v380, 0.0
        %v1672 = vadd.f32 %v1670, %v1671
        %v1673 = vsel %vm1643, %v381, 0.0
        %v1674 = vadd.f32 %v1672, %v1673
        %v1675 = vsel %vm1643, %v382, 0.0
        %v1676 = vadd.f32 %v1674, %v1675
        %v1677 = vsel %vm1643, %v383, 0.0
        %v1678 = vadd.f32 %v1676, %v1677
        %v1679 = vsel %vm1643, %v384, 0.0
        %v1680 = vadd.f32 %v1678, %v1679
        %v1681 = vsel %vm1643, %v385, 0.0
        %v1682 = vadd.f32 %v1680, %v1681
        %v1683 = vsel %vm1643, %v386, 0.0
        %v1684 = vadd.f32 %v1682, %v1683
        %v1685 = vsel %vm1643, %v387, 0.0
        %v1686 = vadd.f32 %v1684, %v1685
        %v1687 = vsel %vm1643, %v388, 0.0
        %v1688 = vadd.f32 %v1686, %v1687
        %v1689 = vsel %vm1643, %v389, 0.0
        %v1690 = vadd.f32 %v1688, %v1689
        %v1691 = vsel %vm1643, %v390, 0.0
        %v1692 = vadd.f32 %v1690, %v1691
        %v1693 = vsel %vm1643, %v391, 0.0
        %v1694 = vadd.f32 %v1692, %v1693
        %v1695 = vsel %vm1643, %v392, 0.0
        %v1696 = vadd.f32 %v1694, %v1695
        %v1697 = vsel %vm1643, %v393, 0.0
        %v1698 = vadd.f32 %v1696, %v1697
        %v1699 = vsel %vm1643, %v394, 0.0
        %v1700 = vadd.f32 %v1698, %v1699
        %v1701 = vsel %vm1643, %v395, 0.0
        %v1702 = vadd.f32 %v1700, %v1701
        %v1703 = vsel %vm1643, %v396, 0.0
        %v1704 = vadd.f32 %v1702, %v1703
        %v1705 = vsel %vm1643, %v397, 0.0
        %v1706 = vadd.f32 %v1704, %v1705
        %v1707 = vrot.slane %v1706, 4
        %v1708 = vadd.f32 %v1706, %v1707
        %v1709 = vrot.slane %v1708, 2
        %v1710 = vadd.f32 %v1708, %v1709
        %v1711 = vrot.slane %v1710, 1
        %v1712 = vadd.f32 %v1710, %v1711
        %v1713 = vmax.f32 %v1712, 1e-24
        %v1714 = vrsqrt.pop %v1713
        %vm1715 = vcmask 523648
        %v1716 = vsel %vm1715, %v366, 0.0
        %v1717 = vsel %vm1715, %v367, 0.0
        %v1718 = vadd.f32 %v1716, %v1717
        %v1719 = vsel %vm1715, %v368, 0.0
        %v1720 = vadd.f32 %v1718, %v1719
        %v1721 = vsel %vm1715, %v369, 0.0
        %v1722 = vadd.f32 %v1720, %v1721
        %v1723 = vsel %vm1715, %v370, 0.0
        %v1724 = vadd.f32 %v1722, %v1723
        %v1725 = vsel %vm1715, %v371, 0.0
        %v1726 = vadd.f32 %v1724, %v1725
        %v1727 = vsel %vm1715, %v372, 0.0
        %v1728 = vadd.f32 %v1726, %v1727
        %v1729 = vsel %vm1715, %v373, 0.0
        %v1730 = vadd.f32 %v1728, %v1729
        %v1731 = vsel %vm1715, %v374, 0.0
        %v1732 = vadd.f32 %v1730, %v1731
        %v1733 = vsel %vm1715, %v375, 0.0
        %v1734 = vadd.f32 %v1732, %v1733
        %v1735 = vsel %vm1715, %v376, 0.0
        %v1736 = vadd.f32 %v1734, %v1735
        %v1737 = vsel %vm1715, %v377, 0.0
        %v1738 = vadd.f32 %v1736, %v1737
        %v1739 = vsel %vm1715, %v378, 0.0
        %v1740 = vadd.f32 %v1738, %v1739
        %v1741 = vsel %vm1715, %v379, 0.0
        %v1742 = vadd.f32 %v1740, %v1741
        %v1743 = vsel %vm1715, %v380, 0.0
        %v1744 = vadd.f32 %v1742, %v1743
        %v1745 = vsel %vm1715, %v381, 0.0
        %v1746 = vadd.f32 %v1744, %v1745
        %v1747 = vsel %vm1715, %v382, 0.0
        %v1748 = vadd.f32 %v1746, %v1747
        %v1749 = vsel %vm1715, %v383, 0.0
        %v1750 = vadd.f32 %v1748, %v1749
        %v1751 = vsel %vm1715, %v384, 0.0
        %v1752 = vadd.f32 %v1750, %v1751
        %v1753 = vsel %vm1715, %v385, 0.0
        %v1754 = vadd.f32 %v1752, %v1753
        %v1755 = vsel %vm1715, %v386, 0.0
        %v1756 = vadd.f32 %v1754, %v1755
        %v1757 = vsel %vm1715, %v387, 0.0
        %v1758 = vadd.f32 %v1756, %v1757
        %v1759 = vsel %vm1715, %v388, 0.0
        %v1760 = vadd.f32 %v1758, %v1759
        %v1761 = vsel %vm1715, %v389, 0.0
        %v1762 = vadd.f32 %v1760, %v1761
        %v1763 = vsel %vm1715, %v390, 0.0
        %v1764 = vadd.f32 %v1762, %v1763
        %v1765 = vsel %vm1715, %v391, 0.0
        %v1766 = vadd.f32 %v1764, %v1765
        %v1767 = vsel %vm1715, %v392, 0.0
        %v1768 = vadd.f32 %v1766, %v1767
        %v1769 = vsel %vm1715, %v393, 0.0
        %v1770 = vadd.f32 %v1768, %v1769
        %v1771 = vsel %vm1715, %v394, 0.0
        %v1772 = vadd.f32 %v1770, %v1771
        %v1773 = vsel %vm1715, %v395, 0.0
        %v1774 = vadd.f32 %v1772, %v1773
        %v1775 = vsel %vm1715, %v396, 0.0
        %v1776 = vadd.f32 %v1774, %v1775
        %v1777 = vsel %vm1715, %v397, 0.0
        %v1778 = vadd.f32 %v1776, %v1777
        %v1779 = vrot.slane %v1778, 4
        %v1780 = vadd.f32 %v1778, %v1779
        %v1781 = vrot.slane %v1780, 2
        %v1782 = vadd.f32 %v1780, %v1781
        %v1783 = vrot.slane %v1782, 1
        %v1784 = vadd.f32 %v1782, %v1783
        %v1785 = vmax.f32 %v1784, 1e-24
        %v1786 = vrsqrt.pop %v1785
        %v1787 = vmul.f32 %v334, %v1714
        %v1788 = vmul.f32 %v335, %v1714
        %v1789 = vmul.f32 %v336, %v1714
        %v1790 = vmul.f32 %v337, %v1714
        %v1791 = vmul.f32 %v338, %v1714
        %v1792 = vmul.f32 %v339, %v1714
        %v1793 = vmul.f32 %v340, %v1714
        %v1794 = vmul.f32 %v341, %v1714
        %v1795 = vmul.f32 %v342, %v1714
        %v1796 = vmul.f32 %v343, %v1714
        %v1797 = vmul.f32 %v344, %v1714
        %v1798 = vmul.f32 %v345, %v1714
        %v1799 = vmul.f32 %v346, %v1714
        %v1800 = vmul.f32 %v347, %v1714
        %v1801 = vmul.f32 %v348, %v1714
        %v1802 = vmul.f32 %v349, %v1714
        %v1803 = vmul.f32 %v350, %v1714
        %v1804 = vmul.f32 %v351, %v1714
        %v1805 = vmul.f32 %v352, %v1714
        %v1806 = vmul.f32 %v353, %v1714
        %v1807 = vmul.f32 %v354, %v1714
        %v1808 = vmul.f32 %v355, %v1714
        %v1809 = vmul.f32 %v356, %v1714
        %v1810 = vmul.f32 %v357, %v1714
        %v1811 = vmul.f32 %v358, %v1714
        %v1812 = vmul.f32 %v359, %v1714
        %v1813 = vmul.f32 %v360, %v1714
        %v1814 = vmul.f32 %v361, %v1714
        %v1815 = vmul.f32 %v362, %v1714
        %v1816 = vmul.f32 %v363, %v1714
        %v1817 = vmul.f32 %v364, %v1714
        %v1818 = vmul.f32 %v365, %v1714
        %v1819 = vmul.f32 %v334, %v1786
        %v1820 = vmul.f32 %v335, %v1786
        %v1821 = vmul.f32 %v336, %v1786
        %v1822 = vmul.f32 %v337, %v1786
        %v1823 = vmul.f32 %v338, %v1786
        %v1824 = vmul.f32 %v339, %v1786
        %v1825 = vmul.f32 %v340, %v1786
        %v1826 = vmul.f32 %v341, %v1786
        %v1827 = vmul.f32 %v342, %v1786
        %v1828 = vmul.f32 %v343, %v1786
        %v1829 = vmul.f32 %v344, %v1786
        %v1830 = vmul.f32 %v345, %v1786
        %v1831 = vmul.f32 %v346, %v1786
        %v1832 = vmul.f32 %v347, %v1786
        %v1833 = vmul.f32 %v348, %v1786
        %v1834 = vmul.f32 %v349, %v1786
        %v1835 = vmul.f32 %v350, %v1786
        %v1836 = vmul.f32 %v351, %v1786
        %v1837 = vmul.f32 %v352, %v1786
        %v1838 = vmul.f32 %v353, %v1786
        %v1839 = vmul.f32 %v354, %v1786
        %v1840 = vmul.f32 %v355, %v1786
        %v1841 = vmul.f32 %v356, %v1786
        %v1842 = vmul.f32 %v357, %v1786
        %v1843 = vmul.f32 %v358, %v1786
        %v1844 = vmul.f32 %v359, %v1786
        %v1845 = vmul.f32 %v360, %v1786
        %v1846 = vmul.f32 %v361, %v1786
        %v1847 = vmul.f32 %v362, %v1786
        %v1848 = vmul.f32 %v363, %v1786
        %v1849 = vmul.f32 %v364, %v1786
        %v1850 = vmul.f32 %v365, %v1786
        %1883 = vrot.lane.b32.xlu0 %v1787, 112
        %v1884 = vpop.permute.xlu0 %1883
        %1885 = vrot.lane.b32.xlu0 %v1788, 112
        %v1886 = vpop.permute.xlu0 %1885
        %1887 = vrot.lane.b32.xlu0 %v1789, 112
        %v1888 = vpop.permute.xlu0 %1887
        %1889 = vrot.lane.b32.xlu0 %v1790, 112
        %v1890 = vpop.permute.xlu0 %1889
        %1891 = vrot.lane.b32.xlu0 %v1791, 112
        %v1892 = vpop.permute.xlu0 %1891
        %1893 = vrot.lane.b32.xlu0 %v1792, 112
        %v1894 = vpop.permute.xlu0 %1893
        %1895 = vrot.lane.b32.xlu0 %v1793, 112
        %v1896 = vpop.permute.xlu0 %1895
        %1897 = vrot.lane.b32.xlu0 %v1794, 112
        %v1898 = vpop.permute.xlu0 %1897
        %1899 = vrot.lane.b32.xlu0 %v1795, 112
        %v1900 = vpop.permute.xlu0 %1899
        %1901 = vrot.lane.b32.xlu0 %v1796, 112
        %v1902 = vpop.permute.xlu0 %1901
        %1903 = vrot.lane.b32.xlu0 %v1797, 112
        %v1904 = vpop.permute.xlu0 %1903
        %1905 = vrot.lane.b32.xlu0 %v1798, 112
        %v1906 = vpop.permute.xlu0 %1905
        %1907 = vrot.lane.b32.xlu0 %v1799, 112
        %v1908 = vpop.permute.xlu0 %1907
        %1909 = vrot.lane.b32.xlu0 %v1800, 112
        %v1910 = vpop.permute.xlu0 %1909
        %1911 = vrot.lane.b32.xlu0 %v1801, 112
        %v1912 = vpop.permute.xlu0 %1911
        %1913 = vrot.lane.b32.xlu0 %v1802, 112
        %v1914 = vpop.permute.xlu0 %1913
        %1915 = vrot.lane.b32.xlu0 %v1803, 112
        %v1916 = vpop.permute.xlu0 %1915
        %1917 = vrot.lane.b32.xlu0 %v1804, 112
        %v1918 = vpop.permute.xlu0 %1917
        %1919 = vrot.lane.b32.xlu0 %v1805, 112
        %v1920 = vpop.permute.xlu0 %1919
        %1921 = vrot.lane.b32.xlu0 %v1806, 112
        %v1922 = vpop.permute.xlu0 %1921
        %1923 = vrot.lane.b32.xlu0 %v1807, 112
        %v1924 = vpop.permute.xlu0 %1923
        %1925 = vrot.lane.b32.xlu0 %v1808, 112
        %v1926 = vpop.permute.xlu0 %1925
        %1927 = vrot.lane.b32.xlu0 %v1809, 112
        %v1928 = vpop.permute.xlu0 %1927
        %1929 = vrot.lane.b32.xlu0 %v1810, 112
        %v1930 = vpop.permute.xlu0 %1929
        %1931 = vrot.lane.b32.xlu0 %v1811, 112
        %v1932 = vpop.permute.xlu0 %1931
        %1933 = vrot.lane.b32.xlu0 %v1812, 112
        %v1934 = vpop.permute.xlu0 %1933
        %1935 = vrot.lane.b32.xlu0 %v1813, 112
        %v1936 = vpop.permute.xlu0 %1935
        %1937 = vrot.lane.b32.xlu0 %v1814, 112
        %v1938 = vpop.permute.xlu0 %1937
        %1939 = vrot.lane.b32.xlu0 %v1815, 112
        %v1940 = vpop.permute.xlu0 %1939
        %1941 = vrot.lane.b32.xlu0 %v1816, 112
        %v1942 = vpop.permute.xlu0 %1941
        %1943 = vrot.lane.b32.xlu0 %v1817, 112
        %v1944 = vpop.permute.xlu0 %1943
        %1945 = vrot.lane.b32.xlu0 %v1818, 112
        %v1946 = vpop.permute.xlu0 %1945
        %1979 = vxpose.xlu0.b32.start [1/16] %v1884, 128
        %1980 = vxpose.xlu0.b32.cont [2/16] %v1886, 128
        %1981 = vxpose.xlu0.b32.cont [3/16] %v1888, 128
        %1982 = vxpose.xlu0.b32.cont [4/16] %v1890, 128
        %1983 = vxpose.xlu0.b32.cont [5/16] %v1892, 128
        %1984 = vxpose.xlu0.b32.cont [6/16] %v1894, 128
        %1985 = vxpose.xlu0.b32.cont [7/16] %v1896, 128
        %1986 = vxpose.xlu0.b32.cont [8/16] %v1898, 128
        %1987 = vxpose.xlu0.b32.cont [9/16] %v1900, 128
        %1988 = vxpose.xlu0.b32.cont [10/16] %v1902, 128
        %1989 = vxpose.xlu0.b32.cont [11/16] %v1904, 128
        %1990 = vxpose.xlu0.b32.cont [12/16] %v1906, 128
        %1991 = vxpose.xlu0.b32.cont [13/16] %v1908, 128
        %1992 = vxpose.xlu0.b32.cont [14/16] %v1910, 128
        %1993 = vxpose.xlu0.b32.cont [15/16] %v1912, 128
        %1994 = vxpose.xlu0.b32.end [16/16] %v1914, 128
        %v1995 = vpop.trf.xlu0
        %v1996 = vpop.trf.xlu0
        %v1997 = vpop.trf.xlu0
        %v1998 = vpop.trf.xlu0
        %v1999 = vpop.trf.xlu0
        %v2000 = vpop.trf.xlu0
        %v2001 = vpop.trf.xlu0
        %v2002 = vpop.trf.xlu0
        %v2003 = vpop.trf.xlu0
        %v2004 = vpop.trf.xlu0
        %v2005 = vpop.trf.xlu0
        %v2006 = vpop.trf.xlu0
        %v2007 = vpop.trf.xlu0
        %v2008 = vpop.trf.xlu0
        %v2009 = vpop.trf.xlu0
        %v2010 = vpop.trf.xlu0
        %2011 = vxpose.xlu0.b32.start [1/16] %v1916, 128
        %2012 = vxpose.xlu0.b32.cont [2/16] %v1918, 128
        %2013 = vxpose.xlu0.b32.cont [3/16] %v1920, 128
        %2014 = vxpose.xlu0.b32.cont [4/16] %v1922, 128
        %2015 = vxpose.xlu0.b32.cont [5/16] %v1924, 128
        %2016 = vxpose.xlu0.b32.cont [6/16] %v1926, 128
        %2017 = vxpose.xlu0.b32.cont [7/16] %v1928, 128
        %2018 = vxpose.xlu0.b32.cont [8/16] %v1930, 128
        %2019 = vxpose.xlu0.b32.cont [9/16] %v1932, 128
        %2020 = vxpose.xlu0.b32.cont [10/16] %v1934, 128
        %2021 = vxpose.xlu0.b32.cont [11/16] %v1936, 128
        %2022 = vxpose.xlu0.b32.cont [12/16] %v1938, 128
        %2023 = vxpose.xlu0.b32.cont [13/16] %v1940, 128
        %2024 = vxpose.xlu0.b32.cont [14/16] %v1942, 128
        %2025 = vxpose.xlu0.b32.cont [15/16] %v1944, 128
        %2026 = vxpose.xlu0.b32.end [16/16] %v1946, 128
        %v2027 = vpop.trf.xlu0
        %v2028 = vpop.trf.xlu0
        %v2029 = vpop.trf.xlu0
        %v2030 = vpop.trf.xlu0
        %v2031 = vpop.trf.xlu0
        %v2032 = vpop.trf.xlu0
        %v2033 = vpop.trf.xlu0
        %v2034 = vpop.trf.xlu0
        %v2035 = vpop.trf.xlu0
        %v2036 = vpop.trf.xlu0
        %v2037 = vpop.trf.xlu0
        %v2038 = vpop.trf.xlu0
        %v2039 = vpop.trf.xlu0
        %v2040 = vpop.trf.xlu0
        %v2041 = vpop.trf.xlu0
        %v2042 = vpop.trf.xlu0
        %2075 = vrot.lane.b32.xlu0 %v1819, 80
        %v2076 = vpop.permute.xlu0 %2075
        %2077 = vrot.lane.b32.xlu0 %v1820, 80
        %v2078 = vpop.permute.xlu0 %2077
        %2079 = vrot.lane.b32.xlu0 %v1821, 80
        %v2080 = vpop.permute.xlu0 %2079
        %2081 = vrot.lane.b32.xlu0 %v1822, 80
        %v2082 = vpop.permute.xlu0 %2081
        %2083 = vrot.lane.b32.xlu0 %v1823, 80
        %v2084 = vpop.permute.xlu0 %2083
        %2085 = vrot.lane.b32.xlu0 %v1824, 80
        %v2086 = vpop.permute.xlu0 %2085
        %2087 = vrot.lane.b32.xlu0 %v1825, 80
        %v2088 = vpop.permute.xlu0 %2087
        %2089 = vrot.lane.b32.xlu0 %v1826, 80
        %v2090 = vpop.permute.xlu0 %2089
        %2091 = vrot.lane.b32.xlu0 %v1827, 80
        %v2092 = vpop.permute.xlu0 %2091
        %2093 = vrot.lane.b32.xlu0 %v1828, 80
        %v2094 = vpop.permute.xlu0 %2093
        %2095 = vrot.lane.b32.xlu0 %v1829, 80
        %v2096 = vpop.permute.xlu0 %2095
        %2097 = vrot.lane.b32.xlu0 %v1830, 80
        %v2098 = vpop.permute.xlu0 %2097
        %2099 = vrot.lane.b32.xlu0 %v1831, 80
        %v2100 = vpop.permute.xlu0 %2099
        %2101 = vrot.lane.b32.xlu0 %v1832, 80
        %v2102 = vpop.permute.xlu0 %2101
        %2103 = vrot.lane.b32.xlu0 %v1833, 80
        %v2104 = vpop.permute.xlu0 %2103
        %2105 = vrot.lane.b32.xlu0 %v1834, 80
        %v2106 = vpop.permute.xlu0 %2105
        %2107 = vrot.lane.b32.xlu0 %v1835, 80
        %v2108 = vpop.permute.xlu0 %2107
        %2109 = vrot.lane.b32.xlu0 %v1836, 80
        %v2110 = vpop.permute.xlu0 %2109
        %2111 = vrot.lane.b32.xlu0 %v1837, 80
        %v2112 = vpop.permute.xlu0 %2111
        %2113 = vrot.lane.b32.xlu0 %v1838, 80
        %v2114 = vpop.permute.xlu0 %2113
        %2115 = vrot.lane.b32.xlu0 %v1839, 80
        %v2116 = vpop.permute.xlu0 %2115
        %2117 = vrot.lane.b32.xlu0 %v1840, 80
        %v2118 = vpop.permute.xlu0 %2117
        %2119 = vrot.lane.b32.xlu0 %v1841, 80
        %v2120 = vpop.permute.xlu0 %2119
        %2121 = vrot.lane.b32.xlu0 %v1842, 80
        %v2122 = vpop.permute.xlu0 %2121
        %2123 = vrot.lane.b32.xlu0 %v1843, 80
        %v2124 = vpop.permute.xlu0 %2123
        %2125 = vrot.lane.b32.xlu0 %v1844, 80
        %v2126 = vpop.permute.xlu0 %2125
        %2127 = vrot.lane.b32.xlu0 %v1845, 80
        %v2128 = vpop.permute.xlu0 %2127
        %2129 = vrot.lane.b32.xlu0 %v1846, 80
        %v2130 = vpop.permute.xlu0 %2129
        %2131 = vrot.lane.b32.xlu0 %v1847, 80
        %v2132 = vpop.permute.xlu0 %2131
        %2133 = vrot.lane.b32.xlu0 %v1848, 80
        %v2134 = vpop.permute.xlu0 %2133
        %2135 = vrot.lane.b32.xlu0 %v1849, 80
        %v2136 = vpop.permute.xlu0 %2135
        %2137 = vrot.lane.b32.xlu0 %v1850, 80
        %v2138 = vpop.permute.xlu0 %2137
        %2171 = vmatprep.subr.mxu0 0.0
        %2172 = vmatpush1.msra.mxu0 %v2106
        %2173 = vmatprep.subr.mxu0 0.0
        %2174 = vmatpush1.msra.mxu0 %v2104
        %2175 = vmatprep.subr.mxu0 0.0
        %2176 = vmatpush1.msra.mxu0 %v2102
        %2177 = vmatprep.subr.mxu0 0.0
        %2178 = vmatpush1.msra.mxu0 %v2100
        %2179 = vmatprep.subr.mxu0 0.0
        %2180 = vmatpush1.msra.mxu0 %v2098
        %2181 = vmatprep.subr.mxu0 0.0
        %2182 = vmatpush1.msra.mxu0 %v2096
        %2183 = vmatprep.subr.mxu0 0.0
        %2184 = vmatpush1.msra.mxu0 %v2094
        %2185 = vmatprep.subr.mxu0 0.0
        %2186 = vmatpush1.msra.mxu0 %v2092
        %2187 = vmatprep.subr.mxu0 0.0
        %2188 = vmatpush1.msra.mxu0 %v2090
        %2189 = vmatprep.subr.mxu0 0.0
        %2190 = vmatpush1.msra.mxu0 %v2088
        %2191 = vmatprep.subr.mxu0 0.0
        %2192 = vmatpush1.msra.mxu0 %v2086
        %2193 = vmatprep.subr.mxu0 0.0
        %2194 = vmatpush1.msra.mxu0 %v2084
        %2195 = vmatprep.subr.mxu0 0.0
        %2196 = vmatpush1.msra.mxu0 %v2082
        %2197 = vmatprep.subr.mxu0 0.0
        %2198 = vmatpush1.msra.mxu0 %v2080
        %2199 = vmatprep.subr.mxu0 0.0
        %2200 = vmatpush1.msra.mxu0 %v2078
        %2201 = vmatprep.subr.mxu0 0.0
        %2202 = vmatpush1.msra.mxu0 %v2076
        %2203 = vmatprep.subr.mxu0 0.0
        %2204 = vmatpush2.msra.mxu0 %v2138
        %2205 = vmatprep.subr.mxu0 0.0
        %2206 = vmatpush2.msra.mxu0 %v2136
        %2207 = vmatprep.subr.mxu0 0.0
        %2208 = vmatpush2.msra.mxu0 %v2134
        %2209 = vmatprep.subr.mxu0 0.0
        %2210 = vmatpush2.msra.mxu0 %v2132
        %2211 = vmatprep.subr.mxu0 0.0
        %2212 = vmatpush2.msra.mxu0 %v2130
        %2213 = vmatprep.subr.mxu0 0.0
        %2214 = vmatpush2.msra.mxu0 %v2128
        %2215 = vmatprep.subr.mxu0 0.0
        %2216 = vmatpush2.msra.mxu0 %v2126
        %2217 = vmatprep.subr.mxu0 0.0
        %2218 = vmatpush2.msra.mxu0 %v2124
        %2219 = vmatprep.subr.mxu0 0.0
        %2220 = vmatpush2.msra.mxu0 %v2122
        %2221 = vmatprep.subr.mxu0 0.0
        %2222 = vmatpush2.msra.mxu0 %v2120
        %2223 = vmatprep.subr.mxu0 0.0
        %2224 = vmatpush2.msra.mxu0 %v2118
        %2225 = vmatprep.subr.mxu0 0.0
        %2226 = vmatpush2.msra.mxu0 %v2116
        %2227 = vmatprep.subr.mxu0 0.0
        %2228 = vmatpush2.msra.mxu0 %v2114
        %2229 = vmatprep.subr.mxu0 0.0
        %2230 = vmatpush2.msra.mxu0 %v2112
        %2231 = vmatprep.subr.mxu0 0.0
        %2232 = vmatpush2.msra.mxu0 %v2110
        %2233 = vmatprep.subr.mxu0 0.0
        %2234 = vmatpush2.msra.mxu0 %v2108
        %2235 = vmatprep.mubr.f32.mxu0 %v2027
        %2236 = vmatmul.mubr.f32.gmra.mxu0 %v1995
        %v2237 = vpop.f32.mrf.mxu0
        %v2238 = vadd.f32 0.0, %v2237
        %v2239 = vpop.f32.mrf.mxu0
        %2240 = vmatprep.mubr.f32.mxu0 %v2028
        %2241 = vmatmul.mubr.f32.gmra.mxu0 %v1996
        %v2242 = vpop.f32.mrf.mxu0
        %v2243 = vadd.f32 0.0, %v2242
        %v2244 = vpop.f32.mrf.mxu0
        %2245 = vdwg.mxu0
        %s2246 = sld [smem:[#allocation2 + $0x1]]
        %v2247 = vstv %s2246
        %v2248 = vmul.f32 %v2238, %v2247
        %v2249 = vmul.f32 %v2243, %v2247
        %v2250 = vsel %vm398, %v2248, -inf
        %2251 = vmax.xlane.f32.xlu0 %v2250
        %v2252 = vpop.xlane.xlu0 %2251
        %v2253 = vsel %vm398, %v2249, -inf
        %2254 = vmax.xlane.f32.xlu0 %v2253
        %v2255 = vpop.xlane.xlu0 %2254
        %v2256 = vsub.f32 %v2248, %v2252
        %v2257 = vsub.f32 %v2249, %v2255
        %v2258 = vmul.f32 %v2256, 1.442695
        %v2259 = vpow.pop %v2258
        %v2260 = vmul.f32 %v2257, 1.442695
        %v2261 = vpow.pop %v2260
        %v2262 = vsel %vm398, %v2259, 0.0
        %2263 = vadd.xlane.f32.xlu0 %v2262
        %v2264 = vpop.xlane.xlu0 %2263
        %v2265 = vsel %vm398, %v2261, 0.0
        %2266 = vadd.xlane.f32.xlu0 %v2265
        %v2267 = vpop.xlane.xlu0 %2266
        %v2268 = vrcp.pop %v2264
        %v2269 = vrcp.pop %v2267
        %v2270 = vmul.f32 %v2259, %v2268
        %v2271 = vmul.f32 %v2261, %v2269
        %2272 = vrot.lane.b32.xlu0 %v334, 48
        %v2273 = vpop.permute.xlu0 %2272
        %2274 = vrot.lane.b32.xlu0 %v335, 48
        %v2275 = vpop.permute.xlu0 %2274
        %2276 = vrot.lane.b32.xlu0 %v336, 48
        %v2277 = vpop.permute.xlu0 %2276
        %2278 = vrot.lane.b32.xlu0 %v337, 48
        %v2279 = vpop.permute.xlu0 %2278
        %2280 = vrot.lane.b32.xlu0 %v338, 48
        %v2281 = vpop.permute.xlu0 %2280
        %2282 = vrot.lane.b32.xlu0 %v339, 48
        %v2283 = vpop.permute.xlu0 %2282
        %2284 = vrot.lane.b32.xlu0 %v340, 48
        %v2285 = vpop.permute.xlu0 %2284
        %2286 = vrot.lane.b32.xlu0 %v341, 48
        %v2287 = vpop.permute.xlu0 %2286
        %2288 = vrot.lane.b32.xlu0 %v342, 48
        %v2289 = vpop.permute.xlu0 %2288
        %2290 = vrot.lane.b32.xlu0 %v343, 48
        %v2291 = vpop.permute.xlu0 %2290
        %2292 = vrot.lane.b32.xlu0 %v344, 48
        %v2293 = vpop.permute.xlu0 %2292
        %2294 = vrot.lane.b32.xlu0 %v345, 48
        %v2295 = vpop.permute.xlu0 %2294
        %2296 = vrot.lane.b32.xlu0 %v346, 48
        %v2297 = vpop.permute.xlu0 %2296
        %2298 = vrot.lane.b32.xlu0 %v347, 48
        %v2299 = vpop.permute.xlu0 %2298
        %2300 = vrot.lane.b32.xlu0 %v348, 48
        %v2301 = vpop.permute.xlu0 %2300
        %2302 = vrot.lane.b32.xlu0 %v349, 48
        %v2303 = vpop.permute.xlu0 %2302
        %2304 = vrot.lane.b32.xlu0 %v350, 48
        %v2305 = vpop.permute.xlu0 %2304
        %2306 = vrot.lane.b32.xlu0 %v351, 48
        %v2307 = vpop.permute.xlu0 %2306
        %2308 = vrot.lane.b32.xlu0 %v352, 48
        %v2309 = vpop.permute.xlu0 %2308
        %2310 = vrot.lane.b32.xlu0 %v353, 48
        %v2311 = vpop.permute.xlu0 %2310
        %2312 = vrot.lane.b32.xlu0 %v354, 48
        %v2313 = vpop.permute.xlu0 %2312
        %2314 = vrot.lane.b32.xlu0 %v355, 48
        %v2315 = vpop.permute.xlu0 %2314
        %2316 = vrot.lane.b32.xlu0 %v356, 48
        %v2317 = vpop.permute.xlu0 %2316
        %2318 = vrot.lane.b32.xlu0 %v357, 48
        %v2319 = vpop.permute.xlu0 %2318
        %2320 = vrot.lane.b32.xlu0 %v358, 48
        %v2321 = vpop.permute.xlu0 %2320
        %2322 = vrot.lane.b32.xlu0 %v359, 48
        %v2323 = vpop.permute.xlu0 %2322
        %2324 = vrot.lane.b32.xlu0 %v360, 48
        %v2325 = vpop.permute.xlu0 %2324
        %2326 = vrot.lane.b32.xlu0 %v361, 48
        %v2327 = vpop.permute.xlu0 %2326
        %2328 = vrot.lane.b32.xlu0 %v362, 48
        %v2329 = vpop.permute.xlu0 %2328
        %2330 = vrot.lane.b32.xlu0 %v363, 48
        %v2331 = vpop.permute.xlu0 %2330
        %2332 = vrot.lane.b32.xlu0 %v364, 48
        %v2333 = vpop.permute.xlu0 %2332
        %2334 = vrot.lane.b32.xlu0 %v365, 48
        %v2335 = vpop.permute.xlu0 %2334
        %v2336 = vsel %vm398, %v2273, 0
        %v2338 = vsel %vm398, %v2275, 0
        %v2340 = vsel %vm398, %v2277, 0
        %v2342 = vsel %vm398, %v2279, 0
        %v2344 = vsel %vm398, %v2281, 0
        %v2346 = vsel %vm398, %v2283, 0
        %v2348 = vsel %vm398, %v2285, 0
        %v2350 = vsel %vm398, %v2287, 0
        %v2352 = vsel %vm398, %v2289, 0
        %v2354 = vsel %vm398, %v2291, 0
        %v2356 = vsel %vm398, %v2293, 0
        %v2358 = vsel %vm398, %v2295, 0
        %v2360 = vsel %vm398, %v2297, 0
        %v2362 = vsel %vm398, %v2299, 0
        %v2364 = vsel %vm398, %v2301, 0
        %v2366 = vsel %vm398, %v2303, 0
        %v2368 = vsel %vm398, %v2305, 0
        %v2370 = vsel %vm398, %v2307, 0
        %v2372 = vsel %vm398, %v2309, 0
        %v2374 = vsel %vm398, %v2311, 0
        %v2376 = vsel %vm398, %v2313, 0
        %v2378 = vsel %vm398, %v2315, 0
        %v2380 = vsel %vm398, %v2317, 0
        %v2382 = vsel %vm398, %v2319, 0
        %v2384 = vsel %vm398, %v2321, 0
        %v2386 = vsel %vm398, %v2323, 0
        %v2388 = vsel %vm398, %v2325, 0
        %v2390 = vsel %vm398, %v2327, 0
        %v2392 = vsel %vm398, %v2329, 0
        %v2394 = vsel %vm398, %v2331, 0
        %v2396 = vsel %vm398, %v2333, 0
        %v2398 = vsel %vm398, %v2335, 0
        %v2401 = vsel %vm398, %v2270, 0
        %v2404 = vsel %vm398, %v2271, 0
        %2406 = vmatprep.subr.mxu0 0.0
        %2407 = vmatpush1.xpose.msra.mxu0 0.0
        %2408 = vmatprep.subr.mxu0 0.0
        %2409 = vmatpush1.xpose.msra.mxu0 0.0
        %2410 = vmatprep.subr.mxu0 0.0
        %2411 = vmatpush1.xpose.msra.mxu0 0.0
        %2412 = vmatprep.subr.mxu0 0.0
        %2413 = vmatpush1.xpose.msra.mxu0 0.0
        %2414 = vmatprep.subr.mxu0 0.0
        %2415 = vmatpush1.xpose.msra.mxu0 0.0
        %2416 = vmatprep.subr.mxu0 0.0
        %2417 = vmatpush1.xpose.msra.mxu0 0.0
        %2418 = vmatprep.subr.mxu0 0.0
        %2419 = vmatpush1.xpose.msra.mxu0 0.0
        %2420 = vmatprep.subr.mxu0 0.0
        %2421 = vmatpush1.xpose.msra.mxu0 0.0
        %2422 = vmatprep.subr.mxu0 0.0
        %2423 = vmatpush1.xpose.msra.mxu0 0.0
        %2424 = vmatprep.subr.mxu0 0.0
        %2425 = vmatpush1.xpose.msra.mxu0 0.0
        %2426 = vmatprep.subr.mxu0 0.0
        %2427 = vmatpush1.xpose.msra.mxu0 0.0
        %2428 = vmatprep.subr.mxu0 0.0
        %2429 = vmatpush1.xpose.msra.mxu0 0.0
        %2430 = vmatprep.subr.mxu0 0.0
        %2431 = vmatpush1.xpose.msra.mxu0 0.0
        %2432 = vmatprep.subr.mxu0 0.0
        %2433 = vmatpush1.xpose.msra.mxu0 0.0
        %2434 = vmatprep.subr.mxu0 0.0
        %2435 = vmatpush1.xpose.msra.mxu0 %v2404
        %2436 = vmatprep.subr.mxu0 0.0
        %2437 = vmatpush1.xpose.msra.mxu0 %v2401
        %2438 = vmatprep.subr.mxu0 0.0
        %2439 = vmatpush2.xpose.msra.mxu0 0.0
        %2440 = vmatprep.subr.mxu0 0.0
        %2441 = vmatpush2.xpose.msra.mxu0 0.0
        %2442 = vmatprep.subr.mxu0 0.0
        %2443 = vmatpush2.xpose.msra.mxu0 0.0
        %2444 = vmatprep.subr.mxu0 0.0
        %2445 = vmatpush2.xpose.msra.mxu0 0.0
        %2446 = vmatprep.subr.mxu0 0.0
        %2447 = vmatpush2.xpose.msra.mxu0 0.0
        %2448 = vmatprep.subr.mxu0 0.0
        %2449 = vmatpush2.xpose.msra.mxu0 0.0
        %2450 = vmatprep.subr.mxu0 0.0
        %2451 = vmatpush2.xpose.msra.mxu0 0.0
        %2452 = vmatprep.subr.mxu0 0.0
        %2453 = vmatpush2.xpose.msra.mxu0 0.0
        %2454 = vmatprep.subr.mxu0 0.0
        %2455 = vmatpush2.xpose.msra.mxu0 0.0
        %2456 = vmatprep.subr.mxu0 0.0
        %2457 = vmatpush2.xpose.msra.mxu0 0.0
        %2458 = vmatprep.subr.mxu0 0.0
        %2459 = vmatpush2.xpose.msra.mxu0 0.0
        %2460 = vmatprep.subr.mxu0 0.0
        %2461 = vmatpush2.xpose.msra.mxu0 0.0
        %2462 = vmatprep.subr.mxu0 0.0
        %2463 = vmatpush2.xpose.msra.mxu0 0.0
        %2464 = vmatprep.subr.mxu0 0.0
        %2465 = vmatpush2.xpose.msra.mxu0 0.0
        %2466 = vmatprep.subr.mxu0 0.0
        %2467 = vmatpush2.xpose.msra.mxu0 0.0
        %2468 = vmatprep.subr.mxu0 0.0
        %2469 = vmatpush2.xpose.msra.mxu0 0.0
        %2470 = vmatprep.mubr.f32.mxu0 0.0
        %2471 = vmatmul.mubr.f32.gmra.mxu0 %v2336
        %v2472 = vpop.f32.mrf.mxu0
        %v2473 = vadd.f32 0.0, %v2472
        %v2474 = vpop.f32.mrf.mxu0
        %2475 = vmatprep.mubr.f32.mxu0 0.0
        %2476 = vmatmul.mubr.f32.gmra.mxu0 %v2338
        %v2477 = vpop.f32.mrf.mxu0
        %v2478 = vadd.f32 0.0, %v2477
        %v2479 = vpop.f32.mrf.mxu0
        %2480 = vmatprep.mubr.f32.mxu0 0.0
        %2481 = vmatmul.mubr.f32.gmra.mxu0 %v2340
        %v2482 = vpop.f32.mrf.mxu0
        %v2483 = vadd.f32 0.0, %v2482
        %v2484 = vpop.f32.mrf.mxu0
        %2485 = vmatprep.mubr.f32.mxu0 0.0
        %2486 = vmatmul.mubr.f32.gmra.mxu0 %v2342
        %v2487 = vpop.f32.mrf.mxu0
        %v2488 = vadd.f32 0.0, %v2487
        %v2489 = vpop.f32.mrf.mxu0
        %2490 = vmatprep.mubr.f32.mxu0 0.0
        %2491 = vmatmul.mubr.f32.gmra.mxu0 %v2344
        %v2492 = vpop.f32.mrf.mxu0
        %v2493 = vadd.f32 0.0, %v2492
        %v2494 = vpop.f32.mrf.mxu0
        %2495 = vmatprep.mubr.f32.mxu0 0.0
        %2496 = vmatmul.mubr.f32.gmra.mxu0 %v2346
        %v2497 = vpop.f32.mrf.mxu0
        %v2498 = vadd.f32 0.0, %v2497
        %v2499 = vpop.f32.mrf.mxu0
        %2500 = vmatprep.mubr.f32.mxu0 0.0
        %2501 = vmatmul.mubr.f32.gmra.mxu0 %v2348
        %v2502 = vpop.f32.mrf.mxu0
        %v2503 = vadd.f32 0.0, %v2502
        %v2504 = vpop.f32.mrf.mxu0
        %2505 = vmatprep.mubr.f32.mxu0 0.0
        %2506 = vmatmul.mubr.f32.gmra.mxu0 %v2350
        %v2507 = vpop.f32.mrf.mxu0
        %v2508 = vadd.f32 0.0, %v2507
        %v2509 = vpop.f32.mrf.mxu0
        %2510 = vmatprep.mubr.f32.mxu0 0.0
        %2511 = vmatmul.mubr.f32.gmra.mxu0 %v2352
        %v2512 = vpop.f32.mrf.mxu0
        %v2513 = vadd.f32 0.0, %v2512
        %v2514 = vpop.f32.mrf.mxu0
        %2515 = vmatprep.mubr.f32.mxu0 0.0
        %2516 = vmatmul.mubr.f32.gmra.mxu0 %v2354
        %v2517 = vpop.f32.mrf.mxu0
        %v2518 = vadd.f32 0.0, %v2517
        %v2519 = vpop.f32.mrf.mxu0
        %2520 = vmatprep.mubr.f32.mxu0 0.0
        %2521 = vmatmul.mubr.f32.gmra.mxu0 %v2356
        %v2522 = vpop.f32.mrf.mxu0
        %v2523 = vadd.f32 0.0, %v2522
        %v2524 = vpop.f32.mrf.mxu0
        %2525 = vmatprep.mubr.f32.mxu0 0.0
        %2526 = vmatmul.mubr.f32.gmra.mxu0 %v2358
        %v2527 = vpop.f32.mrf.mxu0
        %v2528 = vadd.f32 0.0, %v2527
        %v2529 = vpop.f32.mrf.mxu0
        %2530 = vmatprep.mubr.f32.mxu0 0.0
        %2531 = vmatmul.mubr.f32.gmra.mxu0 %v2360
        %v2532 = vpop.f32.mrf.mxu0
        %v2533 = vadd.f32 0.0, %v2532
        %v2534 = vpop.f32.mrf.mxu0
        %2535 = vmatprep.mubr.f32.mxu0 0.0
        %2536 = vmatmul.mubr.f32.gmra.mxu0 %v2362
        %v2537 = vpop.f32.mrf.mxu0
        %v2538 = vadd.f32 0.0, %v2537
        %v2539 = vpop.f32.mrf.mxu0
        %2540 = vmatprep.mubr.f32.mxu0 0.0
        %2541 = vmatmul.mubr.f32.gmra.mxu0 %v2364
        %v2542 = vpop.f32.mrf.mxu0
        %v2543 = vadd.f32 0.0, %v2542
        %v2544 = vpop.f32.mrf.mxu0
        %2545 = vmatprep.mubr.f32.mxu0 0.0
        %2546 = vmatmul.mubr.f32.gmra.mxu0 %v2366
        %v2547 = vpop.f32.mrf.mxu0
        %v2548 = vadd.f32 0.0, %v2547
        %v2549 = vpop.f32.mrf.mxu0
        %2550 = vmatprep.mubr.f32.mxu0 0.0
        %2551 = vmatmul.mubr.f32.gmra.mxu0 %v2368
        %v2552 = vpop.f32.mrf.mxu0
        %v2553 = vadd.f32 0.0, %v2552
        %v2554 = vpop.f32.mrf.mxu0
        %2555 = vmatprep.mubr.f32.mxu0 0.0
        %2556 = vmatmul.mubr.f32.gmra.mxu0 %v2370
        %v2557 = vpop.f32.mrf.mxu0
        %v2558 = vadd.f32 0.0, %v2557
        %v2559 = vpop.f32.mrf.mxu0
        %2560 = vmatprep.mubr.f32.mxu0 0.0
        %2561 = vmatmul.mubr.f32.gmra.mxu0 %v2372
        %v2562 = vpop.f32.mrf.mxu0
        %v2563 = vadd.f32 0.0, %v2562
        %v2564 = vpop.f32.mrf.mxu0
        %2565 = vmatprep.mubr.f32.mxu0 0.0
        %2566 = vmatmul.mubr.f32.gmra.mxu0 %v2374
        %v2567 = vpop.f32.mrf.mxu0
        %v2568 = vadd.f32 0.0, %v2567
        %v2569 = vpop.f32.mrf.mxu0
        %2570 = vmatprep.mubr.f32.mxu0 0.0
        %2571 = vmatmul.mubr.f32.gmra.mxu0 %v2376
        %v2572 = vpop.f32.mrf.mxu0
        %v2573 = vadd.f32 0.0, %v2572
        %v2574 = vpop.f32.mrf.mxu0
        %2575 = vmatprep.mubr.f32.mxu0 0.0
        %2576 = vmatmul.mubr.f32.gmra.mxu0 %v2378
        %v2577 = vpop.f32.mrf.mxu0
        %v2578 = vadd.f32 0.0, %v2577
        %v2579 = vpop.f32.mrf.mxu0
        %2580 = vmatprep.mubr.f32.mxu0 0.0
        %2581 = vmatmul.mubr.f32.gmra.mxu0 %v2380
        %v2582 = vpop.f32.mrf.mxu0
        %v2583 = vadd.f32 0.0, %v2582
        %v2584 = vpop.f32.mrf.mxu0
        %2585 = vmatprep.mubr.f32.mxu0 0.0
        %2586 = vmatmul.mubr.f32.gmra.mxu0 %v2382
        %v2587 = vpop.f32.mrf.mxu0
        %v2588 = vadd.f32 0.0, %v2587
        %v2589 = vpop.f32.mrf.mxu0
        %2590 = vmatprep.mubr.f32.mxu0 0.0
        %2591 = vmatmul.mubr.f32.gmra.mxu0 %v2384
        %v2592 = vpop.f32.mrf.mxu0
        %v2593 = vadd.f32 0.0, %v2592
        %v2594 = vpop.f32.mrf.mxu0
        %2595 = vmatprep.mubr.f32.mxu0 0.0
        %2596 = vmatmul.mubr.f32.gmra.mxu0 %v2386
        %v2597 = vpop.f32.mrf.mxu0
        %v2598 = vadd.f32 0.0, %v2597
        %v2599 = vpop.f32.mrf.mxu0
        %2600 = vmatprep.mubr.f32.mxu0 0.0
        %2601 = vmatmul.mubr.f32.gmra.mxu0 %v2388
        %v2602 = vpop.f32.mrf.mxu0
        %v2603 = vadd.f32 0.0, %v2602
        %v2604 = vpop.f32.mrf.mxu0
        %2605 = vmatprep.mubr.f32.mxu0 0.0
        %2606 = vmatmul.mubr.f32.gmra.mxu0 %v2390
        %v2607 = vpop.f32.mrf.mxu0
        %v2608 = vadd.f32 0.0, %v2607
        %v2609 = vpop.f32.mrf.mxu0
        %2610 = vmatprep.mubr.f32.mxu0 0.0
        %2611 = vmatmul.mubr.f32.gmra.mxu0 %v2392
        %v2612 = vpop.f32.mrf.mxu0
        %v2613 = vadd.f32 0.0, %v2612
        %v2614 = vpop.f32.mrf.mxu0
        %2615 = vmatprep.mubr.f32.mxu0 0.0
        %2616 = vmatmul.mubr.f32.gmra.mxu0 %v2394
        %v2617 = vpop.f32.mrf.mxu0
        %v2618 = vadd.f32 0.0, %v2617
        %v2619 = vpop.f32.mrf.mxu0
        %2620 = vmatprep.mubr.f32.mxu0 0.0
        %2621 = vmatmul.mubr.f32.gmra.mxu0 %v2396
        %v2622 = vpop.f32.mrf.mxu0
        %v2623 = vadd.f32 0.0, %v2622
        %v2624 = vpop.f32.mrf.mxu0
        %2625 = vmatprep.mubr.f32.mxu0 0.0
        %2626 = vmatmul.mubr.f32.gmra.mxu0 %v2398
        %v2627 = vpop.f32.mrf.mxu0
        %v2628 = vadd.f32 0.0, %v2627
        %v2629 = vpop.f32.mrf.mxu0
        %2630 = vdwg.mxu0
        %v2632 = vsel %vm398, %v2473, 0
        %v2635 = vsel %vm398, %v2478, 0
        %v2638 = vsel %vm398, %v2483, 0
        %v2641 = vsel %vm398, %v2488, 0
        %v2644 = vsel %vm398, %v2493, 0
        %v2647 = vsel %vm398, %v2498, 0
        %v2650 = vsel %vm398, %v2503, 0
        %v2653 = vsel %vm398, %v2508, 0
        %v2656 = vsel %vm398, %v2513, 0
        %v2659 = vsel %vm398, %v2518, 0
        %v2662 = vsel %vm398, %v2523, 0
        %v2665 = vsel %vm398, %v2528, 0
        %v2668 = vsel %vm398, %v2533, 0
        %v2671 = vsel %vm398, %v2538, 0
        %v2674 = vsel %vm398, %v2543, 0
        %v2677 = vsel %vm398, %v2548, 0
        %v2680 = vsel %vm398, %v2553, 0
        %v2683 = vsel %vm398, %v2558, 0
        %v2686 = vsel %vm398, %v2563, 0
        %v2689 = vsel %vm398, %v2568, 0
        %v2692 = vsel %vm398, %v2573, 0
        %v2695 = vsel %vm398, %v2578, 0
        %v2698 = vsel %vm398, %v2583, 0
        %v2701 = vsel %vm398, %v2588, 0
        %v2704 = vsel %vm398, %v2593, 0
        %v2707 = vsel %vm398, %v2598, 0
        %v2710 = vsel %vm398, %v2603, 0
        %v2713 = vsel %vm398, %v2608, 0
        %v2716 = vsel %vm398, %v2613, 0
        %v2719 = vsel %vm398, %v2618, 0
        %v2722 = vsel %vm398, %v2623, 0
        %v2725 = vsel %vm398, %v2628, 0
        %2727 = vmatprep.subr.mxu0 0.0
        %2728 = vmatpush1.msra.mxu0 0.0
        %2729 = vmatprep.subr.mxu0 0.0
        %2730 = vmatpush1.msra.mxu0 0.0
        %2731 = vmatprep.subr.mxu0 0.0
        %2732 = vmatpush1.msra.mxu0 0.0
        %2733 = vmatprep.subr.mxu0 0.0
        %2734 = vmatpush1.msra.mxu0 0.0
        %2735 = vmatprep.subr.mxu0 0.0
        %2736 = vmatpush1.msra.mxu0 0.0
        %2737 = vmatprep.subr.mxu0 0.0
        %2738 = vmatpush1.msra.mxu0 0.0
        %2739 = vmatprep.subr.mxu0 0.0
        %2740 = vmatpush1.msra.mxu0 0.0
        %2741 = vmatprep.subr.mxu0 0.0
        %2742 = vmatpush1.msra.mxu0 0.0
        %2743 = vmatprep.subr.mxu0 0.0
        %2744 = vmatpush1.msra.mxu0 0.0
        %2745 = vmatprep.subr.mxu0 0.0
        %2746 = vmatpush1.msra.mxu0 0.0
        %2747 = vmatprep.subr.mxu0 0.0
        %2748 = vmatpush1.msra.mxu0 0.0
        %2749 = vmatprep.subr.mxu0 0.0
        %2750 = vmatpush1.msra.mxu0 0.0
        %2751 = vmatprep.subr.mxu0 0.0
        %2752 = vmatpush1.msra.mxu0 0.0
        %2753 = vmatprep.subr.mxu0 0.0
        %2754 = vmatpush1.msra.mxu0 0.0
        %2755 = vmatprep.subr.mxu0 0.0
        %2756 = vmatpush1.msra.mxu0 %v262
        %2757 = vmatprep.subr.mxu0 0.0
        %2758 = vmatpush1.msra.mxu0 %v261
        %2759 = vmatprep.subr.mxu0 0.0
        %2760 = vmatpush2.msra.mxu0 0.0
        %2761 = vmatprep.subr.mxu0 0.0
        %2762 = vmatpush2.msra.mxu0 0.0
        %2763 = vmatprep.subr.mxu0 0.0
        %2764 = vmatpush2.msra.mxu0 0.0
        %2765 = vmatprep.subr.mxu0 0.0
        %2766 = vmatpush2.msra.mxu0 0.0
        %2767 = vmatprep.subr.mxu0 0.0
        %2768 = vmatpush2.msra.mxu0 0.0
        %2769 = vmatprep.subr.mxu0 0.0
        %2770 = vmatpush2.msra.mxu0 0.0
        %2771 = vmatprep.subr.mxu0 0.0
        %2772 = vmatpush2.msra.mxu0 0.0
        %2773 = vmatprep.subr.mxu0 0.0
        %2774 = vmatpush2.msra.mxu0 0.0
        %2775 = vmatprep.subr.mxu0 0.0
        %2776 = vmatpush2.msra.mxu0 0.0
        %2777 = vmatprep.subr.mxu0 0.0
        %2778 = vmatpush2.msra.mxu0 0.0
        %2779 = vmatprep.subr.mxu0 0.0
        %2780 = vmatpush2.msra.mxu0 0.0
        %2781 = vmatprep.subr.mxu0 0.0
        %2782 = vmatpush2.msra.mxu0 0.0
        %2783 = vmatprep.subr.mxu0 0.0
        %2784 = vmatpush2.msra.mxu0 0.0
        %2785 = vmatprep.subr.mxu0 0.0
        %2786 = vmatpush2.msra.mxu0 0.0
        %2787 = vmatprep.subr.mxu0 0.0
        %2788 = vmatpush2.msra.mxu0 0.0
        %2789 = vmatprep.subr.mxu0 0.0
        %2790 = vmatpush2.msra.mxu0 0.0
        %2791 = vmatprep.mubr.f32.mxu0 0.0
        %2792 = vmatmul.mubr.f32.gmra.mxu0 %v2632
        %v2793 = vpop.f32.mrf.mxu0
        %v2794 = vadd.f32 0.0, %v2793
        %v2795 = vpop.f32.mrf.mxu0
        %2796 = vmatprep.mubr.f32.mxu0 0.0
        %2797 = vmatmul.mubr.f32.gmra.mxu0 %v2635
        %v2798 = vpop.f32.mrf.mxu0
        %v2799 = vadd.f32 0.0, %v2798
        %v2800 = vpop.f32.mrf.mxu0
        %2801 = vmatprep.mubr.f32.mxu0 0.0
        %2802 = vmatmul.mubr.f32.gmra.mxu0 %v2638
        %v2803 = vpop.f32.mrf.mxu0
        %v2804 = vadd.f32 0.0, %v2803
        %v2805 = vpop.f32.mrf.mxu0
        %2806 = vmatprep.mubr.f32.mxu0 0.0
        %2807 = vmatmul.mubr.f32.gmra.mxu0 %v2641
        %v2808 = vpop.f32.mrf.mxu0
        %v2809 = vadd.f32 0.0, %v2808
        %v2810 = vpop.f32.mrf.mxu0
        %2811 = vmatprep.mubr.f32.mxu0 0.0
        %2812 = vmatmul.mubr.f32.gmra.mxu0 %v2644
        %v2813 = vpop.f32.mrf.mxu0
        %v2814 = vadd.f32 0.0, %v2813
        %v2815 = vpop.f32.mrf.mxu0
        %2816 = vmatprep.mubr.f32.mxu0 0.0
        %2817 = vmatmul.mubr.f32.gmra.mxu0 %v2647
        %v2818 = vpop.f32.mrf.mxu0
        %v2819 = vadd.f32 0.0, %v2818
        %v2820 = vpop.f32.mrf.mxu0
        %2821 = vmatprep.mubr.f32.mxu0 0.0
        %2822 = vmatmul.mubr.f32.gmra.mxu0 %v2650
        %v2823 = vpop.f32.mrf.mxu0
        %v2824 = vadd.f32 0.0, %v2823
        %v2825 = vpop.f32.mrf.mxu0
        %2826 = vmatprep.mubr.f32.mxu0 0.0
        %2827 = vmatmul.mubr.f32.gmra.mxu0 %v2653
        %v2828 = vpop.f32.mrf.mxu0
        %v2829 = vadd.f32 0.0, %v2828
        %v2830 = vpop.f32.mrf.mxu0
        %2831 = vmatprep.mubr.f32.mxu0 0.0
        %2832 = vmatmul.mubr.f32.gmra.mxu0 %v2656
        %v2833 = vpop.f32.mrf.mxu0
        %v2834 = vadd.f32 0.0, %v2833
        %v2835 = vpop.f32.mrf.mxu0
        %2836 = vmatprep.mubr.f32.mxu0 0.0
        %2837 = vmatmul.mubr.f32.gmra.mxu0 %v2659
        %v2838 = vpop.f32.mrf.mxu0
        %v2839 = vadd.f32 0.0, %v2838
        %v2840 = vpop.f32.mrf.mxu0
        %2841 = vmatprep.mubr.f32.mxu0 0.0
        %2842 = vmatmul.mubr.f32.gmra.mxu0 %v2662
        %v2843 = vpop.f32.mrf.mxu0
        %v2844 = vadd.f32 0.0, %v2843
        %v2845 = vpop.f32.mrf.mxu0
        %2846 = vmatprep.mubr.f32.mxu0 0.0
        %2847 = vmatmul.mubr.f32.gmra.mxu0 %v2665
        %v2848 = vpop.f32.mrf.mxu0
        %v2849 = vadd.f32 0.0, %v2848
        %v2850 = vpop.f32.mrf.mxu0
        %2851 = vmatprep.mubr.f32.mxu0 0.0
        %2852 = vmatmul.mubr.f32.gmra.mxu0 %v2668
        %v2853 = vpop.f32.mrf.mxu0
        %v2854 = vadd.f32 0.0, %v2853
        %v2855 = vpop.f32.mrf.mxu0
        %2856 = vmatprep.mubr.f32.mxu0 0.0
        %2857 = vmatmul.mubr.f32.gmra.mxu0 %v2671
        %v2858 = vpop.f32.mrf.mxu0
        %v2859 = vadd.f32 0.0, %v2858
        %v2860 = vpop.f32.mrf.mxu0
        %2861 = vmatprep.mubr.f32.mxu0 0.0
        %2862 = vmatmul.mubr.f32.gmra.mxu0 %v2674
        %v2863 = vpop.f32.mrf.mxu0
        %v2864 = vadd.f32 0.0, %v2863
        %v2865 = vpop.f32.mrf.mxu0
        %2866 = vmatprep.mubr.f32.mxu0 0.0
        %2867 = vmatmul.mubr.f32.gmra.mxu0 %v2677
        %v2868 = vpop.f32.mrf.mxu0
        %v2869 = vadd.f32 0.0, %v2868
        %v2870 = vpop.f32.mrf.mxu0
        %2871 = vmatprep.mubr.f32.mxu0 0.0
        %2872 = vmatmul.mubr.f32.gmra.mxu0 %v2680
        %v2873 = vpop.f32.mrf.mxu0
        %v2874 = vadd.f32 0.0, %v2873
        %v2875 = vpop.f32.mrf.mxu0
        %2876 = vmatprep.mubr.f32.mxu0 0.0
        %2877 = vmatmul.mubr.f32.gmra.mxu0 %v2683
        %v2878 = vpop.f32.mrf.mxu0
        %v2879 = vadd.f32 0.0, %v2878
        %v2880 = vpop.f32.mrf.mxu0
        %2881 = vmatprep.mubr.f32.mxu0 0.0
        %2882 = vmatmul.mubr.f32.gmra.mxu0 %v2686
        %v2883 = vpop.f32.mrf.mxu0
        %v2884 = vadd.f32 0.0, %v2883
        %v2885 = vpop.f32.mrf.mxu0
        %2886 = vmatprep.mubr.f32.mxu0 0.0
        %2887 = vmatmul.mubr.f32.gmra.mxu0 %v2689
        %v2888 = vpop.f32.mrf.mxu0
        %v2889 = vadd.f32 0.0, %v2888
        %v2890 = vpop.f32.mrf.mxu0
        %2891 = vmatprep.mubr.f32.mxu0 0.0
        %2892 = vmatmul.mubr.f32.gmra.mxu0 %v2692
        %v2893 = vpop.f32.mrf.mxu0
        %v2894 = vadd.f32 0.0, %v2893
        %v2895 = vpop.f32.mrf.mxu0
        %2896 = vmatprep.mubr.f32.mxu0 0.0
        %2897 = vmatmul.mubr.f32.gmra.mxu0 %v2695
        %v2898 = vpop.f32.mrf.mxu0
        %v2899 = vadd.f32 0.0, %v2898
        %v2900 = vpop.f32.mrf.mxu0
        %2901 = vmatprep.mubr.f32.mxu0 0.0
        %2902 = vmatmul.mubr.f32.gmra.mxu0 %v2698
        %v2903 = vpop.f32.mrf.mxu0
        %v2904 = vadd.f32 0.0, %v2903
        %v2905 = vpop.f32.mrf.mxu0
        %2906 = vmatprep.mubr.f32.mxu0 0.0
        %2907 = vmatmul.mubr.f32.gmra.mxu0 %v2701
        %v2908 = vpop.f32.mrf.mxu0
        %v2909 = vadd.f32 0.0, %v2908
        %v2910 = vpop.f32.mrf.mxu0
        %2911 = vmatprep.mubr.f32.mxu0 0.0
        %2912 = vmatmul.mubr.f32.gmra.mxu0 %v2704
        %v2913 = vpop.f32.mrf.mxu0
        %v2914 = vadd.f32 0.0, %v2913
        %v2915 = vpop.f32.mrf.mxu0
        %2916 = vmatprep.mubr.f32.mxu0 0.0
        %2917 = vmatmul.mubr.f32.gmra.mxu0 %v2707
        %v2918 = vpop.f32.mrf.mxu0
        %v2919 = vadd.f32 0.0, %v2918
        %v2920 = vpop.f32.mrf.mxu0
        %2921 = vmatprep.mubr.f32.mxu0 0.0
        %2922 = vmatmul.mubr.f32.gmra.mxu0 %v2710
        %v2923 = vpop.f32.mrf.mxu0
        %v2924 = vadd.f32 0.0, %v2923
        %v2925 = vpop.f32.mrf.mxu0
        %2926 = vmatprep.mubr.f32.mxu0 0.0
        %2927 = vmatmul.mubr.f32.gmra.mxu0 %v2713
        %v2928 = vpop.f32.mrf.mxu0
        %v2929 = vadd.f32 0.0, %v2928
        %v2930 = vpop.f32.mrf.mxu0
        %2931 = vmatprep.mubr.f32.mxu0 0.0
        %2932 = vmatmul.mubr.f32.gmra.mxu0 %v2716
        %v2933 = vpop.f32.mrf.mxu0
        %v2934 = vadd.f32 0.0, %v2933
        %v2935 = vpop.f32.mrf.mxu0
        %2936 = vmatprep.mubr.f32.mxu0 0.0
        %2937 = vmatmul.mubr.f32.gmra.mxu0 %v2719
        %v2938 = vpop.f32.mrf.mxu0
        %v2939 = vadd.f32 0.0, %v2938
        %v2940 = vpop.f32.mrf.mxu0
        %2941 = vmatprep.mubr.f32.mxu0 0.0
        %2942 = vmatmul.mubr.f32.gmra.mxu0 %v2722
        %v2943 = vpop.f32.mrf.mxu0
        %v2944 = vadd.f32 0.0, %v2943
        %v2945 = vpop.f32.mrf.mxu0
        %2946 = vmatprep.mubr.f32.mxu0 0.0
        %2947 = vmatmul.mubr.f32.gmra.mxu0 %v2725
        %v2948 = vpop.f32.mrf.mxu0
        %v2949 = vadd.f32 0.0, %v2948
        %v2950 = vpop.f32.mrf.mxu0
        %2951 = vdwg.mxu0
        %v2952 = vadd.f32 %v1611, %v2794
        %v2953 = vadd.f32 %v1612, %v2799
        %v2954 = vadd.f32 %v1613, %v2804
        %v2955 = vadd.f32 %v1614, %v2809
        %v2956 = vadd.f32 %v1615, %v2814
        %v2957 = vadd.f32 %v1616, %v2819
        %v2958 = vadd.f32 %v1617, %v2824
        %v2959 = vadd.f32 %v1618, %v2829
        %v2960 = vadd.f32 %v1619, %v2834
        %v2961 = vadd.f32 %v1620, %v2839
        %v2962 = vadd.f32 %v1621, %v2844
        %v2963 = vadd.f32 %v1622, %v2849
        %v2964 = vadd.f32 %v1623, %v2854
        %v2965 = vadd.f32 %v1624, %v2859
        %v2966 = vadd.f32 %v1625, %v2864
        %v2967 = vadd.f32 %v1626, %v2869
        %v2968 = vadd.f32 %v1627, %v2874
        %v2969 = vadd.f32 %v1628, %v2879
        %v2970 = vadd.f32 %v1629, %v2884
        %v2971 = vadd.f32 %v1630, %v2889
        %v2972 = vadd.f32 %v1631, %v2894
        %v2973 = vadd.f32 %v1632, %v2899
        %v2974 = vadd.f32 %v1633, %v2904
        %v2975 = vadd.f32 %v1634, %v2909
        %v2976 = vadd.f32 %v1635, %v2914
        %v2977 = vadd.f32 %v1636, %v2919
        %v2978 = vadd.f32 %v1637, %v2924
        %v2979 = vadd.f32 %v1638, %v2929
        %v2980 = vadd.f32 %v1639, %v2934
        %v2981 = vadd.f32 %v1640, %v2939
        %v2982 = vadd.f32 %v1641, %v2944
        %v2983 = vadd.f32 %v1642, %v2949
        %vm2984 = vcmask 261120
        %2985 = vst.msk [vmem:[%s258] sm:$0xff] %vm2984, %v2952
        %2986 = vst.msk [vmem:[%s258 + $0x8] sm:$0xff] %vm2984, %v2953
        %2987 = vst.msk [vmem:[%s258 + $0x10] sm:$0xff] %vm2984, %v2954
        %2988 = vst.msk [vmem:[%s258 + $0x18] sm:$0xff] %vm2984, %v2955
        %2989 = vst.msk [vmem:[%s258 + $0x20] sm:$0xff] %vm2984, %v2956
        %2990 = vst.msk [vmem:[%s258 + $0x28] sm:$0xff] %vm2984, %v2957
        %2991 = vst.msk [vmem:[%s258 + $0x30] sm:$0xff] %vm2984, %v2958
        %2992 = vst.msk [vmem:[%s258 + $0x38] sm:$0xff] %vm2984, %v2959
        %2993 = vst.msk [vmem:[%s258 + $0x40] sm:$0xff] %vm2984, %v2960
        %2994 = vst.msk [vmem:[%s258 + $0x48] sm:$0xff] %vm2984, %v2961
        %2995 = vst.msk [vmem:[%s258 + $0x50] sm:$0xff] %vm2984, %v2962
        %2996 = vst.msk [vmem:[%s258 + $0x58] sm:$0xff] %vm2984, %v2963
        %2997 = vst.msk [vmem:[%s258 + $0x60] sm:$0xff] %vm2984, %v2964
        %2998 = vst.msk [vmem:[%s258 + $0x68] sm:$0xff] %vm2984, %v2965
        %2999 = vst.msk [vmem:[%s258 + $0x70] sm:$0xff] %vm2984, %v2966
        %3000 = vst.msk [vmem:[%s258 + $0x78] sm:$0xff] %vm2984, %v2967
        %3001 = vst.msk [vmem:[%s258 + $0x80] sm:$0xff] %vm2984, %v2968
        %3002 = vst.msk [vmem:[%s258 + $0x88] sm:$0xff] %vm2984, %v2969
        %3003 = vst.msk [vmem:[%s258 + $0x90] sm:$0xff] %vm2984, %v2970
        %3004 = vst.msk [vmem:[%s258 + $0x98] sm:$0xff] %vm2984, %v2971
        %3005 = vst.msk [vmem:[%s258 + $0xa0] sm:$0xff] %vm2984, %v2972
        %3006 = vst.msk [vmem:[%s258 + $0xa8] sm:$0xff] %vm2984, %v2973
        %3007 = vst.msk [vmem:[%s258 + $0xb0] sm:$0xff] %vm2984, %v2974
        %3008 = vst.msk [vmem:[%s258 + $0xb8] sm:$0xff] %vm2984, %v2975
        %3009 = vst.msk [vmem:[%s258 + $0xc0] sm:$0xff] %vm2984, %v2976
        %3010 = vst.msk [vmem:[%s258 + $0xc8] sm:$0xff] %vm2984, %v2977
        %3011 = vst.msk [vmem:[%s258 + $0xd0] sm:$0xff] %vm2984, %v2978
        %3012 = vst.msk [vmem:[%s258 + $0xd8] sm:$0xff] %vm2984, %v2979
        %3013 = vst.msk [vmem:[%s258 + $0xe0] sm:$0xff] %vm2984, %v2980
        %3014 = vst.msk [vmem:[%s258 + $0xe8] sm:$0xff] %vm2984, %v2981
        %3015 = vst.msk [vmem:[%s258 + $0xf0] sm:$0xff] %vm2984, %v2982
        %3016 = vst.msk [vmem:[%s258 + $0xf8] sm:$0xff] %vm2984, %v2983
        %p3017 = scmp.lt.s32.totalorder %s17, 1
        %s3018 = scalar_select %p3017, %s17, 1
        %s3019 = smul.addr %s3018, 32
        %s3020 = smul.addr %s3019, 8
        %s3021 = scalar_lea.vmem %s5, %s3020
        // Predicated region
        $region45: #{transformer_block_pallas.8} parent=39 // pred_check
          %p3022 = pneg %p150
        $region46: #{transformer_block_pallas.8} parent=39 // pred_check_branch
          %3024 = sbr.rel (%p3022) target = $region48
        $region47: #{transformer_block_pallas.8} parent=39 // pred_region
          _
        $region48: #{transformer_block_pallas.8} parent=39 // pred_fallthru
          _
      $region40: #{transformer_block_pallas.8} parent=5 // pred_fallthru
        _
      %p3025 = scmp.le.s32.totalorder 2, %s12
      // Predicated region
      $region49: #{transformer_block_pallas.8} parent=5 // pred_check
        %p3026 = pneg %p3025
      $region50: #{transformer_block_pallas.8} parent=5 // pred_check_branch
        %3028 = sbr.rel (%p3026) target = $region52
      $region51: #{transformer_block_pallas.8} parent=5 // pred_region
        %s3029 = ssub.s32 %s12, 2
        // Predicated region
        $region53: #{transformer_block_pallas.8} parent=51 // pred_check
          %p3030 = pneg %p156
        $region54: #{transformer_block_pallas.8} parent=51 // pred_check_branch
          %3032 = sbr.rel (%p3030) target = $region56
        $region55: #{transformer_block_pallas.8} parent=51 // pred_region
          %p3033 = scmp.lt.s32.totalorder %s18, 1
          %s3034 = scalar_select %p3033, %s18, 1
          %s3035 = smul.addr %s3034, 32
          %s3036 = smul.addr %s3035, 8
          %s3037 = scalar_lea.vmem %s5, %s3036
        $region56: #{transformer_block_pallas.8} parent=51 // pred_fallthru
          _
      $region52: #{transformer_block_pallas.8} parent=5 // pred_fallthru
        _
    $region6: #{transformer_block_pallas.8} parent=1 // loop_footer
      %s16 = sadd.s32 1, %s12
    $region7: #{transformer_block_pallas.8} parent=1 // loop_footer_branch
      %11 = sbr.rel target = $region3
    $region8: #{transformer_block_pallas.8} parent=1 // loop_exit
      _
    %3038 = vsyncpa [#allocation3], 1
    %s3039 = scalar_lea.sflag [#allocation3], 1
    %3040 = vsyncpa %s3039, 1

// kernel: transformer_block_pallas.9
$region0: #{transformer_block_pallas.9}
  #allocation0 [shape = 'u32[]', space=smem, size = 0x4, offset = 0x4, fixed_abs, tag = 'smem constant byte address 0x4 - core index']
  #allocation1 [shape = 'u32[144,128]{1,0:T(1,128)}', space=vmem, size = 0x12000, scoped, tag = 'internal scratch']
  %s0 = inlined_call_operand.vmem [shape: f32[128,128], index: 0, kind: input, shape index: {}]
  %s1 = inlined_call_operand.vmem [shape: f32[128,128], index: 1, kind: input, shape index: {}]
  %s2 = inlined_call_operand.vmem [shape: f32[128,512], index: 2, kind: input, shape index: {}]
  %s3 = inlined_call_operand.vmem [shape: f32[1,512], index: 3, kind: input, shape index: {}]
  %s4 = inlined_call_operand.vmem [shape: f32[128,512], index: 4, kind: output, shape index: {}]
  %s5 = sld [smem:[#allocation0]]
  $region49: #{transformer_block_pallas.9} parent=0
    _
  %s7 = ssub.s32 1, %s5
  %s8 = scalar_select 0, %s7, %s5
  loop: start=0, step=1, limit=4
  $region2: #{transformer_block_pallas.9} parent=0 // loop_pre_header
    _
  $region3: #{transformer_block_pallas.9} parent=0 // loop_header
    %s10 = sphi 0, %s14
    %p11 = scmp.ge.s32.totalorder %s10, 4
    %s20 = sphi 0, %s22
    %s23 = sphi 0, %s20
    %s24 = sphi 0, %s23
    %s40 = sphi 0, %s24
    %s44 = sphi 0, %s44
    %s46 = sphi 0, %s44
    %s47 = sphi 0, %s46
    %s61 = sphi 0, %s47
    %s65 = sphi 0, %s65
    %s67 = sphi 0, %s65
    %s68 = sphi 0, %s67
    %s82 = sphi 0, %s68
    %s86 = sphi 0, %s86
    %s88 = sphi 0, %s86
    %s89 = sphi 0, %s88
    %s103 = sphi 0, %s89
    %s109 = sphi 0, %s111
    %s112 = sphi 0, %s109
    %s113 = sphi 0, %s112
    %s129 = sphi 0, %s113
  $region4: #{transformer_block_pallas.9} parent=0 // loop_header_branch
    %13 = sbr.rel (%p11) target = $region8
  $region5: #{transformer_block_pallas.9} parent=0 // loop_body
    %s15 = ssub.s32 %s10, 1
    %s16 = ssub.s32 %s10, 2
    %s17 = sadd.s32 %s10, 1
    %s18 = ssub.s32 %s10, %s17
    %p19 = scmp.eq.s32.totalorder %s18, 0
    %s21 = sadd.s32 %s20, 1
    %s22 = scalar_select %p19, %s20, %s21
    %p25 = pneg %p19
    %p26 = scmp.eq.s32.totalorder %s10, 1
    %p27 = por %p25, %p26
    %p28 = scmp.ne.s32.totalorder %s20, %s23
    %p29 = scmp.eq.s32.totalorder %s10, 0
    %p30 = por %p28, %p29
    %p31 = scmp.ne.s32.totalorder %s20, %s23
    %p32 = scmp.eq.s32.totalorder %s15, 1
    %p33 = por %p31, %p32
    %p34 = scmp.ne.s32.totalorder %s23, %s24
    %p35 = scmp.eq.s32.totalorder %s15, 0
    %p36 = por %p34, %p35
    %p37 = scmp.ne.s32.totalorder %s23, %s24
    %p38 = scmp.eq.s32.totalorder %s16, 1
    %p39 = por %p37, %p38
    %p41 = scmp.ne.s32.totalorder %s24, %s40
    %p42 = scmp.eq.s32.totalorder %s16, 0
    %p43 = por %p41, %p42
    %s45 = sadd.s32 %s44, 1
    %p48 = scmp.eq.s32.totalorder %s10, 1
    %p49 = scmp.ne.s32.totalorder %s44, %s46
    %p50 = scmp.eq.s32.totalorder %s10, 0
    %p51 = por %p49, %p50
    %p52 = scmp.ne.s32.totalorder %s44, %s46
    %p53 = scmp.eq.s32.totalorder %s15, 1
    %p54 = por %p52, %p53
    %p55 = scmp.ne.s32.totalorder %s46, %s47
    %p56 = scmp.eq.s32.totalorder %s15, 0
    %p57 = por %p55, %p56
    %p58 = scmp.ne.s32.totalorder %s46, %s47
    %p59 = scmp.eq.s32.totalorder %s16, 1
    %p60 = por %p58, %p59
    %p62 = scmp.ne.s32.totalorder %s47, %s61
    %p63 = scmp.eq.s32.totalorder %s16, 0
    %p64 = por %p62, %p63
    %s66 = sadd.s32 %s65, 1
    %p69 = scmp.eq.s32.totalorder %s10, 1
    %p70 = scmp.ne.s32.totalorder %s65, %s67
    %p71 = scmp.eq.s32.totalorder %s10, 0
    %p72 = por %p70, %p71
    %p73 = scmp.ne.s32.totalorder %s65, %s67
    %p74 = scmp.eq.s32.totalorder %s15, 1
    %p75 = por %p73, %p74
    %p76 = scmp.ne.s32.totalorder %s67, %s68
    %p77 = scmp.eq.s32.totalorder %s15, 0
    %p78 = por %p76, %p77
    %p79 = scmp.ne.s32.totalorder %s67, %s68
    %p80 = scmp.eq.s32.totalorder %s16, 1
    %p81 = por %p79, %p80
    %p83 = scmp.ne.s32.totalorder %s68, %s82
    %p84 = scmp.eq.s32.totalorder %s16, 0
    %p85 = por %p83, %p84
    %s87 = sadd.s32 %s86, 1
    %p90 = scmp.eq.s32.totalorder %s10, 1
    %p91 = scmp.ne.s32.totalorder %s86, %s88
    %p92 = scmp.eq.s32.totalorder %s10, 0
    %p93 = por %p91, %p92
    %p94 = scmp.ne.s32.totalorder %s86, %s88
    %p95 = scmp.eq.s32.totalorder %s15, 1
    %p96 = por %p94, %p95
    %p97 = scmp.ne.s32.totalorder %s88, %s89
    %p98 = scmp.eq.s32.totalorder %s15, 0
    %p99 = por %p97, %p98
    %p100 = scmp.ne.s32.totalorder %s88, %s89
    %p101 = scmp.eq.s32.totalorder %s16, 1
    %p102 = por %p100, %p101
    %p104 = scmp.ne.s32.totalorder %s89, %s103
    %p105 = scmp.eq.s32.totalorder %s16, 0
    %p106 = por %p104, %p105
    %s107 = ssub.s32 %s10, %s17
    %p108 = scmp.eq.s32.totalorder %s107, 0
    %s110 = sadd.s32 %s109, 1
    %s111 = scalar_select %p108, %s109, %s110
    %p114 = pneg %p108
    %p115 = scmp.eq.s32.totalorder %s10, 1
    %p116 = por %p114, %p115
    %p117 = scmp.ne.s32.totalorder %s109, %s112
    %p118 = scmp.eq.s32.totalorder %s10, 0
    %p119 = por %p117, %p118
    %p120 = scmp.ne.s32.totalorder %s109, %s112
    %p121 = scmp.eq.s32.totalorder %s15, 1
    %p122 = por %p120, %p121
    %p123 = scmp.ne.s32.totalorder %s112, %s113
    %p124 = scmp.eq.s32.totalorder %s15, 0
    %p125 = por %p123, %p124
    %p126 = scmp.ne.s32.totalorder %s112, %s113
    %p127 = scmp.eq.s32.totalorder %s16, 1
    %p128 = por %p126, %p127
    %p130 = scmp.ne.s32.totalorder %s113, %s129
    %p131 = scmp.eq.s32.totalorder %s16, 0
    %p132 = por %p130, %p131
    %p133 = scmp.le.s32.totalorder 1, %s10
    %p134 = scmp.lt.s32.totalorder %s10, 3
    %p135 = pnand %p133, %p134
    %p136 = pneg %p135
    // Predicated region
    $region9: #{transformer_block_pallas.9} parent=5 // pred_check
      _
    $region10: #{transformer_block_pallas.9} parent=5 // pred_check_branch
      %138 = sbr.rel (%p135) target = $region12
    $region11: #{transformer_block_pallas.9} parent=5 // pred_region
      %s139 = ssub.s32 %s10, 1
      // Predicated region
      $region13: #{transformer_block_pallas.9} parent=11 // pred_check
        %p140 = pneg %p57
      $region14: #{transformer_block_pallas.9} parent=11 // pred_check_branch
        %142 = sbr.rel (%p140) target = $region16
      $region15: #{transformer_block_pallas.9} parent=11 // pred_region
        _
      $region16: #{transformer_block_pallas.9} parent=11 // pred_fallthru
        _
      // Predicated region
      $region17: #{transformer_block_pallas.9} parent=11 // pred_check
        %p143 = pneg %p78
      $region18: #{transformer_block_pallas.9} parent=11 // pred_check_branch
        %145 = sbr.rel (%p143) target = $region20
      $region19: #{transformer_block_pallas.9} parent=11 // pred_region
        _
      $region20: #{transformer_block_pallas.9} parent=11 // pred_fallthru
        _
      // Predicated region
      $region21: #{transformer_block_pallas.9} parent=11 // pred_check
        %p146 = pneg %p99
      $region22: #{transformer_block_pallas.9} parent=11 // pred_check_branch
        %148 = sbr.rel (%p146) target = $region24
      $region23: #{transformer_block_pallas.9} parent=11 // pred_region
        _
      $region24: #{transformer_block_pallas.9} parent=11 // pred_fallthru
        _
    $region12: #{transformer_block_pallas.9} parent=5 // pred_fallthru
      _
    %p149 = scmp.lt.s32.totalorder %s10, 2
    // Predicated region
    $region25: #{transformer_block_pallas.9} parent=5 // pred_check
      %p150 = pneg %p149
    $region26: #{transformer_block_pallas.9} parent=5 // pred_check_branch
      %152 = sbr.rel (%p150) target = $region28
    $region27: #{transformer_block_pallas.9} parent=5 // pred_region
      // Predicated region
      $region29: #{transformer_block_pallas.9} parent=27 // pred_check
        %p153 = pneg %p30
      $region30: #{transformer_block_pallas.9} parent=27 // pred_check_branch
        %155 = sbr.rel (%p153) target = $region32
      $region31: #{transformer_block_pallas.9} parent=27 // pred_region
        %s156 = smul.u32 8, %s10
        %p157 = scmp.lt.s32.totalorder %s156, 15
        %s158 = scalar_select %p157, %s156, 15
        %s159 = smul.addr %s158, 8
        %s160 = scalar_lea.vmem %s0, %s159
        %s161 = smul.u32 8, %s10
      $region32: #{transformer_block_pallas.9} parent=27 // pred_fallthru
        _
    $region28: #{transformer_block_pallas.9} parent=5 // pred_fallthru
      _
    %p162 = scmp.le.s32.totalorder 1, %s10
    %p163 = scmp.lt.s32.totalorder %s10, 3
    %p164 = pnand %p162, %p163
    %p165 = pneg %p164
    // Predicated region
    $region33: #{transformer_block_pallas.9} parent=5 // pred_check
      _
    $region34: #{transformer_block_pallas.9} parent=5 // pred_check_branch
      %167 = sbr.rel (%p164) target = $region36
    $region35: #{transformer_block_pallas.9} parent=5 // pred_region
      %s168 = ssub.s32 %s10, 1
      %s169 = smul.u32 8, %s15
      %p170 = scmp.lt.s32.totalorder %s169, 15
      %s171 = scalar_select %p170, %s169, 15
      %s172 = smul.addr %s171, 8
      %s173 = scalar_lea.vmem %s0, %s172
      %p174 = pneg %p36
      %p175 = pneg %p33
      %p176 = pneg %p57
      %p177 = pneg %p54
      %p178 = pneg %p78
      %p179 = pneg %p75
      %p180 = pneg %p99
      %p181 = pneg %p96
      %p182 = pneg %p125
      %p183 = pneg %p122
      %s184 = smul.u32 8, %s15
      %p185 = scmp.lt.s32.totalorder %s184, 15
      %s186 = scalar_select %p185, %s184, 15
      %s187 = smul.addr %s186, 4
      %s188 = smul.addr %s187, 8
      %s189 = scalar_lea.vmem %s4, %s188
      %s190 = smul.u32 8, %s15
      %p191 = scmp.lt.s32.totalorder %s190, 15
      %s192 = scalar_select %p191, %s190, 15
      %s193 = smul.addr %s192, 8
      %s194 = scalar_lea.vmem %s0, %s193
      %s195 = smul.u32 8, %s15
      %s196 = smul.u32 8, %s15
      %p197 = scmp.lt.s32.totalorder %s196, 15
      %s198 = scalar_select %p197, %s196, 15
      %s199 = smul.addr %s198, 4
      %s200 = smul.addr %s199, 8
      %s201 = scalar_lea.vmem %s4, %s200
      %s202 = smul.u32 8, %s15
      %v203 = vld [vmem:[%s194] sm:$0xff]
      %v204 = vld [vmem:[%s194 + $0x8] sm:$0xff]
      %v205 = vld [vmem:[%s194 + $0x10] sm:$0xff]
      %v206 = vld [vmem:[%s194 + $0x18] sm:$0xff]
      %v207 = vld [vmem:[%s194 + $0x20] sm:$0xff]
      %v208 = vld [vmem:[%s194 + $0x28] sm:$0xff]
      %v209 = vld [vmem:[%s194 + $0x30] sm:$0xff]
      %v210 = vld [vmem:[%s194 + $0x38] sm:$0xff]
      %v211 = vld [vmem:[%s1] sm:$0xff]
      %v212 = vld [vmem:[%s1 + $0x8] sm:$0xff]
      %v213 = vld [vmem:[%s1 + $0x10] sm:$0xff]
      %v214 = vld [vmem:[%s1 + $0x18] sm:$0xff]
      %v215 = vld [vmem:[%s1 + $0x20] sm:$0xff]
      %v216 = vld [vmem:[%s1 + $0x28] sm:$0xff]
      %v217 = vld [vmem:[%s1 + $0x30] sm:$0xff]
      %v218 = vld [vmem:[%s1 + $0x38] sm:$0xff]
      %v219 = vld [vmem:[%s1 + $0x40] sm:$0xff]
      %v220 = vld [vmem:[%s1 + $0x48] sm:$0xff]
      %v221 = vld [vmem:[%s1 + $0x50] sm:$0xff]
      %v222 = vld [vmem:[%s1 + $0x58] sm:$0xff]
      %v223 = vld [vmem:[%s1 + $0x60] sm:$0xff]
      %v224 = vld [vmem:[%s1 + $0x68] sm:$0xff]
      %v225 = vld [vmem:[%s1 + $0x70] sm:$0xff]
      %v226 = vld [vmem:[%s1 + $0x78] sm:$0xff]
      %227 = vmatprep.subr.mxu0 0.0
      %228 = vmatpush1.msra.mxu0 %v226
      %229 = vmatprep.subr.mxu0 0.0
      %230 = vmatpush1.msra.mxu0 %v225
      %231 = vmatprep.subr.mxu0 0.0
      %232 = vmatpush1.msra.mxu0 %v224
      %233 = vmatprep.subr.mxu0 0.0
      %234 = vmatpush1.msra.mxu0 %v223
      %235 = vmatprep.subr.mxu0 0.0
      %236 = vmatpush1.msra.mxu0 %v222
      %237 = vmatprep.subr.mxu0 0.0
      %238 = vmatpush1.msra.mxu0 %v221
      %239 = vmatprep.subr.mxu0 0.0
      %240 = vmatpush1.msra.mxu0 %v220
      %241 = vmatprep.subr.mxu0 0.0
      %242 = vmatpush1.msra.mxu0 %v219
      %243 = vmatprep.subr.mxu0 0.0
      %244 = vmatpush1.msra.mxu0 %v218
      %245 = vmatprep.subr.mxu0 0.0
      %246 = vmatpush1.msra.mxu0 %v217
      %247 = vmatprep.subr.mxu0 0.0
      %248 = vmatpush1.msra.mxu0 %v216
      %249 = vmatprep.subr.mxu0 0.0
      %250 = vmatpush1.msra.mxu0 %v215
      %251 = vmatprep.subr.mxu0 0.0
      %252 = vmatpush1.msra.mxu0 %v214
      %253 = vmatprep.subr.mxu0 0.0
      %254 = vmatpush1.msra.mxu0 %v213
      %255 = vmatprep.subr.mxu0 0.0
      %256 = vmatpush1.msra.mxu0 %v212
      %257 = vmatprep.subr.mxu0 0.0
      %258 = vmatpush1.msra.mxu0 %v211
      %259 = vmatprep.subr.mxu0 0.0
      %260 = vmatpush2.msra.mxu0 0.0
      %261 = vmatprep.subr.mxu0 0.0
      %262 = vmatpush2.msra.mxu0 0.0
      %263 = vmatprep.subr.mxu0 0.0
      %264 = vmatpush2.msra.mxu0 0.0
      %265 = vmatprep.subr.mxu0 0.0
      %266 = vmatpush2.msra.mxu0 0.0
      %267 = vmatprep.subr.mxu0 0.0
      %268 = vmatpush2.msra.mxu0 0.0
      %269 = vmatprep.subr.mxu0 0.0
      %270 = vmatpush2.msra.mxu0 0.0
      %271 = vmatprep.subr.mxu0 0.0
      %272 = vmatpush2.msra.mxu0 0.0
      %273 = vmatprep.subr.mxu0 0.0
      %274 = vmatpush2.msra.mxu0 0.0
      %275 = vmatprep.subr.mxu0 0.0
      %276 = vmatpush2.msra.mxu0 0.0
      %277 = vmatprep.subr.mxu0 0.0
      %278 = vmatpush2.msra.mxu0 0.0
      %279 = vmatprep.subr.mxu0 0.0
      %280 = vmatpush2.msra.mxu0 0.0
      %281 = vmatprep.subr.mxu0 0.0
      %282 = vmatpush2.msra.mxu0 0.0
      %283 = vmatprep.subr.mxu0 0.0
      %284 = vmatpush2.msra.mxu0 0.0
      %285 = vmatprep.subr.mxu0 0.0
      %286 = vmatpush2.msra.mxu0 0.0
      %287 = vmatprep.subr.mxu0 0.0
      %288 = vmatpush2.msra.mxu0 0.0
      %289 = vmatprep.subr.mxu0 0.0
      %290 = vmatpush2.msra.mxu0 0.0
      %291 = vmatprep.mubr.f32.mxu0 0.0
      %292 = vmatmul.mubr.f32.gmra.mxu0 %v203
      %v293 = vpop.f32.mrf.mxu0
      %v294 = vadd.f32 0.0, %v293
      %v295 = vpop.f32.mrf.mxu0
      %296 = vmatprep.mubr.f32.mxu0 0.0
      %297 = vmatmul.mubr.f32.gmra.mxu0 %v204
      %v298 = vpop.f32.mrf.mxu0
      %v299 = vadd.f32 0.0, %v298
      %v300 = vpop.f32.mrf.mxu0
      %301 = vmatprep.mubr.f32.mxu0 0.0
      %302 = vmatmul.mubr.f32.gmra.mxu0 %v205
      %v303 = vpop.f32.mrf.mxu0
      %v304 = vadd.f32 0.0, %v303
      %v305 = vpop.f32.mrf.mxu0
      %306 = vmatprep.mubr.f32.mxu0 0.0
      %307 = vmatmul.mubr.f32.gmra.mxu0 %v206
      %v308 = vpop.f32.mrf.mxu0
      %v309 = vadd.f32 0.0, %v308
      %v310 = vpop.f32.mrf.mxu0
      %311 = vmatprep.mubr.f32.mxu0 0.0
      %312 = vmatmul.mubr.f32.gmra.mxu0 %v207
      %v313 = vpop.f32.mrf.mxu0
      %v314 = vadd.f32 0.0, %v313
      %v315 = vpop.f32.mrf.mxu0
      %316 = vmatprep.mubr.f32.mxu0 0.0
      %317 = vmatmul.mubr.f32.gmra.mxu0 %v208
      %v318 = vpop.f32.mrf.mxu0
      %v319 = vadd.f32 0.0, %v318
      %v320 = vpop.f32.mrf.mxu0
      %321 = vmatprep.mubr.f32.mxu0 0.0
      %322 = vmatmul.mubr.f32.gmra.mxu0 %v209
      %v323 = vpop.f32.mrf.mxu0
      %v324 = vadd.f32 0.0, %v323
      %v325 = vpop.f32.mrf.mxu0
      %326 = vmatprep.mubr.f32.mxu0 0.0
      %327 = vmatmul.mubr.f32.gmra.mxu0 %v210
      %v328 = vpop.f32.mrf.mxu0
      %v329 = vadd.f32 0.0, %v328
      %v330 = vpop.f32.mrf.mxu0
      %331 = vdwg.mxu0
      %v332 = vsub.f32 %v203, %v294
      %v333 = vsub.f32 %v204, %v299
      %v334 = vsub.f32 %v205, %v304
      %v335 = vsub.f32 %v206, %v309
      %v336 = vsub.f32 %v207, %v314
      %v337 = vsub.f32 %v208, %v319
      %v338 = vsub.f32 %v209, %v324
      %v339 = vsub.f32 %v210, %v329
      %v340 = vmul.f32 %v332, %v332
      %v341 = vmul.f32 %v333, %v333
      %v342 = vmul.f32 %v334, %v334
      %v343 = vmul.f32 %v335, %v335
      %v344 = vmul.f32 %v336, %v336
      %v345 = vmul.f32 %v337, %v337
      %v346 = vmul.f32 %v338, %v338
      %v347 = vmul.f32 %v339, %v339
      %348 = vmatprep.subr.mxu0 0.0
      %349 = vmatpush1.msra.mxu0 %v226
      %350 = vmatprep.subr.mxu0 0.0
      %351 = vmatpush1.msra.mxu0 %v225
      %352 = vmatprep.subr.mxu0 0.0
      %353 = vmatpush1.msra.mxu0 %v224
      %354 = vmatprep.subr.mxu0 0.0
      %355 = vmatpush1.msra.mxu0 %v223
      %356 = vmatprep.subr.mxu0 0.0
      %357 = vmatpush1.msra.mxu0 %v222
      %358 = vmatprep.subr.mxu0 0.0
      %359 = vmatpush1.msra.mxu0 %v221
      %360 = vmatprep.subr.mxu0 0.0
      %361 = vmatpush1.msra.mxu0 %v220
      %362 = vmatprep.subr.mxu0 0.0
      %363 = vmatpush1.msra.mxu0 %v219
      %364 = vmatprep.subr.mxu0 0.0
      %365 = vmatpush1.msra.mxu0 %v218
      %366 = vmatprep.subr.mxu0 0.0
      %367 = vmatpush1.msra.mxu0 %v217
      %368 = vmatprep.subr.mxu0 0.0
      %369 = vmatpush1.msra.mxu0 %v216
      %370 = vmatprep.subr.mxu0 0.0
      %371 = vmatpush1.msra.mxu0 %v215
      %372 = vmatprep.subr.mxu0 0.0
      %373 = vmatpush1.msra.mxu0 %v214
      %374 = vmatprep.subr.mxu0 0.0
      %375 = vmatpush1.msra.mxu0 %v213
      %376 = vmatprep.subr.mxu0 0.0
      %377 = vmatpush1.msra.mxu0 %v212
      %378 = vmatprep.subr.mxu0 0.0
      %379 = vmatpush1.msra.mxu0 %v211
      %380 = vmatprep.subr.mxu0 0.0
      %381 = vmatpush2.msra.mxu0 0.0
      %382 = vmatprep.subr.mxu0 0.0
      %383 = vmatpush2.msra.mxu0 0.0
      %384 = vmatprep.subr.mxu0 0.0
      %385 = vmatpush2.msra.mxu0 0.0
      %386 = vmatprep.subr.mxu0 0.0
      %387 = vmatpush2.msra.mxu0 0.0
      %388 = vmatprep.subr.mxu0 0.0
      %389 = vmatpush2.msra.mxu0 0.0
      %390 = vmatprep.subr.mxu0 0.0
      %391 = vmatpush2.msra.mxu0 0.0
      %392 = vmatprep.subr.mxu0 0.0
      %393 = vmatpush2.msra.mxu0 0.0
      %394 = vmatprep.subr.mxu0 0.0
      %395 = vmatpush2.msra.mxu0 0.0
      %396 = vmatprep.subr.mxu0 0.0
      %397 = vmatpush2.msra.mxu0 0.0
      %398 = vmatprep.subr.mxu0 0.0
      %399 = vmatpush2.msra.mxu0 0.0
      %400 = vmatprep.subr.mxu0 0.0
      %401 = vmatpush2.msra.mxu0 0.0
      %402 = vmatprep.subr.mxu0 0.0
      %403 = vmatpush2.msra.mxu0 0.0
      %404 = vmatprep.subr.mxu0 0.0
      %405 = vmatpush2.msra.mxu0 0.0
      %406 = vmatprep.subr.mxu0 0.0
      %407 = vmatpush2.msra.mxu0 0.0
      %408 = vmatprep.subr.mxu0 0.0
      %409 = vmatpush2.msra.mxu0 0.0
      %410 = vmatprep.subr.mxu0 0.0
      %411 = vmatpush2.msra.mxu0 0.0
      %412 = vmatprep.mubr.f32.mxu0 0.0
      %413 = vmatmul.mubr.f32.gmra.mxu0 %v340
      %v414 = vpop.f32.mrf.mxu0
      %v415 = vadd.f32 1e-05, %v414
      %v416 = vpop.f32.mrf.mxu0
      %417 = vmatprep.mubr.f32.mxu0 0.0
      %418 = vmatmul.mubr.f32.gmra.mxu0 %v341
      %v419 = vpop.f32.mrf.mxu0
      %v420 = vadd.f32 1e-05, %v419
      %v421 = vpop.f32.mrf.mxu0
      %422 = vmatprep.mubr.f32.mxu0 0.0
      %423 = vmatmul.mubr.f32.gmra.mxu0 %v342
      %v424 = vpop.f32.mrf.mxu0
      %v425 = vadd.f32 1e-05, %v424
      %v426 = vpop.f32.mrf.mxu0
      %427 = vmatprep.mubr.f32.mxu0 0.0
      %428 = vmatmul.mubr.f32.gmra.mxu0 %v343
      %v429 = vpop.f32.mrf.mxu0
      %v430 = vadd.f32 1e-05, %v429
      %v431 = vpop.f32.mrf.mxu0
      %432 = vmatprep.mubr.f32.mxu0 0.0
      %433 = vmatmul.mubr.f32.gmra.mxu0 %v344
      %v434 = vpop.f32.mrf.mxu0
      %v435 = vadd.f32 1e-05, %v434
      %v436 = vpop.f32.mrf.mxu0
      %437 = vmatprep.mubr.f32.mxu0 0.0
      %438 = vmatmul.mubr.f32.gmra.mxu0 %v345
      %v439 = vpop.f32.mrf.mxu0
      %v440 = vadd.f32 1e-05, %v439
      %v441 = vpop.f32.mrf.mxu0
      %442 = vmatprep.mubr.f32.mxu0 0.0
      %443 = vmatmul.mubr.f32.gmra.mxu0 %v346
      %v444 = vpop.f32.mrf.mxu0
      %v445 = vadd.f32 1e-05, %v444
      %v446 = vpop.f32.mrf.mxu0
      %447 = vmatprep.mubr.f32.mxu0 0.0
      %448 = vmatmul.mubr.f32.gmra.mxu0 %v347
      %v449 = vpop.f32.mrf.mxu0
      %v450 = vadd.f32 1e-05, %v449
      %v451 = vpop.f32.mrf.mxu0
      %452 = vdwg.mxu0
      %v453 = vrsqrt.pop %v415
      %v454 = vrsqrt.pop %v420
      %v455 = vrsqrt.pop %v425
      %v456 = vrsqrt.pop %v430
      %v457 = vrsqrt.pop %v435
      %v458 = vrsqrt.pop %v440
      %v459 = vrsqrt.pop %v445
      %v460 = vrsqrt.pop %v450
      %v461 = vmul.f32 %v332, %v453
      %v462 = vmul.f32 %v333, %v454
      %v463 = vmul.f32 %v334, %v455
      %v464 = vmul.f32 %v335, %v456
      %v465 = vmul.f32 %v336, %v457
      %v466 = vmul.f32 %v337, %v458
      %v467 = vmul.f32 %v338, %v459
      %v468 = vmul.f32 %v339, %v460
      %v469 = vld [vmem:[%s2] sm:$0xff]
      %v470 = vld [vmem:[%s2 + $0x8] sm:$0xff]
      %v471 = vld [vmem:[%s2 + $0x10] sm:$0xff]
      %v472 = vld [vmem:[%s2 + $0x18] sm:$0xff]
      %v473 = vld [vmem:[%s2 + $0x20] sm:$0xff]
      %v474 = vld [vmem:[%s2 + $0x28] sm:$0xff]
      %v475 = vld [vmem:[%s2 + $0x30] sm:$0xff]
      %v476 = vld [vmem:[%s2 + $0x38] sm:$0xff]
      %v477 = vld [vmem:[%s2 + $0x40] sm:$0xff]
      %v478 = vld [vmem:[%s2 + $0x48] sm:$0xff]
      %v479 = vld [vmem:[%s2 + $0x50] sm:$0xff]
      %v480 = vld [vmem:[%s2 + $0x58] sm:$0xff]
      %v481 = vld [vmem:[%s2 + $0x60] sm:$0xff]
      %v482 = vld [vmem:[%s2 + $0x68] sm:$0xff]
      %v483 = vld [vmem:[%s2 + $0x70] sm:$0xff]
      %v484 = vld [vmem:[%s2 + $0x78] sm:$0xff]
      %v485 = vld [vmem:[%s2 + $0x80] sm:$0xff]
      %v486 = vld [vmem:[%s2 + $0x88] sm:$0xff]
      %v487 = vld [vmem:[%s2 + $0x90] sm:$0xff]
      %v488 = vld [vmem:[%s2 + $0x98] sm:$0xff]
      %v489 = vld [vmem:[%s2 + $0xa0] sm:$0xff]
      %v490 = vld [vmem:[%s2 + $0xa8] sm:$0xff]
      %v491 = vld [vmem:[%s2 + $0xb0] sm:$0xff]
      %v492 = vld [vmem:[%s2 + $0xb8] sm:$0xff]
      %v493 = vld [vmem:[%s2 + $0xc0] sm:$0xff]
      %v494 = vld [vmem:[%s2 + $0xc8] sm:$0xff]
      %v495 = vld [vmem:[%s2 + $0xd0] sm:$0xff]
      %v496 = vld [vmem:[%s2 + $0xd8] sm:$0xff]
      %v497 = vld [vmem:[%s2 + $0xe0] sm:$0xff]
      %v498 = vld [vmem:[%s2 + $0xe8] sm:$0xff]
      %v499 = vld [vmem:[%s2 + $0xf0] sm:$0xff]
      %v500 = vld [vmem:[%s2 + $0xf8] sm:$0xff]
      %v501 = vld [vmem:[%s2 + $0x100] sm:$0xff]
      %v502 = vld [vmem:[%s2 + $0x108] sm:$0xff]
      %v503 = vld [vmem:[%s2 + $0x110] sm:$0xff]
      %v504 = vld [vmem:[%s2 + $0x118] sm:$0xff]
      %v505 = vld [vmem:[%s2 + $0x120] sm:$0xff]
      %v506 = vld [vmem:[%s2 + $0x128] sm:$0xff]
      %v507 = vld [vmem:[%s2 + $0x130] sm:$0xff]
      %v508 = vld [vmem:[%s2 + $0x138] sm:$0xff]
      %v509 = vld [vmem:[%s2 + $0x140] sm:$0xff]
      %v510 = vld [vmem:[%s2 + $0x148] sm:$0xff]
      %v511 = vld [vmem:[%s2 + $0x150] sm:$0xff]
      %v512 = vld [vmem:[%s2 + $0x158] sm:$0xff]
      %v513 = vld [vmem:[%s2 + $0x160] sm:$0xff]
      %v514 = vld [vmem:[%s2 + $0x168] sm:$0xff]
      %v515 = vld [vmem:[%s2 + $0x170] sm:$0xff]
      %v516 = vld [vmem:[%s2 + $0x178] sm:$0xff]
      %v517 = vld [vmem:[%s2 + $0x180] sm:$0xff]
      %v518 = vld [vmem:[%s2 + $0x188] sm:$0xff]
      %v519 = vld [vmem:[%s2 + $0x190] sm:$0xff]
      %v520 = vld [vmem:[%s2 + $0x198] sm:$0xff]
      %v521 = vld [vmem:[%s2 + $0x1a0] sm:$0xff]
      %v522 = vld [vmem:[%s2 + $0x1a8] sm:$0xff]
      %v523 = vld [vmem:[%s2 + $0x1b0] sm:$0xff]
      %v524 = vld [vmem:[%s2 + $0x1b8] sm:$0xff]
      %v525 = vld [vmem:[%s2 + $0x1c0] sm:$0xff]
      %v526 = vld [vmem:[%s2 + $0x1c8] sm:$0xff]
      %v527 = vld [vmem:[%s2 + $0x1d0] sm:$0xff]
      %v528 = vld [vmem:[%s2 + $0x1d8] sm:$0xff]
      %v529 = vld [vmem:[%s2 + $0x1e0] sm:$0xff]
      %v530 = vld [vmem:[%s2 + $0x1e8] sm:$0xff]
      %v531 = vld [vmem:[%s2 + $0x1f0] sm:$0xff]
      %v532 = vld [vmem:[%s2 + $0x1f8] sm:$0xff]
      %v533 = vld [vmem:[%s3] sm:$0xf]
      %v535 = vlaneseq
      %v536 = vshrl.u32 %v535, 7
      %v537 = vsub.s32 0, %v536
      %v538 = vrot.slane %v533, %v537
      %v539 = vlaneseq
      %v540 = vshrl.u32 %v539, 7
      %v541 = vsub.s32 1, %v540
      %v542 = vrot.slane %v533, %v541
      %v543 = vlaneseq
      %v544 = vshrl.u32 %v543, 7
      %v545 = vsub.s32 2, %v544
      %v546 = vrot.slane %v533, %v545
      %v547 = vlaneseq
      %v548 = vshrl.u32 %v547, 7
      %v549 = vsub.s32 3, %v548
      %v550 = vrot.slane %v533, %v549
      %555 = vmatprep.subr.mxu0 %v530
      %556 = vmatpush1.msra.mxu0 %v529
      %557 = vmatprep.subr.mxu0 %v526
      %558 = vmatpush1.msra.mxu0 %v525
      %559 = vmatprep.subr.mxu0 %v522
      %560 = vmatpush1.msra.mxu0 %v521
      %561 = vmatprep.subr.mxu0 %v518
      %562 = vmatpush1.msra.mxu0 %v517
      %563 = vmatprep.subr.mxu0 %v514
      %564 = vmatpush1.msra.mxu0 %v513
      %565 = vmatprep.subr.mxu0 %v510
      %566 = vmatpush1.msra.mxu0 %v509
      %567 = vmatprep.subr.mxu0 %v506
      %568 = vmatpush1.msra.mxu0 %v505
      %569 = vmatprep.subr.mxu0 %v502
      %570 = vmatpush1.msra.mxu0 %v501
      %571 = vmatprep.subr.mxu0 %v498
      %572 = vmatpush1.msra.mxu0 %v497
      %573 = vmatprep.subr.mxu0 %v494
      %574 = vmatpush1.msra.mxu0 %v493
      %575 = vmatprep.subr.mxu0 %v490
      %576 = vmatpush1.msra.mxu0 %v489
      %577 = vmatprep.subr.mxu0 %v486
      %578 = vmatpush1.msra.mxu0 %v485
      %579 = vmatprep.subr.mxu0 %v482
      %580 = vmatpush1.msra.mxu0 %v481
      %581 = vmatprep.subr.mxu0 %v478
      %582 = vmatpush1.msra.mxu0 %v477
      %583 = vmatprep.subr.mxu0 %v474
      %584 = vmatpush1.msra.mxu0 %v473
      %585 = vmatprep.subr.mxu0 %v470
      %586 = vmatpush1.msra.mxu0 %v469
      %587 = vmatprep.subr.mxu0 0.0
      %588 = vmatpush2.msra.mxu0 0.0
      %589 = vmatprep.subr.mxu0 0.0
      %590 = vmatpush2.msra.mxu0 0.0
      %591 = vmatprep.subr.mxu0 0.0
      %592 = vmatpush2.msra.mxu0 0.0
      %593 = vmatprep.subr.mxu0 0.0
      %594 = vmatpush2.msra.mxu0 0.0
      %595 = vmatprep.subr.mxu0 0.0
      %596 = vmatpush2.msra.mxu0 0.0
      %597 = vmatprep.subr.mxu0 0.0
      %598 = vmatpush2.msra.mxu0 0.0
      %599 = vmatprep.subr.mxu0 0.0
      %600 = vmatpush2.msra.mxu0 0.0
      %601 = vmatprep.subr.mxu0 0.0
      %602 = vmatpush2.msra.mxu0 0.0
      %603 = vmatprep.subr.mxu0 0.0
      %604 = vmatpush2.msra.mxu0 0.0
      %605 = vmatprep.subr.mxu0 0.0
      %606 = vmatpush2.msra.mxu0 0.0
      %607 = vmatprep.subr.mxu0 0.0
      %608 = vmatpush2.msra.mxu0 0.0
      %609 = vmatprep.subr.mxu0 0.0
      %610 = vmatpush2.msra.mxu0 0.0
      %611 = vmatprep.subr.mxu0 0.0
      %612 = vmatpush2.msra.mxu0 0.0
      %613 = vmatprep.subr.mxu0 0.0
      %614 = vmatpush2.msra.mxu0 0.0
      %615 = vmatprep.subr.mxu0 0.0
      %616 = vmatpush2.msra.mxu0 0.0
      %617 = vmatprep.subr.mxu0 0.0
      %618 = vmatpush2.msra.mxu0 0.0
      %619 = vmatprep.mubr.f32.mxu0 0.0
      %620 = vmatmul.mubr.f32.gmra.mxu0 %v461
      %v621 = vpop.f32.mrf.mxu0
      %v622 = vadd.f32 %v538, %v621
      %v623 = vpop.f32.mrf.mxu0
      %v624 = vadd.f32 %v542, %v623
      %625 = vmatprep.mubr.f32.mxu0 0.0
      %626 = vmatmul.mubr.f32.gmra.mxu0 %v462
      %v627 = vpop.f32.mrf.mxu0
      %v628 = vadd.f32 %v538, %v627
      %v629 = vpop.f32.mrf.mxu0
      %v630 = vadd.f32 %v542, %v629
      %631 = vmatprep.mubr.f32.mxu0 0.0
      %632 = vmatmul.mubr.f32.gmra.mxu0 %v463
      %v633 = vpop.f32.mrf.mxu0
      %v634 = vadd.f32 %v538, %v633
      %v635 = vpop.f32.mrf.mxu0
      %v636 = vadd.f32 %v542, %v635
      %637 = vmatprep.mubr.f32.mxu0 0.0
      %638 = vmatmul.mubr.f32.gmra.mxu0 %v464
      %v639 = vpop.f32.mrf.mxu0
      %v640 = vadd.f32 %v538, %v639
      %v641 = vpop.f32.mrf.mxu0
      %v642 = vadd.f32 %v542, %v641
      %643 = vmatprep.mubr.f32.mxu0 0.0
      %644 = vmatmul.mubr.f32.gmra.mxu0 %v465
      %v645 = vpop.f32.mrf.mxu0
      %v646 = vadd.f32 %v538, %v645
      %v647 = vpop.f32.mrf.mxu0
      %v648 = vadd.f32 %v542, %v647
      %649 = vmatprep.mubr.f32.mxu0 0.0
      %650 = vmatmul.mubr.f32.gmra.mxu0 %v466
      %v651 = vpop.f32.mrf.mxu0
      %v652 = vadd.f32 %v538, %v651
      %v653 = vpop.f32.mrf.mxu0
      %v654 = vadd.f32 %v542, %v653
      %655 = vmatprep.mubr.f32.mxu0 0.0
      %656 = vmatmul.mubr.f32.gmra.mxu0 %v467
      %v657 = vpop.f32.mrf.mxu0
      %v658 = vadd.f32 %v538, %v657
      %v659 = vpop.f32.mrf.mxu0
      %v660 = vadd.f32 %v542, %v659
      %661 = vmatprep.mubr.f32.mxu0 0.0
      %662 = vmatmul.mubr.f32.gmra.mxu0 %v468
      %v663 = vpop.f32.mrf.mxu0
      %v664 = vadd.f32 %v538, %v663
      %v665 = vpop.f32.mrf.mxu0
      %v666 = vadd.f32 %v542, %v665
      %667 = vdwg.mxu0
      %668 = vmatprep.subr.mxu0 %v532
      %669 = vmatpush1.msra.mxu0 %v531
      %670 = vmatprep.subr.mxu0 %v528
      %671 = vmatpush1.msra.mxu0 %v527
      %672 = vmatprep.subr.mxu0 %v524
      %673 = vmatpush1.msra.mxu0 %v523
      %674 = vmatprep.subr.mxu0 %v520
      %675 = vmatpush1.msra.mxu0 %v519
      %676 = vmatprep.subr.mxu0 %v516
      %677 = vmatpush1.msra.mxu0 %v515
      %678 = vmatprep.subr.mxu0 %v512
      %679 = vmatpush1.msra.mxu0 %v511
      %680 = vmatprep.subr.mxu0 %v508
      %681 = vmatpush1.msra.mxu0 %v507
      %682 = vmatprep.subr.mxu0 %v504
      %683 = vmatpush1.msra.mxu0 %v503
      %684 = vmatprep.subr.mxu0 %v500
      %685 = vmatpush1.msra.mxu0 %v499
      %686 = vmatprep.subr.mxu0 %v496
      %687 = vmatpush1.msra.mxu0 %v495
      %688 = vmatprep.subr.mxu0 %v492
      %689 = vmatpush1.msra.mxu0 %v491
      %690 = vmatprep.subr.mxu0 %v488
      %691 = vmatpush1.msra.mxu0 %v487
      %692 = vmatprep.subr.mxu0 %v484
      %693 = vmatpush1.msra.mxu0 %v483
      %694 = vmatprep.subr.mxu0 %v480
      %695 = vmatpush1.msra.mxu0 %v479
      %696 = vmatprep.subr.mxu0 %v476
      %697 = vmatpush1.msra.mxu0 %v475
      %698 = vmatprep.subr.mxu0 %v472
      %699 = vmatpush1.msra.mxu0 %v471
      %700 = vmatprep.subr.mxu0 0.0
      %701 = vmatpush2.msra.mxu0 0.0
      %702 = vmatprep.subr.mxu0 0.0
      %703 = vmatpush2.msra.mxu0 0.0
      %704 = vmatprep.subr.mxu0 0.0
      %705 = vmatpush2.msra.mxu0 0.0
      %706 = vmatprep.subr.mxu0 0.0
      %707 = vmatpush2.msra.mxu0 0.0
      %708 = vmatprep.subr.mxu0 0.0
      %709 = vmatpush2.msra.mxu0 0.0
      %710 = vmatprep.subr.mxu0 0.0
      %711 = vmatpush2.msra.mxu0 0.0
      %712 = vmatprep.subr.mxu0 0.0
      %713 = vmatpush2.msra.mxu0 0.0
      %714 = vmatprep.subr.mxu0 0.0
      %715 = vmatpush2.msra.mxu0 0.0
      %716 = vmatprep.subr.mxu0 0.0
      %717 = vmatpush2.msra.mxu0 0.0
      %718 = vmatprep.subr.mxu0 0.0
      %719 = vmatpush2.msra.mxu0 0.0
      %720 = vmatprep.subr.mxu0 0.0
      %721 = vmatpush2.msra.mxu0 0.0
      %722 = vmatprep.subr.mxu0 0.0
      %723 = vmatpush2.msra.mxu0 0.0
      %724 = vmatprep.subr.mxu0 0.0
      %725 = vmatpush2.msra.mxu0 0.0
      %726 = vmatprep.subr.mxu0 0.0
      %727 = vmatpush2.msra.mxu0 0.0
      %728 = vmatprep.subr.mxu0 0.0
      %729 = vmatpush2.msra.mxu0 0.0
      %730 = vmatprep.subr.mxu0 0.0
      %731 = vmatpush2.msra.mxu0 0.0
      %732 = vmatprep.mubr.f32.mxu0 0.0
      %733 = vmatmul.mubr.f32.gmra.mxu0 %v461
      %v734 = vpop.f32.mrf.mxu0
      %v735 = vadd.f32 %v546, %v734
      %v736 = vpop.f32.mrf.mxu0
      %v737 = vadd.f32 %v550, %v736
      %738 = vmatprep.mubr.f32.mxu0 0.0
      %739 = vmatmul.mubr.f32.gmra.mxu0 %v462
      %v740 = vpop.f32.mrf.mxu0
      %v741 = vadd.f32 %v546, %v740
      %v742 = vpop.f32.mrf.mxu0
      %v743 = vadd.f32 %v550, %v742
      %744 = vmatprep.mubr.f32.mxu0 0.0
      %745 = vmatmul.mubr.f32.gmra.mxu0 %v463
      %v746 = vpop.f32.mrf.mxu0
      %v747 = vadd.f32 %v546, %v746
      %v748 = vpop.f32.mrf.mxu0
      %v749 = vadd.f32 %v550, %v748
      %750 = vmatprep.mubr.f32.mxu0 0.0
      %751 = vmatmul.mubr.f32.gmra.mxu0 %v464
      %v752 = vpop.f32.mrf.mxu0
      %v753 = vadd.f32 %v546, %v752
      %v754 = vpop.f32.mrf.mxu0
      %v755 = vadd.f32 %v550, %v754
      %756 = vmatprep.mubr.f32.mxu0 0.0
      %757 = vmatmul.mubr.f32.gmra.mxu0 %v465
      %v758 = vpop.f32.mrf.mxu0
      %v759 = vadd.f32 %v546, %v758
      %v760 = vpop.f32.mrf.mxu0
      %v761 = vadd.f32 %v550, %v760
      %762 = vmatprep.mubr.f32.mxu0 0.0
      %763 = vmatmul.mubr.f32.gmra.mxu0 %v466
      %v764 = vpop.f32.mrf.mxu0
      %v765 = vadd.f32 %v546, %v764
      %v766 = vpop.f32.mrf.mxu0
      %v767 = vadd.f32 %v550, %v766
      %768 = vmatprep.mubr.f32.mxu0 0.0
      %769 = vmatmul.mubr.f32.gmra.mxu0 %v467
      %v770 = vpop.f32.mrf.mxu0
      %v771 = vadd.f32 %v546, %v770
      %v772 = vpop.f32.mrf.mxu0
      %v773 = vadd.f32 %v550, %v772
      %774 = vmatprep.mubr.f32.mxu0 0.0
      %775 = vmatmul.mubr.f32.gmra.mxu0 %v468
      %v776 = vpop.f32.mrf.mxu0
      %v777 = vadd.f32 %v546, %v776
      %v778 = vpop.f32.mrf.mxu0
      %v779 = vadd.f32 %v550, %v778
      %780 = vdwg.mxu0
      %781 = vst [vmem:[%s201] sm:$0xff] %v622
      %782 = vst [vmem:[%s201 + $0x8] sm:$0xff] %v624
      %783 = vst [vmem:[%s201 + $0x10] sm:$0xff] %v735
      %784 = vst [vmem:[%s201 + $0x18] sm:$0xff] %v737
      %785 = vst [vmem:[%s201 + $0x20] sm:$0xff] %v628
      %786 = vst [vmem:[%s201 + $0x28] sm:$0xff] %v630
      %787 = vst [vmem:[%s201 + $0x30] sm:$0xff] %v741
      %788 = vst [vmem:[%s201 + $0x38] sm:$0xff] %v743
      %789 = vst [vmem:[%s201 + $0x40] sm:$0xff] %v634
      %790 = vst [vmem:[%s201 + $0x48] sm:$0xff] %v636
      %791 = vst [vmem:[%s201 + $0x50] sm:$0xff] %v747
      %792 = vst [vmem:[%s201 + $0x58] sm:$0xff] %v749
      %793 = vst [vmem:[%s201 + $0x60] sm:$0xff] %v640
      %794 = vst [vmem:[%s201 + $0x68] sm:$0xff] %v642
      %795 = vst [vmem:[%s201 + $0x70] sm:$0xff] %v753
      %796 = vst [vmem:[%s201 + $0x78] sm:$0xff] %v755
      %797 = vst [vmem:[%s201 + $0x80] sm:$0xff] %v646
      %798 = vst [vmem:[%s201 + $0x88] sm:$0xff] %v648
      %799 = vst [vmem:[%s201 + $0x90] sm:$0xff] %v759
      %800 = vst [vmem:[%s201 + $0x98] sm:$0xff] %v761
      %801 = vst [vmem:[%s201 + $0xa0] sm:$0xff] %v652
      %802 = vst [vmem:[%s201 + $0xa8] sm:$0xff] %v654
      %803 = vst [vmem:[%s201 + $0xb0] sm:$0xff] %v765
      %804 = vst [vmem:[%s201 + $0xb8] sm:$0xff] %v767
      %805 = vst [vmem:[%s201 + $0xc0] sm:$0xff] %v658
      %806 = vst [vmem:[%s201 + $0xc8] sm:$0xff] %v660
      %807 = vst [vmem:[%s201 + $0xd0] sm:$0xff] %v771
      %808 = vst [vmem:[%s201 + $0xd8] sm:$0xff] %v773
      %809 = vst [vmem:[%s201 + $0xe0] sm:$0xff] %v664
      %810 = vst [vmem:[%s201 + $0xe8] sm:$0xff] %v666
      %811 = vst [vmem:[%s201 + $0xf0] sm:$0xff] %v777
      %812 = vst [vmem:[%s201 + $0xf8] sm:$0xff] %v779
      %s813 = smul.u32 8, %s15
      %p814 = scmp.lt.s32.totalorder %s813, 15
      %s815 = scalar_select %p814, %s813, 15
      %s816 = smul.addr %s815, 4
      %s817 = smul.addr %s816, 8
      %s818 = scalar_lea.vmem %s4, %s817
      // Predicated region
      $region37: #{transformer_block_pallas.9} parent=35 // pred_check
        %p819 = pneg %p122
      $region38: #{transformer_block_pallas.9} parent=35 // pred_check_branch
        %821 = sbr.rel (%p819) target = $region40
      $region39: #{transformer_block_pallas.9} parent=35 // pred_region
        %s822 = smul.u32 8, %s15
      $region40: #{transformer_block_pallas.9} parent=35 // pred_fallthru
        _
    $region36: #{transformer_block_pallas.9} parent=5 // pred_fallthru
      _
    %p823 = scmp.le.s32.totalorder 2, %s10
    // Predicated region
    $region41: #{transformer_block_pallas.9} parent=5 // pred_check
      %p824 = pneg %p823
    $region42: #{transformer_block_pallas.9} parent=5 // pred_check_branch
      %826 = sbr.rel (%p824) target = $region44
    $region43: #{transformer_block_pallas.9} parent=5 // pred_region
      %s827 = ssub.s32 %s10, 2
      // Predicated region
      $region45: #{transformer_block_pallas.9} parent=43 // pred_check
        %p828 = pneg %p128
      $region46: #{transformer_block_pallas.9} parent=43 // pred_check_branch
        %830 = sbr.rel (%p828) target = $region48
      $region47: #{transformer_block_pallas.9} parent=43 // pred_region
        %s831 = smul.u32 8, %s16
        %p832 = scmp.lt.s32.totalorder %s831, 15
        %s833 = scalar_select %p832, %s831, 15
        %s834 = smul.addr %s833, 4
        %s835 = smul.addr %s834, 8
        %s836 = scalar_lea.vmem %s4, %s835
      $region48: #{transformer_block_pallas.9} parent=43 // pred_fallthru
        _
    $region44: #{transformer_block_pallas.9} parent=5 // pred_fallthru
      _
  $region6: #{transformer_block_pallas.9} parent=0 // loop_footer
    %s14 = sadd.s32 1, %s10
  $region7: #{transformer_block_pallas.9} parent=0 // loop_footer_branch
    %9 = sbr.rel target = $region3
  $region8: #{transformer_block_pallas.9} parent=0 // loop_exit
    _

// kernel: transformer_block_pallas.10
$region0: #{transformer_block_pallas.10}
  #allocation0 [shape = 'u32[]', space=smem, size = 0x4, offset = 0x4, fixed_abs, tag = 'smem constant byte address 0x4 - core index']
  #allocation1 [shape = 'u32[144,128]{1,0:T(1,128)}', space=vmem, size = 0x12000, scoped, tag = 'internal scratch']
  %s0 = inlined_call_operand.vmem [shape: f32[2,18,18,128], index: 0, kind: input, shape index: {}]
  %s1 = inlined_call_operand.vmem [shape: f32[3,3,128], index: 1, kind: input, shape index: {}]
  %s2 = inlined_call_operand.vmem [shape: f32[1,1,128], index: 2, kind: input, shape index: {}]
  %s3 = inlined_call_operand.vmem [shape: f32[2,16,16,128], index: 3, kind: output, shape index: {}]
  %s4 = sld [smem:[#allocation0]]
  $region45: #{transformer_block_pallas.10} parent=0
    _
  %s6 = ssub.s32 1, %s4
  %s7 = scalar_select 0, %s6, %s4
  loop: start=0, step=1, limit=4
  $region2: #{transformer_block_pallas.10} parent=0 // loop_pre_header
    _
  $region3: #{transformer_block_pallas.10} parent=0 // loop_header
    %s9 = sphi 0, %s13
    %p10 = scmp.ge.s32.totalorder %s9, 4
    %s19 = sphi 0, %s21
    %s22 = sphi 0, %s19
    %s23 = sphi 0, %s22
    %s39 = sphi 0, %s23
    %s43 = sphi 0, %s43
    %s45 = sphi 0, %s43
    %s46 = sphi 0, %s45
    %s60 = sphi 0, %s46
    %s64 = sphi 0, %s64
    %s66 = sphi 0, %s64
    %s67 = sphi 0, %s66
    %s81 = sphi 0, %s67
    %s87 = sphi 0, %s89
    %s90 = sphi 0, %s87
    %s91 = sphi 0, %s90
    %s107 = sphi 0, %s91
  $region4: #{transformer_block_pallas.10} parent=0 // loop_header_branch
    %12 = sbr.rel (%p10) target = $region8
  $region5: #{transformer_block_pallas.10} parent=0 // loop_body
    %s14 = ssub.s32 %s9, 1
    %s15 = ssub.s32 %s9, 2
    %s16 = sadd.s32 %s9, 1
    %s17 = ssub.s32 %s9, %s16
    %p18 = scmp.eq.s32.totalorder %s17, 0
    %s20 = sadd.s32 %s19, 1
    %s21 = scalar_select %p18, %s19, %s20
    %p24 = pneg %p18
    %p25 = scmp.eq.s32.totalorder %s9, 1
    %p26 = por %p24, %p25
    %p27 = scmp.ne.s32.totalorder %s19, %s22
    %p28 = scmp.eq.s32.totalorder %s9, 0
    %p29 = por %p27, %p28
    %p30 = scmp.ne.s32.totalorder %s19, %s22
    %p31 = scmp.eq.s32.totalorder %s14, 1
    %p32 = por %p30, %p31
    %p33 = scmp.ne.s32.totalorder %s22, %s23
    %p34 = scmp.eq.s32.totalorder %s14, 0
    %p35 = por %p33, %p34
    %p36 = scmp.ne.s32.totalorder %s22, %s23
    %p37 = scmp.eq.s32.totalorder %s15, 1
    %p38 = por %p36, %p37
    %p40 = scmp.ne.s32.totalorder %s23, %s39
    %p41 = scmp.eq.s32.totalorder %s15, 0
    %p42 = por %p40, %p41
    %s44 = sadd.s32 %s43, 1
    %p47 = scmp.eq.s32.totalorder %s9, 1
    %p48 = scmp.ne.s32.totalorder %s43, %s45
    %p49 = scmp.eq.s32.totalorder %s9, 0
    %p50 = por %p48, %p49
    %p51 = scmp.ne.s32.totalorder %s43, %s45
    %p52 = scmp.eq.s32.totalorder %s14, 1
    %p53 = por %p51, %p52
    %p54 = scmp.ne.s32.totalorder %s45, %s46
    %p55 = scmp.eq.s32.totalorder %s14, 0
    %p56 = por %p54, %p55
    %p57 = scmp.ne.s32.totalorder %s45, %s46
    %p58 = scmp.eq.s32.totalorder %s15, 1
    %p59 = por %p57, %p58
    %p61 = scmp.ne.s32.totalorder %s46, %s60
    %p62 = scmp.eq.s32.totalorder %s15, 0
    %p63 = por %p61, %p62
    %s65 = sadd.s32 %s64, 1
    %p68 = scmp.eq.s32.totalorder %s9, 1
    %p69 = scmp.ne.s32.totalorder %s64, %s66
    %p70 = scmp.eq.s32.totalorder %s9, 0
    %p71 = por %p69, %p70
    %p72 = scmp.ne.s32.totalorder %s64, %s66
    %p73 = scmp.eq.s32.totalorder %s14, 1
    %p74 = por %p72, %p73
    %p75 = scmp.ne.s32.totalorder %s66, %s67
    %p76 = scmp.eq.s32.totalorder %s14, 0
    %p77 = por %p75, %p76
    %p78 = scmp.ne.s32.totalorder %s66, %s67
    %p79 = scmp.eq.s32.totalorder %s15, 1
    %p80 = por %p78, %p79
    %p82 = scmp.ne.s32.totalorder %s67, %s81
    %p83 = scmp.eq.s32.totalorder %s15, 0
    %p84 = por %p82, %p83
    %s85 = ssub.s32 %s9, %s16
    %p86 = scmp.eq.s32.totalorder %s85, 0
    %s88 = sadd.s32 %s87, 1
    %s89 = scalar_select %p86, %s87, %s88
    %p92 = pneg %p86
    %p93 = scmp.eq.s32.totalorder %s9, 1
    %p94 = por %p92, %p93
    %p95 = scmp.ne.s32.totalorder %s87, %s90
    %p96 = scmp.eq.s32.totalorder %s9, 0
    %p97 = por %p95, %p96
    %p98 = scmp.ne.s32.totalorder %s87, %s90
    %p99 = scmp.eq.s32.totalorder %s14, 1
    %p100 = por %p98, %p99
    %p101 = scmp.ne.s32.totalorder %s90, %s91
    %p102 = scmp.eq.s32.totalorder %s14, 0
    %p103 = por %p101, %p102
    %p104 = scmp.ne.s32.totalorder %s90, %s91
    %p105 = scmp.eq.s32.totalorder %s15, 1
    %p106 = por %p104, %p105
    %p108 = scmp.ne.s32.totalorder %s91, %s107
    %p109 = scmp.eq.s32.totalorder %s15, 0
    %p110 = por %p108, %p109
    %p111 = scmp.le.s32.totalorder 1, %s9
    %p112 = scmp.lt.s32.totalorder %s9, 3
    %p113 = pnand %p111, %p112
    %p114 = pneg %p113
    // Predicated region
    $region9: #{transformer_block_pallas.10} parent=5 // pred_check
      _
    $region10: #{transformer_block_pallas.10} parent=5 // pred_check_branch
      %116 = sbr.rel (%p113) target = $region12
    $region11: #{transformer_block_pallas.10} parent=5 // pred_region
      %s117 = ssub.s32 %s9, 1
      // Predicated region
      $region13: #{transformer_block_pallas.10} parent=11 // pred_check
        %p118 = pneg %p56
      $region14: #{transformer_block_pallas.10} parent=11 // pred_check_branch
        %120 = sbr.rel (%p118) target = $region16
      $region15: #{transformer_block_pallas.10} parent=11 // pred_region
        _
      $region16: #{transformer_block_pallas.10} parent=11 // pred_fallthru
        _
      // Predicated region
      $region17: #{transformer_block_pallas.10} parent=11 // pred_check
        %p121 = pneg %p77
      $region18: #{transformer_block_pallas.10} parent=11 // pred_check_branch
        %123 = sbr.rel (%p121) target = $region20
      $region19: #{transformer_block_pallas.10} parent=11 // pred_region
        _
      $region20: #{transformer_block_pallas.10} parent=11 // pred_fallthru
        _
    $region12: #{transformer_block_pallas.10} parent=5 // pred_fallthru
      _
    %p124 = scmp.lt.s32.totalorder %s9, 2
    // Predicated region
    $region21: #{transformer_block_pallas.10} parent=5 // pred_check
      %p125 = pneg %p124
    $region22: #{transformer_block_pallas.10} parent=5 // pred_check_branch
      %127 = sbr.rel (%p125) target = $region24
    $region23: #{transformer_block_pallas.10} parent=5 // pred_region
      // Predicated region
      $region25: #{transformer_block_pallas.10} parent=23 // pred_check
        %p128 = pneg %p29
      $region26: #{transformer_block_pallas.10} parent=23 // pred_check_branch
        %130 = sbr.rel (%p128) target = $region28
      $region27: #{transformer_block_pallas.10} parent=23 // pred_region
        %p131 = scmp.lt.s32.totalorder %s9, 1
        %s132 = scalar_select %p131, %s9, 1
        %s133 = smul.addr %s132, 54
        %s134 = smul.addr %s133, 8
        %s135 = scalar_lea.vmem %s0, %s134
      $region28: #{transformer_block_pallas.10} parent=23 // pred_fallthru
        _
    $region24: #{transformer_block_pallas.10} parent=5 // pred_fallthru
      _
    %p136 = scmp.le.s32.totalorder 1, %s9
    %p137 = scmp.lt.s32.totalorder %s9, 3
    %p138 = pnand %p136, %p137
    %p139 = pneg %p138
    // Predicated region
    $region29: #{transformer_block_pallas.10} parent=5 // pred_check
      _
    $region30: #{transformer_block_pallas.10} parent=5 // pred_check_branch
      %141 = sbr.rel (%p138) target = $region32
    $region31: #{transformer_block_pallas.10} parent=5 // pred_region
      %s142 = ssub.s32 %s9, 1
      %p143 = scmp.lt.s32.totalorder %s14, 1
      %s144 = scalar_select %p143, %s14, 1
      %s145 = smul.addr %s144, 54
      %s146 = smul.addr %s145, 8
      %s147 = scalar_lea.vmem %s0, %s146
      %p148 = pneg %p35
      %p149 = pneg %p32
      %p150 = pneg %p56
      %p151 = pneg %p53
      %p152 = pneg %p77
      %p153 = pneg %p74
      %p154 = pneg %p103
      %p155 = pneg %p100
      %p156 = scmp.lt.s32.totalorder %s14, 1
      %s157 = scalar_select %p156, %s14, 1
      %s158 = smul.addr %s157, 32
      %s159 = smul.addr %s158, 8
      %s160 = scalar_lea.vmem %s3, %s159
      %p161 = scmp.lt.s32.totalorder %s14, 1
      %s162 = scalar_select %p161, %s14, 1
      %s163 = smul.addr %s162, 54
      %s164 = smul.addr %s163, 8
      %s165 = scalar_lea.vmem %s0, %s164
      %p166 = scmp.lt.s32.totalorder %s14, 1
      %s167 = scalar_select %p166, %s14, 1
      %s168 = smul.addr %s167, 32
      %s169 = smul.addr %s168, 8
      %s170 = scalar_lea.vmem %s3, %s169
      %v171 = vld [vmem:[%s165] sm:$0xff]
      %v172 = vld [vmem:[%s165 + $0x8] sm:$0xff]
      %v173 = vld [vmem:[%s165 + $0x10] sm:$0x3]
      %v174 = vld [vmem:[%s165 + $0x18] sm:$0xff]
      %v175 = vld [vmem:[%s165 + $0x20] sm:$0xff]
      %v176 = vld [vmem:[%s165 + $0x28] sm:$0x3]
      %v177 = vld [vmem:[%s165 + $0x30] sm:$0xff]
      %v178 = vld [vmem:[%s165 + $0x38] sm:$0xff]
      %v179 = vld [vmem:[%s165 + $0x40] sm:$0x3]
      %v180 = vld [vmem:[%s165 + $0x48] sm:$0xff]
      %v181 = vld [vmem:[%s165 + $0x50] sm:$0xff]
      %v182 = vld [vmem:[%s165 + $0x58] sm:$0x3]
      %v183 = vld [vmem:[%s165 + $0x60] sm:$0xff]
      %v184 = vld [vmem:[%s165 + $0x68] sm:$0xff]
      %v185 = vld [vmem:[%s165 + $0x70] sm:$0x3]
      %v186 = vld [vmem:[%s165 + $0x78] sm:$0xff]
      %v187 = vld [vmem:[%s165 + $0x80] sm:$0xff]
      %v188 = vld [vmem:[%s165 + $0x88] sm:$0x3]
      %v189 = vld [vmem:[%s165 + $0x90] sm:$0xff]
      %v190 = vld [vmem:[%s165 + $0x98] sm:$0xff]
      %v191 = vld [vmem:[%s165 + $0xa0] sm:$0x3]
      %v192 = vld [vmem:[%s165 + $0xa8] sm:$0xff]
      %v193 = vld [vmem:[%s165 + $0xb0] sm:$0xff]
      %v194 = vld [vmem:[%s165 + $0xb8] sm:$0x3]
      %v195 = vld [vmem:[%s165 + $0xc0] sm:$0xff]
      %v196 = vld [vmem:[%s165 + $0xc8] sm:$0xff]
      %v197 = vld [vmem:[%s165 + $0xd0] sm:$0x3]
      %v198 = vld [vmem:[%s165 + $0xd8] sm:$0xff]
      %v199 = vld [vmem:[%s165 + $0xe0] sm:$0xff]
      %v200 = vld [vmem:[%s165 + $0xe8] sm:$0x3]
      %v201 = vld [vmem:[%s165 + $0xf0] sm:$0xff]
      %v202 = vld [vmem:[%s165 + $0xf8] sm:$0xff]
      %v203 = vld [vmem:[%s165 + $0x100] sm:$0x3]
      %v204 = vld [vmem:[%s165 + $0x108] sm:$0xff]
      %v205 = vld [vmem:[%s165 + $0x110] sm:$0xff]
      %v206 = vld [vmem:[%s165 + $0x118] sm:$0x3]
      %v207 = vld [vmem:[%s165 + $0x120] sm:$0xff]
      %v208 = vld [vmem:[%s165 + $0x128] sm:$0xff]
      %v209 = vld [vmem:[%s165 + $0x130] sm:$0x3]
      %v210 = vld [vmem:[%s165 + $0x138] sm:$0xff]
      %v211 = vld [vmem:[%s165 + $0x140] sm:$0xff]
      %v212 = vld [vmem:[%s165 + $0x148] sm:$0x3]
      %v213 = vld [vmem:[%s165 + $0x150] sm:$0xff]
      %v214 = vld [vmem:[%s165 + $0x158] sm:$0xff]
      %v215 = vld [vmem:[%s165 + $0x160] sm:$0x3]
      %v216 = vld [vmem:[%s165 + $0x168] sm:$0xff]
      %v217 = vld [vmem:[%s165 + $0x170] sm:$0xff]
      %v218 = vld [vmem:[%s165 + $0x178] sm:$0x3]
      %v219 = vld [vmem:[%s165 + $0x180] sm:$0xff]
      %v220 = vld [vmem:[%s165 + $0x188] sm:$0xff]
      %v221 = vld [vmem:[%s165 + $0x190] sm:$0x3]
      %v222 = vld [vmem:[%s165 + $0x198] sm:$0xff]
      %v223 = vld [vmem:[%s165 + $0x1a0] sm:$0xff]
      %v224 = vld [vmem:[%s165 + $0x1a8] sm:$0x3]
      %v225 = vld [vmem:[%s1] sm:$0x7]
      %v226 = vld [vmem:[%s1 + $0x4] sm:$0x7]
      %v227 = vld [vmem:[%s1 + $0x8] sm:$0x7]
      %v228 = vlaneseq
      %v229 = vshrl.u32 %v228, 7
      %v230 = vsub.s32 0, %v229
      %v231 = vrot.slane %v225, %v230
      %v232 = vmul.f32 %v171, %v231
      %v233 = vmul.f32 %v172, %v231
      %v234 = vmul.f32 %v174, %v231
      %v235 = vmul.f32 %v175, %v231
      %v236 = vmul.f32 %v177, %v231
      %v237 = vmul.f32 %v178, %v231
      %v238 = vmul.f32 %v180, %v231
      %v239 = vmul.f32 %v181, %v231
      %v240 = vmul.f32 %v183, %v231
      %v241 = vmul.f32 %v184, %v231
      %v242 = vmul.f32 %v186, %v231
      %v243 = vmul.f32 %v187, %v231
      %v244 = vmul.f32 %v189, %v231
      %v245 = vmul.f32 %v190, %v231
      %v246 = vmul.f32 %v192, %v231
      %v247 = vmul.f32 %v193, %v231
      %v248 = vmul.f32 %v195, %v231
      %v249 = vmul.f32 %v196, %v231
      %v250 = vmul.f32 %v198, %v231
      %v251 = vmul.f32 %v199, %v231
      %v252 = vmul.f32 %v201, %v231
      %v253 = vmul.f32 %v202, %v231
      %v254 = vmul.f32 %v204, %v231
      %v255 = vmul.f32 %v205, %v231
      %v256 = vmul.f32 %v207, %v231
      %v257 = vmul.f32 %v208, %v231
      %v258 = vmul.f32 %v210, %v231
      %v259 = vmul.f32 %v211, %v231
      %v260 = vmul.f32 %v213, %v231
      %v261 = vmul.f32 %v214, %v231
      %v262 = vmul.f32 %v216, %v231
      %v263 = vmul.f32 %v217, %v231
      %v264 = vlaneseq
      %v265 = vshrl.u32 %v264, 7
      %v266 = vsub.s32 1, %v265
      %v267 = vrot.slane %v225, %v266
      %v268 = vmul.f32 %v171, %v267
      %v269 = vmul.f32 %v172, %v267
      %v270 = vmul.f32 %v173, %v267
      %v271 = vmul.f32 %v174, %v267
      %v272 = vmul.f32 %v175, %v267
      %v273 = vmul.f32 %v176, %v267
      %v274 = vmul.f32 %v177, %v267
      %v275 = vmul.f32 %v178, %v267
      %v276 = vmul.f32 %v179, %v267
      %v277 = vmul.f32 %v180, %v267
      %v278 = vmul.f32 %v181, %v267
      %v279 = vmul.f32 %v182, %v267
      %v280 = vmul.f32 %v183, %v267
      %v281 = vmul.f32 %v184, %v267
      %v282 = vmul.f32 %v185, %v267
      %v283 = vmul.f32 %v186, %v267
      %v284 = vmul.f32 %v187, %v267
      %v285 = vmul.f32 %v188, %v267
      %v286 = vmul.f32 %v189, %v267
      %v287 = vmul.f32 %v190, %v267
      %v288 = vmul.f32 %v191, %v267
      %v289 = vmul.f32 %v192, %v267
      %v290 = vmul.f32 %v193, %v267
      %v291 = vmul.f32 %v194, %v267
      %v292 = vmul.f32 %v195, %v267
      %v293 = vmul.f32 %v196, %v267
      %v294 = vmul.f32 %v197, %v267
      %v295 = vmul.f32 %v198, %v267
      %v296 = vmul.f32 %v199, %v267
      %v297 = vmul.f32 %v200, %v267
      %v298 = vmul.f32 %v201, %v267
      %v299 = vmul.f32 %v202, %v267
      %v300 = vmul.f32 %v203, %v267
      %v301 = vmul.f32 %v204, %v267
      %v302 = vmul.f32 %v205, %v267
      %v303 = vmul.f32 %v206, %v267
      %v304 = vmul.f32 %v207, %v267
      %v305 = vmul.f32 %v208, %v267
      %v306 = vmul.f32 %v209, %v267
      %v307 = vmul.f32 %v210, %v267
      %v308 = vmul.f32 %v211, %v267
      %v309 = vmul.f32 %v212, %v267
      %v310 = vmul.f32 %v213, %v267
      %v311 = vmul.f32 %v214, %v267
      %v312 = vmul.f32 %v215, %v267
      %v313 = vmul.f32 %v216, %v267
      %v314 = vmul.f32 %v217, %v267
      %v315 = vmul.f32 %v218, %v267
      %vm364 = vcmask 1046528
      %v365 = vrot.slane %v268, 1
      %v366 = vrot.slane %v269, 1
      %v367 = vsel %vm364, %v365, %v366
      %v368 = vrot.slane %v270, 1
      %v369 = vsel %vm364, %v366, %v368
      %v370 = vrot.slane %v271, 1
      %v371 = vrot.slane %v272, 1
      %v372 = vsel %vm364, %v370, %v371
      %v373 = vrot.slane %v273, 1
      %v374 = vsel %vm364, %v371, %v373
      %v375 = vrot.slane %v274, 1
      %v376 = vrot.slane %v275, 1
      %v377 = vsel %vm364, %v375, %v376
      %v378 = vrot.slane %v276, 1
      %v379 = vsel %vm364, %v376, %v378
      %v380 = vrot.slane %v277, 1
      %v381 = vrot.slane %v278, 1
      %v382 = vsel %vm364, %v380, %v381
      %v383 = vrot.slane %v279, 1
      %v384 = vsel %vm364, %v381, %v383
      %v385 = vrot.slane %v280, 1
      %v386 = vrot.slane %v281, 1
      %v387 = vsel %vm364, %v385, %v386
      %v388 = vrot.slane %v282, 1
      %v389 = vsel %vm364, %v386, %v388
      %v390 = vrot.slane %v283, 1
      %v391 = vrot.slane %v284, 1
      %v392 = vsel %vm364, %v390, %v391
      %v393 = vrot.slane %v285, 1
      %v394 = vsel %vm364, %v391, %v393
      %v395 = vrot.slane %v286, 1
      %v396 = vrot.slane %v287, 1
      %v397 = vsel %vm364, %v395, %v396
      %v398 = vrot.slane %v288, 1
      %v399 = vsel %vm364, %v396, %v398
      %v400 = vrot.slane %v289, 1
      %v401 = vrot.slane %v290, 1
      %v402 = vsel %vm364, %v400, %v401
      %v403 = vrot.slane %v291, 1
      %v404 = vsel %vm364, %v401, %v403
      %v405 = vrot.slane %v292, 1
      %v406 = vrot.slane %v293, 1
      %v407 = vsel %vm364, %v405, %v406
      %v408 = vrot.slane %v294, 1
      %v409 = vsel %vm364, %v406, %v408
      %v410 = vrot.slane %v295, 1
      %v411 = vrot.slane %v296, 1
      %v412 = vsel %vm364, %v410, %v411
      %v413 = vrot.slane %v297, 1
      %v414 = vsel %vm364, %v411, %v413
      %v415 = vrot.slane %v298, 1
      %v416 = vrot.slane %v299, 1
      %v417 = vsel %vm364, %v415, %v416
      %v418 = vrot.slane %v300, 1
      %v419 = vsel %vm364, %v416, %v418
      %v420 = vrot.slane %v301, 1
      %v421 = vrot.slane %v302, 1
      %v422 = vsel %vm364, %v420, %v421
      %v423 = vrot.slane %v303, 1
      %v424 = vsel %vm364, %v421, %v423
      %v425 = vrot.slane %v304, 1
      %v426 = vrot.slane %v305, 1
      %v427 = vsel %vm364, %v425, %v426
      %v428 = vrot.slane %v306, 1
      %v429 = vsel %vm364, %v426, %v428
      %v430 = vrot.slane %v307, 1
      %v431 = vrot.slane %v308, 1
      %v432 = vsel %vm364, %v430, %v431
      %v433 = vrot.slane %v309, 1
      %v434 = vsel %vm364, %v431, %v433
      %v435 = vrot.slane %v310, 1
      %v436 = vrot.slane %v311, 1
      %v437 = vsel %vm364, %v435, %v436
      %v438 = vrot.slane %v312, 1
      %v439 = vsel %vm364, %v436, %v438
      %v440 = vrot.slane %v313, 1
      %v441 = vrot.slane %v314, 1
      %v442 = vsel %vm364, %v440, %v441
      %v443 = vrot.slane %v315, 1
      %v444 = vsel %vm364, %v441, %v443
      %v477 = vadd.f32 %v232, %v367
      %v478 = vadd.f32 %v233, %v369
      %v479 = vadd.f32 %v234, %v372
      %v480 = vadd.f32 %v235, %v374
      %v481 = vadd.f32 %v236, %v377
      %v482 = vadd.f32 %v237, %v379
      %v483 = vadd.f32 %v238, %v382
      %v484 = vadd.f32 %v239, %v384
      %v485 = vadd.f32 %v240, %v387
      %v486 = vadd.f32 %v241, %v389
      %v487 = vadd.f32 %v242, %v392
      %v488 = vadd.f32 %v243, %v394
      %v489 = vadd.f32 %v244, %v397
      %v490 = vadd.f32 %v245, %v399
      %v491 = vadd.f32 %v246, %v402
      %v492 = vadd.f32 %v247, %v404
      %v493 = vadd.f32 %v248, %v407
      %v494 = vadd.f32 %v249, %v409
      %v495 = vadd.f32 %v250, %v412
      %v496 = vadd.f32 %v251, %v414
      %v497 = vadd.f32 %v252, %v417
      %v498 = vadd.f32 %v253, %v419
      %v499 = vadd.f32 %v254, %v422
      %v500 = vadd.f32 %v255, %v424
      %v501 = vadd.f32 %v256, %v427
      %v502 = vadd.f32 %v257, %v429
      %v503 = vadd.f32 %v258, %v432
      %v504 = vadd.f32 %v259, %v434
      %v505 = vadd.f32 %v260, %v437
      %v506 = vadd.f32 %v261, %v439
      %v507 = vadd.f32 %v262, %v442
      %v508 = vadd.f32 %v263, %v444
      %v509 = vlaneseq
      %v510 = vshrl.u32 %v509, 7
      %v511 = vsub.s32 2, %v510
      %v512 = vrot.slane %v225, %v511
      %v513 = vmul.f32 %v171, %v512
      %v514 = vmul.f32 %v172, %v512
      %v515 = vmul.f32 %v173, %v512
      %v516 = vmul.f32 %v174, %v512
      %v517 = vmul.f32 %v175, %v512
      %v518 = vmul.f32 %v176, %v512
      %v519 = vmul.f32 %v177, %v512
      %v520 = vmul.f32 %v178, %v512
      %v521 = vmul.f32 %v179, %v512
      %v522 = vmul.f32 %v180, %v512
      %v523 = vmul.f32 %v181, %v512
      %v524 = vmul.f32 %v182, %v512
      %v525 = vmul.f32 %v183, %v512
      %v526 = vmul.f32 %v184, %v512
      %v527 = vmul.f32 %v185, %v512
      %v528 = vmul.f32 %v186, %v512
      %v529 = vmul.f32 %v187, %v512
      %v530 = vmul.f32 %v188, %v512
      %v531 = vmul.f32 %v189, %v512
      %v532 = vmul.f32 %v190, %v512
      %v533 = vmul.f32 %v191, %v512
      %v534 = vmul.f32 %v192, %v512
      %v535 = vmul.f32 %v193, %v512
      %v536 = vmul.f32 %v194, %v512
      %v537 = vmul.f32 %v195, %v512
      %v538 = vmul.f32 %v196, %v512
      %v539 = vmul.f32 %v197, %v512
      %v540 = vmul.f32 %v198, %v512
      %v541 = vmul.f32 %v199, %v512
      %v542 = vmul.f32 %v200, %v512
      %v543 = vmul.f32 %v201, %v512
      %v544 = vmul.f32 %v202, %v512
      %v545 = vmul.f32 %v203, %v512
      %v546 = vmul.f32 %v204, %v512
      %v547 = vmul.f32 %v205, %v512
      %v548 = vmul.f32 %v206, %v512
      %v549 = vmul.f32 %v207, %v512
      %v550 = vmul.f32 %v208, %v512
      %v551 = vmul.f32 %v209, %v512
      %v552 = vmul.f32 %v210, %v512
      %v553 = vmul.f32 %v211, %v512
      %v554 = vmul.f32 %v212, %v512
      %v555 = vmul.f32 %v213, %v512
      %v556 = vmul.f32 %v214, %v512
      %v557 = vmul.f32 %v215, %v512
      %v558 = vmul.f32 %v216, %v512
      %v559 = vmul.f32 %v217, %v512
      %v560 = vmul.f32 %v218, %v512
      %vm609 = vcmask 1045504
      %v610 = vrot.slane %v513, 2
      %v611 = vrot.slane %v514, 2
      %v612 = vsel %vm609, %v610, %v611
      %v613 = vrot.slane %v515, 2
      %v614 = vsel %vm609, %v611, %v613
      %v615 = vrot.slane %v516, 2
      %v616 = vrot.slane %v517, 2
      %v617 = vsel %vm609, %v615, %v616
      %v618 = vrot.slane %v518, 2
      %v619 = vsel %vm609, %v616, %v618
      %v620 = vrot.slane %v519, 2
      %v621 = vrot.slane %v520, 2
      %v622 = vsel %vm609, %v620, %v621
      %v623 = vrot.slane %v521, 2
      %v624 = vsel %vm609, %v621, %v623
      %v625 = vrot.slane %v522, 2
      %v626 = vrot.slane %v523, 2
      %v627 = vsel %vm609, %v625, %v626
      %v628 = vrot.slane %v524, 2
      %v629 = vsel %vm609, %v626, %v628
      %v630 = vrot.slane %v525, 2
      %v631 = vrot.slane %v526, 2
      %v632 = vsel %vm609, %v630, %v631
      %v633 = vrot.slane %v527, 2
      %v634 = vsel %vm609, %v631, %v633
      %v635 = vrot.slane %v528, 2
      %v636 = vrot.slane %v529, 2
      %v637 = vsel %vm609, %v635, %v636
      %v638 = vrot.slane %v530, 2
      %v639 = vsel %vm609, %v636, %v638
      %v640 = vrot.slane %v531, 2
      %v641 = vrot.slane %v532, 2
      %v642 = vsel %vm609, %v640, %v641
      %v643 = vrot.slane %v533, 2
      %v644 = vsel %vm609, %v641, %v643
      %v645 = vrot.slane %v534, 2
      %v646 = vrot.slane %v535, 2
      %v647 = vsel %vm609, %v645, %v646
      %v648 = vrot.slane %v536, 2
      %v649 = vsel %vm609, %v646, %v648
      %v650 = vrot.slane %v537, 2
      %v651 = vrot.slane %v538, 2
      %v652 = vsel %vm609, %v650, %v651
      %v653 = vrot.slane %v539, 2
      %v654 = vsel %vm609, %v651, %v653
      %v655 = vrot.slane %v540, 2
      %v656 = vrot.slane %v541, 2
      %v657 = vsel %vm609, %v655, %v656
      %v658 = vrot.slane %v542, 2
      %v659 = vsel %vm609, %v656, %v658
      %v660 = vrot.slane %v543, 2
      %v661 = vrot.slane %v544, 2
      %v662 = vsel %vm609, %v660, %v661
      %v663 = vrot.slane %v545, 2
      %v664 = vsel %vm609, %v661, %v663
      %v665 = vrot.slane %v546, 2
      %v666 = vrot.slane %v547, 2
      %v667 = vsel %vm609, %v665, %v666
      %v668 = vrot.slane %v548, 2
      %v669 = vsel %vm609, %v666, %v668
      %v670 = vrot.slane %v549, 2
      %v671 = vrot.slane %v550, 2
      %v672 = vsel %vm609, %v670, %v671
      %v673 = vrot.slane %v551, 2
      %v674 = vsel %vm609, %v671, %v673
      %v675 = vrot.slane %v552, 2
      %v676 = vrot.slane %v553, 2
      %v677 = vsel %vm609, %v675, %v676
      %v678 = vrot.slane %v554, 2
      %v679 = vsel %vm609, %v676, %v678
      %v680 = vrot.slane %v555, 2
      %v681 = vrot.slane %v556, 2
      %v682 = vsel %vm609, %v680, %v681
      %v683 = vrot.slane %v557, 2
      %v684 = vsel %vm609, %v681, %v683
      %v685 = vrot.slane %v558, 2
      %v686 = vrot.slane %v559, 2
      %v687 = vsel %vm609, %v685, %v686
      %v688 = vrot.slane %v560, 2
      %v689 = vsel %vm609, %v686, %v688
      %v722 = vadd.f32 %v477, %v612
      %v723 = vadd.f32 %v478, %v614
      %v724 = vadd.f32 %v479, %v617
      %v725 = vadd.f32 %v480, %v619
      %v726 = vadd.f32 %v481, %v622
      %v727 = vadd.f32 %v482, %v624
      %v728 = vadd.f32 %v483, %v627
      %v729 = vadd.f32 %v484, %v629
      %v730 = vadd.f32 %v485, %v632
      %v731 = vadd.f32 %v486, %v634
      %v732 = vadd.f32 %v487, %v637
      %v733 = vadd.f32 %v488, %v639
      %v734 = vadd.f32 %v489, %v642
      %v735 = vadd.f32 %v490, %v644
      %v736 = vadd.f32 %v491, %v647
      %v737 = vadd.f32 %v492, %v649
      %v738 = vadd.f32 %v493, %v652
      %v739 = vadd.f32 %v494, %v654
      %v740 = vadd.f32 %v495, %v657
      %v741 = vadd.f32 %v496, %v659
      %v742 = vadd.f32 %v497, %v662
      %v743 = vadd.f32 %v498, %v664
      %v744 = vadd.f32 %v499, %v667
      %v745 = vadd.f32 %v500, %v669
      %v746 = vadd.f32 %v501, %v672
      %v747 = vadd.f32 %v502, %v674
      %v748 = vadd.f32 %v503, %v677
      %v749 = vadd.f32 %v504, %v679
      %v750 = vadd.f32 %v505, %v682
      %v751 = vadd.f32 %v506, %v684
      %v752 = vadd.f32 %v507, %v687
      %v753 = vadd.f32 %v508, %v689
      %v754 = vlaneseq
      %v755 = vshrl.u32 %v754, 7
      %v756 = vsub.s32 0, %v755
      %v757 = vrot.slane %v226, %v756
      %v758 = vmul.f32 %v174, %v757
      %v759 = vmul.f32 %v175, %v757
      %v760 = vmul.f32 %v177, %v757
      %v761 = vmul.f32 %v178, %v757
      %v762 = vmul.f32 %v180, %v757
      %v763 = vmul.f32 %v181, %v757
      %v764 = vmul.f32 %v183, %v757
      %v765 = vmul.f32 %v184, %v757
      %v766 = vmul.f32 %v186, %v757
      %v767 = vmul.f32 %v187, %v757
      %v768 = vmul.f32 %v189, %v757
      %v769 = vmul.f32 %v190, %v757
      %v770 = vmul.f32 %v192, %v757
      %v771 = vmul.f32 %v193, %v757
      %v772 = vmul.f32 %v195, %v757
      %v773 = vmul.f32 %v196, %v757
      %v774 = vmul.f32 %v198, %v757
      %v775 = vmul.f32 %v199, %v757
      %v776 = vmul.f32 %v201, %v757
      %v777 = vmul.f32 %v202, %v757
      %v778 = vmul.f32 %v204, %v757
      %v779 = vmul.f32 %v205, %v757
      %v780 = vmul.f32 %v207, %v757
      %v781 = vmul.f32 %v208, %v757
      %v782 = vmul.f32 %v210, %v757
      %v783 = vmul.f32 %v211, %v757
      %v784 = vmul.f32 %v213, %v757
      %v785 = vmul.f32 %v214, %v757
      %v786 = vmul.f32 %v216, %v757
      %v787 = vmul.f32 %v217, %v757
      %v788 = vmul.f32 %v219, %v757
      %v789 = vmul.f32 %v220, %v757
      %v790 = vadd.f32 %v722, %v758
      %v791 = vadd.f32 %v723, %v759
      %v792 = vadd.f32 %v724, %v760
      %v793 = vadd.f32 %v725, %v761
      %v794 = vadd.f32 %v726, %v762
      %v795 = vadd.f32 %v727, %v763
      %v796 = vadd.f32 %v728, %v764
      %v797 = vadd.f32 %v729, %v765
      %v798 = vadd.f32 %v730, %v766
      %v799 = vadd.f32 %v731, %v767
      %v800 = vadd.f32 %v732, %v768
      %v801 = vadd.f32 %v733, %v769
      %v802 = vadd.f32 %v734, %v770
      %v803 = vadd.f32 %v735, %v771
      %v804 = vadd.f32 %v736, %v772
      %v805 = vadd.f32 %v737, %v773
      %v806 = vadd.f32 %v738, %v774
      %v807 = vadd.f32 %v739, %v775
      %v808 = vadd.f32 %v740, %v776
      %v809 = vadd.f32 %v741, %v777
      %v810 = vadd.f32 %v742, %v778
      %v811 = vadd.f32 %v743, %v779
      %v812 = vadd.f32 %v744, %v780
      %v813 = vadd.f32 %v745, %v781
      %v814 = vadd.f32 %v746, %v782
      %v815 = vadd.f32 %v747, %v783
      %v816 = vadd.f32 %v748, %v784
      %v817 = vadd.f32 %v749, %v785
      %v818 = vadd.f32 %v750, %v786
      %v819 = vadd.f32 %v751, %v787
      %v820 = vadd.f32 %v752, %v788
      %v821 = vadd.f32 %v753, %v789
      %v822 = vlaneseq
      %v823 = vshrl.u32 %v822, 7
      %v824 = vsub.s32 1, %v823
      %v825 = vrot.slane %v226, %v824
      %v826 = vmul.f32 %v174, %v825
      %v827 = vmul.f32 %v175, %v825
      %v828 = vmul.f32 %v176, %v825
      %v829 = vmul.f32 %v177, %v825
      %v830 = vmul.f32 %v178, %v825
      %v831 = vmul.f32 %v179, %v825
      %v832 = vmul.f32 %v180, %v825
      %v833 = vmul.f32 %v181, %v825
      %v834 = vmul.f32 %v182, %v825
      %v835 = vmul.f32 %v183, %v825
      %v836 = vmul.f32 %v184, %v825
      %v837 = vmul.f32 %v185, %v825
      %v838 = vmul.f32 %v186, %v825
      %v839 = vmul.f32 %v187, %v825
      %v840 = vmul.f32 %v188, %v825
      %v841 = vmul.f32 %v189, %v825
      %v842 = vmul.f32 %v190, %v825
      %v843 = vmul.f32 %v191, %v825
      %v844 = vmul.f32 %v192, %v825
      %v845 = vmul.f32 %v193, %v825
      %v846 = vmul.f32 %v194, %v825
      %v847 = vmul.f32 %v195, %v825
      %v848 = vmul.f32 %v196, %v825
      %v849 = vmul.f32 %v197, %v825
      %v850 = vmul.f32 %v198, %v825
      %v851 = vmul.f32 %v199, %v825
      %v852 = vmul.f32 %v200, %v825
      %v853 = vmul.f32 %v201, %v825
      %v854 = vmul.f32 %v202, %v825
      %v855 = vmul.f32 %v203, %v825
      %v856 = vmul.f32 %v204, %v825
      %v857 = vmul.f32 %v205, %v825
      %v858 = vmul.f32 %v206, %v825
      %v859 = vmul.f32 %v207, %v825
      %v860 = vmul.f32 %v208, %v825
      %v861 = vmul.f32 %v209, %v825
      %v862 = vmul.f32 %v210, %v825
      %v863 = vmul.f32 %v211, %v825
      %v864 = vmul.f32 %v212, %v825
      %v865 = vmul.f32 %v213, %v825
      %v866 = vmul.f32 %v214, %v825
      %v867 = vmul.f32 %v215, %v825
      %v868 = vmul.f32 %v216, %v825
      %v869 = vmul.f32 %v217, %v825
      %v870 = vmul.f32 %v218, %v825
      %v871 = vmul.f32 %v219, %v825
      %v872 = vmul.f32 %v220, %v825
      %v873 = vmul.f32 %v221, %v825
      %v922 = vrot.slane %v826, 1
      %v923 = vrot.slane %v827, 1
      %v924 = vsel %vm364, %v922, %v923
      %v925 = vrot.slane %v828, 1
      %v926 = vsel %vm364, %v923, %v925
      %v927 = vrot.slane %v829, 1
      %v928 = vrot.slane %v830, 1
      %v929 = vsel %vm364, %v927, %v928
      %v930 = vrot.slane %v831, 1
      %v931 = vsel %vm364, %v928, %v930
      %v932 = vrot.slane %v832, 1
      %v933 = vrot.slane %v833, 1
      %v934 = vsel %vm364, %v932, %v933
      %v935 = vrot.slane %v834, 1
      %v936 = vsel %vm364, %v933, %v935
      %v937 = vrot.slane %v835, 1
      %v938 = vrot.slane %v836, 1
      %v939 = vsel %vm364, %v937, %v938
      %v940 = vrot.slane %v837, 1
      %v941 = vsel %vm364, %v938, %v940
      %v942 = vrot.slane %v838, 1
      %v943 = vrot.slane %v839, 1
      %v944 = vsel %vm364, %v942, %v943
      %v945 = vrot.slane %v840, 1
      %v946 = vsel %vm364, %v943, %v945
      %v947 = vrot.slane %v841, 1
      %v948 = vrot.slane %v842, 1
      %v949 = vsel %vm364, %v947, %v948
      %v950 = vrot.slane %v843, 1
      %v951 = vsel %vm364, %v948, %v950
      %v952 = vrot.slane %v844, 1
      %v953 = vrot.slane %v845, 1
      %v954 = vsel %vm364, %v952, %v953
      %v955 = vrot.slane %v846, 1
      %v956 = vsel %vm364, %v953, %v955
      %v957 = vrot.slane %v847, 1
      %v958 = vrot.slane %v848, 1
      %v959 = vsel %vm364, %v957, %v958
      %v960 = vrot.slane %v849, 1
      %v961 = vsel %vm364, %v958, %v960
      %v962 = vrot.slane %v850, 1
      %v963 = vrot.slane %v851, 1
      %v964 = vsel %vm364, %v962, %v963
      %v965 = vrot.slane %v852, 1
      %v966 = vsel %vm364, %v963, %v965
      %v967 = vrot.slane %v853, 1
      %v968 = vrot.slane %v854, 1
      %v969 = vsel %vm364, %v967, %v968
      %v970 = vrot.slane %v855, 1
      %v971 = vsel %vm364, %v968, %v970
      %v972 = vrot.slane %v856, 1
      %v973 = vrot.slane %v857, 1
      %v974 = vsel %vm364, %v972, %v973
      %v975 = vrot.slane %v858, 1
      %v976 = vsel %vm364, %v973, %v975
      %v977 = vrot.slane %v859, 1
      %v978 = vrot.slane %v860, 1
      %v979 = vsel %vm364, %v977, %v978
      %v980 = vrot.slane %v861, 1
      %v981 = vsel %vm364, %v978, %v980
      %v982 = vrot.slane %v862, 1
      %v983 = vrot.slane %v863, 1
      %v984 = vsel %vm364, %v982, %v983
      %v985 = vrot.slane %v864, 1
      %v986 = vsel %vm364, %v983, %v985
      %v987 = vrot.slane %v865, 1
      %v988 = vrot.slane %v866, 1
      %v989 = vsel %vm364, %v987, %v988
      %v990 = vrot.slane %v867, 1
      %v991 = vsel %vm364, %v988, %v990
      %v992 = vrot.slane %v868, 1
      %v993 = vrot.slane %v869, 1
      %v994 = vsel %vm364, %v992, %v993
      %v995 = vrot.slane %v870, 1
      %v996 = vsel %vm364, %v993, %v995
      %v997 = vrot.slane %v871, 1
      %v998 = vrot.slane %v872, 1
      %v999 = vsel %vm364, %v997, %v998
      %v1000 = vrot.slane %v873, 1
      %v1001 = vsel %vm364, %v998, %v1000
      %v1034 = vadd.f32 %v790, %v924
      %v1035 = vadd.f32 %v791, %v926
      %v1036 = vadd.f32 %v792, %v929
      %v1037 = vadd.f32 %v793, %v931
      %v1038 = vadd.f32 %v794, %v934
      %v1039 = vadd.f32 %v795, %v936
      %v1040 = vadd.f32 %v796, %v939
      %v1041 = vadd.f32 %v797, %v941
      %v1042 = vadd.f32 %v798, %v944
      %v1043 = vadd.f32 %v799, %v946
      %v1044 = vadd.f32 %v800, %v949
      %v1045 = vadd.f32 %v801, %v951
      %v1046 = vadd.f32 %v802, %v954
      %v1047 = vadd.f32 %v803, %v956
      %v1048 = vadd.f32 %v804, %v959
      %v1049 = vadd.f32 %v805, %v961
      %v1050 = vadd.f32 %v806, %v964
      %v1051 = vadd.f32 %v807, %v966
      %v1052 = vadd.f32 %v808, %v969
      %v1053 = vadd.f32 %v809, %v971
      %v1054 = vadd.f32 %v810, %v974
      %v1055 = vadd.f32 %v811, %v976
      %v1056 = vadd.f32 %v812, %v979
      %v1057 = vadd.f32 %v813, %v981
      %v1058 = vadd.f32 %v814, %v984
      %v1059 = vadd.f32 %v815, %v986
      %v1060 = vadd.f32 %v816, %v989
      %v1061 = vadd.f32 %v817, %v991
      %v1062 = vadd.f32 %v818, %v994
      %v1063 = vadd.f32 %v819, %v996
      %v1064 = vadd.f32 %v820, %v999
      %v1065 = vadd.f32 %v821, %v1001
      %v1066 = vlaneseq
      %v1067 = vshrl.u32 %v1066, 7
      %v1068 = vsub.s32 2, %v1067
      %v1069 = vrot.slane %v226, %v1068
      %v1070 = vmul.f32 %v174, %v1069
      %v1071 = vmul.f32 %v175, %v1069
      %v1072 = vmul.f32 %v176, %v1069
      %v1073 = vmul.f32 %v177, %v1069
      %v1074 = vmul.f32 %v178, %v1069
      %v1075 = vmul.f32 %v179, %v1069
      %v1076 = vmul.f32 %v180, %v1069
      %v1077 = vmul.f32 %v181, %v1069
      %v1078 = vmul.f32 %v182, %v1069
      %v1079 = vmul.f32 %v183, %v1069
      %v1080 = vmul.f32 %v184, %v1069
      %v1081 = vmul.f32 %v185, %v1069
      %v1082 = vmul.f32 %v186, %v1069
      %v1083 = vmul.f32 %v187, %v1069
      %v1084 = vmul.f32 %v188, %v1069
      %v1085 = vmul.f32 %v189, %v1069
      %v1086 = vmul.f32 %v190, %v1069
      %v1087 = vmul.f32 %v191, %v1069
      %v1088 = vmul.f32 %v192, %v1069
      %v1089 = vmul.f32 %v193, %v1069
      %v1090 = vmul.f32 %v194, %v1069
      %v1091 = vmul.f32 %v195, %v1069
      %v1092 = vmul.f32 %v196, %v1069
      %v1093 = vmul.f32 %v197, %v1069
      %v1094 = vmul.f32 %v198, %v1069
      %v1095 = vmul.f32 %v199, %v1069
      %v1096 = vmul.f32 %v200, %v1069
      %v1097 = vmul.f32 %v201, %v1069
      %v1098 = vmul.f32 %v202, %v1069
      %v1099 = vmul.f32 %v203, %v1069
      %v1100 = vmul.f32 %v204, %v1069
      %v1101 = vmul.f32 %v205, %v1069
      %v1102 = vmul.f32 %v206, %v1069
      %v1103 = vmul.f32 %v207, %v1069
      %v1104 = vmul.f32 %v208, %v1069
      %v1105 = vmul.f32 %v209, %v1069
      %v1106 = vmul.f32 %v210, %v1069
      %v1107 = vmul.f32 %v211, %v1069
      %v1108 = vmul.f32 %v212, %v1069
      %v1109 = vmul.f32 %v213, %v1069
      %v1110 = vmul.f32 %v214, %v1069
      %v1111 = vmul.f32 %v215, %v1069
      %v1112 = vmul.f32 %v216, %v1069
      %v1113 = vmul.f32 %v217, %v1069
      %v1114 = vmul.f32 %v218, %v1069
      %v1115 = vmul.f32 %v219, %v1069
      %v1116 = vmul.f32 %v220, %v1069
      %v1117 = vmul.f32 %v221, %v1069
      %v1166 = vrot.slane %v1070, 2
      %v1167 = vrot.slane %v1071, 2
      %v1168 = vsel %vm609, %v1166, %v1167
      %v1169 = vrot.slane %v1072, 2
      %v1170 = vsel %vm609, %v1167, %v1169
      %v1171 = vrot.slane %v1073, 2
      %v1172 = vrot.slane %v1074, 2
      %v1173 = vsel %vm609, %v1171, %v1172
      %v1174 = vrot.slane %v1075, 2
      %v1175 = vsel %vm609, %v1172, %v1174
      %v1176 = vrot.slane %v1076, 2
      %v1177 = vrot.slane %v1077, 2
      %v1178 = vsel %vm609, %v1176, %v1177
      %v1179 = vrot.slane %v1078, 2
      %v1180 = vsel %vm609, %v1177, %v1179
      %v1181 = vrot.slane %v1079, 2
      %v1182 = vrot.slane %v1080, 2
      %v1183 = vsel %vm609, %v1181, %v1182
      %v1184 = vrot.slane %v1081, 2
      %v1185 = vsel %vm609, %v1182, %v1184
      %v1186 = vrot.slane %v1082, 2
      %v1187 = vrot.slane %v1083, 2
      %v1188 = vsel %vm609, %v1186, %v1187
      %v1189 = vrot.slane %v1084, 2
      %v1190 = vsel %vm609, %v1187, %v1189
      %v1191 = vrot.slane %v1085, 2
      %v1192 = vrot.slane %v1086, 2
      %v1193 = vsel %vm609, %v1191, %v1192
      %v1194 = vrot.slane %v1087, 2
      %v1195 = vsel %vm609, %v1192, %v1194
      %v1196 = vrot.slane %v1088, 2
      %v1197 = vrot.slane %v1089, 2
      %v1198 = vsel %vm609, %v1196, %v1197
      %v1199 = vrot.slane %v1090, 2
      %v1200 = vsel %vm609, %v1197, %v1199
      %v1201 = vrot.slane %v1091, 2
      %v1202 = vrot.slane %v1092, 2
      %v1203 = vsel %vm609, %v1201, %v1202
      %v1204 = vrot.slane %v1093, 2
      %v1205 = vsel %vm609, %v1202, %v1204
      %v1206 = vrot.slane %v1094, 2
      %v1207 = vrot.slane %v1095, 2
      %v1208 = vsel %vm609, %v1206, %v1207
      %v1209 = vrot.slane %v1096, 2
      %v1210 = vsel %vm609, %v1207, %v1209
      %v1211 = vrot.slane %v1097, 2
      %v1212 = vrot.slane %v1098, 2
      %v1213 = vsel %vm609, %v1211, %v1212
      %v1214 = vrot.slane %v1099, 2
      %v1215 = vsel %vm609, %v1212, %v1214
      %v1216 = vrot.slane %v1100, 2
      %v1217 = vrot.slane %v1101, 2
      %v1218 = vsel %vm609, %v1216, %v1217
      %v1219 = vrot.slane %v1102, 2
      %v1220 = vsel %vm609, %v1217, %v1219
      %v1221 = vrot.slane %v1103, 2
      %v1222 = vrot.slane %v1104, 2
      %v1223 = vsel %vm609, %v1221, %v1222
      %v1224 = vrot.slane %v1105, 2
      %v1225 = vsel %vm609, %v1222, %v1224
      %v1226 = vrot.slane %v1106, 2
      %v1227 = vrot.slane %v1107, 2
      %v1228 = vsel %vm609, %v1226, %v1227
      %v1229 = vrot.slane %v1108, 2
      %v1230 = vsel %vm609, %v1227, %v1229
      %v1231 = vrot.slane %v1109, 2
      %v1232 = vrot.slane %v1110, 2
      %v1233 = vsel %vm609, %v1231, %v1232
      %v1234 = vrot.slane %v1111, 2
      %v1235 = vsel %vm609, %v1232, %v1234
      %v1236 = vrot.slane %v1112, 2
      %v1237 = vrot.slane %v1113, 2
      %v1238 = vsel %vm609, %v1236, %v1237
      %v1239 = vrot.slane %v1114, 2
      %v1240 = vsel %vm609, %v1237, %v1239
      %v1241 = vrot.slane %v1115, 2
      %v1242 = vrot.slane %v1116, 2
      %v1243 = vsel %vm609, %v1241, %v1242
      %v1244 = vrot.slane %v1117, 2
      %v1245 = vsel %vm609, %v1242, %v1244
      %v1278 = vadd.f32 %v1034, %v1168
      %v1279 = vadd.f32 %v1035, %v1170
      %v1280 = vadd.f32 %v1036, %v1173
      %v1281 = vadd.f32 %v1037, %v1175
      %v1282 = vadd.f32 %v1038, %v1178
      %v1283 = vadd.f32 %v1039, %v1180
      %v1284 = vadd.f32 %v1040, %v1183
      %v1285 = vadd.f32 %v1041, %v1185
      %v1286 = vadd.f32 %v1042, %v1188
      %v1287 = vadd.f32 %v1043, %v1190
      %v1288 = vadd.f32 %v1044, %v1193
      %v1289 = vadd.f32 %v1045, %v1195
      %v1290 = vadd.f32 %v1046, %v1198
      %v1291 = vadd.f32 %v1047, %v1200
      %v1292 = vadd.f32 %v1048, %v1203
      %v1293 = vadd.f32 %v1049, %v1205
      %v1294 = vadd.f32 %v1050, %v1208
      %v1295 = vadd.f32 %v1051, %v1210
      %v1296 = vadd.f32 %v1052, %v1213
      %v1297 = vadd.f32 %v1053, %v1215
      %v1298 = vadd.f32 %v1054, %v1218
      %v1299 = vadd.f32 %v1055, %v1220
      %v1300 = vadd.f32 %v1056, %v1223
      %v1301 = vadd.f32 %v1057, %v1225
      %v1302 = vadd.f32 %v1058, %v1228
      %v1303 = vadd.f32 %v1059, %v1230
      %v1304 = vadd.f32 %v1060, %v1233
      %v1305 = vadd.f32 %v1061, %v1235
      %v1306 = vadd.f32 %v1062, %v1238
      %v1307 = vadd.f32 %v1063, %v1240
      %v1308 = vadd.f32 %v1064, %v1243
      %v1309 = vadd.f32 %v1065, %v1245
      %v1310 = vlaneseq
      %v1311 = vshrl.u32 %v1310, 7
      %v1312 = vsub.s32 0, %v1311
      %v1313 = vrot.slane %v227, %v1312
      %v1314 = vmul.f32 %v177, %v1313
      %v1315 = vmul.f32 %v178, %v1313
      %v1316 = vmul.f32 %v180, %v1313
      %v1317 = vmul.f32 %v181, %v1313
      %v1318 = vmul.f32 %v183, %v1313
      %v1319 = vmul.f32 %v184, %v1313
      %v1320 = vmul.f32 %v186, %v1313
      %v1321 = vmul.f32 %v187, %v1313
      %v1322 = vmul.f32 %v189, %v1313
      %v1323 = vmul.f32 %v190, %v1313
      %v1324 = vmul.f32 %v192, %v1313
      %v1325 = vmul.f32 %v193, %v1313
      %v1326 = vmul.f32 %v195, %v1313
      %v1327 = vmul.f32 %v196, %v1313
      %v1328 = vmul.f32 %v198, %v1313
      %v1329 = vmul.f32 %v199, %v1313
      %v1330 = vmul.f32 %v201, %v1313
      %v1331 = vmul.f32 %v202, %v1313
      %v1332 = vmul.f32 %v204, %v1313
      %v1333 = vmul.f32 %v205, %v1313
      %v1334 = vmul.f32 %v207, %v1313
      %v1335 = vmul.f32 %v208, %v1313
      %v1336 = vmul.f32 %v210, %v1313
      %v1337 = vmul.f32 %v211, %v1313
      %v1338 = vmul.f32 %v213, %v1313
      %v1339 = vmul.f32 %v214, %v1313
      %v1340 = vmul.f32 %v216, %v1313
      %v1341 = vmul.f32 %v217, %v1313
      %v1342 = vmul.f32 %v219, %v1313
      %v1343 = vmul.f32 %v220, %v1313
      %v1344 = vmul.f32 %v222, %v1313
      %v1345 = vmul.f32 %v223, %v1313
      %v1346 = vadd.f32 %v1278, %v1314
      %v1347 = vadd.f32 %v1279, %v1315
      %v1348 = vadd.f32 %v1280, %v1316
      %v1349 = vadd.f32 %v1281, %v1317
      %v1350 = vadd.f32 %v1282, %v1318
      %v1351 = vadd.f32 %v1283, %v1319
      %v1352 = vadd.f32 %v1284, %v1320
      %v1353 = vadd.f32 %v1285, %v1321
      %v1354 = vadd.f32 %v1286, %v1322
      %v1355 = vadd.f32 %v1287, %v1323
      %v1356 = vadd.f32 %v1288, %v1324
      %v1357 = vadd.f32 %v1289, %v1325
      %v1358 = vadd.f32 %v1290, %v1326
      %v1359 = vadd.f32 %v1291, %v1327
      %v1360 = vadd.f32 %v1292, %v1328
      %v1361 = vadd.f32 %v1293, %v1329
      %v1362 = vadd.f32 %v1294, %v1330
      %v1363 = vadd.f32 %v1295, %v1331
      %v1364 = vadd.f32 %v1296, %v1332
      %v1365 = vadd.f32 %v1297, %v1333
      %v1366 = vadd.f32 %v1298, %v1334
      %v1367 = vadd.f32 %v1299, %v1335
      %v1368 = vadd.f32 %v1300, %v1336
      %v1369 = vadd.f32 %v1301, %v1337
      %v1370 = vadd.f32 %v1302, %v1338
      %v1371 = vadd.f32 %v1303, %v1339
      %v1372 = vadd.f32 %v1304, %v1340
      %v1373 = vadd.f32 %v1305, %v1341
      %v1374 = vadd.f32 %v1306, %v1342
      %v1375 = vadd.f32 %v1307, %v1343
      %v1376 = vadd.f32 %v1308, %v1344
      %v1377 = vadd.f32 %v1309, %v1345
      %v1378 = vlaneseq
      %v1379 = vshrl.u32 %v1378, 7
      %v1380 = vsub.s32 1, %v1379
      %v1381 = vrot.slane %v227, %v1380
      %v1382 = vmul.f32 %v177, %v1381
      %v1383 = vmul.f32 %v178, %v1381
      %v1384 = vmul.f32 %v179, %v1381
      %v1385 = vmul.f32 %v180, %v1381
      %v1386 = vmul.f32 %v181, %v1381
      %v1387 = vmul.f32 %v182, %v1381
      %v1388 = vmul.f32 %v183, %v1381
      %v1389 = vmul.f32 %v184, %v1381
      %v1390 = vmul.f32 %v185, %v1381
      %v1391 = vmul.f32 %v186, %v1381
      %v1392 = vmul.f32 %v187, %v1381
      %v1393 = vmul.f32 %v188, %v1381
      %v1394 = vmul.f32 %v189, %v1381
      %v1395 = vmul.f32 %v190, %v1381
      %v1396 = vmul.f32 %v191, %v1381
      %v1397 = vmul.f32 %v192, %v1381
      %v1398 = vmul.f32 %v193, %v1381
      %v1399 = vmul.f32 %v194, %v1381
      %v1400 = vmul.f32 %v195, %v1381
      %v1401 = vmul.f32 %v196, %v1381
      %v1402 = vmul.f32 %v197, %v1381
      %v1403 = vmul.f32 %v198, %v1381
      %v1404 = vmul.f32 %v199, %v1381
      %v1405 = vmul.f32 %v200, %v1381
      %v1406 = vmul.f32 %v201, %v1381
      %v1407 = vmul.f32 %v202, %v1381
      %v1408 = vmul.f32 %v203, %v1381
      %v1409 = vmul.f32 %v204, %v1381
      %v1410 = vmul.f32 %v205, %v1381
      %v1411 = vmul.f32 %v206, %v1381
      %v1412 = vmul.f32 %v207, %v1381
      %v1413 = vmul.f32 %v208, %v1381
      %v1414 = vmul.f32 %v209, %v1381
      %v1415 = vmul.f32 %v210, %v1381
      %v1416 = vmul.f32 %v211, %v1381
      %v1417 = vmul.f32 %v212, %v1381
      %v1418 = vmul.f32 %v213, %v1381
      %v1419 = vmul.f32 %v214, %v1381
      %v1420 = vmul.f32 %v215, %v1381
      %v1421 = vmul.f32 %v216, %v1381
      %v1422 = vmul.f32 %v217, %v1381
      %v1423 = vmul.f32 %v218, %v1381
      %v1424 = vmul.f32 %v219, %v1381
      %v1425 = vmul.f32 %v220, %v1381
      %v1426 = vmul.f32 %v221, %v1381
      %v1427 = vmul.f32 %v222, %v1381
      %v1428 = vmul.f32 %v223, %v1381
      %v1429 = vmul.f32 %v224, %v1381
      %v1478 = vrot.slane %v1382, 1
      %v1479 = vrot.slane %v1383, 1
      %v1480 = vsel %vm364, %v1478, %v1479
      %v1481 = vrot.slane %v1384, 1
      %v1482 = vsel %vm364, %v1479, %v1481
      %v1483 = vrot.slane %v1385, 1
      %v1484 = vrot.slane %v1386, 1
      %v1485 = vsel %vm364, %v1483, %v1484
      %v1486 = vrot.slane %v1387, 1
      %v1487 = vsel %vm364, %v1484, %v1486
      %v1488 = vrot.slane %v1388, 1
      %v1489 = vrot.slane %v1389, 1
      %v1490 = vsel %vm364, %v1488, %v1489
      %v1491 = vrot.slane %v1390, 1
      %v1492 = vsel %vm364, %v1489, %v1491
      %v1493 = vrot.slane %v1391, 1
      %v1494 = vrot.slane %v1392, 1
      %v1495 = vsel %vm364, %v1493, %v1494
      %v1496 = vrot.slane %v1393, 1
      %v1497 = vsel %vm364, %v1494, %v1496
      %v1498 = vrot.slane %v1394, 1
      %v1499 = vrot.slane %v1395, 1
      %v1500 = vsel %vm364, %v1498, %v1499
      %v1501 = vrot.slane %v1396, 1
      %v1502 = vsel %vm364, %v1499, %v1501
      %v1503 = vrot.slane %v1397, 1
      %v1504 = vrot.slane %v1398, 1
      %v1505 = vsel %vm364, %v1503, %v1504
      %v1506 = vrot.slane %v1399, 1
      %v1507 = vsel %vm364, %v1504, %v1506
      %v1508 = vrot.slane %v1400, 1
      %v1509 = vrot.slane %v1401, 1
      %v1510 = vsel %vm364, %v1508, %v1509
      %v1511 = vrot.slane %v1402, 1
      %v1512 = vsel %vm364, %v1509, %v1511
      %v1513 = vrot.slane %v1403, 1
      %v1514 = vrot.slane %v1404, 1
      %v1515 = vsel %vm364, %v1513, %v1514
      %v1516 = vrot.slane %v1405, 1
      %v1517 = vsel %vm364, %v1514, %v1516
      %v1518 = vrot.slane %v1406, 1
      %v1519 = vrot.slane %v1407, 1
      %v1520 = vsel %vm364, %v1518, %v1519
      %v1521 = vrot.slane %v1408, 1
      %v1522 = vsel %vm364, %v1519, %v1521
      %v1523 = vrot.slane %v1409, 1
      %v1524 = vrot.slane %v1410, 1
      %v1525 = vsel %vm364, %v1523, %v1524
      %v1526 = vrot.slane %v1411, 1
      %v1527 = vsel %vm364, %v1524, %v1526
      %v1528 = vrot.slane %v1412, 1
      %v1529 = vrot.slane %v1413, 1
      %v1530 = vsel %vm364, %v1528, %v1529
      %v1531 = vrot.slane %v1414, 1
      %v1532 = vsel %vm364, %v1529, %v1531
      %v1533 = vrot.slane %v1415, 1
      %v1534 = vrot.slane %v1416, 1
      %v1535 = vsel %vm364, %v1533, %v1534
      %v1536 = vrot.slane %v1417, 1
      %v1537 = vsel %vm364, %v1534, %v1536
      %v1538 = vrot.slane %v1418, 1
      %v1539 = vrot.slane %v1419, 1
      %v1540 = vsel %vm364, %v1538, %v1539
      %v1541 = vrot.slane %v1420, 1
      %v1542 = vsel %vm364, %v1539, %v1541
      %v1543 = vrot.slane %v1421, 1
      %v1544 = vrot.slane %v1422, 1
      %v1545 = vsel %vm364, %v1543, %v1544
      %v1546 = vrot.slane %v1423, 1
      %v1547 = vsel %vm364, %v1544, %v1546
      %v1548 = vrot.slane %v1424, 1
      %v1549 = vrot.slane %v1425, 1
      %v1550 = vsel %vm364, %v1548, %v1549
      %v1551 = vrot.slane %v1426, 1
      %v1552 = vsel %vm364, %v1549, %v1551
      %v1553 = vrot.slane %v1427, 1
      %v1554 = vrot.slane %v1428, 1
      %v1555 = vsel %vm364, %v1553, %v1554
      %v1556 = vrot.slane %v1429, 1
      %v1557 = vsel %vm364, %v1554, %v1556
      %v1590 = vadd.f32 %v1346, %v1480
      %v1591 = vadd.f32 %v1347, %v1482
      %v1592 = vadd.f32 %v1348, %v1485
      %v1593 = vadd.f32 %v1349, %v1487
      %v1594 = vadd.f32 %v1350, %v1490
      %v1595 = vadd.f32 %v1351, %v1492
      %v1596 = vadd.f32 %v1352, %v1495
      %v1597 = vadd.f32 %v1353, %v1497
      %v1598 = vadd.f32 %v1354, %v1500
      %v1599 = vadd.f32 %v1355, %v1502
      %v1600 = vadd.f32 %v1356, %v1505
      %v1601 = vadd.f32 %v1357, %v1507
      %v1602 = vadd.f32 %v1358, %v1510
      %v1603 = vadd.f32 %v1359, %v1512
      %v1604 = vadd.f32 %v1360, %v1515
      %v1605 = vadd.f32 %v1361, %v1517
      %v1606 = vadd.f32 %v1362, %v1520
      %v1607 = vadd.f32 %v1363, %v1522
      %v1608 = vadd.f32 %v1364, %v1525
      %v1609 = vadd.f32 %v1365, %v1527
      %v1610 = vadd.f32 %v1366, %v1530
      %v1611 = vadd.f32 %v1367, %v1532
      %v1612 = vadd.f32 %v1368, %v1535
      %v1613 = vadd.f32 %v1369, %v1537
      %v1614 = vadd.f32 %v1370, %v1540
      %v1615 = vadd.f32 %v1371, %v1542
      %v1616 = vadd.f32 %v1372, %v1545
      %v1617 = vadd.f32 %v1373, %v1547
      %v1618 = vadd.f32 %v1374, %v1550
      %v1619 = vadd.f32 %v1375, %v1552
      %v1620 = vadd.f32 %v1376, %v1555
      %v1621 = vadd.f32 %v1377, %v1557
      %v1622 = vlaneseq
      %v1623 = vshrl.u32 %v1622, 7
      %v1624 = vsub.s32 2, %v1623
      %v1625 = vrot.slane %v227, %v1624
      %v1626 = vmul.f32 %v177, %v1625
      %v1627 = vmul.f32 %v178, %v1625
      %v1628 = vmul.f32 %v179, %v1625
      %v1629 = vmul.f32 %v180, %v1625
      %v1630 = vmul.f32 %v181, %v1625
      %v1631 = vmul.f32 %v182, %v1625
      %v1632 = vmul.f32 %v183, %v1625
      %v1633 = vmul.f32 %v184, %v1625
      %v1634 = vmul.f32 %v185, %v1625
      %v1635 = vmul.f32 %v186, %v1625
      %v1636 = vmul.f32 %v187, %v1625
      %v1637 = vmul.f32 %v188, %v1625
      %v1638 = vmul.f32 %v189, %v1625
      %v1639 = vmul.f32 %v190, %v1625
      %v1640 = vmul.f32 %v191, %v1625
      %v1641 = vmul.f32 %v192, %v1625
      %v1642 = vmul.f32 %v193, %v1625
      %v1643 = vmul.f32 %v194, %v1625
      %v1644 = vmul.f32 %v195, %v1625
      %v1645 = vmul.f32 %v196, %v1625
      %v1646 = vmul.f32 %v197, %v1625
      %v1647 = vmul.f32 %v198, %v1625
      %v1648 = vmul.f32 %v199, %v1625
      %v1649 = vmul.f32 %v200, %v1625
      %v1650 = vmul.f32 %v201, %v1625
      %v1651 = vmul.f32 %v202, %v1625
      %v1652 = vmul.f32 %v203, %v1625
      %v1653 = vmul.f32 %v204, %v1625
      %v1654 = vmul.f32 %v205, %v1625
      %v1655 = vmul.f32 %v206, %v1625
      %v1656 = vmul.f32 %v207, %v1625
      %v1657 = vmul.f32 %v208, %v1625
      %v1658 = vmul.f32 %v209, %v1625
      %v1659 = vmul.f32 %v210, %v1625
      %v1660 = vmul.f32 %v211, %v1625
      %v1661 = vmul.f32 %v212, %v1625
      %v1662 = vmul.f32 %v213, %v1625
      %v1663 = vmul.f32 %v214, %v1625
      %v1664 = vmul.f32 %v215, %v1625
      %v1665 = vmul.f32 %v216, %v1625
      %v1666 = vmul.f32 %v217, %v1625
      %v1667 = vmul.f32 %v218, %v1625
      %v1668 = vmul.f32 %v219, %v1625
      %v1669 = vmul.f32 %v220, %v1625
      %v1670 = vmul.f32 %v221, %v1625
      %v1671 = vmul.f32 %v222, %v1625
      %v1672 = vmul.f32 %v223, %v1625
      %v1673 = vmul.f32 %v224, %v1625
      %v1722 = vrot.slane %v1626, 2
      %v1723 = vrot.slane %v1627, 2
      %v1724 = vsel %vm609, %v1722, %v1723
      %v1725 = vrot.slane %v1628, 2
      %v1726 = vsel %vm609, %v1723, %v1725
      %v1727 = vrot.slane %v1629, 2
      %v1728 = vrot.slane %v1630, 2
      %v1729 = vsel %vm609, %v1727, %v1728
      %v1730 = vrot.slane %v1631, 2
      %v1731 = vsel %vm609, %v1728, %v1730
      %v1732 = vrot.slane %v1632, 2
      %v1733 = vrot.slane %v1633, 2
      %v1734 = vsel %vm609, %v1732, %v1733
      %v1735 = vrot.slane %v1634, 2
      %v1736 = vsel %vm609, %v1733, %v1735
      %v1737 = vrot.slane %v1635, 2
      %v1738 = vrot.slane %v1636, 2
      %v1739 = vsel %vm609, %v1737, %v1738
      %v1740 = vrot.slane %v1637, 2
      %v1741 = vsel %vm609, %v1738, %v1740
      %v1742 = vrot.slane %v1638, 2
      %v1743 = vrot.slane %v1639, 2
      %v1744 = vsel %vm609, %v1742, %v1743
      %v1745 = vrot.slane %v1640, 2
      %v1746 = vsel %vm609, %v1743, %v1745
      %v1747 = vrot.slane %v1641, 2
      %v1748 = vrot.slane %v1642, 2
      %v1749 = vsel %vm609, %v1747, %v1748
      %v1750 = vrot.slane %v1643, 2
      %v1751 = vsel %vm609, %v1748, %v1750
      %v1752 = vrot.slane %v1644, 2
      %v1753 = vrot.slane %v1645, 2
      %v1754 = vsel %vm609, %v1752, %v1753
      %v1755 = vrot.slane %v1646, 2
      %v1756 = vsel %vm609, %v1753, %v1755
      %v1757 = vrot.slane %v1647, 2
      %v1758 = vrot.slane %v1648, 2
      %v1759 = vsel %vm609, %v1757, %v1758
      %v1760 = vrot.slane %v1649, 2
      %v1761 = vsel %vm609, %v1758, %v1760
      %v1762 = vrot.slane %v1650, 2
      %v1763 = vrot.slane %v1651, 2
      %v1764 = vsel %vm609, %v1762, %v1763
      %v1765 = vrot.slane %v1652, 2
      %v1766 = vsel %vm609, %v1763, %v1765
      %v1767 = vrot.slane %v1653, 2
      %v1768 = vrot.slane %v1654, 2
      %v1769 = vsel %vm609, %v1767, %v1768
      %v1770 = vrot.slane %v1655, 2
      %v1771 = vsel %vm609, %v1768, %v1770
      %v1772 = vrot.slane %v1656, 2
      %v1773 = vrot.slane %v1657, 2
      %v1774 = vsel %vm609, %v1772, %v1773
      %v1775 = vrot.slane %v1658, 2
      %v1776 = vsel %vm609, %v1773, %v1775
      %v1777 = vrot.slane %v1659, 2
      %v1778 = vrot.slane %v1660, 2
      %v1779 = vsel %vm609, %v1777, %v1778
      %v1780 = vrot.slane %v1661, 2
      %v1781 = vsel %vm609, %v1778, %v1780
      %v1782 = vrot.slane %v1662, 2
      %v1783 = vrot.slane %v1663, 2
      %v1784 = vsel %vm609, %v1782, %v1783
      %v1785 = vrot.slane %v1664, 2
      %v1786 = vsel %vm609, %v1783, %v1785
      %v1787 = vrot.slane %v1665, 2
      %v1788 = vrot.slane %v1666, 2
      %v1789 = vsel %vm609, %v1787, %v1788
      %v1790 = vrot.slane %v1667, 2
      %v1791 = vsel %vm609, %v1788, %v1790
      %v1792 = vrot.slane %v1668, 2
      %v1793 = vrot.slane %v1669, 2
      %v1794 = vsel %vm609, %v1792, %v1793
      %v1795 = vrot.slane %v1670, 2
      %v1796 = vsel %vm609, %v1793, %v1795
      %v1797 = vrot.slane %v1671, 2
      %v1798 = vrot.slane %v1672, 2
      %v1799 = vsel %vm609, %v1797, %v1798
      %v1800 = vrot.slane %v1673, 2
      %v1801 = vsel %vm609, %v1798, %v1800
      %v1834 = vadd.f32 %v1590, %v1724
      %v1835 = vadd.f32 %v1591, %v1726
      %v1836 = vadd.f32 %v1592, %v1729
      %v1837 = vadd.f32 %v1593, %v1731
      %v1838 = vadd.f32 %v1594, %v1734
      %v1839 = vadd.f32 %v1595, %v1736
      %v1840 = vadd.f32 %v1596, %v1739
      %v1841 = vadd.f32 %v1597, %v1741
      %v1842 = vadd.f32 %v1598, %v1744
      %v1843 = vadd.f32 %v1599, %v1746
      %v1844 = vadd.f32 %v1600, %v1749
      %v1845 = vadd.f32 %v1601, %v1751
      %v1846 = vadd.f32 %v1602, %v1754
      %v1847 = vadd.f32 %v1603, %v1756
      %v1848 = vadd.f32 %v1604, %v1759
      %v1849 = vadd.f32 %v1605, %v1761
      %v1850 = vadd.f32 %v1606, %v1764
      %v1851 = vadd.f32 %v1607, %v1766
      %v1852 = vadd.f32 %v1608, %v1769
      %v1853 = vadd.f32 %v1609, %v1771
      %v1854 = vadd.f32 %v1610, %v1774
      %v1855 = vadd.f32 %v1611, %v1776
      %v1856 = vadd.f32 %v1612, %v1779
      %v1857 = vadd.f32 %v1613, %v1781
      %v1858 = vadd.f32 %v1614, %v1784
      %v1859 = vadd.f32 %v1615, %v1786
      %v1860 = vadd.f32 %v1616, %v1789
      %v1861 = vadd.f32 %v1617, %v1791
      %v1862 = vadd.f32 %v1618, %v1794
      %v1863 = vadd.f32 %v1619, %v1796
      %v1864 = vadd.f32 %v1620, %v1799
      %v1865 = vadd.f32 %v1621, %v1801
      %v1866 = vld [vmem:[%s2] sm:$0x1]
      %v1868 = vlaneseq
      %v1869 = vshrl.u32 %v1868, 7
      %v1870 = vsub.s32 0, %v1869
      %v1871 = vrot.slane %v1866, %v1870
      %v1873 = vadd.f32 %v1834, %v1871
      %v1874 = vadd.f32 %v1835, %v1871
      %v1875 = vadd.f32 %v1836, %v1871
      %v1876 = vadd.f32 %v1837, %v1871
      %v1877 = vadd.f32 %v1838, %v1871
      %v1878 = vadd.f32 %v1839, %v1871
      %v1879 = vadd.f32 %v1840, %v1871
      %v1880 = vadd.f32 %v1841, %v1871
      %v1881 = vadd.f32 %v1842, %v1871
      %v1882 = vadd.f32 %v1843, %v1871
      %v1883 = vadd.f32 %v1844, %v1871
      %v1884 = vadd.f32 %v1845, %v1871
      %v1885 = vadd.f32 %v1846, %v1871
      %v1886 = vadd.f32 %v1847, %v1871
      %v1887 = vadd.f32 %v1848, %v1871
      %v1888 = vadd.f32 %v1849, %v1871
      %v1889 = vadd.f32 %v1850, %v1871
      %v1890 = vadd.f32 %v1851, %v1871
      %v1891 = vadd.f32 %v1852, %v1871
      %v1892 = vadd.f32 %v1853, %v1871
      %v1893 = vadd.f32 %v1854, %v1871
      %v1894 = vadd.f32 %v1855, %v1871
      %v1895 = vadd.f32 %v1856, %v1871
      %v1896 = vadd.f32 %v1857, %v1871
      %v1897 = vadd.f32 %v1858, %v1871
      %v1898 = vadd.f32 %v1859, %v1871
      %v1899 = vadd.f32 %v1860, %v1871
      %v1900 = vadd.f32 %v1861, %v1871
      %v1901 = vadd.f32 %v1862, %v1871
      %v1902 = vadd.f32 %v1863, %v1871
      %v1903 = vadd.f32 %v1864, %v1871
      %v1904 = vadd.f32 %v1865, %v1871
      %1905 = vst [vmem:[%s170] sm:$0xff] %v1873
      %1906 = vst [vmem:[%s170 + $0x8] sm:$0xff] %v1874
      %1907 = vst [vmem:[%s170 + $0x10] sm:$0xff] %v1875
      %1908 = vst [vmem:[%s170 + $0x18] sm:$0xff] %v1876
      %1909 = vst [vmem:[%s170 + $0x20] sm:$0xff] %v1877
      %1910 = vst [vmem:[%s170 + $0x28] sm:$0xff] %v1878
      %1911 = vst [vmem:[%s170 + $0x30] sm:$0xff] %v1879
      %1912 = vst [vmem:[%s170 + $0x38] sm:$0xff] %v1880
      %1913 = vst [vmem:[%s170 + $0x40] sm:$0xff] %v1881
      %1914 = vst [vmem:[%s170 + $0x48] sm:$0xff] %v1882
      %1915 = vst [vmem:[%s170 + $0x50] sm:$0xff] %v1883
      %1916 = vst [vmem:[%s170 + $0x58] sm:$0xff] %v1884
      %1917 = vst [vmem:[%s170 + $0x60] sm:$0xff] %v1885
      %1918 = vst [vmem:[%s170 + $0x68] sm:$0xff] %v1886
      %1919 = vst [vmem:[%s170 + $0x70] sm:$0xff] %v1887
      %1920 = vst [vmem:[%s170 + $0x78] sm:$0xff] %v1888
      %1921 = vst [vmem:[%s170 + $0x80] sm:$0xff] %v1889
      %1922 = vst [vmem:[%s170 + $0x88] sm:$0xff] %v1890
      %1923 = vst [vmem:[%s170 + $0x90] sm:$0xff] %v1891
      %1924 = vst [vmem:[%s170 + $0x98] sm:$0xff] %v1892
      %1925 = vst [vmem:[%s170 + $0xa0] sm:$0xff] %v1893
      %1926 = vst [vmem:[%s170 + $0xa8] sm:$0xff] %v1894
      %1927 = vst [vmem:[%s170 + $0xb0] sm:$0xff] %v1895
      %1928 = vst [vmem:[%s170 + $0xb8] sm:$0xff] %v1896
      %1929 = vst [vmem:[%s170 + $0xc0] sm:$0xff] %v1897
      %1930 = vst [vmem:[%s170 + $0xc8] sm:$0xff] %v1898
      %1931 = vst [vmem:[%s170 + $0xd0] sm:$0xff] %v1899
      %1932 = vst [vmem:[%s170 + $0xd8] sm:$0xff] %v1900
      %1933 = vst [vmem:[%s170 + $0xe0] sm:$0xff] %v1901
      %1934 = vst [vmem:[%s170 + $0xe8] sm:$0xff] %v1902
      %1935 = vst [vmem:[%s170 + $0xf0] sm:$0xff] %v1903
      %1936 = vst [vmem:[%s170 + $0xf8] sm:$0xff] %v1904
      %p1937 = scmp.lt.s32.totalorder %s14, 1
      %s1938 = scalar_select %p1937, %s14, 1
      %s1939 = smul.addr %s1938, 32
      %s1940 = smul.addr %s1939, 8
      %s1941 = scalar_lea.vmem %s3, %s1940
      // Predicated region
      $region33: #{transformer_block_pallas.10} parent=31 // pred_check
        %p1942 = pneg %p100
      $region34: #{transformer_block_pallas.10} parent=31 // pred_check_branch
        %1944 = sbr.rel (%p1942) target = $region36
      $region35: #{transformer_block_pallas.10} parent=31 // pred_region
        _
      $region36: #{transformer_block_pallas.10} parent=31 // pred_fallthru
        _
    $region32: #{transformer_block_pallas.10} parent=5 // pred_fallthru
      _
    %p1945 = scmp.le.s32.totalorder 2, %s9
    // Predicated region
    $region37: #{transformer_block_pallas.10} parent=5 // pred_check
      %p1946 = pneg %p1945
    $region38: #{transformer_block_pallas.10} parent=5 // pred_check_branch
      %1948 = sbr.rel (%p1946) target = $region40
    $region39: #{transformer_block_pallas.10} parent=5 // pred_region
      %s1949 = ssub.s32 %s9, 2
      // Predicated region
      $region41: #{transformer_block_pallas.10} parent=39 // pred_check
        %p1950 = pneg %p106
      $region42: #{transformer_block_pallas.10} parent=39 // pred_check_branch
        %1952 = sbr.rel (%p1950) target = $region44
      $region43: #{transformer_block_pallas.10} parent=39 // pred_region
        %p1953 = scmp.lt.s32.totalorder %s15, 1
        %s1954 = scalar_select %p1953, %s15, 1
        %s1955 = smul.addr %s1954, 32
        %s1956 = smul.addr %s1955, 8
        %s1957 = scalar_lea.vmem %s3, %s1956
      $region44: #{transformer_block_pallas.10} parent=39 // pred_fallthru
        _
    $region40: #{transformer_block_pallas.10} parent=5 // pred_fallthru
      _
  $region6: #{transformer_block_pallas.10} parent=0 // loop_footer
    %s13 = sadd.s32 1, %s9
  $region7: #{transformer_block_pallas.10} parent=0 // loop_footer_branch
    %8 = sbr.rel target = $region3
  $region8: #{transformer_block_pallas.10} parent=0 // loop_exit
    _

// kernel: transformer_block_pallas.11
$region0: #{transformer_block_pallas.11}
  #allocation0 [shape = 'u32[]', space=smem, size = 0x4, offset = 0x4, fixed_abs, tag = 'smem constant byte address 0x4 - core index']
  #allocation1 [shape = 'u32[144,128]{1,0:T(1,128)}', space=vmem, size = 0x12000, scoped, tag = 'internal scratch']
  %s0 = inlined_call_operand.vmem [shape: f32[128,512], index: 0, kind: input, shape index: {}]
  %s1 = inlined_call_operand.vmem [shape: f32[128,128], index: 1, kind: input, shape index: {}]
  %s2 = inlined_call_operand.vmem [shape: f32[256,128], index: 2, kind: input, shape index: {}]
  %s3 = inlined_call_operand.vmem [shape: f32[1,128], index: 3, kind: input, shape index: {}]
  %s4 = inlined_call_operand.vmem [shape: f32[128,128], index: 4, kind: output, shape index: {}]
  %s5 = sld [smem:[#allocation0]]
  $region49: #{transformer_block_pallas.11} parent=0
    _
  %s7 = ssub.s32 1, %s5
  %s8 = scalar_select 0, %s7, %s5
  loop: start=0, step=1, limit=4
  $region2: #{transformer_block_pallas.11} parent=0 // loop_pre_header
    _
  $region3: #{transformer_block_pallas.11} parent=0 // loop_header
    %s10 = sphi 0, %s14
    %p11 = scmp.ge.s32.totalorder %s10, 4
    %s20 = sphi 0, %s22
    %s23 = sphi 0, %s20
    %s24 = sphi 0, %s23
    %s40 = sphi 0, %s24
    %s46 = sphi 0, %s48
    %s49 = sphi 0, %s46
    %s50 = sphi 0, %s49
    %s66 = sphi 0, %s50
    %s70 = sphi 0, %s70
    %s72 = sphi 0, %s70
    %s73 = sphi 0, %s72
    %s87 = sphi 0, %s73
    %s91 = sphi 0, %s91
    %s93 = sphi 0, %s91
    %s94 = sphi 0, %s93
    %s108 = sphi 0, %s94
    %s114 = sphi 0, %s116
    %s117 = sphi 0, %s114
    %s118 = sphi 0, %s117
    %s134 = sphi 0, %s118
  $region4: #{transformer_block_pallas.11} parent=0 // loop_header_branch
    %13 = sbr.rel (%p11) target = $region8
  $region5: #{transformer_block_pallas.11} parent=0 // loop_body
    %s15 = ssub.s32 %s10, 1
    %s16 = ssub.s32 %s10, 2
    %s17 = sadd.s32 %s10, 1
    %s18 = ssub.s32 %s10, %s17
    %p19 = scmp.eq.s32.totalorder %s18, 0
    %s21 = sadd.s32 %s20, 1
    %s22 = scalar_select %p19, %s20, %s21
    %p25 = pneg %p19
    %p26 = scmp.eq.s32.totalorder %s10, 1
    %p27 = por %p25, %p26
    %p28 = scmp.ne.s32.totalorder %s20, %s23
    %p29 = scmp.eq.s32.totalorder %s10, 0
    %p30 = por %p28, %p29
    %p31 = scmp.ne.s32.totalorder %s20, %s23
    %p32 = scmp.eq.s32.totalorder %s15, 1
    %p33 = por %p31, %p32
    %p34 = scmp.ne.s32.totalorder %s23, %s24
    %p35 = scmp.eq.s32.totalorder %s15, 0
    %p36 = por %p34, %p35
    %p37 = scmp.ne.s32.totalorder %s23, %s24
    %p38 = scmp.eq.s32.totalorder %s16, 1
    %p39 = por %p37, %p38
    %p41 = scmp.ne.s32.totalorder %s24, %s40
    %p42 = scmp.eq.s32.totalorder %s16, 0
    %p43 = por %p41, %p42
    %s44 = ssub.s32 %s10, %s17
    %p45 = scmp.eq.s32.totalorder %s44, 0
    %s47 = sadd.s32 %s46, 1
    %s48 = scalar_select %p45, %s46, %s47
    %p51 = pneg %p45
    %p52 = scmp.eq.s32.totalorder %s10, 1
    %p53 = por %p51, %p52
    %p54 = scmp.ne.s32.totalorder %s46, %s49
    %p55 = scmp.eq.s32.totalorder %s10, 0
    %p56 = por %p54, %p55
    %p57 = scmp.ne.s32.totalorder %s46, %s49
    %p58 = scmp.eq.s32.totalorder %s15, 1
    %p59 = por %p57, %p58
    %p60 = scmp.ne.s32.totalorder %s49, %s50
    %p61 = scmp.eq.s32.totalorder %s15, 0
    %p62 = por %p60, %p61
    %p63 = scmp.ne.s32.totalorder %s49, %s50
    %p64 = scmp.eq.s32.totalorder %s16, 1
    %p65 = por %p63, %p64
    %p67 = scmp.ne.s32.totalorder %s50, %s66
    %p68 = scmp.eq.s32.totalorder %s16, 0
    %p69 = por %p67, %p68
    %s71 = sadd.s32 %s70, 1
    %p74 = scmp.eq.s32.totalorder %s10, 1
    %p75 = scmp.ne.s32.totalorder %s70, %s72
    %p76 = scmp.eq.s32.totalorder %s10, 0
    %p77 = por %p75, %p76
    %p78 = scmp.ne.s32.totalorder %s70, %s72
    %p79 = scmp.eq.s32.totalorder %s15, 1
    %p80 = por %p78, %p79
    %p81 = scmp.ne.s32.totalorder %s72, %s73
    %p82 = scmp.eq.s32.totalorder %s15, 0
    %p83 = por %p81, %p82
    %p84 = scmp.ne.s32.totalorder %s72, %s73
    %p85 = scmp.eq.s32.totalorder %s16, 1
    %p86 = por %p84, %p85
    %p88 = scmp.ne.s32.totalorder %s73, %s87
    %p89 = scmp.eq.s32.totalorder %s16, 0
    %p90 = por %p88, %p89
    %s92 = sadd.s32 %s91, 1
    %p95 = scmp.eq.s32.totalorder %s10, 1
    %p96 = scmp.ne.s32.totalorder %s91, %s93
    %p97 = scmp.eq.s32.totalorder %s10, 0
    %p98 = por %p96, %p97
    %p99 = scmp.ne.s32.totalorder %s91, %s93
    %p100 = scmp.eq.s32.totalorder %s15, 1
    %p101 = por %p99, %p100
    %p102 = scmp.ne.s32.totalorder %s93, %s94
    %p103 = scmp.eq.s32.totalorder %s15, 0
    %p104 = por %p102, %p103
    %p105 = scmp.ne.s32.totalorder %s93, %s94
    %p106 = scmp.eq.s32.totalorder %s16, 1
    %p107 = por %p105, %p106
    %p109 = scmp.ne.s32.totalorder %s94, %s108
    %p110 = scmp.eq.s32.totalorder %s16, 0
    %p111 = por %p109, %p110
    %s112 = ssub.s32 %s10, %s17
    %p113 = scmp.eq.s32.totalorder %s112, 0
    %s115 = sadd.s32 %s114, 1
    %s116 = scalar_select %p113, %s114, %s115
    %p119 = pneg %p113
    %p120 = scmp.eq.s32.totalorder %s10, 1
    %p121 = por %p119, %p120
    %p122 = scmp.ne.s32.totalorder %s114, %s117
    %p123 = scmp.eq.s32.totalorder %s10, 0
    %p124 = por %p122, %p123
    %p125 = scmp.ne.s32.totalorder %s114, %s117
    %p126 = scmp.eq.s32.totalorder %s15, 1
    %p127 = por %p125, %p126
    %p128 = scmp.ne.s32.totalorder %s117, %s118
    %p129 = scmp.eq.s32.totalorder %s15, 0
    %p130 = por %p128, %p129
    %p131 = scmp.ne.s32.totalorder %s117, %s118
    %p132 = scmp.eq.s32.totalorder %s16, 1
    %p133 = por %p131, %p132
    %p135 = scmp.ne.s32.totalorder %s118, %s134
    %p136 = scmp.eq.s32.totalorder %s16, 0
    %p137 = por %p135, %p136
    %p138 = scmp.le.s32.totalorder 1, %s10
    %p139 = scmp.lt.s32.totalorder %s10, 3
    %p140 = pnand %p138, %p139
    %p141 = pneg %p140
    // Predicated region
    $region9: #{transformer_block_pallas.11} parent=5 // pred_check
      _
    $region10: #{transformer_block_pallas.11} parent=5 // pred_check_branch
      %143 = sbr.rel (%p140) target = $region12
    $region11: #{transformer_block_pallas.11} parent=5 // pred_region
      %s144 = ssub.s32 %s10, 1
      // Predicated region
      $region13: #{transformer_block_pallas.11} parent=11 // pred_check
        %p145 = pneg %p83
      $region14: #{transformer_block_pallas.11} parent=11 // pred_check_branch
        %147 = sbr.rel (%p145) target = $region16
      $region15: #{transformer_block_pallas.11} parent=11 // pred_region
        _
      $region16: #{transformer_block_pallas.11} parent=11 // pred_fallthru
        _
      // Predicated region
      $region17: #{transformer_block_pallas.11} parent=11 // pred_check
        %p148 = pneg %p104
      $region18: #{transformer_block_pallas.11} parent=11 // pred_check_branch
        %150 = sbr.rel (%p148) target = $region20
      $region19: #{transformer_block_pallas.11} parent=11 // pred_region
        _
      $region20: #{transformer_block_pallas.11} parent=11 // pred_fallthru
        _
    $region12: #{transformer_block_pallas.11} parent=5 // pred_fallthru
      _
    %p151 = scmp.lt.s32.totalorder %s10, 2
    // Predicated region
    $region21: #{transformer_block_pallas.11} parent=5 // pred_check
      %p152 = pneg %p151
    $region22: #{transformer_block_pallas.11} parent=5 // pred_check_branch
      %154 = sbr.rel (%p152) target = $region24
    $region23: #{transformer_block_pallas.11} parent=5 // pred_region
      // Predicated region
      $region25: #{transformer_block_pallas.11} parent=23 // pred_check
        %p155 = pneg %p30
      $region26: #{transformer_block_pallas.11} parent=23 // pred_check_branch
        %157 = sbr.rel (%p155) target = $region28
      $region27: #{transformer_block_pallas.11} parent=23 // pred_region
        %s158 = smul.u32 8, %s10
        %p159 = scmp.lt.s32.totalorder %s158, 15
        %s160 = scalar_select %p159, %s158, 15
        %s161 = smul.addr %s160, 4
        %s162 = smul.addr %s161, 8
        %s163 = scalar_lea.vmem %s0, %s162
        %s164 = smul.u32 8, %s10
      $region28: #{transformer_block_pallas.11} parent=23 // pred_fallthru
        _
      // Predicated region
      $region29: #{transformer_block_pallas.11} parent=23 // pred_check
        %p165 = pneg %p56
      $region30: #{transformer_block_pallas.11} parent=23 // pred_check_branch
        %167 = sbr.rel (%p165) target = $region32
      $region31: #{transformer_block_pallas.11} parent=23 // pred_region
        %s168 = smul.u32 8, %s10
        %p169 = scmp.lt.s32.totalorder %s168, 15
        %s170 = scalar_select %p169, %s168, 15
        %s171 = smul.addr %s170, 8
        %s172 = scalar_lea.vmem %s1, %s171
        %s173 = smul.u32 8, %s10
      $region32: #{transformer_block_pallas.11} parent=23 // pred_fallthru
        _
    $region24: #{transformer_block_pallas.11} parent=5 // pred_fallthru
      _
    %p174 = scmp.le.s32.totalorder 1, %s10
    %p175 = scmp.lt.s32.totalorder %s10, 3
    %p176 = pnand %p174, %p175
    %p177 = pneg %p176
    // Predicated region
    $region33: #{transformer_block_pallas.11} parent=5 // pred_check
      _
    $region34: #{transformer_block_pallas.11} parent=5 // pred_check_branch
      %179 = sbr.rel (%p176) target = $region36
    $region35: #{transformer_block_pallas.11} parent=5 // pred_region
      %s180 = ssub.s32 %s10, 1
      %s181 = smul.u32 8, %s15
      %p182 = scmp.lt.s32.totalorder %s181, 15
      %s183 = scalar_select %p182, %s181, 15
      %s184 = smul.addr %s183, 4
      %s185 = smul.addr %s184, 8
      %s186 = scalar_lea.vmem %s0, %s185
      %p187 = pneg %p36
      %p188 = pneg %p33
      %s189 = smul.u32 8, %s15
      %p190 = scmp.lt.s32.totalorder %s189, 15
      %s191 = scalar_select %p190, %s189, 15
      %s192 = smul.addr %s191, 8
      %s193 = scalar_lea.vmem %s1, %s192
      %p194 = pneg %p62
      %p195 = pneg %p59
      %p196 = pneg %p83
      %p197 = pneg %p80
      %p198 = pneg %p104
      %p199 = pneg %p101
      %p200 = pneg %p130
      %p201 = pneg %p127
      %s202 = smul.u32 8, %s15
      %p203 = scmp.lt.s32.totalorder %s202, 15
      %s204 = scalar_select %p203, %s202, 15
      %s205 = smul.addr %s204, 8
      %s206 = scalar_lea.vmem %s4, %s205
      %s207 = smul.u32 8, %s15
      %p208 = scmp.lt.s32.totalorder %s207, 15
      %s209 = scalar_select %p208, %s207, 15
      %s210 = smul.addr %s209, 4
      %s211 = smul.addr %s210, 8
      %s212 = scalar_lea.vmem %s0, %s211
      %s213 = smul.u32 8, %s15
      %s214 = smul.u32 8, %s15
      %p215 = scmp.lt.s32.totalorder %s214, 15
      %s216 = scalar_select %p215, %s214, 15
      %s217 = smul.addr %s216, 8
      %s218 = scalar_lea.vmem %s1, %s217
      %s219 = smul.u32 8, %s15
      %s220 = smul.u32 8, %s15
      %p221 = scmp.lt.s32.totalorder %s220, 15
      %s222 = scalar_select %p221, %s220, 15
      %s223 = smul.addr %s222, 8
      %s224 = scalar_lea.vmem %s4, %s223
      %s225 = smul.u32 8, %s15
      %v226 = vld [vmem:[%s212] sm:$0xff]
      %v227 = vld [vmem:[%s212 + $0x8] sm:$0xff]
      %v228 = vld [vmem:[%s212 + $0x10] sm:$0xff]
      %v229 = vld [vmem:[%s212 + $0x18] sm:$0xff]
      %v230 = vld [vmem:[%s212 + $0x20] sm:$0xff]
      %v231 = vld [vmem:[%s212 + $0x28] sm:$0xff]
      %v232 = vld [vmem:[%s212 + $0x30] sm:$0xff]
      %v233 = vld [vmem:[%s212 + $0x38] sm:$0xff]
      %v234 = vld [vmem:[%s212 + $0x40] sm:$0xff]
      %v235 = vld [vmem:[%s212 + $0x48] sm:$0xff]
      %v236 = vld [vmem:[%s212 + $0x50] sm:$0xff]
      %v237 = vld [vmem:[%s212 + $0x58] sm:$0xff]
      %v238 = vld [vmem:[%s212 + $0x60] sm:$0xff]
      %v239 = vld [vmem:[%s212 + $0x68] sm:$0xff]
      %v240 = vld [vmem:[%s212 + $0x70] sm:$0xff]
      %v241 = vld [vmem:[%s212 + $0x78] sm:$0xff]
      %v242 = vld [vmem:[%s212 + $0x80] sm:$0xff]
      %v243 = vld [vmem:[%s212 + $0x88] sm:$0xff]
      %v244 = vld [vmem:[%s212 + $0x90] sm:$0xff]
      %v245 = vld [vmem:[%s212 + $0x98] sm:$0xff]
      %v246 = vld [vmem:[%s212 + $0xa0] sm:$0xff]
      %v247 = vld [vmem:[%s212 + $0xa8] sm:$0xff]
      %v248 = vld [vmem:[%s212 + $0xb0] sm:$0xff]
      %v249 = vld [vmem:[%s212 + $0xb8] sm:$0xff]
      %v250 = vld [vmem:[%s212 + $0xc0] sm:$0xff]
      %v251 = vld [vmem:[%s212 + $0xc8] sm:$0xff]
      %v252 = vld [vmem:[%s212 + $0xd0] sm:$0xff]
      %v253 = vld [vmem:[%s212 + $0xd8] sm:$0xff]
      %v254 = vld [vmem:[%s212 + $0xe0] sm:$0xff]
      %v255 = vld [vmem:[%s212 + $0xe8] sm:$0xff]
      %v256 = vld [vmem:[%s212 + $0xf0] sm:$0xff]
      %v257 = vld [vmem:[%s212 + $0xf8] sm:$0xff]
      %v258 = vmul.f32 %v226, 0.5
      %v259 = vmul.f32 %v230, 0.5
      %v260 = vmul.f32 %v234, 0.5
      %v261 = vmul.f32 %v238, 0.5
      %v262 = vmul.f32 %v242, 0.5
      %v263 = vmul.f32 %v246, 0.5
      %v264 = vmul.f32 %v250, 0.5
      %v265 = vmul.f32 %v254, 0.5
      %v266 = vmul.f32 %v226, 0.70710677
      %v267 = vmul.f32 %v230, 0.70710677
      %v268 = vmul.f32 %v234, 0.70710677
      %v269 = vmul.f32 %v238, 0.70710677
      %v270 = vmul.f32 %v242, 0.70710677
      %v271 = vmul.f32 %v246, 0.70710677
      %v272 = vmul.f32 %v250, 0.70710677
      %v273 = vmul.f32 %v254, 0.70710677
      %vm274 = vcmp.ge.f32.partialorder %v266, 0.0
      %vm275 = vcmp.ge.f32.partialorder %v267, 0.0
      %vm276 = vcmp.ge.f32.partialorder %v268, 0.0
      %vm277 = vcmp.ge.f32.partialorder %v269, 0.0
      %vm278 = vcmp.ge.f32.partialorder %v270, 0.0
      %vm279 = vcmp.ge.f32.partialorder %v271, 0.0
      %vm280 = vcmp.ge.f32.partialorder %v272, 0.0
      %vm281 = vcmp.ge.f32.partialorder %v273, 0.0
      %v282 = vsel %vm274, 1.0, -1.0
      %v283 = vsel %vm275, 1.0, -1.0
      %v284 = vsel %vm276, 1.0, -1.0
      %v285 = vsel %vm277, 1.0, -1.0
      %v286 = vsel %vm278, 1.0, -1.0
      %v287 = vsel %vm279, 1.0, -1.0
      %v288 = vsel %vm280, 1.0, -1.0
      %v289 = vsel %vm281, 1.0, -1.0
      %v290 = vand.u32 2147483647, %v266
      %v291 = vand.u32 2147483647, %v267
      %v292 = vand.u32 2147483647, %v268
      %v293 = vand.u32 2147483647, %v269
      %v294 = vand.u32 2147483647, %v270
      %v295 = vand.u32 2147483647, %v271
      %v296 = vand.u32 2147483647, %v272
      %v297 = vand.u32 2147483647, %v273
      %v298 = vmul.f32 %v290, 0.3275911
      %v299 = vmul.f32 %v291, 0.3275911
      %v300 = vmul.f32 %v292, 0.3275911
      %v301 = vmul.f32 %v293, 0.3275911
      %v302 = vmul.f32 %v294, 0.3275911
      %v303 = vmul.f32 %v295, 0.3275911
      %v304 = vmul.f32 %v296, 0.3275911
      %v305 = vmul.f32 %v297, 0.3275911
      %v306 = vadd.f32 %v298, 1.0
      %v307 = vadd.f32 %v299, 1.0
      %v308 = vadd.f32 %v300, 1.0
      %v309 = vadd.f32 %v301, 1.0
      %v310 = vadd.f32 %v302, 1.0
      %v311 = vadd.f32 %v303, 1.0
      %v312 = vadd.f32 %v304, 1.0
      %v313 = vadd.f32 %v305, 1.0
      %v314 = vrcp.pop %v306
      %v315 = vmul.f32 1.0, %v314
      %v316 = vrcp.pop %v307
      %v317 = vmul.f32 1.0, %v316
      %v318 = vrcp.pop %v308
      %v319 = vmul.f32 1.0, %v318
      %v320 = vrcp.pop %v309
      %v321 = vmul.f32 1.0, %v320
      %v322 = vrcp.pop %v310
      %v323 = vmul.f32 1.0, %v322
      %v324 = vrcp.pop %v311
      %v325 = vmul.f32 1.0, %v324
      %v326 = vrcp.pop %v312
      %v327 = vmul.f32 1.0, %v326
      %v328 = vrcp.pop %v313
      %v329 = vmul.f32 1.0, %v328
      %v330 = vmul.f32 %v315, 1.0614054
      %v331 = vmul.f32 %v317, 1.0614054
      %v332 = vmul.f32 %v319, 1.0614054
      %v333 = vmul.f32 %v321, 1.0614054
      %v334 = vmul.f32 %v323, 1.0614054
      %v335 = vmul.f32 %v325, 1.0614054
      %v336 = vmul.f32 %v327, 1.0614054
      %v337 = vmul.f32 %v329, 1.0614054
      %v338 = vadd.f32 %v330, -1.4531521
      %v339 = vadd.f32 %v331, -1.4531521
      %v340 = vadd.f32 %v332, -1.4531521
      %v341 = vadd.f32 %v333, -1.4531521
      %v342 = vadd.f32 %v334, -1.4531521
      %v343 = vadd.f32 %v335, -1.4531521
      %v344 = vadd.f32 %v336, -1.4531521
      %v345 = vadd.f32 %v337, -1.4531521
      %v346 = vmul.f32 %v338, %v315
      %v347 = vmul.f32 %v339, %v317
      %v348 = vmul.f32 %v340, %v319
      %v349 = vmul.f32 %v341, %v321
      %v350 = vmul.f32 %v342, %v323
      %v351 = vmul.f32 %v343, %v325
      %v352 = vmul.f32 %v344, %v327
      %v353 = vmul.f32 %v345, %v329
      %v354 = vadd.f32 %v346, 1.4214138
      %v355 = vadd.f32 %v347, 1.4214138
      %v356 = vadd.f32 %v348, 1.4214138
      %v357 = vadd.f32 %v349, 1.4214138
      %v358 = vadd.f32 %v350, 1.4214138
      %v359 = vadd.f32 %v351, 1.4214138
      %v360 = vadd.f32 %v352, 1.4214138
      %v361 = vadd.f32 %v353, 1.4214138
      %v362 = vmul.f32 %v354, %v315
      %v363 = vmul.f32 %v355, %v317
      %v364 = vmul.f32 %v356, %v319
      %v365 = vmul.f32 %v357, %v321
      %v366 = vmul.f32 %v358, %v323
      %v367 = vmul.f32 %v359, %v325
      %v368 = vmul.f32 %v360, %v327
      %v369 = vmul.f32 %v361, %v329
      %v370 = vadd.f32 %v362, -0.28449672
      %v371 = vadd.f32 %v363, -0.28449672
      %v372 = vadd.f32 %v364, -0.28449672
      %v373 = vadd.f32 %v365, -0.28449672
      %v374 = vadd.f32 %v366, -0.28449672
      %v375 = vadd.f32 %v367, -0.28449672
      %v376 = vadd.f32 %v368, -0.28449672
      %v377 = vadd.f32 %v369, -0.28449672
      %v378 = vmul.f32 %v370, %v315
      %v379 = vmul.f32 %v371, %v317
      %v380 = vmul.f32 %v372, %v319
      %v381 = vmul.f32 %v373, %v321
      %v382 = vmul.f32 %v374, %v323
      %v383 = vmul.f32 %v375, %v325
      %v384 = vmul.f32 %v376, %v327
      %v385 = vmul.f32 %v377, %v329
      %v386 = vadd.f32 %v378, 0.2548296
      %v387 = vadd.f32 %v379, 0.2548296
      %v388 = vadd.f32 %v380, 0.2548296
      %v389 = vadd.f32 %v381, 0.2548296
      %v390 = vadd.f32 %v382, 0.2548296
      %v391 = vadd.f32 %v383, 0.2548296
      %v392 = vadd.f32 %v384, 0.2548296
      %v393 = vadd.f32 %v385, 0.2548296
      %v394 = vmul.f32 %v386, %v315
      %v395 = vmul.f32 %v387, %v317
      %v396 = vmul.f32 %v388, %v319
      %v397 = vmul.f32 %v389, %v321
      %v398 = vmul.f32 %v390, %v323
      %v399 = vmul.f32 %v391, %v325
      %v400 = vmul.f32 %v392, %v327
      %v401 = vmul.f32 %v393, %v329
      %v402 = vsub.f32 0.0, %v290
      %v403 = vsub.f32 0.0, %v291
      %v404 = vsub.f32 0.0, %v292
      %v405 = vsub.f32 0.0, %v293
      %v406 = vsub.f32 0.0, %v294
      %v407 = vsub.f32 0.0, %v295
      %v408 = vsub.f32 0.0, %v296
      %v409 = vsub.f32 0.0, %v297
      %v410 = vmul.f32 %v402, %v290
      %v411 = vmul.f32 %v403, %v291
      %v412 = vmul.f32 %v404, %v292
      %v413 = vmul.f32 %v405, %v293
      %v414 = vmul.f32 %v406, %v294
      %v415 = vmul.f32 %v407, %v295
      %v416 = vmul.f32 %v408, %v296
      %v417 = vmul.f32 %v409, %v297
      %v418 = vmul.f32 %v410, 1.442695
      %v419 = vpow.pop %v418
      %v420 = vmul.f32 %v411, 1.442695
      %v421 = vpow.pop %v420
      %v422 = vmul.f32 %v412, 1.442695
      %v423 = vpow.pop %v422
      %v424 = vmul.f32 %v413, 1.442695
      %v425 = vpow.pop %v424
      %v426 = vmul.f32 %v414, 1.442695
      %v427 = vpow.pop %v426
      %v428 = vmul.f32 %v415, 1.442695
      %v429 = vpow.pop %v428
      %v430 = vmul.f32 %v416, 1.442695
      %v431 = vpow.pop %v430
      %v432 = vmul.f32 %v417, 1.442695
      %v433 = vpow.pop %v432
      %v434 = vmul.f32 %v394, %v419
      %v435 = vmul.f32 %v395, %v421
      %v436 = vmul.f32 %v396, %v423
      %v437 = vmul.f32 %v397, %v425
      %v438 = vmul.f32 %v398, %v427
      %v439 = vmul.f32 %v399, %v429
      %v440 = vmul.f32 %v400, %v431
      %v441 = vmul.f32 %v401, %v433
      %v442 = vsub.f32 1.0, %v434
      %v443 = vsub.f32 1.0, %v435
      %v444 = vsub.f32 1.0, %v436
      %v445 = vsub.f32 1.0, %v437
      %v446 = vsub.f32 1.0, %v438
      %v447 = vsub.f32 1.0, %v439
      %v448 = vsub.f32 1.0, %v440
      %v449 = vsub.f32 1.0, %v441
      %v450 = vmul.f32 %v282, %v442
      %v451 = vmul.f32 %v283, %v443
      %v452 = vmul.f32 %v284, %v444
      %v453 = vmul.f32 %v285, %v445
      %v454 = vmul.f32 %v286, %v446
      %v455 = vmul.f32 %v287, %v447
      %v456 = vmul.f32 %v288, %v448
      %v457 = vmul.f32 %v289, %v449
      %v458 = vadd.f32 %v450, 1.0
      %v459 = vadd.f32 %v451, 1.0
      %v460 = vadd.f32 %v452, 1.0
      %v461 = vadd.f32 %v453, 1.0
      %v462 = vadd.f32 %v454, 1.0
      %v463 = vadd.f32 %v455, 1.0
      %v464 = vadd.f32 %v456, 1.0
      %v465 = vadd.f32 %v457, 1.0
      %v466 = vmul.f32 %v258, %v458
      %v467 = vmul.f32 %v259, %v459
      %v468 = vmul.f32 %v260, %v460
      %v469 = vmul.f32 %v261, %v461
      %v470 = vmul.f32 %v262, %v462
      %v471 = vmul.f32 %v263, %v463
      %v472 = vmul.f32 %v264, %v464
      %v473 = vmul.f32 %v265, %v465
      %482 = vrot.lane.b32.xlu0 %v226, 64
      %v483 = vpop.permute.xlu0 %482
      %484 = vrot.lane.b32.xlu0 %v230, 64
      %v485 = vpop.permute.xlu0 %484
      %486 = vrot.lane.b32.xlu0 %v234, 64
      %v487 = vpop.permute.xlu0 %486
      %488 = vrot.lane.b32.xlu0 %v238, 64
      %v489 = vpop.permute.xlu0 %488
      %490 = vrot.lane.b32.xlu0 %v242, 64
      %v491 = vpop.permute.xlu0 %490
      %492 = vrot.lane.b32.xlu0 %v246, 64
      %v493 = vpop.permute.xlu0 %492
      %494 = vrot.lane.b32.xlu0 %v250, 64
      %v495 = vpop.permute.xlu0 %494
      %496 = vrot.lane.b32.xlu0 %v254, 64
      %v497 = vpop.permute.xlu0 %496
      %v506 = vmul.f32 %v466, %v483
      %v507 = vmul.f32 %v467, %v485
      %v508 = vmul.f32 %v468, %v487
      %v509 = vmul.f32 %v469, %v489
      %v510 = vmul.f32 %v470, %v491
      %v511 = vmul.f32 %v471, %v493
      %v512 = vmul.f32 %v472, %v495
      %v513 = vmul.f32 %v473, %v497
      %v514 = vmul.f32 %v227, 0.5
      %v515 = vmul.f32 %v231, 0.5
      %v516 = vmul.f32 %v235, 0.5
      %v517 = vmul.f32 %v239, 0.5
      %v518 = vmul.f32 %v243, 0.5
      %v519 = vmul.f32 %v247, 0.5
      %v520 = vmul.f32 %v251, 0.5
      %v521 = vmul.f32 %v255, 0.5
      %v522 = vmul.f32 %v227, 0.70710677
      %v523 = vmul.f32 %v231, 0.70710677
      %v524 = vmul.f32 %v235, 0.70710677
      %v525 = vmul.f32 %v239, 0.70710677
      %v526 = vmul.f32 %v243, 0.70710677
      %v527 = vmul.f32 %v247, 0.70710677
      %v528 = vmul.f32 %v251, 0.70710677
      %v529 = vmul.f32 %v255, 0.70710677
      %vm530 = vcmp.ge.f32.partialorder %v522, 0.0
      %vm531 = vcmp.ge.f32.partialorder %v523, 0.0
      %vm532 = vcmp.ge.f32.partialorder %v524, 0.0
      %vm533 = vcmp.ge.f32.partialorder %v525, 0.0
      %vm534 = vcmp.ge.f32.partialorder %v526, 0.0
      %vm535 = vcmp.ge.f32.partialorder %v527, 0.0
      %vm536 = vcmp.ge.f32.partialorder %v528, 0.0
      %vm537 = vcmp.ge.f32.partialorder %v529, 0.0
      %v538 = vsel %vm530, 1.0, -1.0
      %v539 = vsel %vm531, 1.0, -1.0
      %v540 = vsel %vm532, 1.0, -1.0
      %v541 = vsel %vm533, 1.0, -1.0
      %v542 = vsel %vm534, 1.0, -1.0
      %v543 = vsel %vm535, 1.0, -1.0
      %v544 = vsel %vm536, 1.0, -1.0
      %v545 = vsel %vm537, 1.0, -1.0
      %v546 = vand.u32 2147483647, %v522
      %v547 = vand.u32 2147483647, %v523
      %v548 = vand.u32 2147483647, %v524
      %v549 = vand.u32 2147483647, %v525
      %v550 = vand.u32 2147483647, %v526
      %v551 = vand.u32 2147483647, %v527
      %v552 = vand.u32 2147483647, %v528
      %v553 = vand.u32 2147483647, %v529
      %v554 = vmul.f32 %v546, 0.3275911
      %v555 = vmul.f32 %v547, 0.3275911
      %v556 = vmul.f32 %v548, 0.3275911
      %v557 = vmul.f32 %v549, 0.3275911
      %v558 = vmul.f32 %v550, 0.3275911
      %v559 = vmul.f32 %v551, 0.3275911
      %v560 = vmul.f32 %v552, 0.3275911
      %v561 = vmul.f32 %v553, 0.3275911
      %v562 = vadd.f32 %v554, 1.0
      %v563 = vadd.f32 %v555, 1.0
      %v564 = vadd.f32 %v556, 1.0
      %v565 = vadd.f32 %v557, 1.0
      %v566 = vadd.f32 %v558, 1.0
      %v567 = vadd.f32 %v559, 1.0
      %v568 = vadd.f32 %v560, 1.0
      %v569 = vadd.f32 %v561, 1.0
      %v570 = vrcp.pop %v562
      %v571 = vmul.f32 1.0, %v570
      %v572 = vrcp.pop %v563
      %v573 = vmul.f32 1.0, %v572
      %v574 = vrcp.pop %v564
      %v575 = vmul.f32 1.0, %v574
      %v576 = vrcp.pop %v565
      %v577 = vmul.f32 1.0, %v576
      %v578 = vrcp.pop %v566
      %v579 = vmul.f32 1.0, %v578
      %v580 = vrcp.pop %v567
      %v581 = vmul.f32 1.0, %v580
      %v582 = vrcp.pop %v568
      %v583 = vmul.f32 1.0, %v582
      %v584 = vrcp.pop %v569
      %v585 = vmul.f32 1.0, %v584
      %v586 = vmul.f32 %v571, 1.0614054
      %v587 = vmul.f32 %v573, 1.0614054
      %v588 = vmul.f32 %v575, 1.0614054
      %v589 = vmul.f32 %v577, 1.0614054
      %v590 = vmul.f32 %v579, 1.0614054
      %v591 = vmul.f32 %v581, 1.0614054
      %v592 = vmul.f32 %v583, 1.0614054
      %v593 = vmul.f32 %v585, 1.0614054
      %v594 = vadd.f32 %v586, -1.4531521
      %v595 = vadd.f32 %v587, -1.4531521
      %v596 = vadd.f32 %v588, -1.4531521
      %v597 = vadd.f32 %v589, -1.4531521
      %v598 = vadd.f32 %v590, -1.4531521
      %v599 = vadd.f32 %v591, -1.4531521
      %v600 = vadd.f32 %v592, -1.4531521
      %v601 = vadd.f32 %v593, -1.4531521
      %v602 = vmul.f32 %v594, %v571
      %v603 = vmul.f32 %v595, %v573
      %v604 = vmul.f32 %v596, %v575
      %v605 = vmul.f32 %v597, %v577
      %v606 = vmul.f32 %v598, %v579
      %v607 = vmul.f32 %v599, %v581
      %v608 = vmul.f32 %v600, %v583
      %v609 = vmul.f32 %v601, %v585
      %v610 = vadd.f32 %v602, 1.4214138
      %v611 = vadd.f32 %v603, 1.4214138
      %v612 = vadd.f32 %v604, 1.4214138
      %v613 = vadd.f32 %v605, 1.4214138
      %v614 = vadd.f32 %v606, 1.4214138
      %v615 = vadd.f32 %v607, 1.4214138
      %v616 = vadd.f32 %v608, 1.4214138
      %v617 = vadd.f32 %v609, 1.4214138
      %v618 = vmul.f32 %v610, %v571
      %v619 = vmul.f32 %v611, %v573
      %v620 = vmul.f32 %v612, %v575
      %v621 = vmul.f32 %v613, %v577
      %v622 = vmul.f32 %v614, %v579
      %v623 = vmul.f32 %v615, %v581
      %v624 = vmul.f32 %v616, %v583
      %v625 = vmul.f32 %v617, %v585
      %v626 = vadd.f32 %v618, -0.28449672
      %v627 = vadd.f32 %v619, -0.28449672
      %v628 = vadd.f32 %v620, -0.28449672
      %v629 = vadd.f32 %v621, -0.28449672
      %v630 = vadd.f32 %v622, -0.28449672
      %v631 = vadd.f32 %v623, -0.28449672
      %v632 = vadd.f32 %v624, -0.28449672
      %v633 = vadd.f32 %v625, -0.28449672
      %v634 = vmul.f32 %v626, %v571
      %v635 = vmul.f32 %v627, %v573
      %v636 = vmul.f32 %v628, %v575
      %v637 = vmul.f32 %v629, %v577
      %v638 = vmul.f32 %v630, %v579
      %v639 = vmul.f32 %v631, %v581
      %v640 = vmul.f32 %v632, %v583
      %v641 = vmul.f32 %v633, %v585
      %v642 = vadd.f32 %v634, 0.2548296
      %v643 = vadd.f32 %v635, 0.2548296
      %v644 = vadd.f32 %v636, 0.2548296
      %v645 = vadd.f32 %v637, 0.2548296
      %v646 = vadd.f32 %v638, 0.2548296
      %v647 = vadd.f32 %v639, 0.2548296
      %v648 = vadd.f32 %v640, 0.2548296
      %v649 = vadd.f32 %v641, 0.2548296
      %v650 = vmul.f32 %v642, %v571
      %v651 = vmul.f32 %v643, %v573
      %v652 = vmul.f32 %v644, %v575
      %v653 = vmul.f32 %v645, %v577
      %v654 = vmul.f32 %v646, %v579
      %v655 = vmul.f32 %v647, %v581
      %v656 = vmul.f32 %v648, %v583
      %v657 = vmul.f32 %v649, %v585
      %v658 = vsub.f32 0.0, %v546
      %v659 = vsub.f32 0.0, %v547
      %v660 = vsub.f32 0.0, %v548
      %v661 = vsub.f32 0.0, %v549
      %v662 = vsub.f32 0.0, %v550
      %v663 = vsub.f32 0.0, %v551
      %v664 = vsub.f32 0.0, %v552
      %v665 = vsub.f32 0.0, %v553
      %v666 = vmul.f32 %v658, %v546
      %v667 = vmul.f32 %v659, %v547
      %v668 = vmul.f32 %v660, %v548
      %v669 = vmul.f32 %v661, %v549
      %v670 = vmul.f32 %v662, %v550
      %v671 = vmul.f32 %v663, %v551
      %v672 = vmul.f32 %v664, %v552
      %v673 = vmul.f32 %v665, %v553
      %v674 = vmul.f32 %v666, 1.442695
      %v675 = vpow.pop %v674
      %v676 = vmul.f32 %v667, 1.442695
      %v677 = vpow.pop %v676
      %v678 = vmul.f32 %v668, 1.442695
      %v679 = vpow.pop %v678
      %v680 = vmul.f32 %v669, 1.442695
      %v681 = vpow.pop %v680
      %v682 = vmul.f32 %v670, 1.442695
      %v683 = vpow.pop %v682
      %v684 = vmul.f32 %v671, 1.442695
      %v685 = vpow.pop %v684
      %v686 = vmul.f32 %v672, 1.442695
      %v687 = vpow.pop %v686
      %v688 = vmul.f32 %v673, 1.442695
      %v689 = vpow.pop %v688
      %v690 = vmul.f32 %v650, %v675
      %v691 = vmul.f32 %v651, %v677
      %v692 = vmul.f32 %v652, %v679
      %v693 = vmul.f32 %v653, %v681
      %v694 = vmul.f32 %v654, %v683
      %v695 = vmul.f32 %v655, %v685
      %v696 = vmul.f32 %v656, %v687
      %v697 = vmul.f32 %v657, %v689
      %v698 = vsub.f32 1.0, %v690
      %v699 = vsub.f32 1.0, %v691
      %v700 = vsub.f32 1.0, %v692
      %v701 = vsub.f32 1.0, %v693
      %v702 = vsub.f32 1.0, %v694
      %v703 = vsub.f32 1.0, %v695
      %v704 = vsub.f32 1.0, %v696
      %v705 = vsub.f32 1.0, %v697
      %v706 = vmul.f32 %v538, %v698
      %v707 = vmul.f32 %v539, %v699
      %v708 = vmul.f32 %v540, %v700
      %v709 = vmul.f32 %v541, %v701
      %v710 = vmul.f32 %v542, %v702
      %v711 = vmul.f32 %v543, %v703
      %v712 = vmul.f32 %v544, %v704
      %v713 = vmul.f32 %v545, %v705
      %v714 = vadd.f32 %v706, 1.0
      %v715 = vadd.f32 %v707, 1.0
      %v716 = vadd.f32 %v708, 1.0
      %v717 = vadd.f32 %v709, 1.0
      %v718 = vadd.f32 %v710, 1.0
      %v719 = vadd.f32 %v711, 1.0
      %v720 = vadd.f32 %v712, 1.0
      %v721 = vadd.f32 %v713, 1.0
      %v722 = vmul.f32 %v514, %v714
      %v723 = vmul.f32 %v515, %v715
      %v724 = vmul.f32 %v516, %v716
      %v725 = vmul.f32 %v517, %v717
      %v726 = vmul.f32 %v518, %v718
      %v727 = vmul.f32 %v519, %v719
      %v728 = vmul.f32 %v520, %v720
      %v729 = vmul.f32 %v521, %v721
      %738 = vrot.lane.b32.xlu0 %v227, 64
      %v739 = vpop.permute.xlu0 %738
      %740 = vrot.lane.b32.xlu0 %v231, 64
      %v741 = vpop.permute.xlu0 %740
      %742 = vrot.lane.b32.xlu0 %v235, 64
      %v743 = vpop.permute.xlu0 %742
      %744 = vrot.lane.b32.xlu0 %v239, 64
      %v745 = vpop.permute.xlu0 %744
      %746 = vrot.lane.b32.xlu0 %v243, 64
      %v747 = vpop.permute.xlu0 %746
      %748 = vrot.lane.b32.xlu0 %v247, 64
      %v749 = vpop.permute.xlu0 %748
      %750 = vrot.lane.b32.xlu0 %v251, 64
      %v751 = vpop.permute.xlu0 %750
      %752 = vrot.lane.b32.xlu0 %v255, 64
      %v753 = vpop.permute.xlu0 %752
      %v762 = vmul.f32 %v722, %v739
      %v763 = vmul.f32 %v723, %v741
      %v764 = vmul.f32 %v724, %v743
      %v765 = vmul.f32 %v725, %v745
      %v766 = vmul.f32 %v726, %v747
      %v767 = vmul.f32 %v727, %v749
      %v768 = vmul.f32 %v728, %v751
      %v769 = vmul.f32 %v729, %v753
      %v770 = vmul.f32 %v228, 0.5
      %v771 = vmul.f32 %v232, 0.5
      %v772 = vmul.f32 %v236, 0.5
      %v773 = vmul.f32 %v240, 0.5
      %v774 = vmul.f32 %v244, 0.5
      %v775 = vmul.f32 %v248, 0.5
      %v776 = vmul.f32 %v252, 0.5
      %v777 = vmul.f32 %v256, 0.5
      %v778 = vmul.f32 %v228, 0.70710677
      %v779 = vmul.f32 %v232, 0.70710677
      %v780 = vmul.f32 %v236, 0.70710677
      %v781 = vmul.f32 %v240, 0.70710677
      %v782 = vmul.f32 %v244, 0.70710677
      %v783 = vmul.f32 %v248, 0.70710677
      %v784 = vmul.f32 %v252, 0.70710677
      %v785 = vmul.f32 %v256, 0.70710677
      %vm786 = vcmp.ge.f32.partialorder %v778, 0.0
      %vm787 = vcmp.ge.f32.partialorder %v779, 0.0
      %vm788 = vcmp.ge.f32.partialorder %v780, 0.0
      %vm789 = vcmp.ge.f32.partialorder %v781, 0.0
      %vm790 = vcmp.ge.f32.partialorder %v782, 0.0
      %vm791 = vcmp.ge.f32.partialorder %v783, 0.0
      %vm792 = vcmp.ge.f32.partialorder %v784, 0.0
      %vm793 = vcmp.ge.f32.partialorder %v785, 0.0
      %v794 = vsel %vm786, 1.0, -1.0
      %v795 = vsel %vm787, 1.0, -1.0
      %v796 = vsel %vm788, 1.0, -1.0
      %v797 = vsel %vm789, 1.0, -1.0
      %v798 = vsel %vm790, 1.0, -1.0
      %v799 = vsel %vm791, 1.0, -1.0
      %v800 = vsel %vm792, 1.0, -1.0
      %v801 = vsel %vm793, 1.0, -1.0
      %v802 = vand.u32 2147483647, %v778
      %v803 = vand.u32 2147483647, %v779
      %v804 = vand.u32 2147483647, %v780
      %v805 = vand.u32 2147483647, %v781
      %v806 = vand.u32 2147483647, %v782
      %v807 = vand.u32 2147483647, %v783
      %v808 = vand.u32 2147483647, %v784
      %v809 = vand.u32 2147483647, %v785
      %v810 = vmul.f32 %v802, 0.3275911
      %v811 = vmul.f32 %v803, 0.3275911
      %v812 = vmul.f32 %v804, 0.3275911
      %v813 = vmul.f32 %v805, 0.3275911
      %v814 = vmul.f32 %v806, 0.3275911
      %v815 = vmul.f32 %v807, 0.3275911
      %v816 = vmul.f32 %v808, 0.3275911
      %v817 = vmul.f32 %v809, 0.3275911
      %v818 = vadd.f32 %v810, 1.0
      %v819 = vadd.f32 %v811, 1.0
      %v820 = vadd.f32 %v812, 1.0
      %v821 = vadd.f32 %v813, 1.0
      %v822 = vadd.f32 %v814, 1.0
      %v823 = vadd.f32 %v815, 1.0
      %v824 = vadd.f32 %v816, 1.0
      %v825 = vadd.f32 %v817, 1.0
      %v826 = vrcp.pop %v818
      %v827 = vmul.f32 1.0, %v826
      %v828 = vrcp.pop %v819
      %v829 = vmul.f32 1.0, %v828
      %v830 = vrcp.pop %v820
      %v831 = vmul.f32 1.0, %v830
      %v832 = vrcp.pop %v821
      %v833 = vmul.f32 1.0, %v832
      %v834 = vrcp.pop %v822
      %v835 = vmul.f32 1.0, %v834
      %v836 = vrcp.pop %v823
      %v837 = vmul.f32 1.0, %v836
      %v838 = vrcp.pop %v824
      %v839 = vmul.f32 1.0, %v838
      %v840 = vrcp.pop %v825
      %v841 = vmul.f32 1.0, %v840
      %v842 = vmul.f32 %v827, 1.0614054
      %v843 = vmul.f32 %v829, 1.0614054
      %v844 = vmul.f32 %v831, 1.0614054
      %v845 = vmul.f32 %v833, 1.0614054
      %v846 = vmul.f32 %v835, 1.0614054
      %v847 = vmul.f32 %v837, 1.0614054
      %v848 = vmul.f32 %v839, 1.0614054
      %v849 = vmul.f32 %v841, 1.0614054
      %v850 = vadd.f32 %v842, -1.4531521
      %v851 = vadd.f32 %v843, -1.4531521
      %v852 = vadd.f32 %v844, -1.4531521
      %v853 = vadd.f32 %v845, -1.4531521
      %v854 = vadd.f32 %v846, -1.4531521
      %v855 = vadd.f32 %v847, -1.4531521
      %v856 = vadd.f32 %v848, -1.4531521
      %v857 = vadd.f32 %v849, -1.4531521
      %v858 = vmul.f32 %v850, %v827
      %v859 = vmul.f32 %v851, %v829
      %v860 = vmul.f32 %v852, %v831
      %v861 = vmul.f32 %v853, %v833
      %v862 = vmul.f32 %v854, %v835
      %v863 = vmul.f32 %v855, %v837
      %v864 = vmul.f32 %v856, %v839
      %v865 = vmul.f32 %v857, %v841
      %v866 = vadd.f32 %v858, 1.4214138
      %v867 = vadd.f32 %v859, 1.4214138
      %v868 = vadd.f32 %v860, 1.4214138
      %v869 = vadd.f32 %v861, 1.4214138
      %v870 = vadd.f32 %v862, 1.4214138
      %v871 = vadd.f32 %v863, 1.4214138
      %v872 = vadd.f32 %v864, 1.4214138
      %v873 = vadd.f32 %v865, 1.4214138
      %v874 = vmul.f32 %v866, %v827
      %v875 = vmul.f32 %v867, %v829
      %v876 = vmul.f32 %v868, %v831
      %v877 = vmul.f32 %v869, %v833
      %v878 = vmul.f32 %v870, %v835
      %v879 = vmul.f32 %v871, %v837
      %v880 = vmul.f32 %v872, %v839
      %v881 = vmul.f32 %v873, %v841
      %v882 = vadd.f32 %v874, -0.28449672
      %v883 = vadd.f32 %v875, -0.28449672
      %v884 = vadd.f32 %v876, -0.28449672
      %v885 = vadd.f32 %v877, -0.28449672
      %v886 = vadd.f32 %v878, -0.28449672
      %v887 = vadd.f32 %v879, -0.28449672
      %v888 = vadd.f32 %v880, -0.28449672
      %v889 = vadd.f32 %v881, -0.28449672
      %v890 = vmul.f32 %v882, %v827
      %v891 = vmul.f32 %v883, %v829
      %v892 = vmul.f32 %v884, %v831
      %v893 = vmul.f32 %v885, %v833
      %v894 = vmul.f32 %v886, %v835
      %v895 = vmul.f32 %v887, %v837
      %v896 = vmul.f32 %v888, %v839
      %v897 = vmul.f32 %v889, %v841
      %v898 = vadd.f32 %v890, 0.2548296
      %v899 = vadd.f32 %v891, 0.2548296
      %v900 = vadd.f32 %v892, 0.2548296
      %v901 = vadd.f32 %v893, 0.2548296
      %v902 = vadd.f32 %v894, 0.2548296
      %v903 = vadd.f32 %v895, 0.2548296
      %v904 = vadd.f32 %v896, 0.2548296
      %v905 = vadd.f32 %v897, 0.2548296
      %v906 = vmul.f32 %v898, %v827
      %v907 = vmul.f32 %v899, %v829
      %v908 = vmul.f32 %v900, %v831
      %v909 = vmul.f32 %v901, %v833
      %v910 = vmul.f32 %v902, %v835
      %v911 = vmul.f32 %v903, %v837
      %v912 = vmul.f32 %v904, %v839
      %v913 = vmul.f32 %v905, %v841
      %v914 = vsub.f32 0.0, %v802
      %v915 = vsub.f32 0.0, %v803
      %v916 = vsub.f32 0.0, %v804
      %v917 = vsub.f32 0.0, %v805
      %v918 = vsub.f32 0.0, %v806
      %v919 = vsub.f32 0.0, %v807
      %v920 = vsub.f32 0.0, %v808
      %v921 = vsub.f32 0.0, %v809
      %v922 = vmul.f32 %v914, %v802
      %v923 = vmul.f32 %v915, %v803
      %v924 = vmul.f32 %v916, %v804
      %v925 = vmul.f32 %v917, %v805
      %v926 = vmul.f32 %v918, %v806
      %v927 = vmul.f32 %v919, %v807
      %v928 = vmul.f32 %v920, %v808
      %v929 = vmul.f32 %v921, %v809
      %v930 = vmul.f32 %v922, 1.442695
      %v931 = vpow.pop %v930
      %v932 = vmul.f32 %v923, 1.442695
      %v933 = vpow.pop %v932
      %v934 = vmul.f32 %v924, 1.442695
      %v935 = vpow.pop %v934
      %v936 = vmul.f32 %v925, 1.442695
      %v937 = vpow.pop %v936
      %v938 = vmul.f32 %v926, 1.442695
      %v939 = vpow.pop %v938
      %v940 = vmul.f32 %v927, 1.442695
      %v941 = vpow.pop %v940
      %v942 = vmul.f32 %v928, 1.442695
      %v943 = vpow.pop %v942
      %v944 = vmul.f32 %v929, 1.442695
      %v945 = vpow.pop %v944
      %v946 = vmul.f32 %v906, %v931
      %v947 = vmul.f32 %v907, %v933
      %v948 = vmul.f32 %v908, %v935
      %v949 = vmul.f32 %v909, %v937
      %v950 = vmul.f32 %v910, %v939
      %v951 = vmul.f32 %v911, %v941
      %v952 = vmul.f32 %v912, %v943
      %v953 = vmul.f32 %v913, %v945
      %v954 = vsub.f32 1.0, %v946
      %v955 = vsub.f32 1.0, %v947
      %v956 = vsub.f32 1.0, %v948
      %v957 = vsub.f32 1.0, %v949
      %v958 = vsub.f32 1.0, %v950
      %v959 = vsub.f32 1.0, %v951
      %v960 = vsub.f32 1.0, %v952
      %v961 = vsub.f32 1.0, %v953
      %v962 = vmul.f32 %v794, %v954
      %v963 = vmul.f32 %v795, %v955
      %v964 = vmul.f32 %v796, %v956
      %v965 = vmul.f32 %v797, %v957
      %v966 = vmul.f32 %v798, %v958
      %v967 = vmul.f32 %v799, %v959
      %v968 = vmul.f32 %v800, %v960
      %v969 = vmul.f32 %v801, %v961
      %v970 = vadd.f32 %v962, 1.0
      %v971 = vadd.f32 %v963, 1.0
      %v972 = vadd.f32 %v964, 1.0
      %v973 = vadd.f32 %v965, 1.0
      %v974 = vadd.f32 %v966, 1.0
      %v975 = vadd.f32 %v967, 1.0
      %v976 = vadd.f32 %v968, 1.0
      %v977 = vadd.f32 %v969, 1.0
      %v978 = vmul.f32 %v770, %v970
      %v979 = vmul.f32 %v771, %v971
      %v980 = vmul.f32 %v772, %v972
      %v981 = vmul.f32 %v773, %v973
      %v982 = vmul.f32 %v774, %v974
      %v983 = vmul.f32 %v775, %v975
      %v984 = vmul.f32 %v776, %v976
      %v985 = vmul.f32 %v777, %v977
      %994 = vrot.lane.b32.xlu0 %v228, 64
      %v995 = vpop.permute.xlu0 %994
      %996 = vrot.lane.b32.xlu0 %v232, 64
      %v997 = vpop.permute.xlu0 %996
      %998 = vrot.lane.b32.xlu0 %v236, 64
      %v999 = vpop.permute.xlu0 %998
      %1000 = vrot.lane.b32.xlu0 %v240, 64
      %v1001 = vpop.permute.xlu0 %1000
      %1002 = vrot.lane.b32.xlu0 %v244, 64
      %v1003 = vpop.permute.xlu0 %1002
      %1004 = vrot.lane.b32.xlu0 %v248, 64
      %v1005 = vpop.permute.xlu0 %1004
      %1006 = vrot.lane.b32.xlu0 %v252, 64
      %v1007 = vpop.permute.xlu0 %1006
      %1008 = vrot.lane.b32.xlu0 %v256, 64
      %v1009 = vpop.permute.xlu0 %1008
      %v1018 = vmul.f32 %v978, %v995
      %v1019 = vmul.f32 %v979, %v997
      %v1020 = vmul.f32 %v980, %v999
      %v1021 = vmul.f32 %v981, %v1001
      %v1022 = vmul.f32 %v982, %v1003
      %v1023 = vmul.f32 %v983, %v1005
      %v1024 = vmul.f32 %v984, %v1007
      %v1025 = vmul.f32 %v985, %v1009
      %v1026 = vmul.f32 %v229, 0.5
      %v1027 = vmul.f32 %v233, 0.5
      %v1028 = vmul.f32 %v237, 0.5
      %v1029 = vmul.f32 %v241, 0.5
      %v1030 = vmul.f32 %v245, 0.5
      %v1031 = vmul.f32 %v249, 0.5
      %v1032 = vmul.f32 %v253, 0.5
      %v1033 = vmul.f32 %v257, 0.5
      %v1034 = vmul.f32 %v229, 0.70710677
      %v1035 = vmul.f32 %v233, 0.70710677
      %v1036 = vmul.f32 %v237, 0.70710677
      %v1037 = vmul.f32 %v241, 0.70710677
      %v1038 = vmul.f32 %v245, 0.70710677
      %v1039 = vmul.f32 %v249, 0.70710677
      %v1040 = vmul.f32 %v253, 0.70710677
      %v1041 = vmul.f32 %v257, 0.70710677
      %vm1042 = vcmp.ge.f32.partialorder %v1034, 0.0
      %vm1043 = vcmp.ge.f32.partialorder %v1035, 0.0
      %vm1044 = vcmp.ge.f32.partialorder %v1036, 0.0
      %vm1045 = vcmp.ge.f32.partialorder %v1037, 0.0
      %vm1046 = vcmp.ge.f32.partialorder %v1038, 0.0
      %vm1047 = vcmp.ge.f32.partialorder %v1039, 0.0
      %vm1048 = vcmp.ge.f32.partialorder %v1040, 0.0
      %vm1049 = vcmp.ge.f32.partialorder %v1041, 0.0
      %v1050 = vsel %vm1042, 1.0, -1.0
      %v1051 = vsel %vm1043, 1.0, -1.0
      %v1052 = vsel %vm1044, 1.0, -1.0
      %v1053 = vsel %vm1045, 1.0, -1.0
      %v1054 = vsel %vm1046, 1.0, -1.0
      %v1055 = vsel %vm1047, 1.0, -1.0
      %v1056 = vsel %vm1048, 1.0, -1.0
      %v1057 = vsel %vm1049, 1.0, -1.0
      %v1058 = vand.u32 2147483647, %v1034
      %v1059 = vand.u32 2147483647, %v1035
      %v1060 = vand.u32 2147483647, %v1036
      %v1061 = vand.u32 2147483647, %v1037
      %v1062 = vand.u32 2147483647, %v1038
      %v1063 = vand.u32 2147483647, %v1039
      %v1064 = vand.u32 2147483647, %v1040
      %v1065 = vand.u32 2147483647, %v1041
      %v1066 = vmul.f32 %v1058, 0.3275911
      %v1067 = vmul.f32 %v1059, 0.3275911
      %v1068 = vmul.f32 %v1060, 0.3275911
      %v1069 = vmul.f32 %v1061, 0.3275911
      %v1070 = vmul.f32 %v1062, 0.3275911
      %v1071 = vmul.f32 %v1063, 0.3275911
      %v1072 = vmul.f32 %v1064, 0.3275911
      %v1073 = vmul.f32 %v1065, 0.3275911
      %v1074 = vadd.f32 %v1066, 1.0
      %v1075 = vadd.f32 %v1067, 1.0
      %v1076 = vadd.f32 %v1068, 1.0
      %v1077 = vadd.f32 %v1069, 1.0
      %v1078 = vadd.f32 %v1070, 1.0
      %v1079 = vadd.f32 %v1071, 1.0
      %v1080 = vadd.f32 %v1072, 1.0
      %v1081 = vadd.f32 %v1073, 1.0
      %v1082 = vrcp.pop %v1074
      %v1083 = vmul.f32 1.0, %v1082
      %v1084 = vrcp.pop %v1075
      %v1085 = vmul.f32 1.0, %v1084
      %v1086 = vrcp.pop %v1076
      %v1087 = vmul.f32 1.0, %v1086
      %v1088 = vrcp.pop %v1077
      %v1089 = vmul.f32 1.0, %v1088
      %v1090 = vrcp.pop %v1078
      %v1091 = vmul.f32 1.0, %v1090
      %v1092 = vrcp.pop %v1079
      %v1093 = vmul.f32 1.0, %v1092
      %v1094 = vrcp.pop %v1080
      %v1095 = vmul.f32 1.0, %v1094
      %v1096 = vrcp.pop %v1081
      %v1097 = vmul.f32 1.0, %v1096
      %v1098 = vmul.f32 %v1083, 1.0614054
      %v1099 = vmul.f32 %v1085, 1.0614054
      %v1100 = vmul.f32 %v1087, 1.0614054
      %v1101 = vmul.f32 %v1089, 1.0614054
      %v1102 = vmul.f32 %v1091, 1.0614054
      %v1103 = vmul.f32 %v1093, 1.0614054
      %v1104 = vmul.f32 %v1095, 1.0614054
      %v1105 = vmul.f32 %v1097, 1.0614054
      %v1106 = vadd.f32 %v1098, -1.4531521
      %v1107 = vadd.f32 %v1099, -1.4531521
      %v1108 = vadd.f32 %v1100, -1.4531521
      %v1109 = vadd.f32 %v1101, -1.4531521
      %v1110 = vadd.f32 %v1102, -1.4531521
      %v1111 = vadd.f32 %v1103, -1.4531521
      %v1112 = vadd.f32 %v1104, -1.4531521
      %v1113 = vadd.f32 %v1105, -1.4531521
      %v1114 = vmul.f32 %v1106, %v1083
      %v1115 = vmul.f32 %v1107, %v1085
      %v1116 = vmul.f32 %v1108, %v1087
      %v1117 = vmul.f32 %v1109, %v1089
      %v1118 = vmul.f32 %v1110, %v1091
      %v1119 = vmul.f32 %v1111, %v1093
      %v1120 = vmul.f32 %v1112, %v1095
      %v1121 = vmul.f32 %v1113, %v1097
      %v1122 = vadd.f32 %v1114, 1.4214138
      %v1123 = vadd.f32 %v1115, 1.4214138
      %v1124 = vadd.f32 %v1116, 1.4214138
      %v1125 = vadd.f32 %v1117, 1.4214138
      %v1126 = vadd.f32 %v1118, 1.4214138
      %v1127 = vadd.f32 %v1119, 1.4214138
      %v1128 = vadd.f32 %v1120, 1.4214138
      %v1129 = vadd.f32 %v1121, 1.4214138
      %v1130 = vmul.f32 %v1122, %v1083
      %v1131 = vmul.f32 %v1123, %v1085
      %v1132 = vmul.f32 %v1124, %v1087
      %v1133 = vmul.f32 %v1125, %v1089
      %v1134 = vmul.f32 %v1126, %v1091
      %v1135 = vmul.f32 %v1127, %v1093
      %v1136 = vmul.f32 %v1128, %v1095
      %v1137 = vmul.f32 %v1129, %v1097
      %v1138 = vadd.f32 %v1130, -0.28449672
      %v1139 = vadd.f32 %v1131, -0.28449672
      %v1140 = vadd.f32 %v1132, -0.28449672
      %v1141 = vadd.f32 %v1133, -0.28449672
      %v1142 = vadd.f32 %v1134, -0.28449672
      %v1143 = vadd.f32 %v1135, -0.28449672
      %v1144 = vadd.f32 %v1136, -0.28449672
      %v1145 = vadd.f32 %v1137, -0.28449672
      %v1146 = vmul.f32 %v1138, %v1083
      %v1147 = vmul.f32 %v1139, %v1085
      %v1148 = vmul.f32 %v1140, %v1087
      %v1149 = vmul.f32 %v1141, %v1089
      %v1150 = vmul.f32 %v1142, %v1091
      %v1151 = vmul.f32 %v1143, %v1093
      %v1152 = vmul.f32 %v1144, %v1095
      %v1153 = vmul.f32 %v1145, %v1097
      %v1154 = vadd.f32 %v1146, 0.2548296
      %v1155 = vadd.f32 %v1147, 0.2548296
      %v1156 = vadd.f32 %v1148, 0.2548296
      %v1157 = vadd.f32 %v1149, 0.2548296
      %v1158 = vadd.f32 %v1150, 0.2548296
      %v1159 = vadd.f32 %v1151, 0.2548296
      %v1160 = vadd.f32 %v1152, 0.2548296
      %v1161 = vadd.f32 %v1153, 0.2548296
      %v1162 = vmul.f32 %v1154, %v1083
      %v1163 = vmul.f32 %v1155, %v1085
      %v1164 = vmul.f32 %v1156, %v1087
      %v1165 = vmul.f32 %v1157, %v1089
      %v1166 = vmul.f32 %v1158, %v1091
      %v1167 = vmul.f32 %v1159, %v1093
      %v1168 = vmul.f32 %v1160, %v1095
      %v1169 = vmul.f32 %v1161, %v1097
      %v1170 = vsub.f32 0.0, %v1058
      %v1171 = vsub.f32 0.0, %v1059
      %v1172 = vsub.f32 0.0, %v1060
      %v1173 = vsub.f32 0.0, %v1061
      %v1174 = vsub.f32 0.0, %v1062
      %v1175 = vsub.f32 0.0, %v1063
      %v1176 = vsub.f32 0.0, %v1064
      %v1177 = vsub.f32 0.0, %v1065
      %v1178 = vmul.f32 %v1170, %v1058
      %v1179 = vmul.f32 %v1171, %v1059
      %v1180 = vmul.f32 %v1172, %v1060
      %v1181 = vmul.f32 %v1173, %v1061
      %v1182 = vmul.f32 %v1174, %v1062
      %v1183 = vmul.f32 %v1175, %v1063
      %v1184 = vmul.f32 %v1176, %v1064
      %v1185 = vmul.f32 %v1177, %v1065
      %v1186 = vmul.f32 %v1178, 1.442695
      %v1187 = vpow.pop %v1186
      %v1188 = vmul.f32 %v1179, 1.442695
      %v1189 = vpow.pop %v1188
      %v1190 = vmul.f32 %v1180, 1.442695
      %v1191 = vpow.pop %v1190
      %v1192 = vmul.f32 %v1181, 1.442695
      %v1193 = vpow.pop %v1192
      %v1194 = vmul.f32 %v1182, 1.442695
      %v1195 = vpow.pop %v1194
      %v1196 = vmul.f32 %v1183, 1.442695
      %v1197 = vpow.pop %v1196
      %v1198 = vmul.f32 %v1184, 1.442695
      %v1199 = vpow.pop %v1198
      %v1200 = vmul.f32 %v1185, 1.442695
      %v1201 = vpow.pop %v1200
      %v1202 = vmul.f32 %v1162, %v1187
      %v1203 = vmul.f32 %v1163, %v1189
      %v1204 = vmul.f32 %v1164, %v1191
      %v1205 = vmul.f32 %v1165, %v1193
      %v1206 = vmul.f32 %v1166, %v1195
      %v1207 = vmul.f32 %v1167, %v1197
      %v1208 = vmul.f32 %v1168, %v1199
      %v1209 = vmul.f32 %v1169, %v1201
      %v1210 = vsub.f32 1.0, %v1202
      %v1211 = vsub.f32 1.0, %v1203
      %v1212 = vsub.f32 1.0, %v1204
      %v1213 = vsub.f32 1.0, %v1205
      %v1214 = vsub.f32 1.0, %v1206
      %v1215 = vsub.f32 1.0, %v1207
      %v1216 = vsub.f32 1.0, %v1208
      %v1217 = vsub.f32 1.0, %v1209
      %v1218 = vmul.f32 %v1050, %v1210
      %v1219 = vmul.f32 %v1051, %v1211
      %v1220 = vmul.f32 %v1052, %v1212
      %v1221 = vmul.f32 %v1053, %v1213
      %v1222 = vmul.f32 %v1054, %v1214
      %v1223 = vmul.f32 %v1055, %v1215
      %v1224 = vmul.f32 %v1056, %v1216
      %v1225 = vmul.f32 %v1057, %v1217
      %v1226 = vadd.f32 %v1218, 1.0
      %v1227 = vadd.f32 %v1219, 1.0
      %v1228 = vadd.f32 %v1220, 1.0
      %v1229 = vadd.f32 %v1221, 1.0
      %v1230 = vadd.f32 %v1222, 1.0
      %v1231 = vadd.f32 %v1223, 1.0
      %v1232 = vadd.f32 %v1224, 1.0
      %v1233 = vadd.f32 %v1225, 1.0
      %v1234 = vmul.f32 %v1026, %v1226
      %v1235 = vmul.f32 %v1027, %v1227
      %v1236 = vmul.f32 %v1028, %v1228
      %v1237 = vmul.f32 %v1029, %v1229
      %v1238 = vmul.f32 %v1030, %v1230
      %v1239 = vmul.f32 %v1031, %v1231
      %v1240 = vmul.f32 %v1032, %v1232
      %v1241 = vmul.f32 %v1033, %v1233
      %1250 = vrot.lane.b32.xlu0 %v229, 64
      %v1251 = vpop.permute.xlu0 %1250
      %1252 = vrot.lane.b32.xlu0 %v233, 64
      %v1253 = vpop.permute.xlu0 %1252
      %1254 = vrot.lane.b32.xlu0 %v237, 64
      %v1255 = vpop.permute.xlu0 %1254
      %1256 = vrot.lane.b32.xlu0 %v241, 64
      %v1257 = vpop.permute.xlu0 %1256
      %1258 = vrot.lane.b32.xlu0 %v245, 64
      %v1259 = vpop.permute.xlu0 %1258
      %1260 = vrot.lane.b32.xlu0 %v249, 64
      %v1261 = vpop.permute.xlu0 %1260
      %1262 = vrot.lane.b32.xlu0 %v253, 64
      %v1263 = vpop.permute.xlu0 %1262
      %1264 = vrot.lane.b32.xlu0 %v257, 64
      %v1265 = vpop.permute.xlu0 %1264
      %v1274 = vmul.f32 %v1234, %v1251
      %v1275 = vmul.f32 %v1235, %v1253
      %v1276 = vmul.f32 %v1236, %v1255
      %v1277 = vmul.f32 %v1237, %v1257
      %v1278 = vmul.f32 %v1238, %v1259
      %v1279 = vmul.f32 %v1239, %v1261
      %v1280 = vmul.f32 %v1240, %v1263
      %v1281 = vmul.f32 %v1241, %v1265
      %1290 = vrot.lane.b32.xlu0 %v762, 64
      %v1291 = vpop.permute.xlu0 %1290
      %1292 = vrot.lane.b32.xlu0 %v763, 64
      %v1293 = vpop.permute.xlu0 %1292
      %1294 = vrot.lane.b32.xlu0 %v764, 64
      %v1295 = vpop.permute.xlu0 %1294
      %1296 = vrot.lane.b32.xlu0 %v765, 64
      %v1297 = vpop.permute.xlu0 %1296
      %1298 = vrot.lane.b32.xlu0 %v766, 64
      %v1299 = vpop.permute.xlu0 %1298
      %1300 = vrot.lane.b32.xlu0 %v767, 64
      %v1301 = vpop.permute.xlu0 %1300
      %1302 = vrot.lane.b32.xlu0 %v768, 64
      %v1303 = vpop.permute.xlu0 %1302
      %1304 = vrot.lane.b32.xlu0 %v769, 64
      %v1305 = vpop.permute.xlu0 %1304
      %1322 = vrot.lane.b32.xlu0 %v1274, 64
      %v1323 = vpop.permute.xlu0 %1322
      %1324 = vrot.lane.b32.xlu0 %v1275, 64
      %v1325 = vpop.permute.xlu0 %1324
      %1326 = vrot.lane.b32.xlu0 %v1276, 64
      %v1327 = vpop.permute.xlu0 %1326
      %1328 = vrot.lane.b32.xlu0 %v1277, 64
      %v1329 = vpop.permute.xlu0 %1328
      %1330 = vrot.lane.b32.xlu0 %v1278, 64
      %v1331 = vpop.permute.xlu0 %1330
      %1332 = vrot.lane.b32.xlu0 %v1279, 64
      %v1333 = vpop.permute.xlu0 %1332
      %1334 = vrot.lane.b32.xlu0 %v1280, 64
      %v1335 = vpop.permute.xlu0 %1334
      %1336 = vrot.lane.b32.xlu0 %v1281, 64
      %v1337 = vpop.permute.xlu0 %1336
      %vm1346 = vcmask 523264
      %v1347 = vsel %vm1346, %v506, %v1291
      %v1348 = vsel %vm1346, %v507, %v1293
      %v1349 = vsel %vm1346, %v508, %v1295
      %v1350 = vsel %vm1346, %v509, %v1297
      %v1351 = vsel %vm1346, %v510, %v1299
      %v1352 = vsel %vm1346, %v511, %v1301
      %v1353 = vsel %vm1346, %v512, %v1303
      %v1354 = vsel %vm1346, %v513, %v1305
      %v1355 = vsel %vm1346, %v1018, %v1323
      %v1356 = vsel %vm1346, %v1019, %v1325
      %v1357 = vsel %vm1346, %v1020, %v1327
      %v1358 = vsel %vm1346, %v1021, %v1329
      %v1359 = vsel %vm1346, %v1022, %v1331
      %v1360 = vsel %vm1346, %v1023, %v1333
      %v1361 = vsel %vm1346, %v1024, %v1335
      %v1362 = vsel %vm1346, %v1025, %v1337
      %v1363 = vld [vmem:[%s2] sm:$0xff]
      %v1364 = vld [vmem:[%s2 + $0x8] sm:$0xff]
      %v1365 = vld [vmem:[%s2 + $0x10] sm:$0xff]
      %v1366 = vld [vmem:[%s2 + $0x18] sm:$0xff]
      %v1367 = vld [vmem:[%s2 + $0x20] sm:$0xff]
      %v1368 = vld [vmem:[%s2 + $0x28] sm:$0xff]
      %v1369 = vld [vmem:[%s2 + $0x30] sm:$0xff]
      %v1370 = vld [vmem:[%s2 + $0x38] sm:$0xff]
      %v1371 = vld [vmem:[%s2 + $0x40] sm:$0xff]
      %v1372 = vld [vmem:[%s2 + $0x48] sm:$0xff]
      %v1373 = vld [vmem:[%s2 + $0x50] sm:$0xff]
      %v1374 = vld [vmem:[%s2 + $0x58] sm:$0xff]
      %v1375 = vld [vmem:[%s2 + $0x60] sm:$0xff]
      %v1376 = vld [vmem:[%s2 + $0x68] sm:$0xff]
      %v1377 = vld [vmem:[%s2 + $0x70] sm:$0xff]
      %v1378 = vld [vmem:[%s2 + $0x78] sm:$0xff]
      %v1379 = vld [vmem:[%s2 + $0x80] sm:$0xff]
      %v1380 = vld [vmem:[%s2 + $0x88] sm:$0xff]
      %v1381 = vld [vmem:[%s2 + $0x90] sm:$0xff]
      %v1382 = vld [vmem:[%s2 + $0x98] sm:$0xff]
      %v1383 = vld [vmem:[%s2 + $0xa0] sm:$0xff]
      %v1384 = vld [vmem:[%s2 + $0xa8] sm:$0xff]
      %v1385 = vld [vmem:[%s2 + $0xb0] sm:$0xff]
      %v1386 = vld [vmem:[%s2 + $0xb8] sm:$0xff]
      %v1387 = vld [vmem:[%s2 + $0xc0] sm:$0xff]
      %v1388 = vld [vmem:[%s2 + $0xc8] sm:$0xff]
      %v1389 = vld [vmem:[%s2 + $0xd0] sm:$0xff]
      %v1390 = vld [vmem:[%s2 + $0xd8] sm:$0xff]
      %v1391 = vld [vmem:[%s2 + $0xe0] sm:$0xff]
      %v1392 = vld [vmem:[%s2 + $0xe8] sm:$0xff]
      %v1393 = vld [vmem:[%s2 + $0xf0] sm:$0xff]
      %v1394 = vld [vmem:[%s2 + $0xf8] sm:$0xff]
      %v1395 = vld [vmem:[%s3] sm:$0x1]
      %v1397 = vlaneseq
      %v1398 = vshrl.u32 %v1397, 7
      %v1399 = vsub.s32 0, %v1398
      %v1400 = vrot.slane %v1395, %v1399
      %1402 = vmatprep.subr.mxu0 0.0
      %1403 = vmatpush1.msra.mxu0 %v1378
      %1404 = vmatprep.subr.mxu0 0.0
      %1405 = vmatpush1.msra.mxu0 %v1377
      %1406 = vmatprep.subr.mxu0 0.0
      %1407 = vmatpush1.msra.mxu0 %v1376
      %1408 = vmatprep.subr.mxu0 0.0
      %1409 = vmatpush1.msra.mxu0 %v1375
      %1410 = vmatprep.subr.mxu0 0.0
      %1411 = vmatpush1.msra.mxu0 %v1374
      %1412 = vmatprep.subr.mxu0 0.0
      %1413 = vmatpush1.msra.mxu0 %v1373
      %1414 = vmatprep.subr.mxu0 0.0
      %1415 = vmatpush1.msra.mxu0 %v1372
      %1416 = vmatprep.subr.mxu0 0.0
      %1417 = vmatpush1.msra.mxu0 %v1371
      %1418 = vmatprep.subr.mxu0 0.0
      %1419 = vmatpush1.msra.mxu0 %v1370
      %1420 = vmatprep.subr.mxu0 0.0
      %1421 = vmatpush1.msra.mxu0 %v1369
      %1422 = vmatprep.subr.mxu0 0.0
      %1423 = vmatpush1.msra.mxu0 %v1368
      %1424 = vmatprep.subr.mxu0 0.0
      %1425 = vmatpush1.msra.mxu0 %v1367
      %1426 = vmatprep.subr.mxu0 0.0
      %1427 = vmatpush1.msra.mxu0 %v1366
      %1428 = vmatprep.subr.mxu0 0.0
      %1429 = vmatpush1.msra.mxu0 %v1365
      %1430 = vmatprep.subr.mxu0 0.0
      %1431 = vmatpush1.msra.mxu0 %v1364
      %1432 = vmatprep.subr.mxu0 0.0
      %1433 = vmatpush1.msra.mxu0 %v1363
      %1434 = vmatprep.subr.mxu0 0.0
      %1435 = vmatpush2.msra.mxu0 %v1394
      %1436 = vmatprep.subr.mxu0 0.0
      %1437 = vmatpush2.msra.mxu0 %v1393
      %1438 = vmatprep.subr.mxu0 0.0
      %1439 = vmatpush2.msra.mxu0 %v1392
      %1440 = vmatprep.subr.mxu0 0.0
      %1441 = vmatpush2.msra.mxu0 %v1391
      %1442 = vmatprep.subr.mxu0 0.0
      %1443 = vmatpush2.msra.mxu0 %v1390
      %1444 = vmatprep.subr.mxu0 0.0
      %1445 = vmatpush2.msra.mxu0 %v1389
      %1446 = vmatprep.subr.mxu0 0.0
      %1447 = vmatpush2.msra.mxu0 %v1388
      %1448 = vmatprep.subr.mxu0 0.0
      %1449 = vmatpush2.msra.mxu0 %v1387
      %1450 = vmatprep.subr.mxu0 0.0
      %1451 = vmatpush2.msra.mxu0 %v1386
      %1452 = vmatprep.subr.mxu0 0.0
      %1453 = vmatpush2.msra.mxu0 %v1385
      %1454 = vmatprep.subr.mxu0 0.0
      %1455 = vmatpush2.msra.mxu0 %v1384
      %1456 = vmatprep.subr.mxu0 0.0
      %1457 = vmatpush2.msra.mxu0 %v1383
      %1458 = vmatprep.subr.mxu0 0.0
      %1459 = vmatpush2.msra.mxu0 %v1382
      %1460 = vmatprep.subr.mxu0 0.0
      %1461 = vmatpush2.msra.mxu0 %v1381
      %1462 = vmatprep.subr.mxu0 0.0
      %1463 = vmatpush2.msra.mxu0 %v1380
      %1464 = vmatprep.subr.mxu0 0.0
      %1465 = vmatpush2.msra.mxu0 %v1379
      %1466 = vmatprep.mubr.f32.mxu0 %v1355
      %1467 = vmatmul.mubr.f32.gmra.mxu0 %v1347
      %v1468 = vpop.f32.mrf.mxu0
      %v1469 = vadd.f32 %v1400, %v1468
      %v1470 = vpop.f32.mrf.mxu0
      %1471 = vmatprep.mubr.f32.mxu0 %v1356
      %1472 = vmatmul.mubr.f32.gmra.mxu0 %v1348
      %v1473 = vpop.f32.mrf.mxu0
      %v1474 = vadd.f32 %v1400, %v1473
      %v1475 = vpop.f32.mrf.mxu0
      %1476 = vmatprep.mubr.f32.mxu0 %v1357
      %1477 = vmatmul.mubr.f32.gmra.mxu0 %v1349
      %v1478 = vpop.f32.mrf.mxu0
      %v1479 = vadd.f32 %v1400, %v1478
      %v1480 = vpop.f32.mrf.mxu0
      %1481 = vmatprep.mubr.f32.mxu0 %v1358
      %1482 = vmatmul.mubr.f32.gmra.mxu0 %v1350
      %v1483 = vpop.f32.mrf.mxu0
      %v1484 = vadd.f32 %v1400, %v1483
      %v1485 = vpop.f32.mrf.mxu0
      %1486 = vmatprep.mubr.f32.mxu0 %v1359
      %1487 = vmatmul.mubr.f32.gmra.mxu0 %v1351
      %v1488 = vpop.f32.mrf.mxu0
      %v1489 = vadd.f32 %v1400, %v1488
      %v1490 = vpop.f32.mrf.mxu0
      %1491 = vmatprep.mubr.f32.mxu0 %v1360
      %1492 = vmatmul.mubr.f32.gmra.mxu0 %v1352
      %v1493 = vpop.f32.mrf.mxu0
      %v1494 = vadd.f32 %v1400, %v1493
      %v1495 = vpop.f32.mrf.mxu0
      %1496 = vmatprep.mubr.f32.mxu0 %v1361
      %1497 = vmatmul.mubr.f32.gmra.mxu0 %v1353
      %v1498 = vpop.f32.mrf.mxu0
      %v1499 = vadd.f32 %v1400, %v1498
      %v1500 = vpop.f32.mrf.mxu0
      %1501 = vmatprep.mubr.f32.mxu0 %v1362
      %1502 = vmatmul.mubr.f32.gmra.mxu0 %v1354
      %v1503 = vpop.f32.mrf.mxu0
      %v1504 = vadd.f32 %v1400, %v1503
      %v1505 = vpop.f32.mrf.mxu0
      %1506 = vdwg.mxu0
      %v1507 = vld [vmem:[%s218] sm:$0xff]
      %v1508 = vld [vmem:[%s218 + $0x8] sm:$0xff]
      %v1509 = vld [vmem:[%s218 + $0x10] sm:$0xff]
      %v1510 = vld [vmem:[%s218 + $0x18] sm:$0xff]
      %v1511 = vld [vmem:[%s218 + $0x20] sm:$0xff]
      %v1512 = vld [vmem:[%s218 + $0x28] sm:$0xff]
      %v1513 = vld [vmem:[%s218 + $0x30] sm:$0xff]
      %v1514 = vld [vmem:[%s218 + $0x38] sm:$0xff]
      %v1515 = vadd.f32 %v1469, %v1507
      %v1516 = vadd.f32 %v1474, %v1508
      %v1517 = vadd.f32 %v1479, %v1509
      %v1518 = vadd.f32 %v1484, %v1510
      %v1519 = vadd.f32 %v1489, %v1511
      %v1520 = vadd.f32 %v1494, %v1512
      %v1521 = vadd.f32 %v1499, %v1513
      %v1522 = vadd.f32 %v1504, %v1514
      %1523 = vst [vmem:[%s224] sm:$0xff] %v1515
      %1524 = vst [vmem:[%s224 + $0x8] sm:$0xff] %v1516
      %1525 = vst [vmem:[%s224 + $0x10] sm:$0xff] %v1517
      %1526 = vst [vmem:[%s224 + $0x18] sm:$0xff] %v1518
      %1527 = vst [vmem:[%s224 + $0x20] sm:$0xff] %v1519
      %1528 = vst [vmem:[%s224 + $0x28] sm:$0xff] %v1520
      %1529 = vst [vmem:[%s224 + $0x30] sm:$0xff] %v1521
      %1530 = vst [vmem:[%s224 + $0x38] sm:$0xff] %v1522
      %s1531 = smul.u32 8, %s15
      %p1532 = scmp.lt.s32.totalorder %s1531, 15
      %s1533 = scalar_select %p1532, %s1531, 15
      %s1534 = smul.addr %s1533, 8
      %s1535 = scalar_lea.vmem %s4, %s1534
      // Predicated region
      $region37: #{transformer_block_pallas.11} parent=35 // pred_check
        %p1536 = pneg %p127
      $region38: #{transformer_block_pallas.11} parent=35 // pred_check_branch
        %1538 = sbr.rel (%p1536) target = $region40
      $region39: #{transformer_block_pallas.11} parent=35 // pred_region
        %s1539 = smul.u32 8, %s15
      $region40: #{transformer_block_pallas.11} parent=35 // pred_fallthru
        _
    $region36: #{transformer_block_pallas.11} parent=5 // pred_fallthru
      _
    %p1540 = scmp.le.s32.totalorder 2, %s10
    // Predicated region
    $region41: #{transformer_block_pallas.11} parent=5 // pred_check
      %p1541 = pneg %p1540
    $region42: #{transformer_block_pallas.11} parent=5 // pred_check_branch
      %1543 = sbr.rel (%p1541) target = $region44
    $region43: #{transformer_block_pallas.11} parent=5 // pred_region
      %s1544 = ssub.s32 %s10, 2
      // Predicated region
      $region45: #{transformer_block_pallas.11} parent=43 // pred_check
        %p1545 = pneg %p133
      $region46: #{transformer_block_pallas.11} parent=43 // pred_check_branch
        %1547 = sbr.rel (%p1545) target = $region48
      $region47: #{transformer_block_pallas.11} parent=43 // pred_region
        %s1548 = smul.u32 8, %s16
        %p1549 = scmp.lt.s32.totalorder %s1548, 15
        %s1550 = scalar_select %p1549, %s1548, 15
        %s1551 = smul.addr %s1550, 8
        %s1552 = scalar_lea.vmem %s4, %s1551
      $region48: #{transformer_block_pallas.11} parent=43 // pred_fallthru
        _
    $region44: #{transformer_block_pallas.11} parent=5 // pred_fallthru
      _
  $region6: #{transformer_block_pallas.11} parent=0 // loop_footer
    %s14 = sadd.s32 1, %s10
  $region7: #{transformer_block_pallas.11} parent=0 // loop_footer_branch
    %9 = sbr.rel target = $region3
  $region8: #{transformer_block_pallas.11} parent=0 // loop_exit
    _

</llo_original>
